<compile_context>
chip_gen: v5e
topology: v5e:2x2
jax: 0.10.0
libtpu: 0.0.40
codegen_flags: <defaults>
</compile_context>

<pallas_src>
import numpy as np
import jax
import jax.numpy as jnp
from jax import lax
from jax.experimental import pallas as pl
from jax.experimental.pallas import tpu as pltpu


LANE = 128  # batch-tile width (lane axis)


def _round_up(x, m):
    return (x + m - 1) // m * m


def _choose_time_chunk(S):
    """Pick the per-grid-step time chunk Ts (and the padded sequence length)."""
    if S >= 64:
        ts = 32
    elif S >= 16:
        ts = 16
    else:
        ts = 8
    return _round_up(S, ts), ts


# ----------------------------- fused Pallas kernel -----------------------------

def sequence_label_kernel(x_ref, w_ref, b_ref, start_ref, end_ref, trans_ref,
                          tags_ref, mask_ref,
                          pred_ref, llh_ref,
                          num_sc, alpha_sc, score_sc, prevtag_sc,
                          lasttag_sc, seqlen_sc, hist_sc):
    """One grid step = one (batch_tile, time_chunk of Ts steps).

    x_ref:     (TB, Ts, H)   activations for this chunk / batch tile (batch-first, no transpose)
    w_ref:     (H, T)        linear weight (transposed)
    b/start/end: (T, 1);  trans: (T, T)  indexed [prev, cur]
    tags_ref, mask_ref: (Ts, TB) int32, time-major
    pred_ref:  (S_pad, TB) int32  time-major decoded tags (written at the last chunk)
    llh_ref:   (1, TB) f32        per-sequence log-likelihood (written at the last chunk)
    scratch:   CRF state in the (T, TB) batch-on-lanes layout + (S_pad, T, TB) backpointers
    """
    ic = pl.program_id(1)
    n_chunks = pl.num_programs(1)
    S_pad = pred_ref.shape[0]
    T, TB = alpha_sc.shape
    Ts = tags_ref.shape[0]

    w = w_ref[...]                                   # (H, T)
    b = b_ref[...]                                   # (T, 1)
    start = start_ref[...]                           # (T, 1)
    end = end_ref[...]                               # (T, 1)
    trans = trans_ref[...]                           # (T, T)  [prev, cur]
    trans_t = trans.T                                # (T, T)  [cur, prev]  (MXU one-hot gather)

    tags_c = tags_ref[...]                           # (Ts, TB) int32
    mask_c = mask_ref[...]                           # (Ts, TB) int32

    # hoisted iotas (JAX does not CSE broadcast_in_dim -> build once per chunk)
    tag_iota = lax.broadcasted_iota(jnp.int32, (T, TB), 0)
    prev_iota = lax.broadcasted_iota(jnp.int32, (T, T, TB), 0)

    def read_state():
        return (num_sc[...], alpha_sc[...], score_sc[...],
                prevtag_sc[...], lasttag_sc[...], seqlen_sc[...])

    def write_state(st):
        num, alpha, score, prevtag, lasttag, seqlen = st
        num_sc[...] = num
        alpha_sc[...] = alpha
        score_sc[...] = score
        prevtag_sc[...] = prevtag
        lasttag_sc[...] = lasttag
        seqlen_sc[...] = seqlen

    def step(st, e_t, tag_t, mask_t, gt):
        """One CRF timestep (global t >= 1), value-carried; writes backpointers to VMEM."""
        num, alpha, score, prevtag, lasttag, seqlen = st
        maskf = mask_t.astype(jnp.float32)                       # (1, TB)
        oh_cur = (tag_iota == tag_t).astype(jnp.float32)         # (T, TB)
        oh_prev = (tag_iota == prevtag).astype(jnp.float32)      # (T, TB)

        # gold-path numerator: trans[tag_{t-1}, tag_t] gathered on the MXU + emission at tag_t
        trans_sel = jnp.dot(trans_t, oh_prev,
                            preferred_element_type=jnp.float32)  # (T, TB)
        step_sc = jnp.sum(oh_cur * (trans_sel + e_t), axis=0, keepdims=True)
        num = num + step_sc * maskf

        # log-partition (forward): logsumexp over previous tag; e_t hoisted out of the 3-D tensor
        nxt = alpha[:, None, :] + trans[:, :, None]              # (P, C, TB)
        m = jnp.max(nxt, axis=0)                                 # (C, TB)
        lse = m + jnp.log(jnp.sum(jnp.exp(nxt - m[None]), axis=0)) + e_t
        alpha = jnp.where(maskf > 0, lse, alpha)

        # Viterbi: max over previous tag, first-argmax backpointers into VMEM scratch
        vnxt = score[:, None, :] + trans[:, :, None]             # (P, C, TB)
        vmax = jnp.max(vnxt, axis=0)                             # (C, TB)
        bp = jnp.min(jnp.where(vnxt == vmax[None], prev_iota, T), axis=0)
        hist_sc[gt] = bp.astype(hist_sc.dtype)
        score = jnp.where(maskf > 0, vmax + e_t, score)

        # bookkeeping for the end transition / backtrack
        prevtag = tag_t
        lasttag = jnp.where(mask_t > 0, tag_t, lasttag)
        seqlen = seqlen + mask_t
        return (num, alpha, score, prevtag, lasttag, seqlen)

    state = None
    for t in range(Ts):                                          # static unroll, Ts <= 32
        gt = ic * Ts + t

        # emission for this timestep in (T, TB) batch-on-lanes layout
        x_t = x_ref[:, t, :]                                     # (TB, H)
        e_t = jnp.dot(x_t, w, preferred_element_type=jnp.float32).T + b   # (T, TB)

        tag_t = tags_c[t:t + 1, :]                               # (1, TB)
        mask_t = mask_c[t:t + 1, :]                              # (1, TB)

        if t == 0:
            @pl.when(ic == 0)
            def _init():
                oh0 = (tag_iota == tag_t).astype(jnp.float32)
                first = start + e_t                              # (T, TB)
                num_sc[...] = jnp.sum(oh0 * first, axis=0, keepdims=True)
                alpha_sc[...] = first
                score_sc[...] = first
                prevtag_sc[...] = tag_t
                lasttag_sc[...] = tag_t
                seqlen_sc[...] = mask_t

            @pl.when(ic > 0)
            def _carry():
                write_state(step(read_state(), e_t, tag_t, mask_t, gt))

            state = read_state()
        else:
            state = step(state, e_t, tag_t, mask_t, gt)

    write_state(state)

    # ---------------- last chunk: finalize loss + Viterbi backtrack ----------------
    @pl.when(ic == n_chunks - 1)
    def _finalize():
        num, alpha, score, _prevtag, lasttag, seqlen = state

        # numerator: end transition at the last valid tag
        oh_last = (tag_iota == lasttag).astype(jnp.float32)
        num_f = num + jnp.sum(oh_last * end, axis=0, keepdims=True)        # (1, TB)

        # denominator: logsumexp(alpha + end)
        a_end = alpha + end
        m = jnp.max(a_end, axis=0, keepdims=True)
        denom = m + jnp.log(jnp.sum(jnp.exp(a_end - m), axis=0, keepdims=True))
        llh_ref[...] = num_f - denom

        # Viterbi: best final tag (first-argmax tie break), then walk backpointers
        sc_end = score + end
        smax = jnp.max(sc_end, axis=0, keepdims=True)
        best_last = jnp.min(jnp.where(sc_end == smax, tag_iota, T),
                            axis=0, keepdims=True).astype(jnp.int32)       # (1, TB)
        seq_ends = seqlen - 1                                              # (1, TB)

        cur0 = jnp.where(seq_ends == S_pad - 1, best_last, 0)
        pred_ref[pl.ds(S_pad - 1, 1), :] = cur0

        def backtrack(j, cur):
            t = S_pad - 2 - j
            hist = hist_sc[t + 1].astype(jnp.int32)                        # (T, TB)
            from_hist = jnp.sum(jnp.where(tag_iota == cur, hist, 0),
                                axis=0, keepdims=True)                     # (1, TB)
            cur_new = jnp.where(seq_ends == t, best_last,
                                jnp.where(seq_ends > t, from_hist, 0))
            pred_ref[pl.ds(t, 1), :] = cur_new
            return cur_new

        final = lax.fori_loop(0, S_pad - 1, backtrack, cur0)
        pred_ref[pl.ds(0, 1), :] = final   # idempotent re-write; keeps the loop result live


# ----------------------------- wrapper -----------------------------

@jax.jit
def sequence_label_forward(sequence_output, token_ids_arr, labels, params):
    """Mirrors SequenceLabel.forward: dropout (eval identity) -> Linear -> CRF decode + CRF NLL."""
    B, S, H = sequence_output.shape
    T = params['w'].shape[0]

    # mask = token_ids[0].permute(1, 0, 2)[2]
    mask = jnp.transpose(token_ids_arr, (1, 0, 2))[2].astype(jnp.int32)    # (B, S)
    labels_i = labels.astype(jnp.int32)

    # ---- padding: full 128-lane batch tiles, 8-aligned time chunks ----
    TB = LANE
    B_pad = _round_up(B, TB)
    nb = B_pad // TB
    S_pad, Ts = _choose_time_chunk(S)
    n_chunks = S_pad // Ts

    x = sequence_output
    if B_pad != B or S_pad != S:
        x = jnp.pad(x, ((0, B_pad - B), (0, S_pad - S), (0, 0)))
        mask = jnp.pad(mask, ((0, B_pad - B), (0, S_pad - S)))
        labels_i = jnp.pad(labels_i, ((0, B_pad - B), (0, S_pad - S)))

    # tiny int arrays go time-major so each chunk reads one contiguous (Ts, TB) block
    tags_tm = jnp.transpose(labels_i, (1, 0))                              # (S_pad, B_pad)
    mask_tm = jnp.transpose(mask, (1, 0))                                  # (S_pad, B_pad)

    # parameters (keep the activation streaming dtype; f32 accumulation on the MXU)
    w = params['w'].T.astype(sequence_output.dtype)                        # (H, T)
    b_col = params['b'].reshape(T, 1).astype(jnp.float32)
    start_col = params['start'].reshape(T, 1).astype(jnp.float32)
    end_col = params['end'].reshape(T, 1).astype(jnp.float32)
    trans = params['trans'].astype(jnp.float32)

    # backpointer dtype: int8 only pays off once T reaches the (32, 128) int8 native tile
    hist_dtype = jnp.int8 if 32 <= T <= 127 else jnp.int32

    # rough VMEM budget -> explicit limit (capped at 32 MiB: valid on v5e / v6e / v7x)
    xs = jnp.dtype(sequence_output.dtype).itemsize
    est = (2 * TB * Ts * max(_round_up(H, 128), 128) * xs                  # x double buffer
           + 4 * Ts * TB * 4                                               # tags + mask buffers
           + 2 * S_pad * TB * 4 + 2 * 8 * TB * 4                           # pred / llh buffers
           + S_pad * _round_up(T, 32) * TB * jnp.dtype(hist_dtype).itemsize  # backpointers
           + 8 * TB * 4 * 8                                                # small CRF state
           + 2 * _round_up(H, 8) * 128 * xs)                               # weight tile
    vmem_limit = int(min(max(2 * est, 16 * 2 ** 20), 32 * 2 ** 20))

    pred_tm, llh = pl.pallas_call(
        sequence_label_kernel,
        out_shape=(jax.ShapeDtypeStruct((S_pad, B_pad), jnp.int32),
                   jax.ShapeDtypeStruct((1, B_pad), jnp.float32)),
        grid_spec=pltpu.PrefetchScalarGridSpec(
            num_scalar_prefetch=0,
            grid=(nb, n_chunks),
            in_specs=[
                pl.BlockSpec((TB, Ts, H), lambda ib, ic: (ib, ic, 0)),     # x (time-chunked)
                pl.BlockSpec((H, T), lambda ib, ic: (0, 0)),               # w
                pl.BlockSpec((T, 1), lambda ib, ic: (0, 0)),               # b
                pl.BlockSpec((T, 1), lambda ib, ic: (0, 0)),               # start
                pl.BlockSpec((T, 1), lambda ib, ic: (0, 0)),               # end
                pl.BlockSpec((T, T), lambda ib, ic: (0, 0)),               # trans
                pl.BlockSpec((Ts, TB), lambda ib, ic: (ic, ib)),           # tags (time-major)
                pl.BlockSpec((Ts, TB), lambda ib, ic: (ic, ib)),           # mask (time-major)
            ],
            out_specs=[
                pl.BlockSpec((S_pad, TB), lambda ib, ic: (0, ib)),         # pred (2-D, lane-dense)
                pl.BlockSpec((1, TB), lambda ib, ic: (0, ib)),             # per-seq llh
            ],
            scratch_shapes=[
                pltpu.VMEM((1, TB), jnp.float32),        # gold-path score (numerator)
                pltpu.VMEM((T, TB), jnp.float32),        # alpha (forward / logsumexp)
                pltpu.VMEM((T, TB), jnp.float32),        # Viterbi score
                pltpu.VMEM((1, TB), jnp.int32),          # previous (raw) tag
                pltpu.VMEM((1, TB), jnp.int32),          # last valid tag
                pltpu.VMEM((1, TB), jnp.int32),          # running sequence length
                pltpu.VMEM((S_pad, T, TB), hist_dtype),  # Viterbi backpointers
            ]),
        compiler_params=pltpu.CompilerParams(
            dimension_semantics=("parallel", "arbitrary"),
            vmem_limit_bytes=vmem_limit),
    )(x, w, b_col, start_col, end_col, trans, tags_tm, mask_tm)

    pred = jnp.transpose(pred_tm, (1, 0))[:B, :S]                          # (B, S)
    loss = -jnp.sum(llh[:, :B])                                            # sum, then * -1
    return pred, loss


# ----------------------------- numpy reference (torchcrf semantics) -----------------------------

def reference_forward(x, token_ids_arr, labels, params):
    x = np.asarray(x, np.float32)
    mask = np.asarray(token_ids_arr).transpose(1, 0, 2)[2].astype(np.int64)    # (B, S)
    W = np.asarray(params['w'], np.float32)
    b = np.asarray(params['b'], np.float32)
    start = np.asarray(params['start'], np.float32)
    end = np.asarray(params['end'], np.float32)
    trans = np.asarray(params['trans'], np.float32)
    tags = np.asarray(labels, np.int64)

    logits = x @ W.T + b                                                       # (B, S, T)
    B, S, T = logits.shape
    ar = np.arange(B)

    # numerator
    num = start[tags[:, 0]] + logits[ar, 0, tags[:, 0]]
    for i in range(1, S):
        num = num + (trans[tags[:, i - 1], tags[:, i]] + logits[ar, i, tags[:, i]]) * mask[:, i]
    seq_ends = mask.sum(1) - 1
    num = num + end[tags[ar, seq_ends]]

    # denominator
    alpha = start[None, :] + logits[:, 0, :]
    for i in range(1, S):
        nxt = alpha[:, :, None] + trans[None] + logits[:, i, None, :]
        m = nxt.max(axis=1, keepdims=True)
        nxt = np.squeeze(m, 1) + np.log(np.exp(nxt - m).sum(axis=1))
        alpha = np.where(mask[:, i][:, None] > 0, nxt, alpha)
    alpha = alpha + end
    m = alpha.max(axis=1, keepdims=True)
    denom = np.squeeze(m, 1) + np.log(np.exp(alpha - m).sum(axis=1))
    loss = -float((num - denom).sum())

    # viterbi
    score = start[None, :] + logits[:, 0, :]
    history = []
    for i in range(1, S):
        nxt = score[:, :, None] + trans[None] + logits[:, i, None, :]
        history.append(nxt.argmax(axis=1))
        mval = nxt.max(axis=1)
        score = np.where(mask[:, i][:, None] > 0, mval, score)
    score = score + end
    pred = np.zeros((B, S), np.int32)
    for bi in range(B):
        L = int(seq_ends[bi])
        best = int(score[bi].argmax())
        pred[bi, L] = best
        for t in range(L - 1, -1, -1):
            best = int(history[t][bi, best])
            pred[bi, t] = best
    return pred, loss


# ----------------------------- main -----------------------------

if __name__ == "__main__":
    B, S, H, T = 2, 8, 32, 5   # batch, seq, hidden, num_tags (LABELS_NUM)

    key = jax.random.PRNGKey(0)
    k1, k2, k3, k4, k5, k6, k7, k8 = jax.random.split(key, 8)

    sequence_output = jax.random.normal(k1, (B, S, H), jnp.float32)
    pooled = jax.random.normal(k2, (B, H), jnp.float32)
    bert_outputs = (pooled, sequence_output)                 # module uses bert_outputs[1]

    lengths = jnp.array([S, 5], dtype=jnp.int32)             # contiguous-prefix attention mask
    pos = jnp.arange(S)[None, :]
    mask = (pos < lengths[:, None]).astype(jnp.int32)        # (B, S), mask[:, 0] == 1
    tok = jax.random.randint(k3, (B, S), 0, 1000, jnp.int32)
    seg = jnp.zeros((B, S), jnp.int32)
    token_ids_arr = jnp.stack([tok, seg, mask], axis=1)      # (B, 3, S); channel 2 is the mask
    token_ids = (token_ids_arr,)                             # module indexes token_ids[0]

    labels_inputs = jax.random.randint(k4, (B, S), 0, T, jnp.int32)

    params = {
        'w': jax.random.normal(k5, (T, H), jnp.float32) * 0.1,              # Linear weight (T, H)
        'b': jax.random.uniform(k6, (T,), jnp.float32, -0.1, 0.1),          # Linear bias
        'start': jax.random.uniform(k7, (T,), jnp.float32, -0.1, 0.1),      # CRF start_transitions
        'end': jax.random.uniform(k8, (T,), jnp.float32, -0.1, 0.1),        # CRF end_transitions
        'trans': jax.random.uniform(jax.random.PRNGKey(123), (T, T), jnp.float32, -0.1, 0.1),
    }

    seq_out = bert_outputs[1]
    pred, loss = sequence_label_forward(seq_out, token_ids[0], labels_inputs, params)
    jax.block_until_ready((pred, loss))

    ref_pred, ref_loss = reference_forward(seq_out, token_ids[0], labels_inputs, params)
    assert np.allclose(float(loss), ref_loss, rtol=1e-3, atol=1e-2), (float(loss), ref_loss)
    assert np.array_equal(np.asarray(pred), ref_pred), (np.asarray(pred), ref_pred)

    print("KERNEL_OK")
</pallas_src>

<mosaic_0001>
module attributes {stable_mosaic.version = 11 : i64} {
  func.func @sequence_label_kernel(%arg0: i32, %arg1: i32, %arg2: memref<128x8x32xf32, #tpu.memory_space<vmem>>, %arg3: memref<32x5xf32, #tpu.memory_space<vmem>>, %arg4: memref<5x1xf32, #tpu.memory_space<vmem>>, %arg5: memref<5x1xf32, #tpu.memory_space<vmem>>, %arg6: memref<5x1xf32, #tpu.memory_space<vmem>>, %arg7: memref<5x5xf32, #tpu.memory_space<vmem>>, %arg8: memref<8x128xi32, #tpu.memory_space<vmem>>, %arg9: memref<8x128xi32, #tpu.memory_space<vmem>>, %arg10: memref<8x128xi32, #tpu.memory_space<vmem>>, %arg11: memref<1x128xf32, #tpu.memory_space<vmem>>, %arg12: memref<1x128xf32, #tpu.memory_space<vmem>>, %arg13: memref<5x128xf32, #tpu.memory_space<vmem>>, %arg14: memref<5x128xf32, #tpu.memory_space<vmem>>, %arg15: memref<1x128xi32, #tpu.memory_space<vmem>>, %arg16: memref<1x128xi32, #tpu.memory_space<vmem>>, %arg17: memref<1x128xi32, #tpu.memory_space<vmem>>, %arg18: memref<8x5x128xi32, #tpu.memory_space<vmem>>) attributes {dimension_semantics = [#tpu.dimension_semantics<parallel>, #tpu.dimension_semantics<arbitrary>], iteration_bounds = array<i64: 1, 1>, scalar_prefetch = 0 : i64, scratch_operands = 7 : i64, tpu.core_type = #tpu.core_type<tc>, window_params = [{transform_indices = @transform_0, window_bounds = array<i64: 128, 8, 32>}, {pipeline_mode = #tpu.pipeline_mode<synchronous>, transform_indices = @transform_1, window_bounds = array<i64: 32, 5>}, {pipeline_mode = #tpu.pipeline_mode<synchronous>, transform_indices = @transform_2, window_bounds = array<i64: 5, 1>}, {pipeline_mode = #tpu.pipeline_mode<synchronous>, transform_indices = @transform_3, window_bounds = array<i64: 5, 1>}, {pipeline_mode = #tpu.pipeline_mode<synchronous>, transform_indices = @transform_4, window_bounds = array<i64: 5, 1>}, {pipeline_mode = #tpu.pipeline_mode<synchronous>, transform_indices = @transform_5, window_bounds = array<i64: 5, 5>}, {transform_indices = @transform_6, window_bounds = array<i64: 8, 128>}, {transform_indices = @transform_7, window_bounds = array<i64: 8, 128>}, {transform_indices = @transform_8, window_bounds = array<i64: 8, 128>}, {transform_indices = @transform_9, window_bounds = array<i64: 1, 128>}]} {
    %c0 = arith.constant 0 : index
    %c0_0 = arith.constant 0 : index
    %0 = vector.load %arg3[%c0, %c0_0] : memref<32x5xf32, #tpu.memory_space<vmem>>, vector<32x5xf32>
    %c0_1 = arith.constant 0 : index
    %c0_2 = arith.constant 0 : index
    %1 = vector.load %arg4[%c0_1, %c0_2] : memref<5x1xf32, #tpu.memory_space<vmem>>, vector<5x1xf32>
    %c0_3 = arith.constant 0 : index
    %c0_4 = arith.constant 0 : index
    %2 = vector.load %arg5[%c0_3, %c0_4] : memref<5x1xf32, #tpu.memory_space<vmem>>, vector<5x1xf32>
    %c0_5 = arith.constant 0 : index
    %c0_6 = arith.constant 0 : index
    %3 = vector.load %arg6[%c0_5, %c0_6] : memref<5x1xf32, #tpu.memory_space<vmem>>, vector<5x1xf32>
    %c0_7 = arith.constant 0 : index
    %c0_8 = arith.constant 0 : index
    %4 = vector.load %arg7[%c0_7, %c0_8] : memref<5x5xf32, #tpu.memory_space<vmem>>, vector<5x5xf32>
    %5 = tpu.transpose %4, [1, 0] : vector<5x5xf32> -> vector<5x5xf32>
    %c0_9 = arith.constant 0 : index
    %c0_10 = arith.constant 0 : index
    %6 = vector.load %arg8[%c0_9, %c0_10] : memref<8x128xi32, #tpu.memory_space<vmem>>, vector<8x128xi32>
    %c0_11 = arith.constant 0 : index
    %c0_12 = arith.constant 0 : index
    %7 = vector.load %arg9[%c0_11, %c0_12] : memref<8x128xi32, #tpu.memory_space<vmem>>, vector<8x128xi32>
    %8 = tpu.iota {dimensions = array<i32: 0>} : vector<5x128xi32>
    %9 = tpu.iota {dimensions = array<i32: 0>} : vector<5x5x128xi32>
    %c8_i32 = arith.constant 8 : i32
    %10 = arith.muli %arg1, %c8_i32 : i32
    %c0_i32 = arith.constant 0 : i32
    %11 = arith.addi %10, %c0_i32 : i32
    %c0_13 = arith.constant 0 : index
    %c0_14 = arith.constant 0 : index
    %c0_15 = arith.constant 0 : index
    %12 = vector.load %arg2[%c0_13, %c0_14, %c0_15] : memref<128x8x32xf32, #tpu.memory_space<vmem>>, vector<128x1x32xf32>
    %13 = vector.shape_cast %12 : vector<128x1x32xf32> to vector<128x32xf32>
    %cst = arith.constant dense<0.000000e+00> : vector<128x5xf32>
    %14 = tpu.matmul %13, %0, %cst {dimension_numbers = #tpu.dot_dimension_numbers<[1], [0], [0], [1], [0, 0, 1, 1], [], []>} : vector<128x32xf32>, vector<32x5xf32>, vector<128x5xf32> -> vector<128x5xf32>
    %15 = tpu.transpose %14, [1, 0] : vector<128x5xf32> -> vector<5x128xf32>
    %16 = vector.broadcast %1 : vector<5x1xf32> to vector<5x128xf32>
    %17 = arith.addf %15, %16 : vector<5x128xf32>
    %18 = vector.extract_strided_slice %6 {offsets = [0, 0], sizes = [1, 128], strides = [1, 1]} : vector<8x128xi32> to vector<1x128xi32>
    %19 = vector.extract_strided_slice %7 {offsets = [0, 0], sizes = [1, 128], strides = [1, 1]} : vector<8x128xi32> to vector<1x128xi32>
    %c0_i32_16 = arith.constant 0 : i32
    %20 = arith.cmpi eq, %arg1, %c0_i32_16 : i32
    %21 = arith.extui %20 : i1 to i32
    %c0_i32_17 = arith.constant 0 : i32
    %22 = arith.cmpi ne, %21, %c0_i32_17 : i32
    scf.if %22 {
      %538 = vector.broadcast %18 : vector<1x128xi32> to vector<5x128xi32>
      %539 = arith.cmpi eq, %8, %538 : vector<5x128xi32>
      %540 = arith.extui %539 : vector<5x128xi1> to vector<5x128xi32>
      %541 = arith.sitofp %540 : vector<5x128xi32> to vector<5x128xf32>
      %542 = vector.broadcast %2 : vector<5x1xf32> to vector<5x128xf32>
      %543 = arith.addf %542, %17 : vector<5x128xf32>
      %544 = arith.mulf %541, %543 : vector<5x128xf32>
      %cst_158 = arith.constant dense<0.000000e+00> : vector<128xf32>
      %545 = vector.multi_reduction <add>, %544, %cst_158 [0] : vector<5x128xf32> to vector<128xf32>
      %546 = vector.shape_cast %545 : vector<128xf32> to vector<1x128xf32>
      %c0_159 = arith.constant 0 : index
      %c0_160 = arith.constant 0 : index
      %547 = vector.load %arg12[%c0_159, %c0_160] : memref<1x128xf32, #tpu.memory_space<vmem>>, vector<1x128xf32>
      tpu.vector_store %arg12[%c0_159, %c0_160], %546 {strides = array<i32>} : memref<1x128xf32, #tpu.memory_space<vmem>>, vector<1x128xf32>,
      %c0_161 = arith.constant 0 : index
      %c0_162 = arith.constant 0 : index
      %548 = vector.load %arg13[%c0_161, %c0_162] : memref<5x128xf32, #tpu.memory_space<vmem>>, vector<5x128xf32>
      tpu.vector_store %arg13[%c0_161, %c0_162], %543 {strides = array<i32>} : memref<5x128xf32, #tpu.memory_space<vmem>>, vector<5x128xf32>,
      %c0_163 = arith.constant 0 : index
      %c0_164 = arith.constant 0 : index
      %549 = vector.load %arg14[%c0_163, %c0_164] : memref<5x128xf32, #tpu.memory_space<vmem>>, vector<5x128xf32>
      tpu.vector_store %arg14[%c0_163, %c0_164], %543 {strides = array<i32>} : memref<5x128xf32, #tpu.memory_space<vmem>>, vector<5x128xf32>,
      %c0_165 = arith.constant 0 : index
      %c0_166 = arith.constant 0 : index
      %550 = vector.load %arg15[%c0_165, %c0_166] : memref<1x128xi32, #tpu.memory_space<vmem>>, vector<1x128xi32>
      tpu.vector_store %arg15[%c0_165, %c0_166], %18 {strides = array<i32>} : memref<1x128xi32, #tpu.memory_space<vmem>>, vector<1x128xi32>,
      %c0_167 = arith.constant 0 : index
      %c0_168 = arith.constant 0 : index
      %551 = vector.load %arg16[%c0_167, %c0_168] : memref<1x128xi32, #tpu.memory_space<vmem>>, vector<1x128xi32>
      tpu.vector_store %arg16[%c0_167, %c0_168], %18 {strides = array<i32>} : memref<1x128xi32, #tpu.memory_space<vmem>>, vector<1x128xi32>,
      %c0_169 = arith.constant 0 : index
      %c0_170 = arith.constant 0 : index
      %552 = vector.load %arg17[%c0_169, %c0_170] : memref<1x128xi32, #tpu.memory_space<vmem>>, vector<1x128xi32>
      tpu.vector_store %arg17[%c0_169, %c0_170], %19 {strides = array<i32>} : memref<1x128xi32, #tpu.memory_space<vmem>>, vector<1x128xi32>,
    } else {
    }
    %c0_i32_18 = arith.constant 0 : i32
    %23 = arith.cmpi sgt, %arg1, %c0_i32_18 : i32
    %24 = arith.extui %23 : i1 to i32
    %c0_i32_19 = arith.constant 0 : i32
    %25 = arith.cmpi ne, %24, %c0_i32_19 : i32
    scf.if %25 {
      %c0_158 = arith.constant 0 : index
      %c0_159 = arith.constant 0 : index
      %538 = vector.load %arg12[%c0_158, %c0_159] : memref<1x128xf32, #tpu.memory_space<vmem>>, vector<1x128xf32>
      %c0_160 = arith.constant 0 : index
      %c0_161 = arith.constant 0 : index
      %539 = vector.load %arg13[%c0_160, %c0_161] : memref<5x128xf32, #tpu.memory_space<vmem>>, vector<5x128xf32>
      %c0_162 = arith.constant 0 : index
      %c0_163 = arith.constant 0 : index
      %540 = vector.load %arg14[%c0_162, %c0_163] : memref<5x128xf32, #tpu.memory_space<vmem>>, vector<5x128xf32>
      %c0_164 = arith.constant 0 : index
      %c0_165 = arith.constant 0 : index
      %541 = vector.load %arg15[%c0_164, %c0_165] : memref<1x128xi32, #tpu.memory_space<vmem>>, vector<1x128xi32>
      %c0_166 = arith.constant 0 : index
      %c0_167 = arith.constant 0 : index
      %542 = vector.load %arg16[%c0_166, %c0_167] : memref<1x128xi32, #tpu.memory_space<vmem>>, vector<1x128xi32>
      %c0_168 = arith.constant 0 : index
      %c0_169 = arith.constant 0 : index
      %543 = vector.load %arg17[%c0_168, %c0_169] : memref<1x128xi32, #tpu.memory_space<vmem>>, vector<1x128xi32>
      %544 = arith.sitofp %19 : vector<1x128xi32> to vector<1x128xf32>
      %545 = vector.broadcast %18 : vector<1x128xi32> to vector<5x128xi32>
      %546 = arith.cmpi eq, %8, %545 : vector<5x128xi32>
      %547 = arith.extui %546 : vector<5x128xi1> to vector<5x128xi32>
      %548 = arith.sitofp %547 : vector<5x128xi32> to vector<5x128xf32>
      %549 = vector.broadcast %541 : vector<1x128xi32> to vector<5x128xi32>
      %550 = arith.cmpi eq, %8, %549 : vector<5x128xi32>
      %551 = arith.extui %550 : vector<5x128xi1> to vector<5x128xi32>
      %552 = arith.sitofp %551 : vector<5x128xi32> to vector<5x128xf32>
      %cst_170 = arith.constant dense<0.000000e+00> : vector<5x128xf32>
      %553 = tpu.matmul %5, %552, %cst_170 {dimension_numbers = #tpu.dot_dimension_numbers<[1], [0], [0], [1], [0, 0, 1, 1], [], []>} : vector<5x5xf32>, vector<5x128xf32>, vector<5x128xf32> -> vector<5x128xf32>
      %554 = arith.addf %553, %17 : vector<5x128xf32>
      %555 = arith.mulf %548, %554 : vector<5x128xf32>
      %cst_171 = arith.constant dense<0.000000e+00> : vector<128xf32>
      %556 = vector.multi_reduction <add>, %555, %cst_171 [0] : vector<5x128xf32> to vector<128xf32>
      %557 = vector.shape_cast %556 : vector<128xf32> to vector<1x128xf32>
      %558 = arith.mulf %557, %544 : vector<1x128xf32>
      %559 = arith.addf %538, %558 : vector<1x128xf32>
      %560 = vector.shape_cast %539 : vector<5x128xf32> to vector<5x1x128xf32>
      %561 = vector.shape_cast %4 : vector<5x5xf32> to vector<5x5x1xf32>
      %562 = vector.broadcast %560 : vector<5x1x128xf32> to vector<5x5x128xf32>
      %563 = vector.broadcast %561 : vector<5x5x1xf32> to vector<5x5x128xf32>
      %564 = arith.addf %562, %563 : vector<5x5x128xf32>
      %cst_172 = arith.constant dense<0xFF800000> : vector<5x128xf32>
      %565 = vector.multi_reduction <maximumf>, %564, %cst_172 [0] : vector<5x5x128xf32> to vector<5x128xf32>
      %566 = vector.shape_cast %565 : vector<5x128xf32> to vector<1x5x128xf32>
      %567 = vector.broadcast %566 : vector<1x5x128xf32> to vector<5x5x128xf32>
      %568 = arith.subf %564, %567 : vector<5x5x128xf32>
      %569 = math.exp %568 : vector<5x5x128xf32>
      %cst_173 = arith.constant dense<0.000000e+00> : vector<5x128xf32>
      %570 = vector.multi_reduction <add>, %569, %cst_173 [0] : vector<5x5x128xf32> to vector<5x128xf32>
      %571 = math.log %570 : vector<5x128xf32>
      %572 = arith.addf %565, %571 : vector<5x128xf32>
      %573 = arith.addf %572, %17 : vector<5x128xf32>
      %cst_174 = arith.constant 0.000000e+00 : f32
      %574 = vector.broadcast %cst_174 : f32 to vector<1x128xf32>
      %575 = arith.cmpf ogt, %544, %574 : vector<1x128xf32>
      %576 = vector.shape_cast %575 : vector<1x128xi1> to vector<1x128xi1>
      %577 = vector.broadcast %576 : vector<1x128xi1> to vector<5x128xi1>
      %578 = arith.select %577, %573, %539 : vector<5x128xi1>, vector<5x128xf32>
      %579 = vector.shape_cast %540 : vector<5x128xf32> to vector<5x1x128xf32>
      %580 = vector.shape_cast %4 : vector<5x5xf32> to vector<5x5x1xf32>
      %581 = vector.broadcast %579 : vector<5x1x128xf32> to vector<5x5x128xf32>
      %582 = vector.broadcast %580 : vector<5x5x1xf32> to vector<5x5x128xf32>
      %583 = arith.addf %581, %582 : vector<5x5x128xf32>
      %cst_175 = arith.constant dense<0xFF800000> : vector<5x128xf32>
      %584 = vector.multi_reduction <maximumf>, %583, %cst_175 [0] : vector<5x5x128xf32> to vector<5x128xf32>
      %585 = vector.shape_cast %584 : vector<5x128xf32> to vector<1x5x128xf32>
      %586 = vector.broadcast %585 : vector<1x5x128xf32> to vector<5x5x128xf32>
      %587 = arith.cmpf oeq, %583, %586 : vector<5x5x128xf32>
      %c5_i32_176 = arith.constant 5 : i32
      %588 = vector.broadcast %c5_i32_176 : i32 to vector<5x5x128xi32>
      %589 = arith.select %587, %9, %588 : vector<5x5x128xi1>, vector<5x5x128xi32>
      %cst_177 = arith.constant dense<2147483647> : vector<5x128xi32>
      %590 = vector.multi_reduction <minsi>, %589, %cst_177 [0] : vector<5x5x128xi32> to vector<5x128xi32>
      %591 = arith.index_cast %11 : i32 to index
      %c0_178 = arith.constant 0 : index
      %c0_179 = arith.constant 0 : index
      %592 = vector.load %arg18[%591, %c0_178, %c0_179] : memref<8x5x128xi32, #tpu.memory_space<vmem>>, vector<1x5x128xi32>
      %593 = vector.shape_cast %592 : vector<1x5x128xi32> to vector<5x128xi32>
      %594 = vector.shape_cast %590 : vector<5x128xi32> to vector<1x5x128xi32>
      tpu.vector_store %arg18[%591, %c0_178, %c0_179], %594 {strides = array<i32>} : memref<8x5x128xi32, #tpu.memory_space<vmem>>, vector<1x5x128xi32>,
      %cst_180 = arith.constant 0.000000e+00 : f32
      %595 = vector.broadcast %cst_180 : f32 to vector<1x128xf32>
      %596 = arith.cmpf ogt, %544, %595 : vector<1x128xf32>
      %597 = arith.addf %584, %17 : vector<5x128xf32>
      %598 = vector.shape_cast %596 : vector<1x128xi1> to vector<1x128xi1>
      %599 = vector.broadcast %598 : vector<1x128xi1> to vector<5x128xi1>
      %600 = arith.select %599, %597, %540 : vector<5x128xi1>, vector<5x128xf32>
      %c0_i32_181 = arith.constant 0 : i32
      %601 = vector.broadcast %c0_i32_181 : i32 to vector<1x128xi32>
      %602 = arith.cmpi sgt, %19, %601 : vector<1x128xi32>
      %603 = arith.select %602, %18, %542 : vector<1x128xi1>, vector<1x128xi32>
      %604 = arith.addi %543, %19 : vector<1x128xi32>
      %c0_182 = arith.constant 0 : index
      %c0_183 = arith.constant 0 : index
      %605 = vector.load %arg12[%c0_182, %c0_183] : memref<1x128xf32, #tpu.memory_space<vmem>>, vector<1x128xf32>
      tpu.vector_store %arg12[%c0_182, %c0_183], %559 {strides = array<i32>} : memref<1x128xf32, #tpu.memory_space<vmem>>, vector<1x128xf32>,
      %c0_184 = arith.constant 0 : index
      %c0_185 = arith.constant 0 : index
      %606 = vector.load %arg13[%c0_184, %c0_185] : memref<5x128xf32, #tpu.memory_space<vmem>>, vector<5x128xf32>
      tpu.vector_store %arg13[%c0_184, %c0_185], %578 {strides = array<i32>} : memref<5x128xf32, #tpu.memory_space<vmem>>, vector<5x128xf32>,
      %c0_186 = arith.constant 0 : index
      %c0_187 = arith.constant 0 : index
      %607 = vector.load %arg14[%c0_186, %c0_187] : memref<5x128xf32, #tpu.memory_space<vmem>>, vector<5x128xf32>
      tpu.vector_store %arg14[%c0_186, %c0_187], %600 {strides = array<i32>} : memref<5x128xf32, #tpu.memory_space<vmem>>, vector<5x128xf32>,
      %c0_188 = arith.constant 0 : index
      %c0_189 = arith.constant 0 : index
      %608 = vector.load %arg15[%c0_188, %c0_189] : memref<1x128xi32, #tpu.memory_space<vmem>>, vector<1x128xi32>
      tpu.vector_store %arg15[%c0_188, %c0_189], %18 {strides = array<i32>} : memref<1x128xi32, #tpu.memory_space<vmem>>, vector<1x128xi32>,
      %c0_190 = arith.constant 0 : index
      %c0_191 = arith.constant 0 : index
      %609 = vector.load %arg16[%c0_190, %c0_191] : memref<1x128xi32, #tpu.memory_space<vmem>>, vector<1x128xi32>
      tpu.vector_store %arg16[%c0_190, %c0_191], %603 {strides = array<i32>} : memref<1x128xi32, #tpu.memory_space<vmem>>, vector<1x128xi32>,
      %c0_192 = arith.constant 0 : index
      %c0_193 = arith.constant 0 : index
      %610 = vector.load %arg17[%c0_192, %c0_193] : memref<1x128xi32, #tpu.memory_space<vmem>>, vector<1x128xi32>
      tpu.vector_store %arg17[%c0_192, %c0_193], %604 {strides = array<i32>} : memref<1x128xi32, #tpu.memory_space<vmem>>, vector<1x128xi32>,
    } else {
    }
    %c0_20 = arith.constant 0 : index
    %c0_21 = arith.constant 0 : index
    %26 = vector.load %arg12[%c0_20, %c0_21] : memref<1x128xf32, #tpu.memory_space<vmem>>, vector<1x128xf32>
    %c0_22 = arith.constant 0 : index
    %c0_23 = arith.constant 0 : index
    %27 = vector.load %arg13[%c0_22, %c0_23] : memref<5x128xf32, #tpu.memory_space<vmem>>, vector<5x128xf32>
    %c0_24 = arith.constant 0 : index
    %c0_25 = arith.constant 0 : index
    %28 = vector.load %arg14[%c0_24, %c0_25] : memref<5x128xf32, #tpu.memory_space<vmem>>, vector<5x128xf32>
    %c0_26 = arith.constant 0 : index
    %c0_27 = arith.constant 0 : index
    %29 = vector.load %arg15[%c0_26, %c0_27] : memref<1x128xi32, #tpu.memory_space<vmem>>, vector<1x128xi32>
    %c0_28 = arith.constant 0 : index
    %c0_29 = arith.constant 0 : index
    %30 = vector.load %arg16[%c0_28, %c0_29] : memref<1x128xi32, #tpu.memory_space<vmem>>, vector<1x128xi32>
    %c0_30 = arith.constant 0 : index
    %c0_31 = arith.constant 0 : index
    %31 = vector.load %arg17[%c0_30, %c0_31] : memref<1x128xi32, #tpu.memory_space<vmem>>, vector<1x128xi32>
    %c8_i32_32 = arith.constant 8 : i32
    %32 = arith.muli %arg1, %c8_i32_32 : i32
    %c1_i32 = arith.constant 1 : i32
    %33 = arith.addi %32, %c1_i32 : i32
    %c0_33 = arith.constant 0 : index
    %c1 = arith.constant 1 : index
    %c0_34 = arith.constant 0 : index
    %34 = vector.load %arg2[%c0_33, %c1, %c0_34] : memref<128x8x32xf32, #tpu.memory_space<vmem>>, vector<128x1x32xf32>
    %35 = vector.shape_cast %34 : vector<128x1x32xf32> to vector<128x32xf32>
    %cst_35 = arith.constant dense<0.000000e+00> : vector<128x5xf32>
    %36 = tpu.matmul %35, %0, %cst_35 {dimension_numbers = #tpu.dot_dimension_numbers<[1], [0], [0], [1], [0, 0, 1, 1], [], []>} : vector<128x32xf32>, vector<32x5xf32>, vector<128x5xf32> -> vector<128x5xf32>
    %37 = tpu.transpose %36, [1, 0] : vector<128x5xf32> -> vector<5x128xf32>
    %38 = vector.broadcast %1 : vector<5x1xf32> to vector<5x128xf32>
    %39 = arith.addf %37, %38 : vector<5x128xf32>
    %40 = vector.extract_strided_slice %6 {offsets = [1, 0], sizes = [1, 128], strides = [1, 1]} : vector<8x128xi32> to vector<1x128xi32>
    %41 = vector.extract_strided_slice %7 {offsets = [1, 0], sizes = [1, 128], strides = [1, 1]} : vector<8x128xi32> to vector<1x128xi32>
    %42 = arith.sitofp %41 : vector<1x128xi32> to vector<1x128xf32>
    %43 = vector.broadcast %40 : vector<1x128xi32> to vector<5x128xi32>
    %44 = arith.cmpi eq, %8, %43 : vector<5x128xi32>
    %45 = arith.extui %44 : vector<5x128xi1> to vector<5x128xi32>
    %46 = arith.sitofp %45 : vector<5x128xi32> to vector<5x128xf32>
    %47 = vector.broadcast %29 : vector<1x128xi32> to vector<5x128xi32>
    %48 = arith.cmpi eq, %8, %47 : vector<5x128xi32>
    %49 = arith.extui %48 : vector<5x128xi1> to vector<5x128xi32>
    %50 = arith.sitofp %49 : vector<5x128xi32> to vector<5x128xf32>
    %cst_36 = arith.constant dense<0.000000e+00> : vector<5x128xf32>
    %51 = tpu.matmul %5, %50, %cst_36 {dimension_numbers = #tpu.dot_dimension_numbers<[1], [0], [0], [1], [0, 0, 1, 1], [], []>} : vector<5x5xf32>, vector<5x128xf32>, vector<5x128xf32> -> vector<5x128xf32>
    %52 = arith.addf %51, %39 : vector<5x128xf32>
    %53 = arith.mulf %46, %52 : vector<5x128xf32>
    %cst_37 = arith.constant dense<0.000000e+00> : vector<128xf32>
    %54 = vector.multi_reduction <add>, %53, %cst_37 [0] : vector<5x128xf32> to vector<128xf32>
    %55 = vector.shape_cast %54 : vector<128xf32> to vector<1x128xf32>
    %56 = arith.mulf %55, %42 : vector<1x128xf32>
    %57 = arith.addf %26, %56 : vector<1x128xf32>
    %58 = vector.shape_cast %27 : vector<5x128xf32> to vector<5x1x128xf32>
    %59 = vector.shape_cast %4 : vector<5x5xf32> to vector<5x5x1xf32>
    %60 = vector.broadcast %58 : vector<5x1x128xf32> to vector<5x5x128xf32>
    %61 = vector.broadcast %59 : vector<5x5x1xf32> to vector<5x5x128xf32>
    %62 = arith.addf %60, %61 : vector<5x5x128xf32>
    %cst_38 = arith.constant dense<0xFF800000> : vector<5x128xf32>
    %63 = vector.multi_reduction <maximumf>, %62, %cst_38 [0] : vector<5x5x128xf32> to vector<5x128xf32>
    %64 = vector.shape_cast %63 : vector<5x128xf32> to vector<1x5x128xf32>
    %65 = vector.broadcast %64 : vector<1x5x128xf32> to vector<5x5x128xf32>
    %66 = arith.subf %62, %65 : vector<5x5x128xf32>
    %67 = math.exp %66 : vector<5x5x128xf32>
    %cst_39 = arith.constant dense<0.000000e+00> : vector<5x128xf32>
    %68 = vector.multi_reduction <add>, %67, %cst_39 [0] : vector<5x5x128xf32> to vector<5x128xf32>
    %69 = math.log %68 : vector<5x128xf32>
    %70 = arith.addf %63, %69 : vector<5x128xf32>
    %71 = arith.addf %70, %39 : vector<5x128xf32>
    %cst_40 = arith.constant 0.000000e+00 : f32
    %72 = vector.broadcast %cst_40 : f32 to vector<1x128xf32>
    %73 = arith.cmpf ogt, %42, %72 : vector<1x128xf32>
    %74 = vector.shape_cast %73 : vector<1x128xi1> to vector<1x128xi1>
    %75 = vector.broadcast %74 : vector<1x128xi1> to vector<5x128xi1>
    %76 = arith.select %75, %71, %27 : vector<5x128xi1>, vector<5x128xf32>
    %77 = vector.shape_cast %28 : vector<5x128xf32> to vector<5x1x128xf32>
    %78 = vector.shape_cast %4 : vector<5x5xf32> to vector<5x5x1xf32>
    %79 = vector.broadcast %77 : vector<5x1x128xf32> to vector<5x5x128xf32>
    %80 = vector.broadcast %78 : vector<5x5x1xf32> to vector<5x5x128xf32>
    %81 = arith.addf %79, %80 : vector<5x5x128xf32>
    %cst_41 = arith.constant dense<0xFF800000> : vector<5x128xf32>
    %82 = vector.multi_reduction <maximumf>, %81, %cst_41 [0] : vector<5x5x128xf32> to vector<5x128xf32>
    %83 = vector.shape_cast %82 : vector<5x128xf32> to vector<1x5x128xf32>
    %84 = vector.broadcast %83 : vector<1x5x128xf32> to vector<5x5x128xf32>
    %85 = arith.cmpf oeq, %81, %84 : vector<5x5x128xf32>
    %c5_i32 = arith.constant 5 : i32
    %86 = vector.broadcast %c5_i32 : i32 to vector<5x5x128xi32>
    %87 = arith.select %85, %9, %86 : vector<5x5x128xi1>, vector<5x5x128xi32>
    %cst_42 = arith.constant dense<2147483647> : vector<5x128xi32>
    %88 = vector.multi_reduction <minsi>, %87, %cst_42 [0] : vector<5x5x128xi32> to vector<5x128xi32>
    %89 = arith.index_cast %33 : i32 to index
    %c0_43 = arith.constant 0 : index
    %c0_44 = arith.constant 0 : index
    %90 = vector.load %arg18[%89, %c0_43, %c0_44] : memref<8x5x128xi32, #tpu.memory_space<vmem>>, vector<1x5x128xi32>
    %91 = vector.shape_cast %90 : vector<1x5x128xi32> to vector<5x128xi32>
    %92 = vector.shape_cast %88 : vector<5x128xi32> to vector<1x5x128xi32>
    tpu.vector_store %arg18[%89, %c0_43, %c0_44], %92 {strides = array<i32>} : memref<8x5x128xi32, #tpu.memory_space<vmem>>, vector<1x5x128xi32>,
    %cst_45 = arith.constant 0.000000e+00 : f32
    %93 = vector.broadcast %cst_45 : f32 to vector<1x128xf32>
    %94 = arith.cmpf ogt, %42, %93 : vector<1x128xf32>
    %95 = arith.addf %82, %39 : vector<5x128xf32>
    %96 = vector.shape_cast %94 : vector<1x128xi1> to vector<1x128xi1>
    %97 = vector.broadcast %96 : vector<1x128xi1> to vector<5x128xi1>
    %98 = arith.select %97, %95, %28 : vector<5x128xi1>, vector<5x128xf32>
    %c0_i32_46 = arith.constant 0 : i32
    %99 = vector.broadcast %c0_i32_46 : i32 to vector<1x128xi32>
    %100 = arith.cmpi sgt, %41, %99 : vector<1x128xi32>
    %101 = arith.select %100, %40, %30 : vector<1x128xi1>, vector<1x128xi32>
    %102 = arith.addi %31, %41 : vector<1x128xi32>
    %c8_i32_47 = arith.constant 8 : i32
    %103 = arith.muli %arg1, %c8_i32_47 : i32
    %c2_i32 = arith.constant 2 : i32
    %104 = arith.addi %103, %c2_i32 : i32
    %c0_48 = arith.constant 0 : index
    %c2 = arith.constant 2 : index
    %c0_49 = arith.constant 0 : index
    %105 = vector.load %arg2[%c0_48, %c2, %c0_49] : memref<128x8x32xf32, #tpu.memory_space<vmem>>, vector<128x1x32xf32>
    %106 = vector.shape_cast %105 : vector<128x1x32xf32> to vector<128x32xf32>
    %cst_50 = arith.constant dense<0.000000e+00> : vector<128x5xf32>
    %107 = tpu.matmul %106, %0, %cst_50 {dimension_numbers = #tpu.dot_dimension_numbers<[1], [0], [0], [1], [0, 0, 1, 1], [], []>} : vector<128x32xf32>, vector<32x5xf32>, vector<128x5xf32> -> vector<128x5xf32>
    %108 = tpu.transpose %107, [1, 0] : vector<128x5xf32> -> vector<5x128xf32>
    %109 = vector.broadcast %1 : vector<5x1xf32> to vector<5x128xf32>
    %110 = arith.addf %108, %109 : vector<5x128xf32>
    %111 = vector.extract_strided_slice %6 {offsets = [2, 0], sizes = [1, 128], strides = [1, 1]} : vector<8x128xi32> to vector<1x128xi32>
    %112 = vector.extract_strided_slice %7 {offsets = [2, 0], sizes = [1, 128], strides = [1, 1]} : vector<8x128xi32> to vector<1x128xi32>
    %113 = arith.sitofp %112 : vector<1x128xi32> to vector<1x128xf32>
    %114 = vector.broadcast %111 : vector<1x128xi32> to vector<5x128xi32>
    %115 = arith.cmpi eq, %8, %114 : vector<5x128xi32>
    %116 = arith.extui %115 : vector<5x128xi1> to vector<5x128xi32>
    %117 = arith.sitofp %116 : vector<5x128xi32> to vector<5x128xf32>
    %118 = vector.broadcast %40 : vector<1x128xi32> to vector<5x128xi32>
    %119 = arith.cmpi eq, %8, %118 : vector<5x128xi32>
    %120 = arith.extui %119 : vector<5x128xi1> to vector<5x128xi32>
    %121 = arith.sitofp %120 : vector<5x128xi32> to vector<5x128xf32>
    %cst_51 = arith.constant dense<0.000000e+00> : vector<5x128xf32>
    %122 = tpu.matmul %5, %121, %cst_51 {dimension_numbers = #tpu.dot_dimension_numbers<[1], [0], [0], [1], [0, 0, 1, 1], [], []>} : vector<5x5xf32>, vector<5x128xf32>, vector<5x128xf32> -> vector<5x128xf32>
    %123 = arith.addf %122, %110 : vector<5x128xf32>
    %124 = arith.mulf %117, %123 : vector<5x128xf32>
    %cst_52 = arith.constant dense<0.000000e+00> : vector<128xf32>
    %125 = vector.multi_reduction <add>, %124, %cst_52 [0] : vector<5x128xf32> to vector<128xf32>
    %126 = vector.shape_cast %125 : vector<128xf32> to vector<1x128xf32>
    %127 = arith.mulf %126, %113 : vector<1x128xf32>
    %128 = arith.addf %57, %127 : vector<1x128xf32>
    %129 = vector.shape_cast %76 : vector<5x128xf32> to vector<5x1x128xf32>
    %130 = vector.shape_cast %4 : vector<5x5xf32> to vector<5x5x1xf32>
    %131 = vector.broadcast %129 : vector<5x1x128xf32> to vector<5x5x128xf32>
    %132 = vector.broadcast %130 : vector<5x5x1xf32> to vector<5x5x128xf32>
    %133 = arith.addf %131, %132 : vector<5x5x128xf32>
    %cst_53 = arith.constant dense<0xFF800000> : vector<5x128xf32>
    %134 = vector.multi_reduction <maximumf>, %133, %cst_53 [0] : vector<5x5x128xf32> to vector<5x128xf32>
    %135 = vector.shape_cast %134 : vector<5x128xf32> to vector<1x5x128xf32>
    %136 = vector.broadcast %135 : vector<1x5x128xf32> to vector<5x5x128xf32>
    %137 = arith.subf %133, %136 : vector<5x5x128xf32>
    %138 = math.exp %137 : vector<5x5x128xf32>
    %cst_54 = arith.constant dense<0.000000e+00> : vector<5x128xf32>
    %139 = vector.multi_reduction <add>, %138, %cst_54 [0] : vector<5x5x128xf32> to vector<5x128xf32>
    %140 = math.log %139 : vector<5x128xf32>
    %141 = arith.addf %134, %140 : vector<5x128xf32>
    %142 = arith.addf %141, %110 : vector<5x128xf32>
    %cst_55 = arith.constant 0.000000e+00 : f32
    %143 = vector.broadcast %cst_55 : f32 to vector<1x128xf32>
    %144 = arith.cmpf ogt, %113, %143 : vector<1x128xf32>
    %145 = vector.shape_cast %144 : vector<1x128xi1> to vector<1x128xi1>
    %146 = vector.broadcast %145 : vector<1x128xi1> to vector<5x128xi1>
    %147 = arith.select %146, %142, %76 : vector<5x128xi1>, vector<5x128xf32>
    %148 = vector.shape_cast %98 : vector<5x128xf32> to vector<5x1x128xf32>
    %149 = vector.shape_cast %4 : vector<5x5xf32> to vector<5x5x1xf32>
    %150 = vector.broadcast %148 : vector<5x1x128xf32> to vector<5x5x128xf32>
    %151 = vector.broadcast %149 : vector<5x5x1xf32> to vector<5x5x128xf32>
    %152 = arith.addf %150, %151 : vector<5x5x128xf32>
    %cst_56 = arith.constant dense<0xFF800000> : vector<5x128xf32>
    %153 = vector.multi_reduction <maximumf>, %152, %cst_56 [0] : vector<5x5x128xf32> to vector<5x128xf32>
    %154 = vector.shape_cast %153 : vector<5x128xf32> to vector<1x5x128xf32>
    %155 = vector.broadcast %154 : vector<1x5x128xf32> to vector<5x5x128xf32>
    %156 = arith.cmpf oeq, %152, %155 : vector<5x5x128xf32>
    %c5_i32_57 = arith.constant 5 : i32
    %157 = vector.broadcast %c5_i32_57 : i32 to vector<5x5x128xi32>
    %158 = arith.select %156, %9, %157 : vector<5x5x128xi1>, vector<5x5x128xi32>
    %cst_58 = arith.constant dense<2147483647> : vector<5x128xi32>
    %159 = vector.multi_reduction <minsi>, %158, %cst_58 [0] : vector<5x5x128xi32> to vector<5x128xi32>
    %160 = arith.index_cast %104 : i32 to index
    %c0_59 = arith.constant 0 : index
    %c0_60 = arith.constant 0 : index
    %161 = vector.load %arg18[%160, %c0_59, %c0_60] : memref<8x5x128xi32, #tpu.memory_space<vmem>>, vector<1x5x128xi32>
    %162 = vector.shape_cast %161 : vector<1x5x128xi32> to vector<5x128xi32>
    %163 = vector.shape_cast %159 : vector<5x128xi32> to vector<1x5x128xi32>
    tpu.vector_store %arg18[%160, %c0_59, %c0_60], %163 {strides = array<i32>} : memref<8x5x128xi32, #tpu.memory_space<vmem>>, vector<1x5x128xi32>,
    %cst_61 = arith.constant 0.000000e+00 : f32
    %164 = vector.broadcast %cst_61 : f32 to vector<1x128xf32>
    %165 = arith.cmpf ogt, %113, %164 : vector<1x128xf32>
    %166 = arith.addf %153, %110 : vector<5x128xf32>
    %167 = vector.shape_cast %165 : vector<1x128xi1> to vector<1x128xi1>
    %168 = vector.broadcast %167 : vector<1x128xi1> to vector<5x128xi1>
    %169 = arith.select %168, %166, %98 : vector<5x128xi1>, vector<5x128xf32>
    %c0_i32_62 = arith.constant 0 : i32
    %170 = vector.broadcast %c0_i32_62 : i32 to vector<1x128xi32>
    %171 = arith.cmpi sgt, %112, %170 : vector<1x128xi32>
    %172 = arith.select %171, %111, %101 : vector<1x128xi1>, vector<1x128xi32>
    %173 = arith.addi %102, %112 : vector<1x128xi32>
    %c8_i32_63 = arith.constant 8 : i32
    %174 = arith.muli %arg1, %c8_i32_63 : i32
    %c3_i32 = arith.constant 3 : i32
    %175 = arith.addi %174, %c3_i32 : i32
    %c0_64 = arith.constant 0 : index
    %c3 = arith.constant 3 : index
    %c0_65 = arith.constant 0 : index
    %176 = vector.load %arg2[%c0_64, %c3, %c0_65] : memref<128x8x32xf32, #tpu.memory_space<vmem>>, vector<128x1x32xf32>
    %177 = vector.shape_cast %176 : vector<128x1x32xf32> to vector<128x32xf32>
    %cst_66 = arith.constant dense<0.000000e+00> : vector<128x5xf32>
    %178 = tpu.matmul %177, %0, %cst_66 {dimension_numbers = #tpu.dot_dimension_numbers<[1], [0], [0], [1], [0, 0, 1, 1], [], []>} : vector<128x32xf32>, vector<32x5xf32>, vector<128x5xf32> -> vector<128x5xf32>
    %179 = tpu.transpose %178, [1, 0] : vector<128x5xf32> -> vector<5x128xf32>
    %180 = vector.broadcast %1 : vector<5x1xf32> to vector<5x128xf32>
    %181 = arith.addf %179, %180 : vector<5x128xf32>
    %182 = vector.extract_strided_slice %6 {offsets = [3, 0], sizes = [1, 128], strides = [1, 1]} : vector<8x128xi32> to vector<1x128xi32>
    %183 = vector.extract_strided_slice %7 {offsets = [3, 0], sizes = [1, 128], strides = [1, 1]} : vector<8x128xi32> to vector<1x128xi32>
    %184 = arith.sitofp %183 : vector<1x128xi32> to vector<1x128xf32>
    %185 = vector.broadcast %182 : vector<1x128xi32> to vector<5x128xi32>
    %186 = arith.cmpi eq, %8, %185 : vector<5x128xi32>
    %187 = arith.extui %186 : vector<5x128xi1> to vector<5x128xi32>
    %188 = arith.sitofp %187 : vector<5x128xi32> to vector<5x128xf32>
    %189 = vector.broadcast %111 : vector<1x128xi32> to vector<5x128xi32>
    %190 = arith.cmpi eq, %8, %189 : vector<5x128xi32>
    %191 = arith.extui %190 : vector<5x128xi1> to vector<5x128xi32>
    %192 = arith.sitofp %191 : vector<5x128xi32> to vector<5x128xf32>
    %cst_67 = arith.constant dense<0.000000e+00> : vector<5x128xf32>
    %193 = tpu.matmul %5, %192, %cst_67 {dimension_numbers = #tpu.dot_dimension_numbers<[1], [0], [0], [1], [0, 0, 1, 1], [], []>} : vector<5x5xf32>, vector<5x128xf32>, vector<5x128xf32> -> vector<5x128xf32>
    %194 = arith.addf %193, %181 : vector<5x128xf32>
    %195 = arith.mulf %188, %194 : vector<5x128xf32>
    %cst_68 = arith.constant dense<0.000000e+00> : vector<128xf32>
    %196 = vector.multi_reduction <add>, %195, %cst_68 [0] : vector<5x128xf32> to vector<128xf32>
    %197 = vector.shape_cast %196 : vector<128xf32> to vector<1x128xf32>
    %198 = arith.mulf %197, %184 : vector<1x128xf32>
    %199 = arith.addf %128, %198 : vector<1x128xf32>
    %200 = vector.shape_cast %147 : vector<5x128xf32> to vector<5x1x128xf32>
    %201 = vector.shape_cast %4 : vector<5x5xf32> to vector<5x5x1xf32>
    %202 = vector.broadcast %200 : vector<5x1x128xf32> to vector<5x5x128xf32>
    %203 = vector.broadcast %201 : vector<5x5x1xf32> to vector<5x5x128xf32>
    %204 = arith.addf %202, %203 : vector<5x5x128xf32>
    %cst_69 = arith.constant dense<0xFF800000> : vector<5x128xf32>
    %205 = vector.multi_reduction <maximumf>, %204, %cst_69 [0] : vector<5x5x128xf32> to vector<5x128xf32>
    %206 = vector.shape_cast %205 : vector<5x128xf32> to vector<1x5x128xf32>
    %207 = vector.broadcast %206 : vector<1x5x128xf32> to vector<5x5x128xf32>
    %208 = arith.subf %204, %207 : vector<5x5x128xf32>
    %209 = math.exp %208 : vector<5x5x128xf32>
    %cst_70 = arith.constant dense<0.000000e+00> : vector<5x128xf32>
    %210 = vector.multi_reduction <add>, %209, %cst_70 [0] : vector<5x5x128xf32> to vector<5x128xf32>
    %211 = math.log %210 : vector<5x128xf32>
    %212 = arith.addf %205, %211 : vector<5x128xf32>
    %213 = arith.addf %212, %181 : vector<5x128xf32>
    %cst_71 = arith.constant 0.000000e+00 : f32
    %214 = vector.broadcast %cst_71 : f32 to vector<1x128xf32>
    %215 = arith.cmpf ogt, %184, %214 : vector<1x128xf32>
    %216 = vector.shape_cast %215 : vector<1x128xi1> to vector<1x128xi1>
    %217 = vector.broadcast %216 : vector<1x128xi1> to vector<5x128xi1>
    %218 = arith.select %217, %213, %147 : vector<5x128xi1>, vector<5x128xf32>
    %219 = vector.shape_cast %169 : vector<5x128xf32> to vector<5x1x128xf32>
    %220 = vector.shape_cast %4 : vector<5x5xf32> to vector<5x5x1xf32>
    %221 = vector.broadcast %219 : vector<5x1x128xf32> to vector<5x5x128xf32>
    %222 = vector.broadcast %220 : vector<5x5x1xf32> to vector<5x5x128xf32>
    %223 = arith.addf %221, %222 : vector<5x5x128xf32>
    %cst_72 = arith.constant dense<0xFF800000> : vector<5x128xf32>
    %224 = vector.multi_reduction <maximumf>, %223, %cst_72 [0] : vector<5x5x128xf32> to vector<5x128xf32>
    %225 = vector.shape_cast %224 : vector<5x128xf32> to vector<1x5x128xf32>
    %226 = vector.broadcast %225 : vector<1x5x128xf32> to vector<5x5x128xf32>
    %227 = arith.cmpf oeq, %223, %226 : vector<5x5x128xf32>
    %c5_i32_73 = arith.constant 5 : i32
    %228 = vector.broadcast %c5_i32_73 : i32 to vector<5x5x128xi32>
    %229 = arith.select %227, %9, %228 : vector<5x5x128xi1>, vector<5x5x128xi32>
    %cst_74 = arith.constant dense<2147483647> : vector<5x128xi32>
    %230 = vector.multi_reduction <minsi>, %229, %cst_74 [0] : vector<5x5x128xi32> to vector<5x128xi32>
    %231 = arith.index_cast %175 : i32 to index
    %c0_75 = arith.constant 0 : index
    %c0_76 = arith.constant 0 : index
    %232 = vector.load %arg18[%231, %c0_75, %c0_76] : memref<8x5x128xi32, #tpu.memory_space<vmem>>, vector<1x5x128xi32>
    %233 = vector.shape_cast %232 : vector<1x5x128xi32> to vector<5x128xi32>
    %234 = vector.shape_cast %230 : vector<5x128xi32> to vector<1x5x128xi32>
    tpu.vector_store %arg18[%231, %c0_75, %c0_76], %234 {strides = array<i32>} : memref<8x5x128xi32, #tpu.memory_space<vmem>>, vector<1x5x128xi32>,
    %cst_77 = arith.constant 0.000000e+00 : f32
    %235 = vector.broadcast %cst_77 : f32 to vector<1x128xf32>
    %236 = arith.cmpf ogt, %184, %235 : vector<1x128xf32>
    %237 = arith.addf %224, %181 : vector<5x128xf32>
    %238 = vector.shape_cast %236 : vector<1x128xi1> to vector<1x128xi1>
    %239 = vector.broadcast %238 : vector<1x128xi1> to vector<5x128xi1>
    %240 = arith.select %239, %237, %169 : vector<5x128xi1>, vector<5x128xf32>
    %c0_i32_78 = arith.constant 0 : i32
    %241 = vector.broadcast %c0_i32_78 : i32 to vector<1x128xi32>
    %242 = arith.cmpi sgt, %183, %241 : vector<1x128xi32>
    %243 = arith.select %242, %182, %172 : vector<1x128xi1>, vector<1x128xi32>
    %244 = arith.addi %173, %183 : vector<1x128xi32>
    %c8_i32_79 = arith.constant 8 : i32
    %245 = arith.muli %arg1, %c8_i32_79 : i32
    %c4_i32 = arith.constant 4 : i32
    %246 = arith.addi %245, %c4_i32 : i32
    %c0_80 = arith.constant 0 : index
    %c4 = arith.constant 4 : index
    %c0_81 = arith.constant 0 : index
    %247 = vector.load %arg2[%c0_80, %c4, %c0_81] : memref<128x8x32xf32, #tpu.memory_space<vmem>>, vector<128x1x32xf32>
    %248 = vector.shape_cast %247 : vector<128x1x32xf32> to vector<128x32xf32>
    %cst_82 = arith.constant dense<0.000000e+00> : vector<128x5xf32>
    %249 = tpu.matmul %248, %0, %cst_82 {dimension_numbers = #tpu.dot_dimension_numbers<[1], [0], [0], [1], [0, 0, 1, 1], [], []>} : vector<128x32xf32>, vector<32x5xf32>, vector<128x5xf32> -> vector<128x5xf32>
    %250 = tpu.transpose %249, [1, 0] : vector<128x5xf32> -> vector<5x128xf32>
    %251 = vector.broadcast %1 : vector<5x1xf32> to vector<5x128xf32>
    %252 = arith.addf %250, %251 : vector<5x128xf32>
    %253 = vector.extract_strided_slice %6 {offsets = [4, 0], sizes = [1, 128], strides = [1, 1]} : vector<8x128xi32> to vector<1x128xi32>
    %254 = vector.extract_strided_slice %7 {offsets = [4, 0], sizes = [1, 128], strides = [1, 1]} : vector<8x128xi32> to vector<1x128xi32>
    %255 = arith.sitofp %254 : vector<1x128xi32> to vector<1x128xf32>
    %256 = vector.broadcast %253 : vector<1x128xi32> to vector<5x128xi32>
    %257 = arith.cmpi eq, %8, %256 : vector<5x128xi32>
    %258 = arith.extui %257 : vector<5x128xi1> to vector<5x128xi32>
    %259 = arith.sitofp %258 : vector<5x128xi32> to vector<5x128xf32>
    %260 = vector.broadcast %182 : vector<1x128xi32> to vector<5x128xi32>
    %261 = arith.cmpi eq, %8, %260 : vector<5x128xi32>
    %262 = arith.extui %261 : vector<5x128xi1> to vector<5x128xi32>
    %263 = arith.sitofp %262 : vector<5x128xi32> to vector<5x128xf32>
    %cst_83 = arith.constant dense<0.000000e+00> : vector<5x128xf32>
    %264 = tpu.matmul %5, %263, %cst_83 {dimension_numbers = #tpu.dot_dimension_numbers<[1], [0], [0], [1], [0, 0, 1, 1], [], []>} : vector<5x5xf32>, vector<5x128xf32>, vector<5x128xf32> -> vector<5x128xf32>
    %265 = arith.addf %264, %252 : vector<5x128xf32>
    %266 = arith.mulf %259, %265 : vector<5x128xf32>
    %cst_84 = arith.constant dense<0.000000e+00> : vector<128xf32>
    %267 = vector.multi_reduction <add>, %266, %cst_84 [0] : vector<5x128xf32> to vector<128xf32>
    %268 = vector.shape_cast %267 : vector<128xf32> to vector<1x128xf32>
    %269 = arith.mulf %268, %255 : vector<1x128xf32>
    %270 = arith.addf %199, %269 : vector<1x128xf32>
    %271 = vector.shape_cast %218 : vector<5x128xf32> to vector<5x1x128xf32>
    %272 = vector.shape_cast %4 : vector<5x5xf32> to vector<5x5x1xf32>
    %273 = vector.broadcast %271 : vector<5x1x128xf32> to vector<5x5x128xf32>
    %274 = vector.broadcast %272 : vector<5x5x1xf32> to vector<5x5x128xf32>
    %275 = arith.addf %273, %274 : vector<5x5x128xf32>
    %cst_85 = arith.constant dense<0xFF800000> : vector<5x128xf32>
    %276 = vector.multi_reduction <maximumf>, %275, %cst_85 [0] : vector<5x5x128xf32> to vector<5x128xf32>
    %277 = vector.shape_cast %276 : vector<5x128xf32> to vector<1x5x128xf32>
    %278 = vector.broadcast %277 : vector<1x5x128xf32> to vector<5x5x128xf32>
    %279 = arith.subf %275, %278 : vector<5x5x128xf32>
    %280 = math.exp %279 : vector<5x5x128xf32>
    %cst_86 = arith.constant dense<0.000000e+00> : vector<5x128xf32>
    %281 = vector.multi_reduction <add>, %280, %cst_86 [0] : vector<5x5x128xf32> to vector<5x128xf32>
    %282 = math.log %281 : vector<5x128xf32>
    %283 = arith.addf %276, %282 : vector<5x128xf32>
    %284 = arith.addf %283, %252 : vector<5x128xf32>
    %cst_87 = arith.constant 0.000000e+00 : f32
    %285 = vector.broadcast %cst_87 : f32 to vector<1x128xf32>
    %286 = arith.cmpf ogt, %255, %285 : vector<1x128xf32>
    %287 = vector.shape_cast %286 : vector<1x128xi1> to vector<1x128xi1>
    %288 = vector.broadcast %287 : vector<1x128xi1> to vector<5x128xi1>
    %289 = arith.select %288, %284, %218 : vector<5x128xi1>, vector<5x128xf32>
    %290 = vector.shape_cast %240 : vector<5x128xf32> to vector<5x1x128xf32>
    %291 = vector.shape_cast %4 : vector<5x5xf32> to vector<5x5x1xf32>
    %292 = vector.broadcast %290 : vector<5x1x128xf32> to vector<5x5x128xf32>
    %293 = vector.broadcast %291 : vector<5x5x1xf32> to vector<5x5x128xf32>
    %294 = arith.addf %292, %293 : vector<5x5x128xf32>
    %cst_88 = arith.constant dense<0xFF800000> : vector<5x128xf32>
    %295 = vector.multi_reduction <maximumf>, %294, %cst_88 [0] : vector<5x5x128xf32> to vector<5x128xf32>
    %296 = vector.shape_cast %295 : vector<5x128xf32> to vector<1x5x128xf32>
    %297 = vector.broadcast %296 : vector<1x5x128xf32> to vector<5x5x128xf32>
    %298 = arith.cmpf oeq, %294, %297 : vector<5x5x128xf32>
    %c5_i32_89 = arith.constant 5 : i32
    %299 = vector.broadcast %c5_i32_89 : i32 to vector<5x5x128xi32>
    %300 = arith.select %298, %9, %299 : vector<5x5x128xi1>, vector<5x5x128xi32>
    %cst_90 = arith.constant dense<2147483647> : vector<5x128xi32>
    %301 = vector.multi_reduction <minsi>, %300, %cst_90 [0] : vector<5x5x128xi32> to vector<5x128xi32>
    %302 = arith.index_cast %246 : i32 to index
    %c0_91 = arith.constant 0 : index
    %c0_92 = arith.constant 0 : index
    %303 = vector.load %arg18[%302, %c0_91, %c0_92] : memref<8x5x128xi32, #tpu.memory_space<vmem>>, vector<1x5x128xi32>
    %304 = vector.shape_cast %303 : vector<1x5x128xi32> to vector<5x128xi32>
    %305 = vector.shape_cast %301 : vector<5x128xi32> to vector<1x5x128xi32>
    tpu.vector_store %arg18[%302, %c0_91, %c0_92], %305 {strides = array<i32>} : memref<8x5x128xi32, #tpu.memory_space<vmem>>, vector<1x5x128xi32>,
    %cst_93 = arith.constant 0.000000e+00 : f32
    %306 = vector.broadcast %cst_93 : f32 to vector<1x128xf32>
    %307 = arith.cmpf ogt, %255, %306 : vector<1x128xf32>
    %308 = arith.addf %295, %252 : vector<5x128xf32>
    %309 = vector.shape_cast %307 : vector<1x128xi1> to vector<1x128xi1>
    %310 = vector.broadcast %309 : vector<1x128xi1> to vector<5x128xi1>
    %311 = arith.select %310, %308, %240 : vector<5x128xi1>, vector<5x128xf32>
    %c0_i32_94 = arith.constant 0 : i32
    %312 = vector.broadcast %c0_i32_94 : i32 to vector<1x128xi32>
    %313 = arith.cmpi sgt, %254, %312 : vector<1x128xi32>
    %314 = arith.select %313, %253, %243 : vector<1x128xi1>, vector<1x128xi32>
    %315 = arith.addi %244, %254 : vector<1x128xi32>
    %c8_i32_95 = arith.constant 8 : i32
    %316 = arith.muli %arg1, %c8_i32_95 : i32
    %c5_i32_96 = arith.constant 5 : i32
    %317 = arith.addi %316, %c5_i32_96 : i32
    %c0_97 = arith.constant 0 : index
    %c5 = arith.constant 5 : index
    %c0_98 = arith.constant 0 : index
    %318 = vector.load %arg2[%c0_97, %c5, %c0_98] : memref<128x8x32xf32, #tpu.memory_space<vmem>>, vector<128x1x32xf32>
    %319 = vector.shape_cast %318 : vector<128x1x32xf32> to vector<128x32xf32>
    %cst_99 = arith.constant dense<0.000000e+00> : vector<128x5xf32>
    %320 = tpu.matmul %319, %0, %cst_99 {dimension_numbers = #tpu.dot_dimension_numbers<[1], [0], [0], [1], [0, 0, 1, 1], [], []>} : vector<128x32xf32>, vector<32x5xf32>, vector<128x5xf32> -> vector<128x5xf32>
    %321 = tpu.transpose %320, [1, 0] : vector<128x5xf32> -> vector<5x128xf32>
    %322 = vector.broadcast %1 : vector<5x1xf32> to vector<5x128xf32>
    %323 = arith.addf %321, %322 : vector<5x128xf32>
    %324 = vector.extract_strided_slice %6 {offsets = [5, 0], sizes = [1, 128], strides = [1, 1]} : vector<8x128xi32> to vector<1x128xi32>
    %325 = vector.extract_strided_slice %7 {offsets = [5, 0], sizes = [1, 128], strides = [1, 1]} : vector<8x128xi32> to vector<1x128xi32>
    %326 = arith.sitofp %325 : vector<1x128xi32> to vector<1x128xf32>
    %327 = vector.broadcast %324 : vector<1x128xi32> to vector<5x128xi32>
    %328 = arith.cmpi eq, %8, %327 : vector<5x128xi32>
    %329 = arith.extui %328 : vector<5x128xi1> to vector<5x128xi32>
    %330 = arith.sitofp %329 : vector<5x128xi32> to vector<5x128xf32>
    %331 = vector.broadcast %253 : vector<1x128xi32> to vector<5x128xi32>
    %332 = arith.cmpi eq, %8, %331 : vector<5x128xi32>
    %333 = arith.extui %332 : vector<5x128xi1> to vector<5x128xi32>
    %334 = arith.sitofp %333 : vector<5x128xi32> to vector<5x128xf32>
    %cst_100 = arith.constant dense<0.000000e+00> : vector<5x128xf32>
    %335 = tpu.matmul %5, %334, %cst_100 {dimension_numbers = #tpu.dot_dimension_numbers<[1], [0], [0], [1], [0, 0, 1, 1], [], []>} : vector<5x5xf32>, vector<5x128xf32>, vector<5x128xf32> -> vector<5x128xf32>
    %336 = arith.addf %335, %323 : vector<5x128xf32>
    %337 = arith.mulf %330, %336 : vector<5x128xf32>
    %cst_101 = arith.constant dense<0.000000e+00> : vector<128xf32>
    %338 = vector.multi_reduction <add>, %337, %cst_101 [0] : vector<5x128xf32> to vector<128xf32>
    %339 = vector.shape_cast %338 : vector<128xf32> to vector<1x128xf32>
    %340 = arith.mulf %339, %326 : vector<1x128xf32>
    %341 = arith.addf %270, %340 : vector<1x128xf32>
    %342 = vector.shape_cast %289 : vector<5x128xf32> to vector<5x1x128xf32>
    %343 = vector.shape_cast %4 : vector<5x5xf32> to vector<5x5x1xf32>
    %344 = vector.broadcast %342 : vector<5x1x128xf32> to vector<5x5x128xf32>
    %345 = vector.broadcast %343 : vector<5x5x1xf32> to vector<5x5x128xf32>
    %346 = arith.addf %344, %345 : vector<5x5x128xf32>
    %cst_102 = arith.constant dense<0xFF800000> : vector<5x128xf32>
    %347 = vector.multi_reduction <maximumf>, %346, %cst_102 [0] : vector<5x5x128xf32> to vector<5x128xf32>
    %348 = vector.shape_cast %347 : vector<5x128xf32> to vector<1x5x128xf32>
    %349 = vector.broadcast %348 : vector<1x5x128xf32> to vector<5x5x128xf32>
    %350 = arith.subf %346, %349 : vector<5x5x128xf32>
    %351 = math.exp %350 : vector<5x5x128xf32>
    %cst_103 = arith.constant dense<0.000000e+00> : vector<5x128xf32>
    %352 = vector.multi_reduction <add>, %351, %cst_103 [0] : vector<5x5x128xf32> to vector<5x128xf32>
    %353 = math.log %352 : vector<5x128xf32>
    %354 = arith.addf %347, %353 : vector<5x128xf32>
    %355 = arith.addf %354, %323 : vector<5x128xf32>
    %cst_104 = arith.constant 0.000000e+00 : f32
    %356 = vector.broadcast %cst_104 : f32 to vector<1x128xf32>
    %357 = arith.cmpf ogt, %326, %356 : vector<1x128xf32>
    %358 = vector.shape_cast %357 : vector<1x128xi1> to vector<1x128xi1>
    %359 = vector.broadcast %358 : vector<1x128xi1> to vector<5x128xi1>
    %360 = arith.select %359, %355, %289 : vector<5x128xi1>, vector<5x128xf32>
    %361 = vector.shape_cast %311 : vector<5x128xf32> to vector<5x1x128xf32>
    %362 = vector.shape_cast %4 : vector<5x5xf32> to vector<5x5x1xf32>
    %363 = vector.broadcast %361 : vector<5x1x128xf32> to vector<5x5x128xf32>
    %364 = vector.broadcast %362 : vector<5x5x1xf32> to vector<5x5x128xf32>
    %365 = arith.addf %363, %364 : vector<5x5x128xf32>
    %cst_105 = arith.constant dense<0xFF800000> : vector<5x128xf32>
    %366 = vector.multi_reduction <maximumf>, %365, %cst_105 [0] : vector<5x5x128xf32> to vector<5x128xf32>
    %367 = vector.shape_cast %366 : vector<5x128xf32> to vector<1x5x128xf32>
    %368 = vector.broadcast %367 : vector<1x5x128xf32> to vector<5x5x128xf32>
    %369 = arith.cmpf oeq, %365, %368 : vector<5x5x128xf32>
    %c5_i32_106 = arith.constant 5 : i32
    %370 = vector.broadcast %c5_i32_106 : i32 to vector<5x5x128xi32>
    %371 = arith.select %369, %9, %370 : vector<5x5x128xi1>, vector<5x5x128xi32>
    %cst_107 = arith.constant dense<2147483647> : vector<5x128xi32>
    %372 = vector.multi_reduction <minsi>, %371, %cst_107 [0] : vector<5x5x128xi32> to vector<5x128xi32>
    %373 = arith.index_cast %317 : i32 to index
    %c0_108 = arith.constant 0 : index
    %c0_109 = arith.constant 0 : index
    %374 = vector.load %arg18[%373, %c0_108, %c0_109] : memref<8x5x128xi32, #tpu.memory_space<vmem>>, vector<1x5x128xi32>
    %375 = vector.shape_cast %374 : vector<1x5x128xi32> to vector<5x128xi32>
    %376 = vector.shape_cast %372 : vector<5x128xi32> to vector<1x5x128xi32>
    tpu.vector_store %arg18[%373, %c0_108, %c0_109], %376 {strides = array<i32>} : memref<8x5x128xi32, #tpu.memory_space<vmem>>, vector<1x5x128xi32>,
    %cst_110 = arith.constant 0.000000e+00 : f32
    %377 = vector.broadcast %cst_110 : f32 to vector<1x128xf32>
    %378 = arith.cmpf ogt, %326, %377 : vector<1x128xf32>
    %379 = arith.addf %366, %323 : vector<5x128xf32>
    %380 = vector.shape_cast %378 : vector<1x128xi1> to vector<1x128xi1>
    %381 = vector.broadcast %380 : vector<1x128xi1> to vector<5x128xi1>
    %382 = arith.select %381, %379, %311 : vector<5x128xi1>, vector<5x128xf32>
    %c0_i32_111 = arith.constant 0 : i32
    %383 = vector.broadcast %c0_i32_111 : i32 to vector<1x128xi32>
    %384 = arith.cmpi sgt, %325, %383 : vector<1x128xi32>
    %385 = arith.select %384, %324, %314 : vector<1x128xi1>, vector<1x128xi32>
    %386 = arith.addi %315, %325 : vector<1x128xi32>
    %c8_i32_112 = arith.constant 8 : i32
    %387 = arith.muli %arg1, %c8_i32_112 : i32
    %c6_i32 = arith.constant 6 : i32
    %388 = arith.addi %387, %c6_i32 : i32
    %c0_113 = arith.constant 0 : index
    %c6 = arith.constant 6 : index
    %c0_114 = arith.constant 0 : index
    %389 = vector.load %arg2[%c0_113, %c6, %c0_114] : memref<128x8x32xf32, #tpu.memory_space<vmem>>, vector<128x1x32xf32>
    %390 = vector.shape_cast %389 : vector<128x1x32xf32> to vector<128x32xf32>
    %cst_115 = arith.constant dense<0.000000e+00> : vector<128x5xf32>
    %391 = tpu.matmul %390, %0, %cst_115 {dimension_numbers = #tpu.dot_dimension_numbers<[1], [0], [0], [1], [0, 0, 1, 1], [], []>} : vector<128x32xf32>, vector<32x5xf32>, vector<128x5xf32> -> vector<128x5xf32>
    %392 = tpu.transpose %391, [1, 0] : vector<128x5xf32> -> vector<5x128xf32>
    %393 = vector.broadcast %1 : vector<5x1xf32> to vector<5x128xf32>
    %394 = arith.addf %392, %393 : vector<5x128xf32>
    %395 = vector.extract_strided_slice %6 {offsets = [6, 0], sizes = [1, 128], strides = [1, 1]} : vector<8x128xi32> to vector<1x128xi32>
    %396 = vector.extract_strided_slice %7 {offsets = [6, 0], sizes = [1, 128], strides = [1, 1]} : vector<8x128xi32> to vector<1x128xi32>
    %397 = arith.sitofp %396 : vector<1x128xi32> to vector<1x128xf32>
    %398 = vector.broadcast %395 : vector<1x128xi32> to vector<5x128xi32>
    %399 = arith.cmpi eq, %8, %398 : vector<5x128xi32>
    %400 = arith.extui %399 : vector<5x128xi1> to vector<5x128xi32>
    %401 = arith.sitofp %400 : vector<5x128xi32> to vector<5x128xf32>
    %402 = vector.broadcast %324 : vector<1x128xi32> to vector<5x128xi32>
    %403 = arith.cmpi eq, %8, %402 : vector<5x128xi32>
    %404 = arith.extui %403 : vector<5x128xi1> to vector<5x128xi32>
    %405 = arith.sitofp %404 : vector<5x128xi32> to vector<5x128xf32>
    %cst_116 = arith.constant dense<0.000000e+00> : vector<5x128xf32>
    %406 = tpu.matmul %5, %405, %cst_116 {dimension_numbers = #tpu.dot_dimension_numbers<[1], [0], [0], [1], [0, 0, 1, 1], [], []>} : vector<5x5xf32>, vector<5x128xf32>, vector<5x128xf32> -> vector<5x128xf32>
    %407 = arith.addf %406, %394 : vector<5x128xf32>
    %408 = arith.mulf %401, %407 : vector<5x128xf32>
    %cst_117 = arith.constant dense<0.000000e+00> : vector<128xf32>
    %409 = vector.multi_reduction <add>, %408, %cst_117 [0] : vector<5x128xf32> to vector<128xf32>
    %410 = vector.shape_cast %409 : vector<128xf32> to vector<1x128xf32>
    %411 = arith.mulf %410, %397 : vector<1x128xf32>
    %412 = arith.addf %341, %411 : vector<1x128xf32>
    %413 = vector.shape_cast %360 : vector<5x128xf32> to vector<5x1x128xf32>
    %414 = vector.shape_cast %4 : vector<5x5xf32> to vector<5x5x1xf32>
    %415 = vector.broadcast %413 : vector<5x1x128xf32> to vector<5x5x128xf32>
    %416 = vector.broadcast %414 : vector<5x5x1xf32> to vector<5x5x128xf32>
    %417 = arith.addf %415, %416 : vector<5x5x128xf32>
    %cst_118 = arith.constant dense<0xFF800000> : vector<5x128xf32>
    %418 = vector.multi_reduction <maximumf>, %417, %cst_118 [0] : vector<5x5x128xf32> to vector<5x128xf32>
    %419 = vector.shape_cast %418 : vector<5x128xf32> to vector<1x5x128xf32>
    %420 = vector.broadcast %419 : vector<1x5x128xf32> to vector<5x5x128xf32>
    %421 = arith.subf %417, %420 : vector<5x5x128xf32>
    %422 = math.exp %421 : vector<5x5x128xf32>
    %cst_119 = arith.constant dense<0.000000e+00> : vector<5x128xf32>
    %423 = vector.multi_reduction <add>, %422, %cst_119 [0] : vector<5x5x128xf32> to vector<5x128xf32>
    %424 = math.log %423 : vector<5x128xf32>
    %425 = arith.addf %418, %424 : vector<5x128xf32>
    %426 = arith.addf %425, %394 : vector<5x128xf32>
    %cst_120 = arith.constant 0.000000e+00 : f32
    %427 = vector.broadcast %cst_120 : f32 to vector<1x128xf32>
    %428 = arith.cmpf ogt, %397, %427 : vector<1x128xf32>
    %429 = vector.shape_cast %428 : vector<1x128xi1> to vector<1x128xi1>
    %430 = vector.broadcast %429 : vector<1x128xi1> to vector<5x128xi1>
    %431 = arith.select %430, %426, %360 : vector<5x128xi1>, vector<5x128xf32>
    %432 = vector.shape_cast %382 : vector<5x128xf32> to vector<5x1x128xf32>
    %433 = vector.shape_cast %4 : vector<5x5xf32> to vector<5x5x1xf32>
    %434 = vector.broadcast %432 : vector<5x1x128xf32> to vector<5x5x128xf32>
    %435 = vector.broadcast %433 : vector<5x5x1xf32> to vector<5x5x128xf32>
    %436 = arith.addf %434, %435 : vector<5x5x128xf32>
    %cst_121 = arith.constant dense<0xFF800000> : vector<5x128xf32>
    %437 = vector.multi_reduction <maximumf>, %436, %cst_121 [0] : vector<5x5x128xf32> to vector<5x128xf32>
    %438 = vector.shape_cast %437 : vector<5x128xf32> to vector<1x5x128xf32>
    %439 = vector.broadcast %438 : vector<1x5x128xf32> to vector<5x5x128xf32>
    %440 = arith.cmpf oeq, %436, %439 : vector<5x5x128xf32>
    %c5_i32_122 = arith.constant 5 : i32
    %441 = vector.broadcast %c5_i32_122 : i32 to vector<5x5x128xi32>
    %442 = arith.select %440, %9, %441 : vector<5x5x128xi1>, vector<5x5x128xi32>
    %cst_123 = arith.constant dense<2147483647> : vector<5x128xi32>
    %443 = vector.multi_reduction <minsi>, %442, %cst_123 [0] : vector<5x5x128xi32> to vector<5x128xi32>
    %444 = arith.index_cast %388 : i32 to index
    %c0_124 = arith.constant 0 : index
    %c0_125 = arith.constant 0 : index
    %445 = vector.load %arg18[%444, %c0_124, %c0_125] : memref<8x5x128xi32, #tpu.memory_space<vmem>>, vector<1x5x128xi32>
    %446 = vector.shape_cast %445 : vector<1x5x128xi32> to vector<5x128xi32>
    %447 = vector.shape_cast %443 : vector<5x128xi32> to vector<1x5x128xi32>
    tpu.vector_store %arg18[%444, %c0_124, %c0_125], %447 {strides = array<i32>} : memref<8x5x128xi32, #tpu.memory_space<vmem>>, vector<1x5x128xi32>,
    %cst_126 = arith.constant 0.000000e+00 : f32
    %448 = vector.broadcast %cst_126 : f32 to vector<1x128xf32>
    %449 = arith.cmpf ogt, %397, %448 : vector<1x128xf32>
    %450 = arith.addf %437, %394 : vector<5x128xf32>
    %451 = vector.shape_cast %449 : vector<1x128xi1> to vector<1x128xi1>
    %452 = vector.broadcast %451 : vector<1x128xi1> to vector<5x128xi1>
    %453 = arith.select %452, %450, %382 : vector<5x128xi1>, vector<5x128xf32>
    %c0_i32_127 = arith.constant 0 : i32
    %454 = vector.broadcast %c0_i32_127 : i32 to vector<1x128xi32>
    %455 = arith.cmpi sgt, %396, %454 : vector<1x128xi32>
    %456 = arith.select %455, %395, %385 : vector<1x128xi1>, vector<1x128xi32>
    %457 = arith.addi %386, %396 : vector<1x128xi32>
    %c8_i32_128 = arith.constant 8 : i32
    %458 = arith.muli %arg1, %c8_i32_128 : i32
    %c7_i32 = arith.constant 7 : i32
    %459 = arith.addi %458, %c7_i32 : i32
    %c0_129 = arith.constant 0 : index
    %c7 = arith.constant 7 : index
    %c0_130 = arith.constant 0 : index
    %460 = vector.load %arg2[%c0_129, %c7, %c0_130] : memref<128x8x32xf32, #tpu.memory_space<vmem>>, vector<128x1x32xf32>
    %461 = vector.shape_cast %460 : vector<128x1x32xf32> to vector<128x32xf32>
    %cst_131 = arith.constant dense<0.000000e+00> : vector<128x5xf32>
    %462 = tpu.matmul %461, %0, %cst_131 {dimension_numbers = #tpu.dot_dimension_numbers<[1], [0], [0], [1], [0, 0, 1, 1], [], []>} : vector<128x32xf32>, vector<32x5xf32>, vector<128x5xf32> -> vector<128x5xf32>
    %463 = tpu.transpose %462, [1, 0] : vector<128x5xf32> -> vector<5x128xf32>
    %464 = vector.broadcast %1 : vector<5x1xf32> to vector<5x128xf32>
    %465 = arith.addf %463, %464 : vector<5x128xf32>
    %466 = vector.extract_strided_slice %6 {offsets = [7, 0], sizes = [1, 128], strides = [1, 1]} : vector<8x128xi32> to vector<1x128xi32>
    %467 = vector.extract_strided_slice %7 {offsets = [7, 0], sizes = [1, 128], strides = [1, 1]} : vector<8x128xi32> to vector<1x128xi32>
    %468 = arith.sitofp %467 : vector<1x128xi32> to vector<1x128xf32>
    %469 = vector.broadcast %466 : vector<1x128xi32> to vector<5x128xi32>
    %470 = arith.cmpi eq, %8, %469 : vector<5x128xi32>
    %471 = arith.extui %470 : vector<5x128xi1> to vector<5x128xi32>
    %472 = arith.sitofp %471 : vector<5x128xi32> to vector<5x128xf32>
    %473 = vector.broadcast %395 : vector<1x128xi32> to vector<5x128xi32>
    %474 = arith.cmpi eq, %8, %473 : vector<5x128xi32>
    %475 = arith.extui %474 : vector<5x128xi1> to vector<5x128xi32>
    %476 = arith.sitofp %475 : vector<5x128xi32> to vector<5x128xf32>
    %cst_132 = arith.constant dense<0.000000e+00> : vector<5x128xf32>
    %477 = tpu.matmul %5, %476, %cst_132 {dimension_numbers = #tpu.dot_dimension_numbers<[1], [0], [0], [1], [0, 0, 1, 1], [], []>} : vector<5x5xf32>, vector<5x128xf32>, vector<5x128xf32> -> vector<5x128xf32>
    %478 = arith.addf %477, %465 : vector<5x128xf32>
    %479 = arith.mulf %472, %478 : vector<5x128xf32>
    %cst_133 = arith.constant dense<0.000000e+00> : vector<128xf32>
    %480 = vector.multi_reduction <add>, %479, %cst_133 [0] : vector<5x128xf32> to vector<128xf32>
    %481 = vector.shape_cast %480 : vector<128xf32> to vector<1x128xf32>
    %482 = arith.mulf %481, %468 : vector<1x128xf32>
    %483 = arith.addf %412, %482 : vector<1x128xf32>
    %484 = vector.shape_cast %431 : vector<5x128xf32> to vector<5x1x128xf32>
    %485 = vector.shape_cast %4 : vector<5x5xf32> to vector<5x5x1xf32>
    %486 = vector.broadcast %484 : vector<5x1x128xf32> to vector<5x5x128xf32>
    %487 = vector.broadcast %485 : vector<5x5x1xf32> to vector<5x5x128xf32>
    %488 = arith.addf %486, %487 : vector<5x5x128xf32>
    %cst_134 = arith.constant dense<0xFF800000> : vector<5x128xf32>
    %489 = vector.multi_reduction <maximumf>, %488, %cst_134 [0] : vector<5x5x128xf32> to vector<5x128xf32>
    %490 = vector.shape_cast %489 : vector<5x128xf32> to vector<1x5x128xf32>
    %491 = vector.broadcast %490 : vector<1x5x128xf32> to vector<5x5x128xf32>
    %492 = arith.subf %488, %491 : vector<5x5x128xf32>
    %493 = math.exp %492 : vector<5x5x128xf32>
    %cst_135 = arith.constant dense<0.000000e+00> : vector<5x128xf32>
    %494 = vector.multi_reduction <add>, %493, %cst_135 [0] : vector<5x5x128xf32> to vector<5x128xf32>
    %495 = math.log %494 : vector<5x128xf32>
    %496 = arith.addf %489, %495 : vector<5x128xf32>
    %497 = arith.addf %496, %465 : vector<5x128xf32>
    %cst_136 = arith.constant 0.000000e+00 : f32
    %498 = vector.broadcast %cst_136 : f32 to vector<1x128xf32>
    %499 = arith.cmpf ogt, %468, %498 : vector<1x128xf32>
    %500 = vector.shape_cast %499 : vector<1x128xi1> to vector<1x128xi1>
    %501 = vector.broadcast %500 : vector<1x128xi1> to vector<5x128xi1>
    %502 = arith.select %501, %497, %431 : vector<5x128xi1>, vector<5x128xf32>
    %503 = vector.shape_cast %453 : vector<5x128xf32> to vector<5x1x128xf32>
    %504 = vector.shape_cast %4 : vector<5x5xf32> to vector<5x5x1xf32>
    %505 = vector.broadcast %503 : vector<5x1x128xf32> to vector<5x5x128xf32>
    %506 = vector.broadcast %504 : vector<5x5x1xf32> to vector<5x5x128xf32>
    %507 = arith.addf %505, %506 : vector<5x5x128xf32>
    %cst_137 = arith.constant dense<0xFF800000> : vector<5x128xf32>
    %508 = vector.multi_reduction <maximumf>, %507, %cst_137 [0] : vector<5x5x128xf32> to vector<5x128xf32>
    %509 = vector.shape_cast %508 : vector<5x128xf32> to vector<1x5x128xf32>
    %510 = vector.broadcast %509 : vector<1x5x128xf32> to vector<5x5x128xf32>
    %511 = arith.cmpf oeq, %507, %510 : vector<5x5x128xf32>
    %c5_i32_138 = arith.constant 5 : i32
    %512 = vector.broadcast %c5_i32_138 : i32 to vector<5x5x128xi32>
    %513 = arith.select %511, %9, %512 : vector<5x5x128xi1>, vector<5x5x128xi32>
    %cst_139 = arith.constant dense<2147483647> : vector<5x128xi32>
    %514 = vector.multi_reduction <minsi>, %513, %cst_139 [0] : vector<5x5x128xi32> to vector<5x128xi32>
    %515 = arith.index_cast %459 : i32 to index
    %c0_140 = arith.constant 0 : index
    %c0_141 = arith.constant 0 : index
    %516 = vector.load %arg18[%515, %c0_140, %c0_141] : memref<8x5x128xi32, #tpu.memory_space<vmem>>, vector<1x5x128xi32>
    %517 = vector.shape_cast %516 : vector<1x5x128xi32> to vector<5x128xi32>
    %518 = vector.shape_cast %514 : vector<5x128xi32> to vector<1x5x128xi32>
    tpu.vector_store %arg18[%515, %c0_140, %c0_141], %518 {strides = array<i32>} : memref<8x5x128xi32, #tpu.memory_space<vmem>>, vector<1x5x128xi32>,
    %cst_142 = arith.constant 0.000000e+00 : f32
    %519 = vector.broadcast %cst_142 : f32 to vector<1x128xf32>
    %520 = arith.cmpf ogt, %468, %519 : vector<1x128xf32>
    %521 = arith.addf %508, %465 : vector<5x128xf32>
    %522 = vector.shape_cast %520 : vector<1x128xi1> to vector<1x128xi1>
    %523 = vector.broadcast %522 : vector<1x128xi1> to vector<5x128xi1>
    %524 = arith.select %523, %521, %453 : vector<5x128xi1>, vector<5x128xf32>
    %c0_i32_143 = arith.constant 0 : i32
    %525 = vector.broadcast %c0_i32_143 : i32 to vector<1x128xi32>
    %526 = arith.cmpi sgt, %467, %525 : vector<1x128xi32>
    %527 = arith.select %526, %466, %456 : vector<1x128xi1>, vector<1x128xi32>
    %528 = arith.addi %457, %467 : vector<1x128xi32>
    %c0_144 = arith.constant 0 : index
    %c0_145 = arith.constant 0 : index
    %529 = vector.load %arg12[%c0_144, %c0_145] : memref<1x128xf32, #tpu.memory_space<vmem>>, vector<1x128xf32>
    tpu.vector_store %arg12[%c0_144, %c0_145], %483 {strides = array<i32>} : memref<1x128xf32, #tpu.memory_space<vmem>>, vector<1x128xf32>,
    %c0_146 = arith.constant 0 : index
    %c0_147 = arith.constant 0 : index
    %530 = vector.load %arg13[%c0_146, %c0_147] : memref<5x128xf32, #tpu.memory_space<vmem>>, vector<5x128xf32>
    tpu.vector_store %arg13[%c0_146, %c0_147], %502 {strides = array<i32>} : memref<5x128xf32, #tpu.memory_space<vmem>>, vector<5x128xf32>,
    %c0_148 = arith.constant 0 : index
    %c0_149 = arith.constant 0 : index
    %531 = vector.load %arg14[%c0_148, %c0_149] : memref<5x128xf32, #tpu.memory_space<vmem>>, vector<5x128xf32>
    tpu.vector_store %arg14[%c0_148, %c0_149], %524 {strides = array<i32>} : memref<5x128xf32, #tpu.memory_space<vmem>>, vector<5x128xf32>,
    %c0_150 = arith.constant 0 : index
    %c0_151 = arith.constant 0 : index
    %532 = vector.load %arg15[%c0_150, %c0_151] : memref<1x128xi32, #tpu.memory_space<vmem>>, vector<1x128xi32>
    tpu.vector_store %arg15[%c0_150, %c0_151], %466 {strides = array<i32>} : memref<1x128xi32, #tpu.memory_space<vmem>>, vector<1x128xi32>,
    %c0_152 = arith.constant 0 : index
    %c0_153 = arith.constant 0 : index
    %533 = vector.load %arg16[%c0_152, %c0_153] : memref<1x128xi32, #tpu.memory_space<vmem>>, vector<1x128xi32>
    tpu.vector_store %arg16[%c0_152, %c0_153], %527 {strides = array<i32>} : memref<1x128xi32, #tpu.memory_space<vmem>>, vector<1x128xi32>,
    %c0_154 = arith.constant 0 : index
    %c0_155 = arith.constant 0 : index
    %534 = vector.load %arg17[%c0_154, %c0_155] : memref<1x128xi32, #tpu.memory_space<vmem>>, vector<1x128xi32>
    tpu.vector_store %arg17[%c0_154, %c0_155], %528 {strides = array<i32>} : memref<1x128xi32, #tpu.memory_space<vmem>>, vector<1x128xi32>,
    %c0_i32_156 = arith.constant 0 : i32
    %535 = arith.cmpi eq, %arg1, %c0_i32_156 : i32
    %536 = arith.extui %535 : i1 to i32
    %c0_i32_157 = arith.constant 0 : i32
    %537 = arith.cmpi ne, %536, %c0_i32_157 : i32
    scf.if %537 {
      %538 = vector.broadcast %527 : vector<1x128xi32> to vector<5x128xi32>
      %539 = arith.cmpi eq, %8, %538 : vector<5x128xi32>
      %540 = arith.extui %539 : vector<5x128xi1> to vector<5x128xi32>
      %541 = arith.sitofp %540 : vector<5x128xi32> to vector<5x128xf32>
      %542 = vector.broadcast %3 : vector<5x1xf32> to vector<5x128xf32>
      %543 = arith.mulf %541, %542 : vector<5x128xf32>
      %cst_158 = arith.constant dense<0.000000e+00> : vector<128xf32>
      %544 = vector.multi_reduction <add>, %543, %cst_158 [0] : vector<5x128xf32> to vector<128xf32>
      %545 = vector.shape_cast %544 : vector<128xf32> to vector<1x128xf32>
      %546 = arith.addf %483, %545 : vector<1x128xf32>
      %547 = vector.broadcast %3 : vector<5x1xf32> to vector<5x128xf32>
      %548 = arith.addf %502, %547 : vector<5x128xf32>
      %cst_159 = arith.constant dense<0xFF800000> : vector<128xf32>
      %549 = vector.multi_reduction <maximumf>, %548, %cst_159 [0] : vector<5x128xf32> to vector<128xf32>
      %550 = vector.shape_cast %549 : vector<128xf32> to vector<1x128xf32>
      %551 = vector.broadcast %550 : vector<1x128xf32> to vector<5x128xf32>
      %552 = arith.subf %548, %551 : vector<5x128xf32>
      %553 = math.exp %552 : vector<5x128xf32>
      %cst_160 = arith.constant dense<0.000000e+00> : vector<128xf32>
      %554 = vector.multi_reduction <add>, %553, %cst_160 [0] : vector<5x128xf32> to vector<128xf32>
      %555 = vector.shape_cast %554 : vector<128xf32> to vector<1x128xf32>
      %556 = math.log %555 : vector<1x128xf32>
      %557 = arith.addf %550, %556 : vector<1x128xf32>
      %558 = arith.subf %546, %557 : vector<1x128xf32>
      %c0_161 = arith.constant 0 : index
      %c0_162 = arith.constant 0 : index
      %559 = vector.load %arg11[%c0_161, %c0_162] : memref<1x128xf32, #tpu.memory_space<vmem>>, vector<1x128xf32>
      tpu.vector_store %arg11[%c0_161, %c0_162], %558 {strides = array<i32>} : memref<1x128xf32, #tpu.memory_space<vmem>>, vector<1x128xf32>,
      %560 = vector.broadcast %3 : vector<5x1xf32> to vector<5x128xf32>
      %561 = arith.addf %524, %560 : vector<5x128xf32>
      %cst_163 = arith.constant dense<0xFF800000> : vector<128xf32>
      %562 = vector.multi_reduction <maximumf>, %561, %cst_163 [0] : vector<5x128xf32> to vector<128xf32>
      %563 = vector.shape_cast %562 : vector<128xf32> to vector<1x128xf32>
      %564 = vector.broadcast %563 : vector<1x128xf32> to vector<5x128xf32>
      %565 = arith.cmpf oeq, %561, %564 : vector<5x128xf32>
      %c5_i32_164 = arith.constant 5 : i32
      %566 = vector.broadcast %c5_i32_164 : i32 to vector<5x128xi32>
      %567 = arith.select %565, %8, %566 : vector<5x128xi1>, vector<5x128xi32>
      %cst_165 = arith.constant dense<2147483647> : vector<128xi32>
      %568 = vector.multi_reduction <minsi>, %567, %cst_165 [0] : vector<5x128xi32> to vector<128xi32>
      %569 = vector.shape_cast %568 : vector<128xi32> to vector<1x128xi32>
      %c1_i32_166 = arith.constant 1 : i32
      %570 = vector.broadcast %c1_i32_166 : i32 to vector<1x128xi32>
      %571 = arith.subi %528, %570 : vector<1x128xi32>
      %c7_i32_167 = arith.constant 7 : i32
      %572 = vector.broadcast %c7_i32_167 : i32 to vector<1x128xi32>
      %573 = arith.cmpi eq, %571, %572 : vector<1x128xi32>
      %c0_i32_168 = arith.constant 0 : i32
      %574 = vector.broadcast %c0_i32_168 : i32 to vector<1x128xi32>
      %575 = arith.select %573, %569, %574 : vector<1x128xi1>, vector<1x128xi32>
      %c7_169 = arith.constant 7 : index
      %c0_170 = arith.constant 0 : index
      %576 = vector.load %arg10[%c7_169, %c0_170] : memref<8x128xi32, #tpu.memory_space<vmem>>, vector<1x128xi32>
      tpu.vector_store %arg10[%c7_169, %c0_170], %575 {strides = array<i32>} : memref<8x128xi32, #tpu.memory_space<vmem>>, vector<1x128xi32>,
      %c0_i32_171 = arith.constant 0 : i32
      %c7_i32_172 = arith.constant 7 : i32
      %577 = arith.addi %c0_i32_171, %c7_i32_172 : i32
      %c1_i32_173 = arith.constant 1 : i32
      %578 = scf.for %arg19 = %c0_i32_171 to %577 step %c1_i32_173 iter_args(%arg20 = %575) -> (vector<1x128xi32>)  : i32 {
        %c6_i32_177 = arith.constant 6 : i32
        %580 = arith.subi %c6_i32_177, %arg19 : i32
        %c1_i32_178 = arith.constant 1 : i32
        %581 = arith.addi %580, %c1_i32_178 : i32
        %582 = arith.index_cast %581 : i32 to index
        %c0_179 = arith.constant 0 : index
        %c0_180 = arith.constant 0 : index
        %583 = vector.load %arg18[%582, %c0_179, %c0_180] : memref<8x5x128xi32, #tpu.memory_space<vmem>>, vector<1x5x128xi32>
        %584 = vector.shape_cast %583 : vector<1x5x128xi32> to vector<5x128xi32>
        %585 = vector.broadcast %arg20 : vector<1x128xi32> to vector<5x128xi32>
        %586 = arith.cmpi eq, %8, %585 : vector<5x128xi32>
        %c0_i32_181 = arith.constant 0 : i32
        %587 = vector.broadcast %c0_i32_181 : i32 to vector<5x128xi32>
        %588 = arith.select %586, %584, %587 : vector<5x128xi1>, vector<5x128xi32>
        %cst_182 = arith.constant dense<0> : vector<128xi32>
        %589 = vector.multi_reduction <add>, %588, %cst_182 [0] : vector<5x128xi32> to vector<128xi32>
        %590 = vector.shape_cast %589 : vector<128xi32> to vector<1x128xi32>
        %591 = vector.broadcast %580 : i32 to vector<1x128xi32>
        %592 = arith.cmpi eq, %571, %591 : vector<1x128xi32>
        %593 = vector.broadcast %580 : i32 to vector<1x128xi32>
        %594 = arith.cmpi sgt, %571, %593 : vector<1x128xi32>
        %c0_i32_183 = arith.constant 0 : i32
        %595 = vector.broadcast %c0_i32_183 : i32 to vector<1x128xi32>
        %596 = arith.select %594, %590, %595 : vector<1x128xi1>, vector<1x128xi32>
        %597 = arith.select %592, %569, %596 : vector<1x128xi1>, vector<1x128xi32>
        %598 = arith.index_cast %580 : i32 to index
        %c0_184 = arith.constant 0 : index
        %599 = vector.load %arg10[%598, %c0_184] : memref<8x128xi32, #tpu.memory_space<vmem>>, vector<1x128xi32>
        tpu.vector_store %arg10[%598, %c0_184], %597 {strides = array<i32>} : memref<8x128xi32, #tpu.memory_space<vmem>>, vector<1x128xi32>,
        scf.yield %597 : vector<1x128xi32>
      }
      %c7_i32_174 = arith.constant 7 : i32
      %c0_175 = arith.constant 0 : index
      %c0_176 = arith.constant 0 : index
      %579 = vector.load %arg10[%c0_175, %c0_176] : memref<8x128xi32, #tpu.memory_space<vmem>>, vector<1x128xi32>
      tpu.vector_store %arg10[%c0_175, %c0_176], %578 {strides = array<i32>} : memref<8x128xi32, #tpu.memory_space<vmem>>, vector<1x128xi32>,
    } else {
    }
    return
  }
  func.func @transform_0(%arg0: i32, %arg1: i32) -> (i32, i32, i32) {
    %c0_i32 = arith.constant 0 : i32
    %c0_i32_0 = arith.constant 0 : i32
    return %arg0, %arg1, %c0_i32 : i32, i32, i32
  }
  func.func @transform_1(%arg0: i32, %arg1: i32) -> (i32, i32) {
    %c0_i32 = arith.constant 0 : i32
    %c0_i32_0 = arith.constant 0 : i32
    %c0_i32_1 = arith.constant 0 : i32
    return %c0_i32, %c0_i32_0 : i32, i32
  }
  func.func @transform_2(%arg0: i32, %arg1: i32) -> (i32, i32) {
    %c0_i32 = arith.constant 0 : i32
    %c0_i32_0 = arith.constant 0 : i32
    %c0_i32_1 = arith.constant 0 : i32
    return %c0_i32, %c0_i32_0 : i32, i32
  }
  func.func @transform_3(%arg0: i32, %arg1: i32) -> (i32, i32) {
    %c0_i32 = arith.constant 0 : i32
    %c0_i32_0 = arith.constant 0 : i32
    %c0_i32_1 = arith.constant 0 : i32
    return %c0_i32, %c0_i32_0 : i32, i32
  }
  func.func @transform_4(%arg0: i32, %arg1: i32) -> (i32, i32) {
    %c0_i32 = arith.constant 0 : i32
    %c0_i32_0 = arith.constant 0 : i32
    %c0_i32_1 = arith.constant 0 : i32
    return %c0_i32, %c0_i32_0 : i32, i32
  }
  func.func @transform_5(%arg0: i32, %arg1: i32) -> (i32, i32) {
    %c0_i32 = arith.constant 0 : i32
    %c0_i32_0 = arith.constant 0 : i32
    %c0_i32_1 = arith.constant 0 : i32
    return %c0_i32, %c0_i32_0 : i32, i32
  }
  func.func @transform_6(%arg0: i32, %arg1: i32) -> (i32, i32) {
    %c0_i32 = arith.constant 0 : i32
    return %arg1, %arg0 : i32, i32
  }
  func.func @transform_7(%arg0: i32, %arg1: i32) -> (i32, i32) {
    %c0_i32 = arith.constant 0 : i32
    return %arg1, %arg0 : i32, i32
  }
  func.func @transform_8(%arg0: i32, %arg1: i32) -> (i32, i32) {
    %c0_i32 = arith.constant 0 : i32
    %c0_i32_0 = arith.constant 0 : i32
    return %c0_i32, %arg0 : i32, i32
  }
  func.func @transform_9(%arg0: i32, %arg1: i32) -> (i32, i32) {
    %c0_i32 = arith.constant 0 : i32
    %c0_i32_0 = arith.constant 0 : i32
    return %c0_i32, %arg0 : i32, i32
  }
}

</mosaic_0001>

<llo_original>
// kernel: sequence_label_forward.1
$region0: #{sequence_label_forward.1}
  #allocation0 [shape = 'u32[]', space=smem, size = 0x4, offset = 0x4, fixed_abs, tag = 'smem constant byte address 0x4 - core index']
  #allocation1 [shape = 'u32[72,128]{1,0:T(1,128)}', space=vmem, size = 0x9000, scoped, tag = 'internal scratch']
  #allocation2 [shape = 'f32[1,128]{1,0:T(1,128)}', space=vmem, size = 0x200, scoped, tag = 'scratch operand']
  #allocation3 [shape = 'f32[5,128]{1,0:T(8,128)}', space=vmem, size = 0x1000, scoped, tag = 'scratch operand']
  #allocation4 [shape = 'f32[5,128]{1,0:T(8,128)}', space=vmem, size = 0x1000, scoped, tag = 'scratch operand']
  #allocation5 [shape = 's32[1,128]{1,0:T(1,128)}', space=vmem, size = 0x200, scoped, tag = 'scratch operand']
  #allocation6 [shape = 's32[1,128]{1,0:T(1,128)}', space=vmem, size = 0x200, scoped, tag = 'scratch operand']
  #allocation7 [shape = 's32[1,128]{1,0:T(1,128)}', space=vmem, size = 0x200, scoped, tag = 'scratch operand']
  #allocation8 [shape = 's32[8,5,128]{2,1,0:T(8,128)}', space=vmem, size = 0x8000, scoped, tag = 'scratch operand']
  %s0 = inlined_call_operand.vmem [shape: f32[128,8,32], index: 0, kind: input, shape index: {}]
  %s1 = inlined_call_operand.vmem [shape: f32[32,5], index: 1, kind: input, shape index: {}]
  %s2 = inlined_call_operand.vmem [shape: f32[5,1], index: 2, kind: input, shape index: {}]
  %s3 = inlined_call_operand.vmem [shape: f32[5,1], index: 3, kind: input, shape index: {}]
  %s4 = inlined_call_operand.vmem [shape: f32[5,1], index: 4, kind: input, shape index: {}]
  %s5 = inlined_call_operand.vmem [shape: f32[5,5], index: 5, kind: input, shape index: {}]
  %s6 = inlined_call_operand.vmem [shape: s32[8,128], index: 6, kind: input, shape index: {}]
  %s7 = inlined_call_operand.vmem [shape: s32[8,128], index: 7, kind: input, shape index: {}]
  %s8 = inlined_call_operand.vmem [shape: s32[8,128], index: 8, kind: output, shape index: {0}]
  %s9 = inlined_call_operand.vmem [shape: f32[1,128], index: 9, kind: output, shape index: {1}]
  %10 = xla_tuple %s8, %s9
  %s11 = sld [smem:[#allocation0]]
  $region69: #{sequence_label_forward.1} parent=0
    _
  %s13 = ssub.s32 1, %s11
  %s14 = scalar_select 0, %s13, %s11
  // Predicated region
  $region2: #{sequence_label_forward.1} parent=0 // pred_check
    _
  $region3: #{sequence_label_forward.1} parent=0 // pred_check_branch
    %16 = sbr.rel (0) target = $region5
  $region4: #{sequence_label_forward.1} parent=0 // pred_region
    _
  $region5: #{sequence_label_forward.1} parent=0 // pred_fallthru
    _
  // Predicated region
  $region6: #{sequence_label_forward.1} parent=0 // pred_check
    _
  $region7: #{sequence_label_forward.1} parent=0 // pred_check_branch
    %18 = sbr.rel (0) target = $region9
  $region8: #{sequence_label_forward.1} parent=0 // pred_region
    _
  $region9: #{sequence_label_forward.1} parent=0 // pred_fallthru
    _
  // Predicated region
  $region10: #{sequence_label_forward.1} parent=0 // pred_check
    _
  $region11: #{sequence_label_forward.1} parent=0 // pred_check_branch
    %20 = sbr.rel (0) target = $region13
  $region12: #{sequence_label_forward.1} parent=0 // pred_region
    _
  $region13: #{sequence_label_forward.1} parent=0 // pred_fallthru
    _
  // Predicated region
  $region14: #{sequence_label_forward.1} parent=0 // pred_check
    _
  $region15: #{sequence_label_forward.1} parent=0 // pred_check_branch
    %22 = sbr.rel (0) target = $region17
  $region16: #{sequence_label_forward.1} parent=0 // pred_region
    _
  $region17: #{sequence_label_forward.1} parent=0 // pred_fallthru
    _
  // Predicated region
  $region18: #{sequence_label_forward.1} parent=0 // pred_check
    _
  $region19: #{sequence_label_forward.1} parent=0 // pred_check_branch
    %24 = sbr.rel (0) target = $region21
  $region20: #{sequence_label_forward.1} parent=0 // pred_region
    _
  $region21: #{sequence_label_forward.1} parent=0 // pred_fallthru
    _
  // Predicated region
  $region22: #{sequence_label_forward.1} parent=0 // pred_check
    _
  $region23: #{sequence_label_forward.1} parent=0 // pred_check_branch
    %26 = sbr.rel (0) target = $region25
  $region24: #{sequence_label_forward.1} parent=0 // pred_region
    _
  $region25: #{sequence_label_forward.1} parent=0 // pred_fallthru
    _
  // Predicated region
  $region26: #{sequence_label_forward.1} parent=0 // pred_check
    _
  $region27: #{sequence_label_forward.1} parent=0 // pred_check_branch
    %28 = sbr.rel (0) target = $region29
  $region28: #{sequence_label_forward.1} parent=0 // pred_region
    _
  $region29: #{sequence_label_forward.1} parent=0 // pred_fallthru
    _
  // Predicated region
  $region30: #{sequence_label_forward.1} parent=0 // pred_check
    _
  $region31: #{sequence_label_forward.1} parent=0 // pred_check_branch
    %30 = sbr.rel (0) target = $region33
  $region32: #{sequence_label_forward.1} parent=0 // pred_region
    _
  $region33: #{sequence_label_forward.1} parent=0 // pred_fallthru
    _
  %v31 = vld [vmem:[%s1] sm:$0xff]
  %v32 = vld [vmem:[%s1 + $0x8] sm:$0xff]
  %v33 = vld [vmem:[%s1 + $0x10] sm:$0xff]
  %v34 = vld [vmem:[%s1 + $0x18] sm:$0xff]
  %v35 = vld [vmem:[%s2] sm:$0x1f]
  %v36 = vld [vmem:[%s3] sm:$0x1f]
  %v37 = vld [vmem:[%s4] sm:$0x1f]
  %v38 = vld [vmem:[%s5] sm:$0x1f]
  %39 = vxpose.xlu0.b32.start [1/16] %v38, 128
  %40 = vxpose.xlu0.b32.cont [2/16] 0.0, 128
  %41 = vxpose.xlu0.b32.cont [3/16] 0.0, 128
  %42 = vxpose.xlu0.b32.cont [4/16] 0.0, 128
  %43 = vxpose.xlu0.b32.cont [5/16] 0.0, 128
  %44 = vxpose.xlu0.b32.cont [6/16] 0.0, 128
  %45 = vxpose.xlu0.b32.cont [7/16] 0.0, 128
  %46 = vxpose.xlu0.b32.cont [8/16] 0.0, 128
  %47 = vxpose.xlu0.b32.cont [9/16] 0.0, 128
  %48 = vxpose.xlu0.b32.cont [10/16] 0.0, 128
  %49 = vxpose.xlu0.b32.cont [11/16] 0.0, 128
  %50 = vxpose.xlu0.b32.cont [12/16] 0.0, 128
  %51 = vxpose.xlu0.b32.cont [13/16] 0.0, 128
  %52 = vxpose.xlu0.b32.cont [14/16] 0.0, 128
  %53 = vxpose.xlu0.b32.cont [15/16] 0.0, 128
  %54 = vxpose.xlu0.b32.end [16/16] 0.0, 128
  %v55 = vpop.trf.xlu0
  %v56 = vpop.trf.xlu0
  %v57 = vpop.trf.xlu0
  %v58 = vpop.trf.xlu0
  %v59 = vpop.trf.xlu0
  %v60 = vpop.trf.xlu0
  %v61 = vpop.trf.xlu0
  %v62 = vpop.trf.xlu0
  %v63 = vpop.trf.xlu0
  %v64 = vpop.trf.xlu0
  %v65 = vpop.trf.xlu0
  %v66 = vpop.trf.xlu0
  %v67 = vpop.trf.xlu0
  %v68 = vpop.trf.xlu0
  %v69 = vpop.trf.xlu0
  %v70 = vpop.trf.xlu0
  %v71 = vld [vmem:[%s6] sm:$0xff]
  %v72 = vld [vmem:[%s7] sm:$0xff]
  %v73 = vlaneseq
  %v74 = vshrl.u32 %v73, 7
  %s75 = smul.u32 0, 8
  %v76 = vld [vmem:[%s0] sm:$0x1]
  %v77 = vld [vmem:[%s0 + $0x8] sm:$0x1]
  %v78 = vld [vmem:[%s0 + $0x10] sm:$0x1]
  %v79 = vld [vmem:[%s0 + $0x18] sm:$0x1]
  %v80 = vld [vmem:[%s0 + $0x20] sm:$0x1]
  %v81 = vld [vmem:[%s0 + $0x28] sm:$0x1]
  %v82 = vld [vmem:[%s0 + $0x30] sm:$0x1]
  %v83 = vld [vmem:[%s0 + $0x38] sm:$0x1]
  %v84 = vld [vmem:[%s0 + $0x40] sm:$0x1]
  %v85 = vld [vmem:[%s0 + $0x48] sm:$0x1]
  %v86 = vld [vmem:[%s0 + $0x50] sm:$0x1]
  %v87 = vld [vmem:[%s0 + $0x58] sm:$0x1]
  %v88 = vld [vmem:[%s0 + $0x60] sm:$0x1]
  %v89 = vld [vmem:[%s0 + $0x68] sm:$0x1]
  %v90 = vld [vmem:[%s0 + $0x70] sm:$0x1]
  %v91 = vld [vmem:[%s0 + $0x78] sm:$0x1]
  %v92 = vld [vmem:[%s0 + $0x80] sm:$0x1]
  %v93 = vld [vmem:[%s0 + $0x88] sm:$0x1]
  %v94 = vld [vmem:[%s0 + $0x90] sm:$0x1]
  %v95 = vld [vmem:[%s0 + $0x98] sm:$0x1]
  %v96 = vld [vmem:[%s0 + $0xa0] sm:$0x1]
  %v97 = vld [vmem:[%s0 + $0xa8] sm:$0x1]
  %v98 = vld [vmem:[%s0 + $0xb0] sm:$0x1]
  %v99 = vld [vmem:[%s0 + $0xb8] sm:$0x1]
  %v100 = vld [vmem:[%s0 + $0xc0] sm:$0x1]
  %v101 = vld [vmem:[%s0 + $0xc8] sm:$0x1]
  %v102 = vld [vmem:[%s0 + $0xd0] sm:$0x1]
  %v103 = vld [vmem:[%s0 + $0xd8] sm:$0x1]
  %v104 = vld [vmem:[%s0 + $0xe0] sm:$0x1]
  %v105 = vld [vmem:[%s0 + $0xe8] sm:$0x1]
  %v106 = vld [vmem:[%s0 + $0xf0] sm:$0x1]
  %v107 = vld [vmem:[%s0 + $0xf8] sm:$0x1]
  %v108 = vld [vmem:[%s0 + $0x100] sm:$0x1]
  %v109 = vld [vmem:[%s0 + $0x108] sm:$0x1]
  %v110 = vld [vmem:[%s0 + $0x110] sm:$0x1]
  %v111 = vld [vmem:[%s0 + $0x118] sm:$0x1]
  %v112 = vld [vmem:[%s0 + $0x120] sm:$0x1]
  %v113 = vld [vmem:[%s0 + $0x128] sm:$0x1]
  %v114 = vld [vmem:[%s0 + $0x130] sm:$0x1]
  %v115 = vld [vmem:[%s0 + $0x138] sm:$0x1]
  %v116 = vld [vmem:[%s0 + $0x140] sm:$0x1]
  %v117 = vld [vmem:[%s0 + $0x148] sm:$0x1]
  %v118 = vld [vmem:[%s0 + $0x150] sm:$0x1]
  %v119 = vld [vmem:[%s0 + $0x158] sm:$0x1]
  %v120 = vld [vmem:[%s0 + $0x160] sm:$0x1]
  %v121 = vld [vmem:[%s0 + $0x168] sm:$0x1]
  %v122 = vld [vmem:[%s0 + $0x170] sm:$0x1]
  %v123 = vld [vmem:[%s0 + $0x178] sm:$0x1]
  %v124 = vld [vmem:[%s0 + $0x180] sm:$0x1]
  %v125 = vld [vmem:[%s0 + $0x188] sm:$0x1]
  %v126 = vld [vmem:[%s0 + $0x190] sm:$0x1]
  %v127 = vld [vmem:[%s0 + $0x198] sm:$0x1]
  %v128 = vld [vmem:[%s0 + $0x1a0] sm:$0x1]
  %v129 = vld [vmem:[%s0 + $0x1a8] sm:$0x1]
  %v130 = vld [vmem:[%s0 + $0x1b0] sm:$0x1]
  %v131 = vld [vmem:[%s0 + $0x1b8] sm:$0x1]
  %v132 = vld [vmem:[%s0 + $0x1c0] sm:$0x1]
  %v133 = vld [vmem:[%s0 + $0x1c8] sm:$0x1]
  %v134 = vld [vmem:[%s0 + $0x1d0] sm:$0x1]
  %v135 = vld [vmem:[%s0 + $0x1d8] sm:$0x1]
  %v136 = vld [vmem:[%s0 + $0x1e0] sm:$0x1]
  %v137 = vld [vmem:[%s0 + $0x1e8] sm:$0x1]
  %v138 = vld [vmem:[%s0 + $0x1f0] sm:$0x1]
  %v139 = vld [vmem:[%s0 + $0x1f8] sm:$0x1]
  %v140 = vld [vmem:[%s0 + $0x200] sm:$0x1]
  %v141 = vld [vmem:[%s0 + $0x208] sm:$0x1]
  %v142 = vld [vmem:[%s0 + $0x210] sm:$0x1]
  %v143 = vld [vmem:[%s0 + $0x218] sm:$0x1]
  %v144 = vld [vmem:[%s0 + $0x220] sm:$0x1]
  %v145 = vld [vmem:[%s0 + $0x228] sm:$0x1]
  %v146 = vld [vmem:[%s0 + $0x230] sm:$0x1]
  %v147 = vld [vmem:[%s0 + $0x238] sm:$0x1]
  %v148 = vld [vmem:[%s0 + $0x240] sm:$0x1]
  %v149 = vld [vmem:[%s0 + $0x248] sm:$0x1]
  %v150 = vld [vmem:[%s0 + $0x250] sm:$0x1]
  %v151 = vld [vmem:[%s0 + $0x258] sm:$0x1]
  %v152 = vld [vmem:[%s0 + $0x260] sm:$0x1]
  %v153 = vld [vmem:[%s0 + $0x268] sm:$0x1]
  %v154 = vld [vmem:[%s0 + $0x270] sm:$0x1]
  %v155 = vld [vmem:[%s0 + $0x278] sm:$0x1]
  %v156 = vld [vmem:[%s0 + $0x280] sm:$0x1]
  %v157 = vld [vmem:[%s0 + $0x288] sm:$0x1]
  %v158 = vld [vmem:[%s0 + $0x290] sm:$0x1]
  %v159 = vld [vmem:[%s0 + $0x298] sm:$0x1]
  %v160 = vld [vmem:[%s0 + $0x2a0] sm:$0x1]
  %v161 = vld [vmem:[%s0 + $0x2a8] sm:$0x1]
  %v162 = vld [vmem:[%s0 + $0x2b0] sm:$0x1]
  %v163 = vld [vmem:[%s0 + $0x2b8] sm:$0x1]
  %v164 = vld [vmem:[%s0 + $0x2c0] sm:$0x1]
  %v165 = vld [vmem:[%s0 + $0x2c8] sm:$0x1]
  %v166 = vld [vmem:[%s0 + $0x2d0] sm:$0x1]
  %v167 = vld [vmem:[%s0 + $0x2d8] sm:$0x1]
  %v168 = vld [vmem:[%s0 + $0x2e0] sm:$0x1]
  %v169 = vld [vmem:[%s0 + $0x2e8] sm:$0x1]
  %v170 = vld [vmem:[%s0 + $0x2f0] sm:$0x1]
  %v171 = vld [vmem:[%s0 + $0x2f8] sm:$0x1]
  %v172 = vld [vmem:[%s0 + $0x300] sm:$0x1]
  %v173 = vld [vmem:[%s0 + $0x308] sm:$0x1]
  %v174 = vld [vmem:[%s0 + $0x310] sm:$0x1]
  %v175 = vld [vmem:[%s0 + $0x318] sm:$0x1]
  %v176 = vld [vmem:[%s0 + $0x320] sm:$0x1]
  %v177 = vld [vmem:[%s0 + $0x328] sm:$0x1]
  %v178 = vld [vmem:[%s0 + $0x330] sm:$0x1]
  %v179 = vld [vmem:[%s0 + $0x338] sm:$0x1]
  %v180 = vld [vmem:[%s0 + $0x340] sm:$0x1]
  %v181 = vld [vmem:[%s0 + $0x348] sm:$0x1]
  %v182 = vld [vmem:[%s0 + $0x350] sm:$0x1]
  %v183 = vld [vmem:[%s0 + $0x358] sm:$0x1]
  %v184 = vld [vmem:[%s0 + $0x360] sm:$0x1]
  %v185 = vld [vmem:[%s0 + $0x368] sm:$0x1]
  %v186 = vld [vmem:[%s0 + $0x370] sm:$0x1]
  %v187 = vld [vmem:[%s0 + $0x378] sm:$0x1]
  %v188 = vld [vmem:[%s0 + $0x380] sm:$0x1]
  %v189 = vld [vmem:[%s0 + $0x388] sm:$0x1]
  %v190 = vld [vmem:[%s0 + $0x390] sm:$0x1]
  %v191 = vld [vmem:[%s0 + $0x398] sm:$0x1]
  %v192 = vld [vmem:[%s0 + $0x3a0] sm:$0x1]
  %v193 = vld [vmem:[%s0 + $0x3a8] sm:$0x1]
  %v194 = vld [vmem:[%s0 + $0x3b0] sm:$0x1]
  %v195 = vld [vmem:[%s0 + $0x3b8] sm:$0x1]
  %v196 = vld [vmem:[%s0 + $0x3c0] sm:$0x1]
  %v197 = vld [vmem:[%s0 + $0x3c8] sm:$0x1]
  %v198 = vld [vmem:[%s0 + $0x3d0] sm:$0x1]
  %v199 = vld [vmem:[%s0 + $0x3d8] sm:$0x1]
  %v200 = vld [vmem:[%s0 + $0x3e0] sm:$0x1]
  %v201 = vld [vmem:[%s0 + $0x3e8] sm:$0x1]
  %v202 = vld [vmem:[%s0 + $0x3f0] sm:$0x1]
  %v203 = vld [vmem:[%s0 + $0x3f8] sm:$0x1]
  %v332 = vrot.slane %v77, 7
  %vm333 = vcmask 1041409
  %v334 = vsel %vm333, %v332, %v76
  %v335 = vrot.slane %v78, 6
  %vm336 = vcmask 1042434
  %v337 = vsel %vm336, %v335, %v334
  %v338 = vrot.slane %v79, 5
  %vm339 = vcmask 1043459
  %v340 = vsel %vm339, %v338, %v337
  %v341 = vrot.slane %v80, 4
  %vm342 = vcmask 1044484
  %v343 = vsel %vm342, %v341, %v340
  %v344 = vrot.slane %v81, 3
  %vm345 = vcmask 1045509
  %v346 = vsel %vm345, %v344, %v343
  %v347 = vrot.slane %v82, 2
  %vm348 = vcmask 1046534
  %v349 = vsel %vm348, %v347, %v346
  %v350 = vrot.slane %v83, 1
  %vm351 = vcmask 1047559
  %v352 = vsel %vm351, %v350, %v349
  %v353 = vrot.slane %v85, 7
  %v354 = vsel %vm333, %v353, %v84
  %v355 = vrot.slane %v86, 6
  %v356 = vsel %vm336, %v355, %v354
  %v357 = vrot.slane %v87, 5
  %v358 = vsel %vm339, %v357, %v356
  %v359 = vrot.slane %v88, 4
  %v360 = vsel %vm342, %v359, %v358
  %v361 = vrot.slane %v89, 3
  %v362 = vsel %vm345, %v361, %v360
  %v363 = vrot.slane %v90, 2
  %v364 = vsel %vm348, %v363, %v362
  %v365 = vrot.slane %v91, 1
  %v366 = vsel %vm351, %v365, %v364
  %v367 = vrot.slane %v93, 7
  %v368 = vsel %vm333, %v367, %v92
  %v369 = vrot.slane %v94, 6
  %v370 = vsel %vm336, %v369, %v368
  %v371 = vrot.slane %v95, 5
  %v372 = vsel %vm339, %v371, %v370
  %v373 = vrot.slane %v96, 4
  %v374 = vsel %vm342, %v373, %v372
  %v375 = vrot.slane %v97, 3
  %v376 = vsel %vm345, %v375, %v374
  %v377 = vrot.slane %v98, 2
  %v378 = vsel %vm348, %v377, %v376
  %v379 = vrot.slane %v99, 1
  %v380 = vsel %vm351, %v379, %v378
  %v381 = vrot.slane %v101, 7
  %v382 = vsel %vm333, %v381, %v100
  %v383 = vrot.slane %v102, 6
  %v384 = vsel %vm336, %v383, %v382
  %v385 = vrot.slane %v103, 5
  %v386 = vsel %vm339, %v385, %v384
  %v387 = vrot.slane %v104, 4
  %v388 = vsel %vm342, %v387, %v386
  %v389 = vrot.slane %v105, 3
  %v390 = vsel %vm345, %v389, %v388
  %v391 = vrot.slane %v106, 2
  %v392 = vsel %vm348, %v391, %v390
  %v393 = vrot.slane %v107, 1
  %v394 = vsel %vm351, %v393, %v392
  %v395 = vrot.slane %v109, 7
  %v396 = vsel %vm333, %v395, %v108
  %v397 = vrot.slane %v110, 6
  %v398 = vsel %vm336, %v397, %v396
  %v399 = vrot.slane %v111, 5
  %v400 = vsel %vm339, %v399, %v398
  %v401 = vrot.slane %v112, 4
  %v402 = vsel %vm342, %v401, %v400
  %v403 = vrot.slane %v113, 3
  %v404 = vsel %vm345, %v403, %v402
  %v405 = vrot.slane %v114, 2
  %v406 = vsel %vm348, %v405, %v404
  %v407 = vrot.slane %v115, 1
  %v408 = vsel %vm351, %v407, %v406
  %v409 = vrot.slane %v117, 7
  %v410 = vsel %vm333, %v409, %v116
  %v411 = vrot.slane %v118, 6
  %v412 = vsel %vm336, %v411, %v410
  %v413 = vrot.slane %v119, 5
  %v414 = vsel %vm339, %v413, %v412
  %v415 = vrot.slane %v120, 4
  %v416 = vsel %vm342, %v415, %v414
  %v417 = vrot.slane %v121, 3
  %v418 = vsel %vm345, %v417, %v416
  %v419 = vrot.slane %v122, 2
  %v420 = vsel %vm348, %v419, %v418
  %v421 = vrot.slane %v123, 1
  %v422 = vsel %vm351, %v421, %v420
  %v423 = vrot.slane %v125, 7
  %v424 = vsel %vm333, %v423, %v124
  %v425 = vrot.slane %v126, 6
  %v426 = vsel %vm336, %v425, %v424
  %v427 = vrot.slane %v127, 5
  %v428 = vsel %vm339, %v427, %v426
  %v429 = vrot.slane %v128, 4
  %v430 = vsel %vm342, %v429, %v428
  %v431 = vrot.slane %v129, 3
  %v432 = vsel %vm345, %v431, %v430
  %v433 = vrot.slane %v130, 2
  %v434 = vsel %vm348, %v433, %v432
  %v435 = vrot.slane %v131, 1
  %v436 = vsel %vm351, %v435, %v434
  %v437 = vrot.slane %v133, 7
  %v438 = vsel %vm333, %v437, %v132
  %v439 = vrot.slane %v134, 6
  %v440 = vsel %vm336, %v439, %v438
  %v441 = vrot.slane %v135, 5
  %v442 = vsel %vm339, %v441, %v440
  %v443 = vrot.slane %v136, 4
  %v444 = vsel %vm342, %v443, %v442
  %v445 = vrot.slane %v137, 3
  %v446 = vsel %vm345, %v445, %v444
  %v447 = vrot.slane %v138, 2
  %v448 = vsel %vm348, %v447, %v446
  %v449 = vrot.slane %v139, 1
  %v450 = vsel %vm351, %v449, %v448
  %v451 = vrot.slane %v141, 7
  %v452 = vsel %vm333, %v451, %v140
  %v453 = vrot.slane %v142, 6
  %v454 = vsel %vm336, %v453, %v452
  %v455 = vrot.slane %v143, 5
  %v456 = vsel %vm339, %v455, %v454
  %v457 = vrot.slane %v144, 4
  %v458 = vsel %vm342, %v457, %v456
  %v459 = vrot.slane %v145, 3
  %v460 = vsel %vm345, %v459, %v458
  %v461 = vrot.slane %v146, 2
  %v462 = vsel %vm348, %v461, %v460
  %v463 = vrot.slane %v147, 1
  %v464 = vsel %vm351, %v463, %v462
  %v465 = vrot.slane %v149, 7
  %v466 = vsel %vm333, %v465, %v148
  %v467 = vrot.slane %v150, 6
  %v468 = vsel %vm336, %v467, %v466
  %v469 = vrot.slane %v151, 5
  %v470 = vsel %vm339, %v469, %v468
  %v471 = vrot.slane %v152, 4
  %v472 = vsel %vm342, %v471, %v470
  %v473 = vrot.slane %v153, 3
  %v474 = vsel %vm345, %v473, %v472
  %v475 = vrot.slane %v154, 2
  %v476 = vsel %vm348, %v475, %v474
  %v477 = vrot.slane %v155, 1
  %v478 = vsel %vm351, %v477, %v476
  %v479 = vrot.slane %v157, 7
  %v480 = vsel %vm333, %v479, %v156
  %v481 = vrot.slane %v158, 6
  %v482 = vsel %vm336, %v481, %v480
  %v483 = vrot.slane %v159, 5
  %v484 = vsel %vm339, %v483, %v482
  %v485 = vrot.slane %v160, 4
  %v486 = vsel %vm342, %v485, %v484
  %v487 = vrot.slane %v161, 3
  %v488 = vsel %vm345, %v487, %v486
  %v489 = vrot.slane %v162, 2
  %v490 = vsel %vm348, %v489, %v488
  %v491 = vrot.slane %v163, 1
  %v492 = vsel %vm351, %v491, %v490
  %v493 = vrot.slane %v165, 7
  %v494 = vsel %vm333, %v493, %v164
  %v495 = vrot.slane %v166, 6
  %v496 = vsel %vm336, %v495, %v494
  %v497 = vrot.slane %v167, 5
  %v498 = vsel %vm339, %v497, %v496
  %v499 = vrot.slane %v168, 4
  %v500 = vsel %vm342, %v499, %v498
  %v501 = vrot.slane %v169, 3
  %v502 = vsel %vm345, %v501, %v500
  %v503 = vrot.slane %v170, 2
  %v504 = vsel %vm348, %v503, %v502
  %v505 = vrot.slane %v171, 1
  %v506 = vsel %vm351, %v505, %v504
  %v507 = vrot.slane %v173, 7
  %v508 = vsel %vm333, %v507, %v172
  %v509 = vrot.slane %v174, 6
  %v510 = vsel %vm336, %v509, %v508
  %v511 = vrot.slane %v175, 5
  %v512 = vsel %vm339, %v511, %v510
  %v513 = vrot.slane %v176, 4
  %v514 = vsel %vm342, %v513, %v512
  %v515 = vrot.slane %v177, 3
  %v516 = vsel %vm345, %v515, %v514
  %v517 = vrot.slane %v178, 2
  %v518 = vsel %vm348, %v517, %v516
  %v519 = vrot.slane %v179, 1
  %v520 = vsel %vm351, %v519, %v518
  %v521 = vrot.slane %v181, 7
  %v522 = vsel %vm333, %v521, %v180
  %v523 = vrot.slane %v182, 6
  %v524 = vsel %vm336, %v523, %v522
  %v525 = vrot.slane %v183, 5
  %v526 = vsel %vm339, %v525, %v524
  %v527 = vrot.slane %v184, 4
  %v528 = vsel %vm342, %v527, %v526
  %v529 = vrot.slane %v185, 3
  %v530 = vsel %vm345, %v529, %v528
  %v531 = vrot.slane %v186, 2
  %v532 = vsel %vm348, %v531, %v530
  %v533 = vrot.slane %v187, 1
  %v534 = vsel %vm351, %v533, %v532
  %v535 = vrot.slane %v189, 7
  %v536 = vsel %vm333, %v535, %v188
  %v537 = vrot.slane %v190, 6
  %v538 = vsel %vm336, %v537, %v536
  %v539 = vrot.slane %v191, 5
  %v540 = vsel %vm339, %v539, %v538
  %v541 = vrot.slane %v192, 4
  %v542 = vsel %vm342, %v541, %v540
  %v543 = vrot.slane %v193, 3
  %v544 = vsel %vm345, %v543, %v542
  %v545 = vrot.slane %v194, 2
  %v546 = vsel %vm348, %v545, %v544
  %v547 = vrot.slane %v195, 1
  %v548 = vsel %vm351, %v547, %v546
  %v549 = vrot.slane %v197, 7
  %v550 = vsel %vm333, %v549, %v196
  %v551 = vrot.slane %v198, 6
  %v552 = vsel %vm336, %v551, %v550
  %v553 = vrot.slane %v199, 5
  %v554 = vsel %vm339, %v553, %v552
  %v555 = vrot.slane %v200, 4
  %v556 = vsel %vm342, %v555, %v554
  %v557 = vrot.slane %v201, 3
  %v558 = vsel %vm345, %v557, %v556
  %v559 = vrot.slane %v202, 2
  %v560 = vsel %vm348, %v559, %v558
  %v561 = vrot.slane %v203, 1
  %v562 = vsel %vm351, %v561, %v560
  %vm563 = vcmask 261120
  %v564 = vsel %vm563, %v352, 0
  %v566 = vsel %vm563, %v366, 0
  %v568 = vsel %vm563, %v380, 0
  %v570 = vsel %vm563, %v394, 0
  %v572 = vsel %vm563, %v408, 0
  %v574 = vsel %vm563, %v422, 0
  %v576 = vsel %vm563, %v436, 0
  %v578 = vsel %vm563, %v450, 0
  %v580 = vsel %vm563, %v464, 0
  %v582 = vsel %vm563, %v478, 0
  %v584 = vsel %vm563, %v492, 0
  %v586 = vsel %vm563, %v506, 0
  %v588 = vsel %vm563, %v520, 0
  %v590 = vsel %vm563, %v534, 0
  %v592 = vsel %vm563, %v548, 0
  %v594 = vsel %vm563, %v562, 0
  %596 = vmatpush.msra.mxu0 0.0
  %597 = vmatpush.msra.mxu0 0.0
  %598 = vmatpush.msra.mxu0 0.0
  %599 = vmatpush.msra.mxu0 0.0
  %600 = vmatpush.msra.mxu0 0.0
  %601 = vmatpush.msra.mxu0 0.0
  %602 = vmatpush.msra.mxu0 0.0
  %603 = vmatpush.msra.mxu0 0.0
  %604 = vmatpush.msra.mxu0 0.0
  %605 = vmatpush.msra.mxu0 0.0
  %606 = vmatpush.msra.mxu0 0.0
  %607 = vmatpush.msra.mxu0 0.0
  %608 = vmatpush.msra.mxu0 %v34
  %609 = vmatpush.msra.mxu0 %v33
  %610 = vmatpush.msra.mxu0 %v32
  %611 = vmatpush.msra.mxu0 %v31
  %612 = vmatmul.f32.gmra.mxu0 %v564
  %v613 = vpop.f32.mrf.mxu0
  %v614 = vadd.f32 0.0, %v613
  %615 = vmatmul.f32.gmra.mxu0 %v566
  %v616 = vpop.f32.mrf.mxu0
  %v617 = vadd.f32 0.0, %v616
  %618 = vmatmul.f32.gmra.mxu0 %v568
  %v619 = vpop.f32.mrf.mxu0
  %v620 = vadd.f32 0.0, %v619
  %621 = vmatmul.f32.gmra.mxu0 %v570
  %v622 = vpop.f32.mrf.mxu0
  %v623 = vadd.f32 0.0, %v622
  %624 = vmatmul.f32.gmra.mxu0 %v572
  %v625 = vpop.f32.mrf.mxu0
  %v626 = vadd.f32 0.0, %v625
  %627 = vmatmul.f32.gmra.mxu0 %v574
  %v628 = vpop.f32.mrf.mxu0
  %v629 = vadd.f32 0.0, %v628
  %630 = vmatmul.f32.gmra.mxu0 %v576
  %v631 = vpop.f32.mrf.mxu0
  %v632 = vadd.f32 0.0, %v631
  %633 = vmatmul.f32.gmra.mxu0 %v578
  %v634 = vpop.f32.mrf.mxu0
  %v635 = vadd.f32 0.0, %v634
  %636 = vmatmul.f32.gmra.mxu0 %v580
  %v637 = vpop.f32.mrf.mxu0
  %v638 = vadd.f32 0.0, %v637
  %639 = vmatmul.f32.gmra.mxu0 %v582
  %v640 = vpop.f32.mrf.mxu0
  %v641 = vadd.f32 0.0, %v640
  %642 = vmatmul.f32.gmra.mxu0 %v584
  %v643 = vpop.f32.mrf.mxu0
  %v644 = vadd.f32 0.0, %v643
  %645 = vmatmul.f32.gmra.mxu0 %v586
  %v646 = vpop.f32.mrf.mxu0
  %v647 = vadd.f32 0.0, %v646
  %648 = vmatmul.f32.gmra.mxu0 %v588
  %v649 = vpop.f32.mrf.mxu0
  %v650 = vadd.f32 0.0, %v649
  %651 = vmatmul.f32.gmra.mxu0 %v590
  %v652 = vpop.f32.mrf.mxu0
  %v653 = vadd.f32 0.0, %v652
  %654 = vmatmul.f32.gmra.mxu0 %v592
  %v655 = vpop.f32.mrf.mxu0
  %v656 = vadd.f32 0.0, %v655
  %657 = vmatmul.f32.gmra.mxu0 %v594
  %v658 = vpop.f32.mrf.mxu0
  %v659 = vadd.f32 0.0, %v658
  %660 = vdwg.mxu0
  %661 = vxpose.xlu0.b32.start [1/16] %v614, 128
  %662 = vxpose.xlu0.b32.cont [2/16] %v617, 128
  %663 = vxpose.xlu0.b32.cont [3/16] %v620, 128
  %664 = vxpose.xlu0.b32.cont [4/16] %v623, 128
  %665 = vxpose.xlu0.b32.cont [5/16] %v626, 128
  %666 = vxpose.xlu0.b32.cont [6/16] %v629, 128
  %667 = vxpose.xlu0.b32.cont [7/16] %v632, 128
  %668 = vxpose.xlu0.b32.cont [8/16] %v635, 128
  %669 = vxpose.xlu0.b32.cont [9/16] %v638, 128
  %670 = vxpose.xlu0.b32.cont [10/16] %v641, 128
  %671 = vxpose.xlu0.b32.cont [11/16] %v644, 128
  %672 = vxpose.xlu0.b32.cont [12/16] %v647, 128
  %673 = vxpose.xlu0.b32.cont [13/16] %v650, 128
  %674 = vxpose.xlu0.b32.cont [14/16] %v653, 128
  %675 = vxpose.xlu0.b32.cont [15/16] %v656, 128
  %676 = vxpose.xlu0.b32.end [16/16] %v659, 128
  %v677 = vpop.trf.xlu0
  %v678 = vpop.trf.xlu0
  %v679 = vpop.trf.xlu0
  %v680 = vpop.trf.xlu0
  %v681 = vpop.trf.xlu0
  %v682 = vpop.trf.xlu0
  %v683 = vpop.trf.xlu0
  %v684 = vpop.trf.xlu0
  %v685 = vpop.trf.xlu0
  %v686 = vpop.trf.xlu0
  %v687 = vpop.trf.xlu0
  %v688 = vpop.trf.xlu0
  %v689 = vpop.trf.xlu0
  %v690 = vpop.trf.xlu0
  %v691 = vpop.trf.xlu0
  %v692 = vpop.trf.xlu0
  %694 = vset.pattern.permute.xlu0 0
  %695 = vperm.xlu0 %694, %v35
  %v696 = vpop.permute.xlu0 %695
  %v698 = vadd.f32 %v677, %v696
  %p699 = scmp.eq.s32.totalorder 0, 0
  // Predicated region
  $region34: #{sequence_label_forward.1} parent=0 // pred_check
    %p700 = pneg %p699
  $region35: #{sequence_label_forward.1} parent=0 // pred_check_branch
    %702 = sbr.rel (%p700) target = $region37
  $region36: #{sequence_label_forward.1} parent=0 // pred_region
    %v703 = vperm.slane %v71, 0
    %vm704 = vcmp.eq.s32.totalorder %v74, %v703
    %v705 = vsel %vm704, 1, 0
    %v706 = vcvt.s32.f32 %v705
    %708 = vset.pattern.permute.xlu0 0
    %709 = vperm.xlu0 %708, %v36
    %v710 = vpop.permute.xlu0 %709
    %v712 = vadd.f32 %v710, %v698
    %v713 = vmul.f32 %v706, %v712
    %vm714 = vcmask 1044480
    %v715 = vsel %vm714, %v713, 0.0
    %v716 = vrot.slane %v715, 4
    %v717 = vadd.f32 %v715, %v716
    %v718 = vrot.slane %v717, 2
    %v719 = vadd.f32 %v717, %v718
    %v720 = vrot.slane %v719, 1
    %v721 = vadd.f32 %v719, %v720
    %722 = vst [vmem:[#allocation2] sm:$0x1] %v721
    %723 = vst [vmem:[#allocation3] sm:$0x1f] %v712
    %724 = vst [vmem:[#allocation4] sm:$0x1f] %v712
    %725 = vst [vmem:[#allocation5] sm:$0x1] %v71
    %726 = vst [vmem:[#allocation6] sm:$0x1] %v71
    %727 = vst [vmem:[#allocation7] sm:$0x1] %v72
  $region37: #{sequence_label_forward.1} parent=0 // pred_fallthru
    _
  %p728 = scmp.gt.s32.totalorder 0, 0
  // Predicated region
  $region38: #{sequence_label_forward.1} parent=0 // pred_check
    %p729 = pneg %p728
  $region39: #{sequence_label_forward.1} parent=0 // pred_check_branch
    %731 = sbr.rel (%p729) target = $region41
  $region40: #{sequence_label_forward.1} parent=0 // pred_region
    %v732 = vld [vmem:[#allocation2] sm:$0x1]
    %v733 = vld [vmem:[#allocation3] sm:$0x1f]
    %v734 = vld [vmem:[#allocation4] sm:$0x1f]
    %v735 = vld [vmem:[#allocation5] sm:$0x1]
    %v736 = vld [vmem:[#allocation6] sm:$0x1]
    %v737 = vld [vmem:[#allocation7] sm:$0x1]
    %v738 = vcvt.s32.f32 %v72
    %v739 = vperm.slane %v71, 0
    %vm740 = vcmp.eq.s32.totalorder %v74, %v739
    %v741 = vsel %vm740, 1, 0
    %v742 = vcvt.s32.f32 %v741
    %v743 = vperm.slane %v735, 0
    %vm744 = vcmp.eq.s32.totalorder %v74, %v743
    %v745 = vsel %vm744, 1, 0
    %v746 = vcvt.s32.f32 %v745
    %vm747 = vcmask 39936
    %v749 = vsel %vm747, %v55, 0
    %vm751 = vcmask 1044480
    %v753 = vsel %vm751, %v746, 0
    %755 = vmatpush.msra.mxu0 0.0
    %756 = vmatpush.msra.mxu0 0.0
    %757 = vmatpush.msra.mxu0 0.0
    %758 = vmatpush.msra.mxu0 0.0
    %759 = vmatpush.msra.mxu0 0.0
    %760 = vmatpush.msra.mxu0 0.0
    %761 = vmatpush.msra.mxu0 0.0
    %762 = vmatpush.msra.mxu0 0.0
    %763 = vmatpush.msra.mxu0 0.0
    %764 = vmatpush.msra.mxu0 0.0
    %765 = vmatpush.msra.mxu0 0.0
    %766 = vmatpush.msra.mxu0 0.0
    %767 = vmatpush.msra.mxu0 0.0
    %768 = vmatpush.msra.mxu0 0.0
    %769 = vmatpush.msra.mxu0 0.0
    %770 = vmatpush.msra.mxu0 %v753
    %771 = vmatmul.f32.gmra.mxu0 %v749
    %v772 = vpop.f32.mrf.mxu0
    %v773 = vadd.f32 %v698, %v772
    %774 = vdwg.mxu0
    %v775 = vmul.f32 %v742, %v773
    %v776 = vsel %vm751, %v775, 0.0
    %v777 = vrot.slane %v776, 4
    %v778 = vadd.f32 %v776, %v777
    %v779 = vrot.slane %v778, 2
    %v780 = vadd.f32 %v778, %v779
    %v781 = vrot.slane %v780, 1
    %v782 = vadd.f32 %v780, %v781
    %v783 = vmul.f32 %v782, %v738
    %v784 = vadd.f32 %v732, %v783
    %v786 = vrot.slane %v733, 1
    %v787 = vrot.slane %v733, 2
    %v788 = vrot.slane %v733, 3
    %v789 = vrot.slane %v733, 4
    %v790 = vperm.slane %v38, 0
    %v791 = vlaneseq
    %v792 = vshrl.u32 %v791, 7
    %794 = vset.pattern.permute.xlu0 %v792
    %795 = vperm.xlu0 %794, %v790
    %v796 = vpop.permute.xlu0 %795
    %v797 = vperm.slane %v38, 1
    %v798 = vlaneseq
    %v799 = vshrl.u32 %v798, 7
    %801 = vset.pattern.permute.xlu0 %v799
    %802 = vperm.xlu0 %801, %v797
    %v803 = vpop.permute.xlu0 %802
    %v804 = vperm.slane %v38, 2
    %v805 = vlaneseq
    %v806 = vshrl.u32 %v805, 7
    %808 = vset.pattern.permute.xlu0 %v806
    %809 = vperm.xlu0 %808, %v804
    %v810 = vpop.permute.xlu0 %809
    %v811 = vperm.slane %v38, 3
    %v812 = vlaneseq
    %v813 = vshrl.u32 %v812, 7
    %815 = vset.pattern.permute.xlu0 %v813
    %816 = vperm.xlu0 %815, %v811
    %v817 = vpop.permute.xlu0 %816
    %v818 = vperm.slane %v38, 4
    %v819 = vlaneseq
    %v820 = vshrl.u32 %v819, 7
    %822 = vset.pattern.permute.xlu0 %v820
    %823 = vperm.xlu0 %822, %v818
    %v824 = vpop.permute.xlu0 %823
    %v825 = vperm.slane %v733, 0
    %v826 = vperm.slane %v786, 0
    %v827 = vperm.slane %v787, 0
    %v828 = vperm.slane %v788, 0
    %v829 = vperm.slane %v789, 0
    %v835 = vadd.f32 %v825, %v796
    %v836 = vadd.f32 %v826, %v803
    %v837 = vadd.f32 %v827, %v810
    %v838 = vadd.f32 %v828, %v817
    %v839 = vadd.f32 %v829, %v824
    %v840 = vsel %vm751, %v835, -inf
    %v841 = vsel %vm751, %v836, -inf
    %v842 = vsel %vm751, %v837, -inf
    %v843 = vsel %vm751, %v838, -inf
    %v844 = vsel %vm751, %v839, -inf
    %v845 = vmax.f32 %v840, %v844
    %v846 = vmax.f32 %v845, %v841
    %v847 = vmax.f32 %v842, %v843
    %v848 = vmax.f32 %v846, %v847
    %v849 = vsub.f32 %v835, %v848
    %v850 = vsub.f32 %v836, %v848
    %v851 = vsub.f32 %v837, %v848
    %v852 = vsub.f32 %v838, %v848
    %v853 = vsub.f32 %v839, %v848
    %v854 = vmul.f32 %v849, 1.442695
    %v855 = vpow.pop %v854
    %v856 = vmul.f32 %v850, 1.442695
    %v857 = vpow.pop %v856
    %v858 = vmul.f32 %v851, 1.442695
    %v859 = vpow.pop %v858
    %v860 = vmul.f32 %v852, 1.442695
    %v861 = vpow.pop %v860
    %v862 = vmul.f32 %v853, 1.442695
    %v863 = vpow.pop %v862
    %v864 = vsel %vm751, %v855, 0.0
    %v865 = vsel %vm751, %v857, 0.0
    %v866 = vadd.f32 %v864, %v865
    %v867 = vsel %vm751, %v859, 0.0
    %v868 = vadd.f32 %v866, %v867
    %v869 = vsel %vm751, %v861, 0.0
    %v870 = vadd.f32 %v868, %v869
    %v871 = vsel %vm751, %v863, 0.0
    %v872 = vadd.f32 %v870, %v871
    %v873 = vlog2.pop %v872
    %v874 = vmul.f32 %v873, 0.6931472
    %v875 = vadd.f32 %v848, %v874
    %v876 = vadd.f32 %v875, %v698
    %vm877 = vcmp.gt.f32.partialorder %v738, 0.0
    %v878 = vsel %vm877, 1, 0
    %v879 = vperm.slane %v878, 0
    %vm880 = vcmp.eq.s32.totalorder %v879, 1
    %v881 = vsel %vm880, %v876, %v733
    %v883 = vrot.slane %v734, 1
    %v884 = vrot.slane %v734, 2
    %v885 = vrot.slane %v734, 3
    %v886 = vrot.slane %v734, 4
    %v887 = vperm.slane %v734, 0
    %v888 = vperm.slane %v883, 0
    %v889 = vperm.slane %v884, 0
    %v890 = vperm.slane %v885, 0
    %v891 = vperm.slane %v886, 0
    %v897 = vadd.f32 %v887, %v796
    %v898 = vadd.f32 %v888, %v803
    %v899 = vadd.f32 %v889, %v810
    %v900 = vadd.f32 %v890, %v817
    %v901 = vadd.f32 %v891, %v824
    %v902 = vsel %vm751, %v897, -inf
    %v903 = vsel %vm751, %v898, -inf
    %v904 = vsel %vm751, %v899, -inf
    %v905 = vsel %vm751, %v900, -inf
    %v906 = vsel %vm751, %v901, -inf
    %v907 = vmax.f32 %v902, %v906
    %v908 = vmax.f32 %v907, %v903
    %v909 = vmax.f32 %v904, %v905
    %v910 = vmax.f32 %v908, %v909
    %vm911 = vcmp.eq.f32.partialorder %v897, %v910
    %vm912 = vcmp.eq.f32.partialorder %v898, %v910
    %vm913 = vcmp.eq.f32.partialorder %v899, %v910
    %vm914 = vcmp.eq.f32.partialorder %v900, %v910
    %vm915 = vcmp.eq.f32.partialorder %v901, %v910
    %v916 = vsel %vm911, 0, 5
    %v917 = vsel %vm912, 1, 5
    %v918 = vsel %vm913, 2, 5
    %v919 = vsel %vm914, 3, 5
    %v920 = vsel %vm915, 4, 5
    %v921 = vsel %vm751, %v916, 2147483647
    %v922 = vsel %vm751, %v917, 2147483647
    %v923 = vsel %vm751, %v918, 2147483647
    %v924 = vsel %vm751, %v919, 2147483647
    %v925 = vsel %vm751, %v920, 2147483647
    %vm926 = vcmp.lt.s32.totalorder %v921, %v925
    %v927 = vsel %vm926, %v921, %v925
    %vm928 = vcmp.lt.s32.totalorder %v927, %v922
    %v929 = vsel %vm928, %v927, %v922
    %vm930 = vcmp.lt.s32.totalorder %v923, %v924
    %v931 = vsel %vm930, %v923, %v924
    %vm932 = vcmp.lt.s32.totalorder %v929, %v931
    %v933 = vsel %vm932, %v929, %v931
    %s934 = smul.u32 %s75, 8
    %s935 = scalar_lea.vmem [#allocation8], %s934
    %936 = vst [vmem:[%s935] sm:$0x1f] %v933
    %v937 = vadd.f32 %v910, %v698
    %v938 = vsel %vm880, %v937, %v734
    %vm939 = vcmp.gt.s32.totalorder %v72, 0
    %v940 = vsel %vm939, %v71, %v736
    %v941 = vadd.s32 %v737, %v72
    %942 = vst [vmem:[#allocation2] sm:$0x1] %v784
    %943 = vst [vmem:[#allocation3] sm:$0x1f] %v881
    %944 = vst [vmem:[#allocation4] sm:$0x1f] %v938
    %945 = vst [vmem:[#allocation5] sm:$0x1] %v71
    %946 = vst [vmem:[#allocation6] sm:$0x1] %v940
    %947 = vst [vmem:[#allocation7] sm:$0x1] %v941
  $region41: #{sequence_label_forward.1} parent=0 // pred_fallthru
    _
  %v948 = vld [vmem:[#allocation2] sm:$0x1]
  %v949 = vld [vmem:[#allocation3] sm:$0x1f]
  %v950 = vld [vmem:[#allocation4] sm:$0x1f]
  %v951 = vld [vmem:[#allocation5] sm:$0x1]
  %v952 = vld [vmem:[#allocation6] sm:$0x1]
  %v953 = vld [vmem:[#allocation7] sm:$0x1]
  %s954 = sadd.s32 %s75, 1
  %v955 = vld [vmem:[%s0 + $0x1] sm:$0x1]
  %v956 = vld [vmem:[%s0 + $0x9] sm:$0x1]
  %v957 = vld [vmem:[%s0 + $0x11] sm:$0x1]
  %v958 = vld [vmem:[%s0 + $0x19] sm:$0x1]
  %v959 = vld [vmem:[%s0 + $0x21] sm:$0x1]
  %v960 = vld [vmem:[%s0 + $0x29] sm:$0x1]
  %v961 = vld [vmem:[%s0 + $0x31] sm:$0x1]
  %v962 = vld [vmem:[%s0 + $0x39] sm:$0x1]
  %v963 = vld [vmem:[%s0 + $0x41] sm:$0x1]
  %v964 = vld [vmem:[%s0 + $0x49] sm:$0x1]
  %v965 = vld [vmem:[%s0 + $0x51] sm:$0x1]
  %v966 = vld [vmem:[%s0 + $0x59] sm:$0x1]
  %v967 = vld [vmem:[%s0 + $0x61] sm:$0x1]
  %v968 = vld [vmem:[%s0 + $0x69] sm:$0x1]
  %v969 = vld [vmem:[%s0 + $0x71] sm:$0x1]
  %v970 = vld [vmem:[%s0 + $0x79] sm:$0x1]
  %v971 = vld [vmem:[%s0 + $0x81] sm:$0x1]
  %v972 = vld [vmem:[%s0 + $0x89] sm:$0x1]
  %v973 = vld [vmem:[%s0 + $0x91] sm:$0x1]
  %v974 = vld [vmem:[%s0 + $0x99] sm:$0x1]
  %v975 = vld [vmem:[%s0 + $0xa1] sm:$0x1]
  %v976 = vld [vmem:[%s0 + $0xa9] sm:$0x1]
  %v977 = vld [vmem:[%s0 + $0xb1] sm:$0x1]
  %v978 = vld [vmem:[%s0 + $0xb9] sm:$0x1]
  %v979 = vld [vmem:[%s0 + $0xc1] sm:$0x1]
  %v980 = vld [vmem:[%s0 + $0xc9] sm:$0x1]
  %v981 = vld [vmem:[%s0 + $0xd1] sm:$0x1]
  %v982 = vld [vmem:[%s0 + $0xd9] sm:$0x1]
  %v983 = vld [vmem:[%s0 + $0xe1] sm:$0x1]
  %v984 = vld [vmem:[%s0 + $0xe9] sm:$0x1]
  %v985 = vld [vmem:[%s0 + $0xf1] sm:$0x1]
  %v986 = vld [vmem:[%s0 + $0xf9] sm:$0x1]
  %v987 = vld [vmem:[%s0 + $0x101] sm:$0x1]
  %v988 = vld [vmem:[%s0 + $0x109] sm:$0x1]
  %v989 = vld [vmem:[%s0 + $0x111] sm:$0x1]
  %v990 = vld [vmem:[%s0 + $0x119] sm:$0x1]
  %v991 = vld [vmem:[%s0 + $0x121] sm:$0x1]
  %v992 = vld [vmem:[%s0 + $0x129] sm:$0x1]
  %v993 = vld [vmem:[%s0 + $0x131] sm:$0x1]
  %v994 = vld [vmem:[%s0 + $0x139] sm:$0x1]
  %v995 = vld [vmem:[%s0 + $0x141] sm:$0x1]
  %v996 = vld [vmem:[%s0 + $0x149] sm:$0x1]
  %v997 = vld [vmem:[%s0 + $0x151] sm:$0x1]
  %v998 = vld [vmem:[%s0 + $0x159] sm:$0x1]
  %v999 = vld [vmem:[%s0 + $0x161] sm:$0x1]
  %v1000 = vld [vmem:[%s0 + $0x169] sm:$0x1]
  %v1001 = vld [vmem:[%s0 + $0x171] sm:$0x1]
  %v1002 = vld [vmem:[%s0 + $0x179] sm:$0x1]
  %v1003 = vld [vmem:[%s0 + $0x181] sm:$0x1]
  %v1004 = vld [vmem:[%s0 + $0x189] sm:$0x1]
  %v1005 = vld [vmem:[%s0 + $0x191] sm:$0x1]
  %v1006 = vld [vmem:[%s0 + $0x199] sm:$0x1]
  %v1007 = vld [vmem:[%s0 + $0x1a1] sm:$0x1]
  %v1008 = vld [vmem:[%s0 + $0x1a9] sm:$0x1]
  %v1009 = vld [vmem:[%s0 + $0x1b1] sm:$0x1]
  %v1010 = vld [vmem:[%s0 + $0x1b9] sm:$0x1]
  %v1011 = vld [vmem:[%s0 + $0x1c1] sm:$0x1]
  %v1012 = vld [vmem:[%s0 + $0x1c9] sm:$0x1]
  %v1013 = vld [vmem:[%s0 + $0x1d1] sm:$0x1]
  %v1014 = vld [vmem:[%s0 + $0x1d9] sm:$0x1]
  %v1015 = vld [vmem:[%s0 + $0x1e1] sm:$0x1]
  %v1016 = vld [vmem:[%s0 + $0x1e9] sm:$0x1]
  %v1017 = vld [vmem:[%s0 + $0x1f1] sm:$0x1]
  %v1018 = vld [vmem:[%s0 + $0x1f9] sm:$0x1]
  %v1019 = vld [vmem:[%s0 + $0x201] sm:$0x1]
  %v1020 = vld [vmem:[%s0 + $0x209] sm:$0x1]
  %v1021 = vld [vmem:[%s0 + $0x211] sm:$0x1]
  %v1022 = vld [vmem:[%s0 + $0x219] sm:$0x1]
  %v1023 = vld [vmem:[%s0 + $0x221] sm:$0x1]
  %v1024 = vld [vmem:[%s0 + $0x229] sm:$0x1]
  %v1025 = vld [vmem:[%s0 + $0x231] sm:$0x1]
  %v1026 = vld [vmem:[%s0 + $0x239] sm:$0x1]
  %v1027 = vld [vmem:[%s0 + $0x241] sm:$0x1]
  %v1028 = vld [vmem:[%s0 + $0x249] sm:$0x1]
  %v1029 = vld [vmem:[%s0 + $0x251] sm:$0x1]
  %v1030 = vld [vmem:[%s0 + $0x259] sm:$0x1]
  %v1031 = vld [vmem:[%s0 + $0x261] sm:$0x1]
  %v1032 = vld [vmem:[%s0 + $0x269] sm:$0x1]
  %v1033 = vld [vmem:[%s0 + $0x271] sm:$0x1]
  %v1034 = vld [vmem:[%s0 + $0x279] sm:$0x1]
  %v1035 = vld [vmem:[%s0 + $0x281] sm:$0x1]
  %v1036 = vld [vmem:[%s0 + $0x289] sm:$0x1]
  %v1037 = vld [vmem:[%s0 + $0x291] sm:$0x1]
  %v1038 = vld [vmem:[%s0 + $0x299] sm:$0x1]
  %v1039 = vld [vmem:[%s0 + $0x2a1] sm:$0x1]
  %v1040 = vld [vmem:[%s0 + $0x2a9] sm:$0x1]
  %v1041 = vld [vmem:[%s0 + $0x2b1] sm:$0x1]
  %v1042 = vld [vmem:[%s0 + $0x2b9] sm:$0x1]
  %v1043 = vld [vmem:[%s0 + $0x2c1] sm:$0x1]
  %v1044 = vld [vmem:[%s0 + $0x2c9] sm:$0x1]
  %v1045 = vld [vmem:[%s0 + $0x2d1] sm:$0x1]
  %v1046 = vld [vmem:[%s0 + $0x2d9] sm:$0x1]
  %v1047 = vld [vmem:[%s0 + $0x2e1] sm:$0x1]
  %v1048 = vld [vmem:[%s0 + $0x2e9] sm:$0x1]
  %v1049 = vld [vmem:[%s0 + $0x2f1] sm:$0x1]
  %v1050 = vld [vmem:[%s0 + $0x2f9] sm:$0x1]
  %v1051 = vld [vmem:[%s0 + $0x301] sm:$0x1]
  %v1052 = vld [vmem:[%s0 + $0x309] sm:$0x1]
  %v1053 = vld [vmem:[%s0 + $0x311] sm:$0x1]
  %v1054 = vld [vmem:[%s0 + $0x319] sm:$0x1]
  %v1055 = vld [vmem:[%s0 + $0x321] sm:$0x1]
  %v1056 = vld [vmem:[%s0 + $0x329] sm:$0x1]
  %v1057 = vld [vmem:[%s0 + $0x331] sm:$0x1]
  %v1058 = vld [vmem:[%s0 + $0x339] sm:$0x1]
  %v1059 = vld [vmem:[%s0 + $0x341] sm:$0x1]
  %v1060 = vld [vmem:[%s0 + $0x349] sm:$0x1]
  %v1061 = vld [vmem:[%s0 + $0x351] sm:$0x1]
  %v1062 = vld [vmem:[%s0 + $0x359] sm:$0x1]
  %v1063 = vld [vmem:[%s0 + $0x361] sm:$0x1]
  %v1064 = vld [vmem:[%s0 + $0x369] sm:$0x1]
  %v1065 = vld [vmem:[%s0 + $0x371] sm:$0x1]
  %v1066 = vld [vmem:[%s0 + $0x379] sm:$0x1]
  %v1067 = vld [vmem:[%s0 + $0x381] sm:$0x1]
  %v1068 = vld [vmem:[%s0 + $0x389] sm:$0x1]
  %v1069 = vld [vmem:[%s0 + $0x391] sm:$0x1]
  %v1070 = vld [vmem:[%s0 + $0x399] sm:$0x1]
  %v1071 = vld [vmem:[%s0 + $0x3a1] sm:$0x1]
  %v1072 = vld [vmem:[%s0 + $0x3a9] sm:$0x1]
  %v1073 = vld [vmem:[%s0 + $0x3b1] sm:$0x1]
  %v1074 = vld [vmem:[%s0 + $0x3b9] sm:$0x1]
  %v1075 = vld [vmem:[%s0 + $0x3c1] sm:$0x1]
  %v1076 = vld [vmem:[%s0 + $0x3c9] sm:$0x1]
  %v1077 = vld [vmem:[%s0 + $0x3d1] sm:$0x1]
  %v1078 = vld [vmem:[%s0 + $0x3d9] sm:$0x1]
  %v1079 = vld [vmem:[%s0 + $0x3e1] sm:$0x1]
  %v1080 = vld [vmem:[%s0 + $0x3e9] sm:$0x1]
  %v1081 = vld [vmem:[%s0 + $0x3f1] sm:$0x1]
  %v1082 = vld [vmem:[%s0 + $0x3f9] sm:$0x1]
  %v1211 = vrot.slane %v956, 7
  %v1212 = vsel %vm333, %v1211, %v955
  %v1213 = vrot.slane %v957, 6
  %v1214 = vsel %vm336, %v1213, %v1212
  %v1215 = vrot.slane %v958, 5
  %v1216 = vsel %vm339, %v1215, %v1214
  %v1217 = vrot.slane %v959, 4
  %v1218 = vsel %vm342, %v1217, %v1216
  %v1219 = vrot.slane %v960, 3
  %v1220 = vsel %vm345, %v1219, %v1218
  %v1221 = vrot.slane %v961, 2
  %v1222 = vsel %vm348, %v1221, %v1220
  %v1223 = vrot.slane %v962, 1
  %v1224 = vsel %vm351, %v1223, %v1222
  %v1225 = vrot.slane %v964, 7
  %v1226 = vsel %vm333, %v1225, %v963
  %v1227 = vrot.slane %v965, 6
  %v1228 = vsel %vm336, %v1227, %v1226
  %v1229 = vrot.slane %v966, 5
  %v1230 = vsel %vm339, %v1229, %v1228
  %v1231 = vrot.slane %v967, 4
  %v1232 = vsel %vm342, %v1231, %v1230
  %v1233 = vrot.slane %v968, 3
  %v1234 = vsel %vm345, %v1233, %v1232
  %v1235 = vrot.slane %v969, 2
  %v1236 = vsel %vm348, %v1235, %v1234
  %v1237 = vrot.slane %v970, 1
  %v1238 = vsel %vm351, %v1237, %v1236
  %v1239 = vrot.slane %v972, 7
  %v1240 = vsel %vm333, %v1239, %v971
  %v1241 = vrot.slane %v973, 6
  %v1242 = vsel %vm336, %v1241, %v1240
  %v1243 = vrot.slane %v974, 5
  %v1244 = vsel %vm339, %v1243, %v1242
  %v1245 = vrot.slane %v975, 4
  %v1246 = vsel %vm342, %v1245, %v1244
  %v1247 = vrot.slane %v976, 3
  %v1248 = vsel %vm345, %v1247, %v1246
  %v1249 = vrot.slane %v977, 2
  %v1250 = vsel %vm348, %v1249, %v1248
  %v1251 = vrot.slane %v978, 1
  %v1252 = vsel %vm351, %v1251, %v1250
  %v1253 = vrot.slane %v980, 7
  %v1254 = vsel %vm333, %v1253, %v979
  %v1255 = vrot.slane %v981, 6
  %v1256 = vsel %vm336, %v1255, %v1254
  %v1257 = vrot.slane %v982, 5
  %v1258 = vsel %vm339, %v1257, %v1256
  %v1259 = vrot.slane %v983, 4
  %v1260 = vsel %vm342, %v1259, %v1258
  %v1261 = vrot.slane %v984, 3
  %v1262 = vsel %vm345, %v1261, %v1260
  %v1263 = vrot.slane %v985, 2
  %v1264 = vsel %vm348, %v1263, %v1262
  %v1265 = vrot.slane %v986, 1
  %v1266 = vsel %vm351, %v1265, %v1264
  %v1267 = vrot.slane %v988, 7
  %v1268 = vsel %vm333, %v1267, %v987
  %v1269 = vrot.slane %v989, 6
  %v1270 = vsel %vm336, %v1269, %v1268
  %v1271 = vrot.slane %v990, 5
  %v1272 = vsel %vm339, %v1271, %v1270
  %v1273 = vrot.slane %v991, 4
  %v1274 = vsel %vm342, %v1273, %v1272
  %v1275 = vrot.slane %v992, 3
  %v1276 = vsel %vm345, %v1275, %v1274
  %v1277 = vrot.slane %v993, 2
  %v1278 = vsel %vm348, %v1277, %v1276
  %v1279 = vrot.slane %v994, 1
  %v1280 = vsel %vm351, %v1279, %v1278
  %v1281 = vrot.slane %v996, 7
  %v1282 = vsel %vm333, %v1281, %v995
  %v1283 = vrot.slane %v997, 6
  %v1284 = vsel %vm336, %v1283, %v1282
  %v1285 = vrot.slane %v998, 5
  %v1286 = vsel %vm339, %v1285, %v1284
  %v1287 = vrot.slane %v999, 4
  %v1288 = vsel %vm342, %v1287, %v1286
  %v1289 = vrot.slane %v1000, 3
  %v1290 = vsel %vm345, %v1289, %v1288
  %v1291 = vrot.slane %v1001, 2
  %v1292 = vsel %vm348, %v1291, %v1290
  %v1293 = vrot.slane %v1002, 1
  %v1294 = vsel %vm351, %v1293, %v1292
  %v1295 = vrot.slane %v1004, 7
  %v1296 = vsel %vm333, %v1295, %v1003
  %v1297 = vrot.slane %v1005, 6
  %v1298 = vsel %vm336, %v1297, %v1296
  %v1299 = vrot.slane %v1006, 5
  %v1300 = vsel %vm339, %v1299, %v1298
  %v1301 = vrot.slane %v1007, 4
  %v1302 = vsel %vm342, %v1301, %v1300
  %v1303 = vrot.slane %v1008, 3
  %v1304 = vsel %vm345, %v1303, %v1302
  %v1305 = vrot.slane %v1009, 2
  %v1306 = vsel %vm348, %v1305, %v1304
  %v1307 = vrot.slane %v1010, 1
  %v1308 = vsel %vm351, %v1307, %v1306
  %v1309 = vrot.slane %v1012, 7
  %v1310 = vsel %vm333, %v1309, %v1011
  %v1311 = vrot.slane %v1013, 6
  %v1312 = vsel %vm336, %v1311, %v1310
  %v1313 = vrot.slane %v1014, 5
  %v1314 = vsel %vm339, %v1313, %v1312
  %v1315 = vrot.slane %v1015, 4
  %v1316 = vsel %vm342, %v1315, %v1314
  %v1317 = vrot.slane %v1016, 3
  %v1318 = vsel %vm345, %v1317, %v1316
  %v1319 = vrot.slane %v1017, 2
  %v1320 = vsel %vm348, %v1319, %v1318
  %v1321 = vrot.slane %v1018, 1
  %v1322 = vsel %vm351, %v1321, %v1320
  %v1323 = vrot.slane %v1020, 7
  %v1324 = vsel %vm333, %v1323, %v1019
  %v1325 = vrot.slane %v1021, 6
  %v1326 = vsel %vm336, %v1325, %v1324
  %v1327 = vrot.slane %v1022, 5
  %v1328 = vsel %vm339, %v1327, %v1326
  %v1329 = vrot.slane %v1023, 4
  %v1330 = vsel %vm342, %v1329, %v1328
  %v1331 = vrot.slane %v1024, 3
  %v1332 = vsel %vm345, %v1331, %v1330
  %v1333 = vrot.slane %v1025, 2
  %v1334 = vsel %vm348, %v1333, %v1332
  %v1335 = vrot.slane %v1026, 1
  %v1336 = vsel %vm351, %v1335, %v1334
  %v1337 = vrot.slane %v1028, 7
  %v1338 = vsel %vm333, %v1337, %v1027
  %v1339 = vrot.slane %v1029, 6
  %v1340 = vsel %vm336, %v1339, %v1338
  %v1341 = vrot.slane %v1030, 5
  %v1342 = vsel %vm339, %v1341, %v1340
  %v1343 = vrot.slane %v1031, 4
  %v1344 = vsel %vm342, %v1343, %v1342
  %v1345 = vrot.slane %v1032, 3
  %v1346 = vsel %vm345, %v1345, %v1344
  %v1347 = vrot.slane %v1033, 2
  %v1348 = vsel %vm348, %v1347, %v1346
  %v1349 = vrot.slane %v1034, 1
  %v1350 = vsel %vm351, %v1349, %v1348
  %v1351 = vrot.slane %v1036, 7
  %v1352 = vsel %vm333, %v1351, %v1035
  %v1353 = vrot.slane %v1037, 6
  %v1354 = vsel %vm336, %v1353, %v1352
  %v1355 = vrot.slane %v1038, 5
  %v1356 = vsel %vm339, %v1355, %v1354
  %v1357 = vrot.slane %v1039, 4
  %v1358 = vsel %vm342, %v1357, %v1356
  %v1359 = vrot.slane %v1040, 3
  %v1360 = vsel %vm345, %v1359, %v1358
  %v1361 = vrot.slane %v1041, 2
  %v1362 = vsel %vm348, %v1361, %v1360
  %v1363 = vrot.slane %v1042, 1
  %v1364 = vsel %vm351, %v1363, %v1362
  %v1365 = vrot.slane %v1044, 7
  %v1366 = vsel %vm333, %v1365, %v1043
  %v1367 = vrot.slane %v1045, 6
  %v1368 = vsel %vm336, %v1367, %v1366
  %v1369 = vrot.slane %v1046, 5
  %v1370 = vsel %vm339, %v1369, %v1368
  %v1371 = vrot.slane %v1047, 4
  %v1372 = vsel %vm342, %v1371, %v1370
  %v1373 = vrot.slane %v1048, 3
  %v1374 = vsel %vm345, %v1373, %v1372
  %v1375 = vrot.slane %v1049, 2
  %v1376 = vsel %vm348, %v1375, %v1374
  %v1377 = vrot.slane %v1050, 1
  %v1378 = vsel %vm351, %v1377, %v1376
  %v1379 = vrot.slane %v1052, 7
  %v1380 = vsel %vm333, %v1379, %v1051
  %v1381 = vrot.slane %v1053, 6
  %v1382 = vsel %vm336, %v1381, %v1380
  %v1383 = vrot.slane %v1054, 5
  %v1384 = vsel %vm339, %v1383, %v1382
  %v1385 = vrot.slane %v1055, 4
  %v1386 = vsel %vm342, %v1385, %v1384
  %v1387 = vrot.slane %v1056, 3
  %v1388 = vsel %vm345, %v1387, %v1386
  %v1389 = vrot.slane %v1057, 2
  %v1390 = vsel %vm348, %v1389, %v1388
  %v1391 = vrot.slane %v1058, 1
  %v1392 = vsel %vm351, %v1391, %v1390
  %v1393 = vrot.slane %v1060, 7
  %v1394 = vsel %vm333, %v1393, %v1059
  %v1395 = vrot.slane %v1061, 6
  %v1396 = vsel %vm336, %v1395, %v1394
  %v1397 = vrot.slane %v1062, 5
  %v1398 = vsel %vm339, %v1397, %v1396
  %v1399 = vrot.slane %v1063, 4
  %v1400 = vsel %vm342, %v1399, %v1398
  %v1401 = vrot.slane %v1064, 3
  %v1402 = vsel %vm345, %v1401, %v1400
  %v1403 = vrot.slane %v1065, 2
  %v1404 = vsel %vm348, %v1403, %v1402
  %v1405 = vrot.slane %v1066, 1
  %v1406 = vsel %vm351, %v1405, %v1404
  %v1407 = vrot.slane %v1068, 7
  %v1408 = vsel %vm333, %v1407, %v1067
  %v1409 = vrot.slane %v1069, 6
  %v1410 = vsel %vm336, %v1409, %v1408
  %v1411 = vrot.slane %v1070, 5
  %v1412 = vsel %vm339, %v1411, %v1410
  %v1413 = vrot.slane %v1071, 4
  %v1414 = vsel %vm342, %v1413, %v1412
  %v1415 = vrot.slane %v1072, 3
  %v1416 = vsel %vm345, %v1415, %v1414
  %v1417 = vrot.slane %v1073, 2
  %v1418 = vsel %vm348, %v1417, %v1416
  %v1419 = vrot.slane %v1074, 1
  %v1420 = vsel %vm351, %v1419, %v1418
  %v1421 = vrot.slane %v1076, 7
  %v1422 = vsel %vm333, %v1421, %v1075
  %v1423 = vrot.slane %v1077, 6
  %v1424 = vsel %vm336, %v1423, %v1422
  %v1425 = vrot.slane %v1078, 5
  %v1426 = vsel %vm339, %v1425, %v1424
  %v1427 = vrot.slane %v1079, 4
  %v1428 = vsel %vm342, %v1427, %v1426
  %v1429 = vrot.slane %v1080, 3
  %v1430 = vsel %vm345, %v1429, %v1428
  %v1431 = vrot.slane %v1081, 2
  %v1432 = vsel %vm348, %v1431, %v1430
  %v1433 = vrot.slane %v1082, 1
  %v1434 = vsel %vm351, %v1433, %v1432
  %v1435 = vsel %vm563, %v1224, 0
  %v1437 = vsel %vm563, %v1238, 0
  %v1439 = vsel %vm563, %v1252, 0
  %v1441 = vsel %vm563, %v1266, 0
  %v1443 = vsel %vm563, %v1280, 0
  %v1445 = vsel %vm563, %v1294, 0
  %v1447 = vsel %vm563, %v1308, 0
  %v1449 = vsel %vm563, %v1322, 0
  %v1451 = vsel %vm563, %v1336, 0
  %v1453 = vsel %vm563, %v1350, 0
  %v1455 = vsel %vm563, %v1364, 0
  %v1457 = vsel %vm563, %v1378, 0
  %v1459 = vsel %vm563, %v1392, 0
  %v1461 = vsel %vm563, %v1406, 0
  %v1463 = vsel %vm563, %v1420, 0
  %v1465 = vsel %vm563, %v1434, 0
  %1467 = vmatpush.msra.mxu0 0.0
  %1468 = vmatpush.msra.mxu0 0.0
  %1469 = vmatpush.msra.mxu0 0.0
  %1470 = vmatpush.msra.mxu0 0.0
  %1471 = vmatpush.msra.mxu0 0.0
  %1472 = vmatpush.msra.mxu0 0.0
  %1473 = vmatpush.msra.mxu0 0.0
  %1474 = vmatpush.msra.mxu0 0.0
  %1475 = vmatpush.msra.mxu0 0.0
  %1476 = vmatpush.msra.mxu0 0.0
  %1477 = vmatpush.msra.mxu0 0.0
  %1478 = vmatpush.msra.mxu0 0.0
  %1479 = vmatpush.msra.mxu0 %v34
  %1480 = vmatpush.msra.mxu0 %v33
  %1481 = vmatpush.msra.mxu0 %v32
  %1482 = vmatpush.msra.mxu0 %v31
  %1483 = vmatmul.f32.gmra.mxu0 %v1435
  %v1484 = vpop.f32.mrf.mxu0
  %v1485 = vadd.f32 0.0, %v1484
  %1486 = vmatmul.f32.gmra.mxu0 %v1437
  %v1487 = vpop.f32.mrf.mxu0
  %v1488 = vadd.f32 0.0, %v1487
  %1489 = vmatmul.f32.gmra.mxu0 %v1439
  %v1490 = vpop.f32.mrf.mxu0
  %v1491 = vadd.f32 0.0, %v1490
  %1492 = vmatmul.f32.gmra.mxu0 %v1441
  %v1493 = vpop.f32.mrf.mxu0
  %v1494 = vadd.f32 0.0, %v1493
  %1495 = vmatmul.f32.gmra.mxu0 %v1443
  %v1496 = vpop.f32.mrf.mxu0
  %v1497 = vadd.f32 0.0, %v1496
  %1498 = vmatmul.f32.gmra.mxu0 %v1445
  %v1499 = vpop.f32.mrf.mxu0
  %v1500 = vadd.f32 0.0, %v1499
  %1501 = vmatmul.f32.gmra.mxu0 %v1447
  %v1502 = vpop.f32.mrf.mxu0
  %v1503 = vadd.f32 0.0, %v1502
  %1504 = vmatmul.f32.gmra.mxu0 %v1449
  %v1505 = vpop.f32.mrf.mxu0
  %v1506 = vadd.f32 0.0, %v1505
  %1507 = vmatmul.f32.gmra.mxu0 %v1451
  %v1508 = vpop.f32.mrf.mxu0
  %v1509 = vadd.f32 0.0, %v1508
  %1510 = vmatmul.f32.gmra.mxu0 %v1453
  %v1511 = vpop.f32.mrf.mxu0
  %v1512 = vadd.f32 0.0, %v1511
  %1513 = vmatmul.f32.gmra.mxu0 %v1455
  %v1514 = vpop.f32.mrf.mxu0
  %v1515 = vadd.f32 0.0, %v1514
  %1516 = vmatmul.f32.gmra.mxu0 %v1457
  %v1517 = vpop.f32.mrf.mxu0
  %v1518 = vadd.f32 0.0, %v1517
  %1519 = vmatmul.f32.gmra.mxu0 %v1459
  %v1520 = vpop.f32.mrf.mxu0
  %v1521 = vadd.f32 0.0, %v1520
  %1522 = vmatmul.f32.gmra.mxu0 %v1461
  %v1523 = vpop.f32.mrf.mxu0
  %v1524 = vadd.f32 0.0, %v1523
  %1525 = vmatmul.f32.gmra.mxu0 %v1463
  %v1526 = vpop.f32.mrf.mxu0
  %v1527 = vadd.f32 0.0, %v1526
  %1528 = vmatmul.f32.gmra.mxu0 %v1465
  %v1529 = vpop.f32.mrf.mxu0
  %v1530 = vadd.f32 0.0, %v1529
  %1531 = vdwg.mxu0
  %1532 = vxpose.xlu0.b32.start [1/16] %v1485, 128
  %1533 = vxpose.xlu0.b32.cont [2/16] %v1488, 128
  %1534 = vxpose.xlu0.b32.cont [3/16] %v1491, 128
  %1535 = vxpose.xlu0.b32.cont [4/16] %v1494, 128
  %1536 = vxpose.xlu0.b32.cont [5/16] %v1497, 128
  %1537 = vxpose.xlu0.b32.cont [6/16] %v1500, 128
  %1538 = vxpose.xlu0.b32.cont [7/16] %v1503, 128
  %1539 = vxpose.xlu0.b32.cont [8/16] %v1506, 128
  %1540 = vxpose.xlu0.b32.cont [9/16] %v1509, 128
  %1541 = vxpose.xlu0.b32.cont [10/16] %v1512, 128
  %1542 = vxpose.xlu0.b32.cont [11/16] %v1515, 128
  %1543 = vxpose.xlu0.b32.cont [12/16] %v1518, 128
  %1544 = vxpose.xlu0.b32.cont [13/16] %v1521, 128
  %1545 = vxpose.xlu0.b32.cont [14/16] %v1524, 128
  %1546 = vxpose.xlu0.b32.cont [15/16] %v1527, 128
  %1547 = vxpose.xlu0.b32.end [16/16] %v1530, 128
  %v1548 = vpop.trf.xlu0
  %v1549 = vpop.trf.xlu0
  %v1550 = vpop.trf.xlu0
  %v1551 = vpop.trf.xlu0
  %v1552 = vpop.trf.xlu0
  %v1553 = vpop.trf.xlu0
  %v1554 = vpop.trf.xlu0
  %v1555 = vpop.trf.xlu0
  %v1556 = vpop.trf.xlu0
  %v1557 = vpop.trf.xlu0
  %v1558 = vpop.trf.xlu0
  %v1559 = vpop.trf.xlu0
  %v1560 = vpop.trf.xlu0
  %v1561 = vpop.trf.xlu0
  %v1562 = vpop.trf.xlu0
  %v1563 = vpop.trf.xlu0
  %v1564 = vadd.f32 %v1548, %v696
  %v1565 = vcvt.s32.f32 %v72
  %v1566 = vperm.slane %v71, 1
  %vm1567 = vcmp.eq.s32.totalorder %v74, %v1566
  %v1568 = vsel %vm1567, 1, 0
  %v1569 = vcvt.s32.f32 %v1568
  %v1570 = vperm.slane %v951, 0
  %vm1571 = vcmp.eq.s32.totalorder %v74, %v1570
  %v1572 = vsel %vm1571, 1, 0
  %v1573 = vcvt.s32.f32 %v1572
  %vm1574 = vcmask 39936
  %v1576 = vsel %vm1574, %v55, 0
  %vm1578 = vcmask 1044480
  %v1580 = vsel %vm1578, %v1573, 0
  %1582 = vmatpush.msra.mxu0 0.0
  %1583 = vmatpush.msra.mxu0 0.0
  %1584 = vmatpush.msra.mxu0 0.0
  %1585 = vmatpush.msra.mxu0 0.0
  %1586 = vmatpush.msra.mxu0 0.0
  %1587 = vmatpush.msra.mxu0 0.0
  %1588 = vmatpush.msra.mxu0 0.0
  %1589 = vmatpush.msra.mxu0 0.0
  %1590 = vmatpush.msra.mxu0 0.0
  %1591 = vmatpush.msra.mxu0 0.0
  %1592 = vmatpush.msra.mxu0 0.0
  %1593 = vmatpush.msra.mxu0 0.0
  %1594 = vmatpush.msra.mxu0 0.0
  %1595 = vmatpush.msra.mxu0 0.0
  %1596 = vmatpush.msra.mxu0 0.0
  %1597 = vmatpush.msra.mxu0 %v1580
  %1598 = vmatmul.f32.gmra.mxu0 %v1576
  %v1599 = vpop.f32.mrf.mxu0
  %v1600 = vadd.f32 %v1564, %v1599
  %1601 = vdwg.mxu0
  %v1602 = vmul.f32 %v1569, %v1600
  %v1603 = vsel %vm1578, %v1602, 0.0
  %v1604 = vrot.slane %v1603, 4
  %v1605 = vadd.f32 %v1603, %v1604
  %v1606 = vrot.slane %v1605, 2
  %v1607 = vadd.f32 %v1605, %v1606
  %v1608 = vrot.slane %v1607, 1
  %v1609 = vadd.f32 %v1607, %v1608
  %v1610 = vmul.f32 %v1609, %v1565
  %1612 = vst [vmem:[#allocation1] sm:$0xff] %v1610
  %s1613 = scalar_lea.vmem [#allocation1], 1
  %v1614 = vld [vmem:[%s1613] ss:$9 sm:$0xff]
  %v1616 = vadd.f32 %v948, %v1614
  %v1618 = vrot.slane %v949, 1
  %v1619 = vrot.slane %v949, 2
  %v1620 = vrot.slane %v949, 3
  %v1621 = vrot.slane %v949, 4
  %v1622 = vperm.slane %v38, 0
  %v1623 = vlaneseq
  %v1624 = vshrl.u32 %v1623, 7
  %1626 = vset.pattern.permute.xlu0 %v1624
  %1627 = vperm.xlu0 %1626, %v1622
  %v1628 = vpop.permute.xlu0 %1627
  %v1629 = vperm.slane %v38, 1
  %v1630 = vlaneseq
  %v1631 = vshrl.u32 %v1630, 7
  %1633 = vset.pattern.permute.xlu0 %v1631
  %1634 = vperm.xlu0 %1633, %v1629
  %v1635 = vpop.permute.xlu0 %1634
  %v1636 = vperm.slane %v38, 2
  %v1637 = vlaneseq
  %v1638 = vshrl.u32 %v1637, 7
  %1640 = vset.pattern.permute.xlu0 %v1638
  %1641 = vperm.xlu0 %1640, %v1636
  %v1642 = vpop.permute.xlu0 %1641
  %v1643 = vperm.slane %v38, 3
  %v1644 = vlaneseq
  %v1645 = vshrl.u32 %v1644, 7
  %1647 = vset.pattern.permute.xlu0 %v1645
  %1648 = vperm.xlu0 %1647, %v1643
  %v1649 = vpop.permute.xlu0 %1648
  %v1650 = vperm.slane %v38, 4
  %v1651 = vlaneseq
  %v1652 = vshrl.u32 %v1651, 7
  %1654 = vset.pattern.permute.xlu0 %v1652
  %1655 = vperm.xlu0 %1654, %v1650
  %v1656 = vpop.permute.xlu0 %1655
  %v1657 = vperm.slane %v949, 0
  %v1658 = vperm.slane %v1618, 0
  %v1659 = vperm.slane %v1619, 0
  %v1660 = vperm.slane %v1620, 0
  %v1661 = vperm.slane %v1621, 0
  %v1667 = vadd.f32 %v1657, %v1628
  %v1668 = vadd.f32 %v1658, %v1635
  %v1669 = vadd.f32 %v1659, %v1642
  %v1670 = vadd.f32 %v1660, %v1649
  %v1671 = vadd.f32 %v1661, %v1656
  %v1672 = vsel %vm1578, %v1667, -inf
  %v1673 = vsel %vm1578, %v1668, -inf
  %v1674 = vsel %vm1578, %v1669, -inf
  %v1675 = vsel %vm1578, %v1670, -inf
  %v1676 = vsel %vm1578, %v1671, -inf
  %v1677 = vmax.f32 %v1672, %v1676
  %v1678 = vmax.f32 %v1677, %v1673
  %v1679 = vmax.f32 %v1674, %v1675
  %v1680 = vmax.f32 %v1678, %v1679
  %v1681 = vsub.f32 %v1667, %v1680
  %v1682 = vsub.f32 %v1668, %v1680
  %v1683 = vsub.f32 %v1669, %v1680
  %v1684 = vsub.f32 %v1670, %v1680
  %v1685 = vsub.f32 %v1671, %v1680
  %v1686 = vmul.f32 %v1681, 1.442695
  %v1687 = vpow.pop %v1686
  %v1688 = vmul.f32 %v1682, 1.442695
  %v1689 = vpow.pop %v1688
  %v1690 = vmul.f32 %v1683, 1.442695
  %v1691 = vpow.pop %v1690
  %v1692 = vmul.f32 %v1684, 1.442695
  %v1693 = vpow.pop %v1692
  %v1694 = vmul.f32 %v1685, 1.442695
  %v1695 = vpow.pop %v1694
  %v1696 = vsel %vm1578, %v1687, 0.0
  %v1697 = vsel %vm1578, %v1689, 0.0
  %v1698 = vadd.f32 %v1696, %v1697
  %v1699 = vsel %vm1578, %v1691, 0.0
  %v1700 = vadd.f32 %v1698, %v1699
  %v1701 = vsel %vm1578, %v1693, 0.0
  %v1702 = vadd.f32 %v1700, %v1701
  %v1703 = vsel %vm1578, %v1695, 0.0
  %v1704 = vadd.f32 %v1702, %v1703
  %v1705 = vlog2.pop %v1704
  %v1706 = vmul.f32 %v1705, 0.6931472
  %v1707 = vadd.f32 %v1680, %v1706
  %v1708 = vadd.f32 %v1707, %v1564
  %vm1709 = vcmp.gt.f32.partialorder %v1565, 0.0
  %v1710 = vsel %vm1709, 1, 0
  %v1711 = vperm.slane %v1710, 1
  %vm1712 = vcmp.eq.s32.totalorder %v1711, 1
  %v1713 = vsel %vm1712, %v1708, %v949
  %v1715 = vrot.slane %v950, 1
  %v1716 = vrot.slane %v950, 2
  %v1717 = vrot.slane %v950, 3
  %v1718 = vrot.slane %v950, 4
  %v1719 = vperm.slane %v950, 0
  %v1720 = vperm.slane %v1715, 0
  %v1721 = vperm.slane %v1716, 0
  %v1722 = vperm.slane %v1717, 0
  %v1723 = vperm.slane %v1718, 0
  %v1729 = vadd.f32 %v1719, %v1628
  %v1730 = vadd.f32 %v1720, %v1635
  %v1731 = vadd.f32 %v1721, %v1642
  %v1732 = vadd.f32 %v1722, %v1649
  %v1733 = vadd.f32 %v1723, %v1656
  %v1734 = vsel %vm1578, %v1729, -inf
  %v1735 = vsel %vm1578, %v1730, -inf
  %v1736 = vsel %vm1578, %v1731, -inf
  %v1737 = vsel %vm1578, %v1732, -inf
  %v1738 = vsel %vm1578, %v1733, -inf
  %v1739 = vmax.f32 %v1734, %v1738
  %v1740 = vmax.f32 %v1739, %v1735
  %v1741 = vmax.f32 %v1736, %v1737
  %v1742 = vmax.f32 %v1740, %v1741
  %vm1743 = vcmp.eq.f32.partialorder %v1729, %v1742
  %vm1744 = vcmp.eq.f32.partialorder %v1730, %v1742
  %vm1745 = vcmp.eq.f32.partialorder %v1731, %v1742
  %vm1746 = vcmp.eq.f32.partialorder %v1732, %v1742
  %vm1747 = vcmp.eq.f32.partialorder %v1733, %v1742
  %v1748 = vsel %vm1743, 0, 5
  %v1749 = vsel %vm1744, 1, 5
  %v1750 = vsel %vm1745, 2, 5
  %v1751 = vsel %vm1746, 3, 5
  %v1752 = vsel %vm1747, 4, 5
  %v1753 = vsel %vm1578, %v1748, 2147483647
  %v1754 = vsel %vm1578, %v1749, 2147483647
  %v1755 = vsel %vm1578, %v1750, 2147483647
  %v1756 = vsel %vm1578, %v1751, 2147483647
  %v1757 = vsel %vm1578, %v1752, 2147483647
  %vm1758 = vcmp.lt.s32.totalorder %v1753, %v1757
  %v1759 = vsel %vm1758, %v1753, %v1757
  %vm1760 = vcmp.lt.s32.totalorder %v1759, %v1754
  %v1761 = vsel %vm1760, %v1759, %v1754
  %vm1762 = vcmp.lt.s32.totalorder %v1755, %v1756
  %v1763 = vsel %vm1762, %v1755, %v1756
  %vm1764 = vcmp.lt.s32.totalorder %v1761, %v1763
  %v1765 = vsel %vm1764, %v1761, %v1763
  %s1766 = smul.u32 %s954, 8
  %s1767 = scalar_lea.vmem [#allocation8], %s1766
  %1768 = vst [vmem:[%s1767] sm:$0x1f] %v1765
  %v1769 = vadd.f32 %v1742, %v1564
  %v1770 = vsel %vm1712, %v1769, %v950
  %vm1771 = vcmp.gt.s32.totalorder %v72, 0
  %v1772 = vperm.slane %v952, 0
  %v1773 = vsel %vm1771, %v71, %v1772
  %1774 = vst [vmem:[#allocation1] sm:$0xff] %v72
  %s1775 = scalar_lea.vmem [#allocation1], 1
  %v1776 = vld [vmem:[%s1775] ss:$9 sm:$0xff]
  %v1777 = vadd.s32 %v953, %v1776
  %s1778 = sadd.s32 %s75, 2
  %v1779 = vld [vmem:[%s0 + $0x2] sm:$0x1]
  %v1780 = vld [vmem:[%s0 + $0xa] sm:$0x1]
  %v1781 = vld [vmem:[%s0 + $0x12] sm:$0x1]
  %v1782 = vld [vmem:[%s0 + $0x1a] sm:$0x1]
  %v1783 = vld [vmem:[%s0 + $0x22] sm:$0x1]
  %v1784 = vld [vmem:[%s0 + $0x2a] sm:$0x1]
  %v1785 = vld [vmem:[%s0 + $0x32] sm:$0x1]
  %v1786 = vld [vmem:[%s0 + $0x3a] sm:$0x1]
  %v1787 = vld [vmem:[%s0 + $0x42] sm:$0x1]
  %v1788 = vld [vmem:[%s0 + $0x4a] sm:$0x1]
  %v1789 = vld [vmem:[%s0 + $0x52] sm:$0x1]
  %v1790 = vld [vmem:[%s0 + $0x5a] sm:$0x1]
  %v1791 = vld [vmem:[%s0 + $0x62] sm:$0x1]
  %v1792 = vld [vmem:[%s0 + $0x6a] sm:$0x1]
  %v1793 = vld [vmem:[%s0 + $0x72] sm:$0x1]
  %v1794 = vld [vmem:[%s0 + $0x7a] sm:$0x1]
  %v1795 = vld [vmem:[%s0 + $0x82] sm:$0x1]
  %v1796 = vld [vmem:[%s0 + $0x8a] sm:$0x1]
  %v1797 = vld [vmem:[%s0 + $0x92] sm:$0x1]
  %v1798 = vld [vmem:[%s0 + $0x9a] sm:$0x1]
  %v1799 = vld [vmem:[%s0 + $0xa2] sm:$0x1]
  %v1800 = vld [vmem:[%s0 + $0xaa] sm:$0x1]
  %v1801 = vld [vmem:[%s0 + $0xb2] sm:$0x1]
  %v1802 = vld [vmem:[%s0 + $0xba] sm:$0x1]
  %v1803 = vld [vmem:[%s0 + $0xc2] sm:$0x1]
  %v1804 = vld [vmem:[%s0 + $0xca] sm:$0x1]
  %v1805 = vld [vmem:[%s0 + $0xd2] sm:$0x1]
  %v1806 = vld [vmem:[%s0 + $0xda] sm:$0x1]
  %v1807 = vld [vmem:[%s0 + $0xe2] sm:$0x1]
  %v1808 = vld [vmem:[%s0 + $0xea] sm:$0x1]
  %v1809 = vld [vmem:[%s0 + $0xf2] sm:$0x1]
  %v1810 = vld [vmem:[%s0 + $0xfa] sm:$0x1]
  %v1811 = vld [vmem:[%s0 + $0x102] sm:$0x1]
  %v1812 = vld [vmem:[%s0 + $0x10a] sm:$0x1]
  %v1813 = vld [vmem:[%s0 + $0x112] sm:$0x1]
  %v1814 = vld [vmem:[%s0 + $0x11a] sm:$0x1]
  %v1815 = vld [vmem:[%s0 + $0x122] sm:$0x1]
  %v1816 = vld [vmem:[%s0 + $0x12a] sm:$0x1]
  %v1817 = vld [vmem:[%s0 + $0x132] sm:$0x1]
  %v1818 = vld [vmem:[%s0 + $0x13a] sm:$0x1]
  %v1819 = vld [vmem:[%s0 + $0x142] sm:$0x1]
  %v1820 = vld [vmem:[%s0 + $0x14a] sm:$0x1]
  %v1821 = vld [vmem:[%s0 + $0x152] sm:$0x1]
  %v1822 = vld [vmem:[%s0 + $0x15a] sm:$0x1]
  %v1823 = vld [vmem:[%s0 + $0x162] sm:$0x1]
  %v1824 = vld [vmem:[%s0 + $0x16a] sm:$0x1]
  %v1825 = vld [vmem:[%s0 + $0x172] sm:$0x1]
  %v1826 = vld [vmem:[%s0 + $0x17a] sm:$0x1]
  %v1827 = vld [vmem:[%s0 + $0x182] sm:$0x1]
  %v1828 = vld [vmem:[%s0 + $0x18a] sm:$0x1]
  %v1829 = vld [vmem:[%s0 + $0x192] sm:$0x1]
  %v1830 = vld [vmem:[%s0 + $0x19a] sm:$0x1]
  %v1831 = vld [vmem:[%s0 + $0x1a2] sm:$0x1]
  %v1832 = vld [vmem:[%s0 + $0x1aa] sm:$0x1]
  %v1833 = vld [vmem:[%s0 + $0x1b2] sm:$0x1]
  %v1834 = vld [vmem:[%s0 + $0x1ba] sm:$0x1]
  %v1835 = vld [vmem:[%s0 + $0x1c2] sm:$0x1]
  %v1836 = vld [vmem:[%s0 + $0x1ca] sm:$0x1]
  %v1837 = vld [vmem:[%s0 + $0x1d2] sm:$0x1]
  %v1838 = vld [vmem:[%s0 + $0x1da] sm:$0x1]
  %v1839 = vld [vmem:[%s0 + $0x1e2] sm:$0x1]
  %v1840 = vld [vmem:[%s0 + $0x1ea] sm:$0x1]
  %v1841 = vld [vmem:[%s0 + $0x1f2] sm:$0x1]
  %v1842 = vld [vmem:[%s0 + $0x1fa] sm:$0x1]
  %v1843 = vld [vmem:[%s0 + $0x202] sm:$0x1]
  %v1844 = vld [vmem:[%s0 + $0x20a] sm:$0x1]
  %v1845 = vld [vmem:[%s0 + $0x212] sm:$0x1]
  %v1846 = vld [vmem:[%s0 + $0x21a] sm:$0x1]
  %v1847 = vld [vmem:[%s0 + $0x222] sm:$0x1]
  %v1848 = vld [vmem:[%s0 + $0x22a] sm:$0x1]
  %v1849 = vld [vmem:[%s0 + $0x232] sm:$0x1]
  %v1850 = vld [vmem:[%s0 + $0x23a] sm:$0x1]
  %v1851 = vld [vmem:[%s0 + $0x242] sm:$0x1]
  %v1852 = vld [vmem:[%s0 + $0x24a] sm:$0x1]
  %v1853 = vld [vmem:[%s0 + $0x252] sm:$0x1]
  %v1854 = vld [vmem:[%s0 + $0x25a] sm:$0x1]
  %v1855 = vld [vmem:[%s0 + $0x262] sm:$0x1]
  %v1856 = vld [vmem:[%s0 + $0x26a] sm:$0x1]
  %v1857 = vld [vmem:[%s0 + $0x272] sm:$0x1]
  %v1858 = vld [vmem:[%s0 + $0x27a] sm:$0x1]
  %v1859 = vld [vmem:[%s0 + $0x282] sm:$0x1]
  %v1860 = vld [vmem:[%s0 + $0x28a] sm:$0x1]
  %v1861 = vld [vmem:[%s0 + $0x292] sm:$0x1]
  %v1862 = vld [vmem:[%s0 + $0x29a] sm:$0x1]
  %v1863 = vld [vmem:[%s0 + $0x2a2] sm:$0x1]
  %v1864 = vld [vmem:[%s0 + $0x2aa] sm:$0x1]
  %v1865 = vld [vmem:[%s0 + $0x2b2] sm:$0x1]
  %v1866 = vld [vmem:[%s0 + $0x2ba] sm:$0x1]
  %v1867 = vld [vmem:[%s0 + $0x2c2] sm:$0x1]
  %v1868 = vld [vmem:[%s0 + $0x2ca] sm:$0x1]
  %v1869 = vld [vmem:[%s0 + $0x2d2] sm:$0x1]
  %v1870 = vld [vmem:[%s0 + $0x2da] sm:$0x1]
  %v1871 = vld [vmem:[%s0 + $0x2e2] sm:$0x1]
  %v1872 = vld [vmem:[%s0 + $0x2ea] sm:$0x1]
  %v1873 = vld [vmem:[%s0 + $0x2f2] sm:$0x1]
  %v1874 = vld [vmem:[%s0 + $0x2fa] sm:$0x1]
  %v1875 = vld [vmem:[%s0 + $0x302] sm:$0x1]
  %v1876 = vld [vmem:[%s0 + $0x30a] sm:$0x1]
  %v1877 = vld [vmem:[%s0 + $0x312] sm:$0x1]
  %v1878 = vld [vmem:[%s0 + $0x31a] sm:$0x1]
  %v1879 = vld [vmem:[%s0 + $0x322] sm:$0x1]
  %v1880 = vld [vmem:[%s0 + $0x32a] sm:$0x1]
  %v1881 = vld [vmem:[%s0 + $0x332] sm:$0x1]
  %v1882 = vld [vmem:[%s0 + $0x33a] sm:$0x1]
  %v1883 = vld [vmem:[%s0 + $0x342] sm:$0x1]
  %v1884 = vld [vmem:[%s0 + $0x34a] sm:$0x1]
  %v1885 = vld [vmem:[%s0 + $0x352] sm:$0x1]
  %v1886 = vld [vmem:[%s0 + $0x35a] sm:$0x1]
  %v1887 = vld [vmem:[%s0 + $0x362] sm:$0x1]
  %v1888 = vld [vmem:[%s0 + $0x36a] sm:$0x1]
  %v1889 = vld [vmem:[%s0 + $0x372] sm:$0x1]
  %v1890 = vld [vmem:[%s0 + $0x37a] sm:$0x1]
  %v1891 = vld [vmem:[%s0 + $0x382] sm:$0x1]
  %v1892 = vld [vmem:[%s0 + $0x38a] sm:$0x1]
  %v1893 = vld [vmem:[%s0 + $0x392] sm:$0x1]
  %v1894 = vld [vmem:[%s0 + $0x39a] sm:$0x1]
  %v1895 = vld [vmem:[%s0 + $0x3a2] sm:$0x1]
  %v1896 = vld [vmem:[%s0 + $0x3aa] sm:$0x1]
  %v1897 = vld [vmem:[%s0 + $0x3b2] sm:$0x1]
  %v1898 = vld [vmem:[%s0 + $0x3ba] sm:$0x1]
  %v1899 = vld [vmem:[%s0 + $0x3c2] sm:$0x1]
  %v1900 = vld [vmem:[%s0 + $0x3ca] sm:$0x1]
  %v1901 = vld [vmem:[%s0 + $0x3d2] sm:$0x1]
  %v1902 = vld [vmem:[%s0 + $0x3da] sm:$0x1]
  %v1903 = vld [vmem:[%s0 + $0x3e2] sm:$0x1]
  %v1904 = vld [vmem:[%s0 + $0x3ea] sm:$0x1]
  %v1905 = vld [vmem:[%s0 + $0x3f2] sm:$0x1]
  %v1906 = vld [vmem:[%s0 + $0x3fa] sm:$0x1]
  %v2035 = vrot.slane %v1780, 7
  %v2036 = vsel %vm333, %v2035, %v1779
  %v2037 = vrot.slane %v1781, 6
  %v2038 = vsel %vm336, %v2037, %v2036
  %v2039 = vrot.slane %v1782, 5
  %v2040 = vsel %vm339, %v2039, %v2038
  %v2041 = vrot.slane %v1783, 4
  %v2042 = vsel %vm342, %v2041, %v2040
  %v2043 = vrot.slane %v1784, 3
  %v2044 = vsel %vm345, %v2043, %v2042
  %v2045 = vrot.slane %v1785, 2
  %v2046 = vsel %vm348, %v2045, %v2044
  %v2047 = vrot.slane %v1786, 1
  %v2048 = vsel %vm351, %v2047, %v2046
  %v2049 = vrot.slane %v1788, 7
  %v2050 = vsel %vm333, %v2049, %v1787
  %v2051 = vrot.slane %v1789, 6
  %v2052 = vsel %vm336, %v2051, %v2050
  %v2053 = vrot.slane %v1790, 5
  %v2054 = vsel %vm339, %v2053, %v2052
  %v2055 = vrot.slane %v1791, 4
  %v2056 = vsel %vm342, %v2055, %v2054
  %v2057 = vrot.slane %v1792, 3
  %v2058 = vsel %vm345, %v2057, %v2056
  %v2059 = vrot.slane %v1793, 2
  %v2060 = vsel %vm348, %v2059, %v2058
  %v2061 = vrot.slane %v1794, 1
  %v2062 = vsel %vm351, %v2061, %v2060
  %v2063 = vrot.slane %v1796, 7
  %v2064 = vsel %vm333, %v2063, %v1795
  %v2065 = vrot.slane %v1797, 6
  %v2066 = vsel %vm336, %v2065, %v2064
  %v2067 = vrot.slane %v1798, 5
  %v2068 = vsel %vm339, %v2067, %v2066
  %v2069 = vrot.slane %v1799, 4
  %v2070 = vsel %vm342, %v2069, %v2068
  %v2071 = vrot.slane %v1800, 3
  %v2072 = vsel %vm345, %v2071, %v2070
  %v2073 = vrot.slane %v1801, 2
  %v2074 = vsel %vm348, %v2073, %v2072
  %v2075 = vrot.slane %v1802, 1
  %v2076 = vsel %vm351, %v2075, %v2074
  %v2077 = vrot.slane %v1804, 7
  %v2078 = vsel %vm333, %v2077, %v1803
  %v2079 = vrot.slane %v1805, 6
  %v2080 = vsel %vm336, %v2079, %v2078
  %v2081 = vrot.slane %v1806, 5
  %v2082 = vsel %vm339, %v2081, %v2080
  %v2083 = vrot.slane %v1807, 4
  %v2084 = vsel %vm342, %v2083, %v2082
  %v2085 = vrot.slane %v1808, 3
  %v2086 = vsel %vm345, %v2085, %v2084
  %v2087 = vrot.slane %v1809, 2
  %v2088 = vsel %vm348, %v2087, %v2086
  %v2089 = vrot.slane %v1810, 1
  %v2090 = vsel %vm351, %v2089, %v2088
  %v2091 = vrot.slane %v1812, 7
  %v2092 = vsel %vm333, %v2091, %v1811
  %v2093 = vrot.slane %v1813, 6
  %v2094 = vsel %vm336, %v2093, %v2092
  %v2095 = vrot.slane %v1814, 5
  %v2096 = vsel %vm339, %v2095, %v2094
  %v2097 = vrot.slane %v1815, 4
  %v2098 = vsel %vm342, %v2097, %v2096
  %v2099 = vrot.slane %v1816, 3
  %v2100 = vsel %vm345, %v2099, %v2098
  %v2101 = vrot.slane %v1817, 2
  %v2102 = vsel %vm348, %v2101, %v2100
  %v2103 = vrot.slane %v1818, 1
  %v2104 = vsel %vm351, %v2103, %v2102
  %v2105 = vrot.slane %v1820, 7
  %v2106 = vsel %vm333, %v2105, %v1819
  %v2107 = vrot.slane %v1821, 6
  %v2108 = vsel %vm336, %v2107, %v2106
  %v2109 = vrot.slane %v1822, 5
  %v2110 = vsel %vm339, %v2109, %v2108
  %v2111 = vrot.slane %v1823, 4
  %v2112 = vsel %vm342, %v2111, %v2110
  %v2113 = vrot.slane %v1824, 3
  %v2114 = vsel %vm345, %v2113, %v2112
  %v2115 = vrot.slane %v1825, 2
  %v2116 = vsel %vm348, %v2115, %v2114
  %v2117 = vrot.slane %v1826, 1
  %v2118 = vsel %vm351, %v2117, %v2116
  %v2119 = vrot.slane %v1828, 7
  %v2120 = vsel %vm333, %v2119, %v1827
  %v2121 = vrot.slane %v1829, 6
  %v2122 = vsel %vm336, %v2121, %v2120
  %v2123 = vrot.slane %v1830, 5
  %v2124 = vsel %vm339, %v2123, %v2122
  %v2125 = vrot.slane %v1831, 4
  %v2126 = vsel %vm342, %v2125, %v2124
  %v2127 = vrot.slane %v1832, 3
  %v2128 = vsel %vm345, %v2127, %v2126
  %v2129 = vrot.slane %v1833, 2
  %v2130 = vsel %vm348, %v2129, %v2128
  %v2131 = vrot.slane %v1834, 1
  %v2132 = vsel %vm351, %v2131, %v2130
  %v2133 = vrot.slane %v1836, 7
  %v2134 = vsel %vm333, %v2133, %v1835
  %v2135 = vrot.slane %v1837, 6
  %v2136 = vsel %vm336, %v2135, %v2134
  %v2137 = vrot.slane %v1838, 5
  %v2138 = vsel %vm339, %v2137, %v2136
  %v2139 = vrot.slane %v1839, 4
  %v2140 = vsel %vm342, %v2139, %v2138
  %v2141 = vrot.slane %v1840, 3
  %v2142 = vsel %vm345, %v2141, %v2140
  %v2143 = vrot.slane %v1841, 2
  %v2144 = vsel %vm348, %v2143, %v2142
  %v2145 = vrot.slane %v1842, 1
  %v2146 = vsel %vm351, %v2145, %v2144
  %v2147 = vrot.slane %v1844, 7
  %v2148 = vsel %vm333, %v2147, %v1843
  %v2149 = vrot.slane %v1845, 6
  %v2150 = vsel %vm336, %v2149, %v2148
  %v2151 = vrot.slane %v1846, 5
  %v2152 = vsel %vm339, %v2151, %v2150
  %v2153 = vrot.slane %v1847, 4
  %v2154 = vsel %vm342, %v2153, %v2152
  %v2155 = vrot.slane %v1848, 3
  %v2156 = vsel %vm345, %v2155, %v2154
  %v2157 = vrot.slane %v1849, 2
  %v2158 = vsel %vm348, %v2157, %v2156
  %v2159 = vrot.slane %v1850, 1
  %v2160 = vsel %vm351, %v2159, %v2158
  %v2161 = vrot.slane %v1852, 7
  %v2162 = vsel %vm333, %v2161, %v1851
  %v2163 = vrot.slane %v1853, 6
  %v2164 = vsel %vm336, %v2163, %v2162
  %v2165 = vrot.slane %v1854, 5
  %v2166 = vsel %vm339, %v2165, %v2164
  %v2167 = vrot.slane %v1855, 4
  %v2168 = vsel %vm342, %v2167, %v2166
  %v2169 = vrot.slane %v1856, 3
  %v2170 = vsel %vm345, %v2169, %v2168
  %v2171 = vrot.slane %v1857, 2
  %v2172 = vsel %vm348, %v2171, %v2170
  %v2173 = vrot.slane %v1858, 1
  %v2174 = vsel %vm351, %v2173, %v2172
  %v2175 = vrot.slane %v1860, 7
  %v2176 = vsel %vm333, %v2175, %v1859
  %v2177 = vrot.slane %v1861, 6
  %v2178 = vsel %vm336, %v2177, %v2176
  %v2179 = vrot.slane %v1862, 5
  %v2180 = vsel %vm339, %v2179, %v2178
  %v2181 = vrot.slane %v1863, 4
  %v2182 = vsel %vm342, %v2181, %v2180
  %v2183 = vrot.slane %v1864, 3
  %v2184 = vsel %vm345, %v2183, %v2182
  %v2185 = vrot.slane %v1865, 2
  %v2186 = vsel %vm348, %v2185, %v2184
  %v2187 = vrot.slane %v1866, 1
  %v2188 = vsel %vm351, %v2187, %v2186
  %v2189 = vrot.slane %v1868, 7
  %v2190 = vsel %vm333, %v2189, %v1867
  %v2191 = vrot.slane %v1869, 6
  %v2192 = vsel %vm336, %v2191, %v2190
  %v2193 = vrot.slane %v1870, 5
  %v2194 = vsel %vm339, %v2193, %v2192
  %v2195 = vrot.slane %v1871, 4
  %v2196 = vsel %vm342, %v2195, %v2194
  %v2197 = vrot.slane %v1872, 3
  %v2198 = vsel %vm345, %v2197, %v2196
  %v2199 = vrot.slane %v1873, 2
  %v2200 = vsel %vm348, %v2199, %v2198
  %v2201 = vrot.slane %v1874, 1
  %v2202 = vsel %vm351, %v2201, %v2200
  %v2203 = vrot.slane %v1876, 7
  %v2204 = vsel %vm333, %v2203, %v1875
  %v2205 = vrot.slane %v1877, 6
  %v2206 = vsel %vm336, %v2205, %v2204
  %v2207 = vrot.slane %v1878, 5
  %v2208 = vsel %vm339, %v2207, %v2206
  %v2209 = vrot.slane %v1879, 4
  %v2210 = vsel %vm342, %v2209, %v2208
  %v2211 = vrot.slane %v1880, 3
  %v2212 = vsel %vm345, %v2211, %v2210
  %v2213 = vrot.slane %v1881, 2
  %v2214 = vsel %vm348, %v2213, %v2212
  %v2215 = vrot.slane %v1882, 1
  %v2216 = vsel %vm351, %v2215, %v2214
  %v2217 = vrot.slane %v1884, 7
  %v2218 = vsel %vm333, %v2217, %v1883
  %v2219 = vrot.slane %v1885, 6
  %v2220 = vsel %vm336, %v2219, %v2218
  %v2221 = vrot.slane %v1886, 5
  %v2222 = vsel %vm339, %v2221, %v2220
  %v2223 = vrot.slane %v1887, 4
  %v2224 = vsel %vm342, %v2223, %v2222
  %v2225 = vrot.slane %v1888, 3
  %v2226 = vsel %vm345, %v2225, %v2224
  %v2227 = vrot.slane %v1889, 2
  %v2228 = vsel %vm348, %v2227, %v2226
  %v2229 = vrot.slane %v1890, 1
  %v2230 = vsel %vm351, %v2229, %v2228
  %v2231 = vrot.slane %v1892, 7
  %v2232 = vsel %vm333, %v2231, %v1891
  %v2233 = vrot.slane %v1893, 6
  %v2234 = vsel %vm336, %v2233, %v2232
  %v2235 = vrot.slane %v1894, 5
  %v2236 = vsel %vm339, %v2235, %v2234
  %v2237 = vrot.slane %v1895, 4
  %v2238 = vsel %vm342, %v2237, %v2236
  %v2239 = vrot.slane %v1896, 3
  %v2240 = vsel %vm345, %v2239, %v2238
  %v2241 = vrot.slane %v1897, 2
  %v2242 = vsel %vm348, %v2241, %v2240
  %v2243 = vrot.slane %v1898, 1
  %v2244 = vsel %vm351, %v2243, %v2242
  %v2245 = vrot.slane %v1900, 7
  %v2246 = vsel %vm333, %v2245, %v1899
  %v2247 = vrot.slane %v1901, 6
  %v2248 = vsel %vm336, %v2247, %v2246
  %v2249 = vrot.slane %v1902, 5
  %v2250 = vsel %vm339, %v2249, %v2248
  %v2251 = vrot.slane %v1903, 4
  %v2252 = vsel %vm342, %v2251, %v2250
  %v2253 = vrot.slane %v1904, 3
  %v2254 = vsel %vm345, %v2253, %v2252
  %v2255 = vrot.slane %v1905, 2
  %v2256 = vsel %vm348, %v2255, %v2254
  %v2257 = vrot.slane %v1906, 1
  %v2258 = vsel %vm351, %v2257, %v2256
  %v2259 = vsel %vm563, %v2048, 0
  %v2261 = vsel %vm563, %v2062, 0
  %v2263 = vsel %vm563, %v2076, 0
  %v2265 = vsel %vm563, %v2090, 0
  %v2267 = vsel %vm563, %v2104, 0
  %v2269 = vsel %vm563, %v2118, 0
  %v2271 = vsel %vm563, %v2132, 0
  %v2273 = vsel %vm563, %v2146, 0
  %v2275 = vsel %vm563, %v2160, 0
  %v2277 = vsel %vm563, %v2174, 0
  %v2279 = vsel %vm563, %v2188, 0
  %v2281 = vsel %vm563, %v2202, 0
  %v2283 = vsel %vm563, %v2216, 0
  %v2285 = vsel %vm563, %v2230, 0
  %v2287 = vsel %vm563, %v2244, 0
  %v2289 = vsel %vm563, %v2258, 0
  %2291 = vmatpush.msra.mxu0 0.0
  %2292 = vmatpush.msra.mxu0 0.0
  %2293 = vmatpush.msra.mxu0 0.0
  %2294 = vmatpush.msra.mxu0 0.0
  %2295 = vmatpush.msra.mxu0 0.0
  %2296 = vmatpush.msra.mxu0 0.0
  %2297 = vmatpush.msra.mxu0 0.0
  %2298 = vmatpush.msra.mxu0 0.0
  %2299 = vmatpush.msra.mxu0 0.0
  %2300 = vmatpush.msra.mxu0 0.0
  %2301 = vmatpush.msra.mxu0 0.0
  %2302 = vmatpush.msra.mxu0 0.0
  %2303 = vmatpush.msra.mxu0 %v34
  %2304 = vmatpush.msra.mxu0 %v33
  %2305 = vmatpush.msra.mxu0 %v32
  %2306 = vmatpush.msra.mxu0 %v31
  %2307 = vmatmul.f32.gmra.mxu0 %v2259
  %v2308 = vpop.f32.mrf.mxu0
  %v2309 = vadd.f32 0.0, %v2308
  %2310 = vmatmul.f32.gmra.mxu0 %v2261
  %v2311 = vpop.f32.mrf.mxu0
  %v2312 = vadd.f32 0.0, %v2311
  %2313 = vmatmul.f32.gmra.mxu0 %v2263
  %v2314 = vpop.f32.mrf.mxu0
  %v2315 = vadd.f32 0.0, %v2314
  %2316 = vmatmul.f32.gmra.mxu0 %v2265
  %v2317 = vpop.f32.mrf.mxu0
  %v2318 = vadd.f32 0.0, %v2317
  %2319 = vmatmul.f32.gmra.mxu0 %v2267
  %v2320 = vpop.f32.mrf.mxu0
  %v2321 = vadd.f32 0.0, %v2320
  %2322 = vmatmul.f32.gmra.mxu0 %v2269
  %v2323 = vpop.f32.mrf.mxu0
  %v2324 = vadd.f32 0.0, %v2323
  %2325 = vmatmul.f32.gmra.mxu0 %v2271
  %v2326 = vpop.f32.mrf.mxu0
  %v2327 = vadd.f32 0.0, %v2326
  %2328 = vmatmul.f32.gmra.mxu0 %v2273
  %v2329 = vpop.f32.mrf.mxu0
  %v2330 = vadd.f32 0.0, %v2329
  %2331 = vmatmul.f32.gmra.mxu0 %v2275
  %v2332 = vpop.f32.mrf.mxu0
  %v2333 = vadd.f32 0.0, %v2332
  %2334 = vmatmul.f32.gmra.mxu0 %v2277
  %v2335 = vpop.f32.mrf.mxu0
  %v2336 = vadd.f32 0.0, %v2335
  %2337 = vmatmul.f32.gmra.mxu0 %v2279
  %v2338 = vpop.f32.mrf.mxu0
  %v2339 = vadd.f32 0.0, %v2338
  %2340 = vmatmul.f32.gmra.mxu0 %v2281
  %v2341 = vpop.f32.mrf.mxu0
  %v2342 = vadd.f32 0.0, %v2341
  %2343 = vmatmul.f32.gmra.mxu0 %v2283
  %v2344 = vpop.f32.mrf.mxu0
  %v2345 = vadd.f32 0.0, %v2344
  %2346 = vmatmul.f32.gmra.mxu0 %v2285
  %v2347 = vpop.f32.mrf.mxu0
  %v2348 = vadd.f32 0.0, %v2347
  %2349 = vmatmul.f32.gmra.mxu0 %v2287
  %v2350 = vpop.f32.mrf.mxu0
  %v2351 = vadd.f32 0.0, %v2350
  %2352 = vmatmul.f32.gmra.mxu0 %v2289
  %v2353 = vpop.f32.mrf.mxu0
  %v2354 = vadd.f32 0.0, %v2353
  %2355 = vdwg.mxu0
  %2356 = vxpose.xlu0.b32.start [1/16] %v2309, 128
  %2357 = vxpose.xlu0.b32.cont [2/16] %v2312, 128
  %2358 = vxpose.xlu0.b32.cont [3/16] %v2315, 128
  %2359 = vxpose.xlu0.b32.cont [4/16] %v2318, 128
  %2360 = vxpose.xlu0.b32.cont [5/16] %v2321, 128
  %2361 = vxpose.xlu0.b32.cont [6/16] %v2324, 128
  %2362 = vxpose.xlu0.b32.cont [7/16] %v2327, 128
  %2363 = vxpose.xlu0.b32.cont [8/16] %v2330, 128
  %2364 = vxpose.xlu0.b32.cont [9/16] %v2333, 128
  %2365 = vxpose.xlu0.b32.cont [10/16] %v2336, 128
  %2366 = vxpose.xlu0.b32.cont [11/16] %v2339, 128
  %2367 = vxpose.xlu0.b32.cont [12/16] %v2342, 128
  %2368 = vxpose.xlu0.b32.cont [13/16] %v2345, 128
  %2369 = vxpose.xlu0.b32.cont [14/16] %v2348, 128
  %2370 = vxpose.xlu0.b32.cont [15/16] %v2351, 128
  %2371 = vxpose.xlu0.b32.end [16/16] %v2354, 128
  %v2372 = vpop.trf.xlu0
  %v2373 = vpop.trf.xlu0
  %v2374 = vpop.trf.xlu0
  %v2375 = vpop.trf.xlu0
  %v2376 = vpop.trf.xlu0
  %v2377 = vpop.trf.xlu0
  %v2378 = vpop.trf.xlu0
  %v2379 = vpop.trf.xlu0
  %v2380 = vpop.trf.xlu0
  %v2381 = vpop.trf.xlu0
  %v2382 = vpop.trf.xlu0
  %v2383 = vpop.trf.xlu0
  %v2384 = vpop.trf.xlu0
  %v2385 = vpop.trf.xlu0
  %v2386 = vpop.trf.xlu0
  %v2387 = vpop.trf.xlu0
  %v2388 = vadd.f32 %v2372, %v696
  %v2389 = vperm.slane %v71, 2
  %vm2390 = vcmp.eq.s32.totalorder %v74, %v2389
  %v2391 = vsel %vm2390, 1, 0
  %v2392 = vcvt.s32.f32 %v2391
  %v2394 = vsel %vm1578, %v1569, 0
  %2396 = vmatpush.msra.mxu0 0.0
  %2397 = vmatpush.msra.mxu0 0.0
  %2398 = vmatpush.msra.mxu0 0.0
  %2399 = vmatpush.msra.mxu0 0.0
  %2400 = vmatpush.msra.mxu0 0.0
  %2401 = vmatpush.msra.mxu0 0.0
  %2402 = vmatpush.msra.mxu0 0.0
  %2403 = vmatpush.msra.mxu0 0.0
  %2404 = vmatpush.msra.mxu0 0.0
  %2405 = vmatpush.msra.mxu0 0.0
  %2406 = vmatpush.msra.mxu0 0.0
  %2407 = vmatpush.msra.mxu0 0.0
  %2408 = vmatpush.msra.mxu0 0.0
  %2409 = vmatpush.msra.mxu0 0.0
  %2410 = vmatpush.msra.mxu0 0.0
  %2411 = vmatpush.msra.mxu0 %v2394
  %2412 = vmatmul.f32.gmra.mxu0 %v1576
  %v2413 = vpop.f32.mrf.mxu0
  %v2414 = vadd.f32 %v2388, %v2413
  %2415 = vdwg.mxu0
  %v2416 = vmul.f32 %v2392, %v2414
  %v2417 = vsel %vm1578, %v2416, 0.0
  %v2418 = vrot.slane %v2417, 4
  %v2419 = vadd.f32 %v2417, %v2418
  %v2420 = vrot.slane %v2419, 2
  %v2421 = vadd.f32 %v2419, %v2420
  %v2422 = vrot.slane %v2421, 1
  %v2423 = vadd.f32 %v2421, %v2422
  %v2424 = vmul.f32 %v2423, %v1565
  %2426 = vst [vmem:[#allocation1] sm:$0xff] %v2424
  %s2427 = scalar_lea.vmem [#allocation1], 2
  %v2428 = vld [vmem:[%s2427] ss:$9 sm:$0xff]
  %v2430 = vadd.f32 %v1616, %v2428
  %v2432 = vrot.slane %v1713, 1
  %v2433 = vrot.slane %v1713, 2
  %v2434 = vrot.slane %v1713, 3
  %v2435 = vrot.slane %v1713, 4
  %v2436 = vperm.slane %v1713, 0
  %v2437 = vperm.slane %v2432, 0
  %v2438 = vperm.slane %v2433, 0
  %v2439 = vperm.slane %v2434, 0
  %v2440 = vperm.slane %v2435, 0
  %v2446 = vadd.f32 %v2436, %v1628
  %v2447 = vadd.f32 %v2437, %v1635
  %v2448 = vadd.f32 %v2438, %v1642
  %v2449 = vadd.f32 %v2439, %v1649
  %v2450 = vadd.f32 %v2440, %v1656
  %v2451 = vsel %vm1578, %v2446, -inf
  %v2452 = vsel %vm1578, %v2447, -inf
  %v2453 = vsel %vm1578, %v2448, -inf
  %v2454 = vsel %vm1578, %v2449, -inf
  %v2455 = vsel %vm1578, %v2450, -inf
  %v2456 = vmax.f32 %v2451, %v2455
  %v2457 = vmax.f32 %v2456, %v2452
  %v2458 = vmax.f32 %v2453, %v2454
  %v2459 = vmax.f32 %v2457, %v2458
  %v2460 = vsub.f32 %v2446, %v2459
  %v2461 = vsub.f32 %v2447, %v2459
  %v2462 = vsub.f32 %v2448, %v2459
  %v2463 = vsub.f32 %v2449, %v2459
  %v2464 = vsub.f32 %v2450, %v2459
  %v2465 = vmul.f32 %v2460, 1.442695
  %v2466 = vpow.pop %v2465
  %v2467 = vmul.f32 %v2461, 1.442695
  %v2468 = vpow.pop %v2467
  %v2469 = vmul.f32 %v2462, 1.442695
  %v2470 = vpow.pop %v2469
  %v2471 = vmul.f32 %v2463, 1.442695
  %v2472 = vpow.pop %v2471
  %v2473 = vmul.f32 %v2464, 1.442695
  %v2474 = vpow.pop %v2473
  %v2475 = vsel %vm1578, %v2466, 0.0
  %v2476 = vsel %vm1578, %v2468, 0.0
  %v2477 = vadd.f32 %v2475, %v2476
  %v2478 = vsel %vm1578, %v2470, 0.0
  %v2479 = vadd.f32 %v2477, %v2478
  %v2480 = vsel %vm1578, %v2472, 0.0
  %v2481 = vadd.f32 %v2479, %v2480
  %v2482 = vsel %vm1578, %v2474, 0.0
  %v2483 = vadd.f32 %v2481, %v2482
  %v2484 = vlog2.pop %v2483
  %v2485 = vmul.f32 %v2484, 0.6931472
  %v2486 = vadd.f32 %v2459, %v2485
  %v2487 = vadd.f32 %v2486, %v2388
  %v2488 = vperm.slane %v1710, 2
  %vm2489 = vcmp.eq.s32.totalorder %v2488, 1
  %v2490 = vsel %vm2489, %v2487, %v1713
  %v2492 = vrot.slane %v1770, 1
  %v2493 = vrot.slane %v1770, 2
  %v2494 = vrot.slane %v1770, 3
  %v2495 = vrot.slane %v1770, 4
  %v2496 = vperm.slane %v1770, 0
  %v2497 = vperm.slane %v2492, 0
  %v2498 = vperm.slane %v2493, 0
  %v2499 = vperm.slane %v2494, 0
  %v2500 = vperm.slane %v2495, 0
  %v2506 = vadd.f32 %v2496, %v1628
  %v2507 = vadd.f32 %v2497, %v1635
  %v2508 = vadd.f32 %v2498, %v1642
  %v2509 = vadd.f32 %v2499, %v1649
  %v2510 = vadd.f32 %v2500, %v1656
  %v2511 = vsel %vm1578, %v2506, -inf
  %v2512 = vsel %vm1578, %v2507, -inf
  %v2513 = vsel %vm1578, %v2508, -inf
  %v2514 = vsel %vm1578, %v2509, -inf
  %v2515 = vsel %vm1578, %v2510, -inf
  %v2516 = vmax.f32 %v2511, %v2515
  %v2517 = vmax.f32 %v2516, %v2512
  %v2518 = vmax.f32 %v2513, %v2514
  %v2519 = vmax.f32 %v2517, %v2518
  %vm2520 = vcmp.eq.f32.partialorder %v2506, %v2519
  %vm2521 = vcmp.eq.f32.partialorder %v2507, %v2519
  %vm2522 = vcmp.eq.f32.partialorder %v2508, %v2519
  %vm2523 = vcmp.eq.f32.partialorder %v2509, %v2519
  %vm2524 = vcmp.eq.f32.partialorder %v2510, %v2519
  %v2525 = vsel %vm2520, 0, 5
  %v2526 = vsel %vm2521, 1, 5
  %v2527 = vsel %vm2522, 2, 5
  %v2528 = vsel %vm2523, 3, 5
  %v2529 = vsel %vm2524, 4, 5
  %v2530 = vsel %vm1578, %v2525, 2147483647
  %v2531 = vsel %vm1578, %v2526, 2147483647
  %v2532 = vsel %vm1578, %v2527, 2147483647
  %v2533 = vsel %vm1578, %v2528, 2147483647
  %v2534 = vsel %vm1578, %v2529, 2147483647
  %vm2535 = vcmp.lt.s32.totalorder %v2530, %v2534
  %v2536 = vsel %vm2535, %v2530, %v2534
  %vm2537 = vcmp.lt.s32.totalorder %v2536, %v2531
  %v2538 = vsel %vm2537, %v2536, %v2531
  %vm2539 = vcmp.lt.s32.totalorder %v2532, %v2533
  %v2540 = vsel %vm2539, %v2532, %v2533
  %vm2541 = vcmp.lt.s32.totalorder %v2538, %v2540
  %v2542 = vsel %vm2541, %v2538, %v2540
  %s2543 = smul.u32 %s1778, 8
  %s2544 = scalar_lea.vmem [#allocation8], %s2543
  %2545 = vst [vmem:[%s2544] sm:$0x1f] %v2542
  %v2546 = vadd.f32 %v2519, %v2388
  %v2547 = vsel %vm2489, %v2546, %v1770
  %v2548 = vrot.slane %v1773, 7
  %v2549 = vsel %vm1771, %v71, %v2548
  %2550 = vst [vmem:[#allocation1] sm:$0xff] %v72
  %s2551 = scalar_lea.vmem [#allocation1], 2
  %v2552 = vld [vmem:[%s2551] ss:$9 sm:$0xff]
  %v2553 = vadd.s32 %v1777, %v2552
  %s2554 = sadd.s32 %s75, 3
  %v2555 = vld [vmem:[%s0 + $0x3] sm:$0x1]
  %v2556 = vld [vmem:[%s0 + $0xb] sm:$0x1]
  %v2557 = vld [vmem:[%s0 + $0x13] sm:$0x1]
  %v2558 = vld [vmem:[%s0 + $0x1b] sm:$0x1]
  %v2559 = vld [vmem:[%s0 + $0x23] sm:$0x1]
  %v2560 = vld [vmem:[%s0 + $0x2b] sm:$0x1]
  %v2561 = vld [vmem:[%s0 + $0x33] sm:$0x1]
  %v2562 = vld [vmem:[%s0 + $0x3b] sm:$0x1]
  %v2563 = vld [vmem:[%s0 + $0x43] sm:$0x1]
  %v2564 = vld [vmem:[%s0 + $0x4b] sm:$0x1]
  %v2565 = vld [vmem:[%s0 + $0x53] sm:$0x1]
  %v2566 = vld [vmem:[%s0 + $0x5b] sm:$0x1]
  %v2567 = vld [vmem:[%s0 + $0x63] sm:$0x1]
  %v2568 = vld [vmem:[%s0 + $0x6b] sm:$0x1]
  %v2569 = vld [vmem:[%s0 + $0x73] sm:$0x1]
  %v2570 = vld [vmem:[%s0 + $0x7b] sm:$0x1]
  %v2571 = vld [vmem:[%s0 + $0x83] sm:$0x1]
  %v2572 = vld [vmem:[%s0 + $0x8b] sm:$0x1]
  %v2573 = vld [vmem:[%s0 + $0x93] sm:$0x1]
  %v2574 = vld [vmem:[%s0 + $0x9b] sm:$0x1]
  %v2575 = vld [vmem:[%s0 + $0xa3] sm:$0x1]
  %v2576 = vld [vmem:[%s0 + $0xab] sm:$0x1]
  %v2577 = vld [vmem:[%s0 + $0xb3] sm:$0x1]
  %v2578 = vld [vmem:[%s0 + $0xbb] sm:$0x1]
  %v2579 = vld [vmem:[%s0 + $0xc3] sm:$0x1]
  %v2580 = vld [vmem:[%s0 + $0xcb] sm:$0x1]
  %v2581 = vld [vmem:[%s0 + $0xd3] sm:$0x1]
  %v2582 = vld [vmem:[%s0 + $0xdb] sm:$0x1]
  %v2583 = vld [vmem:[%s0 + $0xe3] sm:$0x1]
  %v2584 = vld [vmem:[%s0 + $0xeb] sm:$0x1]
  %v2585 = vld [vmem:[%s0 + $0xf3] sm:$0x1]
  %v2586 = vld [vmem:[%s0 + $0xfb] sm:$0x1]
  %v2587 = vld [vmem:[%s0 + $0x103] sm:$0x1]
  %v2588 = vld [vmem:[%s0 + $0x10b] sm:$0x1]
  %v2589 = vld [vmem:[%s0 + $0x113] sm:$0x1]
  %v2590 = vld [vmem:[%s0 + $0x11b] sm:$0x1]
  %v2591 = vld [vmem:[%s0 + $0x123] sm:$0x1]
  %v2592 = vld [vmem:[%s0 + $0x12b] sm:$0x1]
  %v2593 = vld [vmem:[%s0 + $0x133] sm:$0x1]
  %v2594 = vld [vmem:[%s0 + $0x13b] sm:$0x1]
  %v2595 = vld [vmem:[%s0 + $0x143] sm:$0x1]
  %v2596 = vld [vmem:[%s0 + $0x14b] sm:$0x1]
  %v2597 = vld [vmem:[%s0 + $0x153] sm:$0x1]
  %v2598 = vld [vmem:[%s0 + $0x15b] sm:$0x1]
  %v2599 = vld [vmem:[%s0 + $0x163] sm:$0x1]
  %v2600 = vld [vmem:[%s0 + $0x16b] sm:$0x1]
  %v2601 = vld [vmem:[%s0 + $0x173] sm:$0x1]
  %v2602 = vld [vmem:[%s0 + $0x17b] sm:$0x1]
  %v2603 = vld [vmem:[%s0 + $0x183] sm:$0x1]
  %v2604 = vld [vmem:[%s0 + $0x18b] sm:$0x1]
  %v2605 = vld [vmem:[%s0 + $0x193] sm:$0x1]
  %v2606 = vld [vmem:[%s0 + $0x19b] sm:$0x1]
  %v2607 = vld [vmem:[%s0 + $0x1a3] sm:$0x1]
  %v2608 = vld [vmem:[%s0 + $0x1ab] sm:$0x1]
  %v2609 = vld [vmem:[%s0 + $0x1b3] sm:$0x1]
  %v2610 = vld [vmem:[%s0 + $0x1bb] sm:$0x1]
  %v2611 = vld [vmem:[%s0 + $0x1c3] sm:$0x1]
  %v2612 = vld [vmem:[%s0 + $0x1cb] sm:$0x1]
  %v2613 = vld [vmem:[%s0 + $0x1d3] sm:$0x1]
  %v2614 = vld [vmem:[%s0 + $0x1db] sm:$0x1]
  %v2615 = vld [vmem:[%s0 + $0x1e3] sm:$0x1]
  %v2616 = vld [vmem:[%s0 + $0x1eb] sm:$0x1]
  %v2617 = vld [vmem:[%s0 + $0x1f3] sm:$0x1]
  %v2618 = vld [vmem:[%s0 + $0x1fb] sm:$0x1]
  %v2619 = vld [vmem:[%s0 + $0x203] sm:$0x1]
  %v2620 = vld [vmem:[%s0 + $0x20b] sm:$0x1]
  %v2621 = vld [vmem:[%s0 + $0x213] sm:$0x1]
  %v2622 = vld [vmem:[%s0 + $0x21b] sm:$0x1]
  %v2623 = vld [vmem:[%s0 + $0x223] sm:$0x1]
  %v2624 = vld [vmem:[%s0 + $0x22b] sm:$0x1]
  %v2625 = vld [vmem:[%s0 + $0x233] sm:$0x1]
  %v2626 = vld [vmem:[%s0 + $0x23b] sm:$0x1]
  %v2627 = vld [vmem:[%s0 + $0x243] sm:$0x1]
  %v2628 = vld [vmem:[%s0 + $0x24b] sm:$0x1]
  %v2629 = vld [vmem:[%s0 + $0x253] sm:$0x1]
  %v2630 = vld [vmem:[%s0 + $0x25b] sm:$0x1]
  %v2631 = vld [vmem:[%s0 + $0x263] sm:$0x1]
  %v2632 = vld [vmem:[%s0 + $0x26b] sm:$0x1]
  %v2633 = vld [vmem:[%s0 + $0x273] sm:$0x1]
  %v2634 = vld [vmem:[%s0 + $0x27b] sm:$0x1]
  %v2635 = vld [vmem:[%s0 + $0x283] sm:$0x1]
  %v2636 = vld [vmem:[%s0 + $0x28b] sm:$0x1]
  %v2637 = vld [vmem:[%s0 + $0x293] sm:$0x1]
  %v2638 = vld [vmem:[%s0 + $0x29b] sm:$0x1]
  %v2639 = vld [vmem:[%s0 + $0x2a3] sm:$0x1]
  %v2640 = vld [vmem:[%s0 + $0x2ab] sm:$0x1]
  %v2641 = vld [vmem:[%s0 + $0x2b3] sm:$0x1]
  %v2642 = vld [vmem:[%s0 + $0x2bb] sm:$0x1]
  %v2643 = vld [vmem:[%s0 + $0x2c3] sm:$0x1]
  %v2644 = vld [vmem:[%s0 + $0x2cb] sm:$0x1]
  %v2645 = vld [vmem:[%s0 + $0x2d3] sm:$0x1]
  %v2646 = vld [vmem:[%s0 + $0x2db] sm:$0x1]
  %v2647 = vld [vmem:[%s0 + $0x2e3] sm:$0x1]
  %v2648 = vld [vmem:[%s0 + $0x2eb] sm:$0x1]
  %v2649 = vld [vmem:[%s0 + $0x2f3] sm:$0x1]
  %v2650 = vld [vmem:[%s0 + $0x2fb] sm:$0x1]
  %v2651 = vld [vmem:[%s0 + $0x303] sm:$0x1]
  %v2652 = vld [vmem:[%s0 + $0x30b] sm:$0x1]
  %v2653 = vld [vmem:[%s0 + $0x313] sm:$0x1]
  %v2654 = vld [vmem:[%s0 + $0x31b] sm:$0x1]
  %v2655 = vld [vmem:[%s0 + $0x323] sm:$0x1]
  %v2656 = vld [vmem:[%s0 + $0x32b] sm:$0x1]
  %v2657 = vld [vmem:[%s0 + $0x333] sm:$0x1]
  %v2658 = vld [vmem:[%s0 + $0x33b] sm:$0x1]
  %v2659 = vld [vmem:[%s0 + $0x343] sm:$0x1]
  %v2660 = vld [vmem:[%s0 + $0x34b] sm:$0x1]
  %v2661 = vld [vmem:[%s0 + $0x353] sm:$0x1]
  %v2662 = vld [vmem:[%s0 + $0x35b] sm:$0x1]
  %v2663 = vld [vmem:[%s0 + $0x363] sm:$0x1]
  %v2664 = vld [vmem:[%s0 + $0x36b] sm:$0x1]
  %v2665 = vld [vmem:[%s0 + $0x373] sm:$0x1]
  %v2666 = vld [vmem:[%s0 + $0x37b] sm:$0x1]
  %v2667 = vld [vmem:[%s0 + $0x383] sm:$0x1]
  %v2668 = vld [vmem:[%s0 + $0x38b] sm:$0x1]
  %v2669 = vld [vmem:[%s0 + $0x393] sm:$0x1]
  %v2670 = vld [vmem:[%s0 + $0x39b] sm:$0x1]
  %v2671 = vld [vmem:[%s0 + $0x3a3] sm:$0x1]
  %v2672 = vld [vmem:[%s0 + $0x3ab] sm:$0x1]
  %v2673 = vld [vmem:[%s0 + $0x3b3] sm:$0x1]
  %v2674 = vld [vmem:[%s0 + $0x3bb] sm:$0x1]
  %v2675 = vld [vmem:[%s0 + $0x3c3] sm:$0x1]
  %v2676 = vld [vmem:[%s0 + $0x3cb] sm:$0x1]
  %v2677 = vld [vmem:[%s0 + $0x3d3] sm:$0x1]
  %v2678 = vld [vmem:[%s0 + $0x3db] sm:$0x1]
  %v2679 = vld [vmem:[%s0 + $0x3e3] sm:$0x1]
  %v2680 = vld [vmem:[%s0 + $0x3eb] sm:$0x1]
  %v2681 = vld [vmem:[%s0 + $0x3f3] sm:$0x1]
  %v2682 = vld [vmem:[%s0 + $0x3fb] sm:$0x1]
  %v2811 = vrot.slane %v2556, 7
  %v2812 = vsel %vm333, %v2811, %v2555
  %v2813 = vrot.slane %v2557, 6
  %v2814 = vsel %vm336, %v2813, %v2812
  %v2815 = vrot.slane %v2558, 5
  %v2816 = vsel %vm339, %v2815, %v2814
  %v2817 = vrot.slane %v2559, 4
  %v2818 = vsel %vm342, %v2817, %v2816
  %v2819 = vrot.slane %v2560, 3
  %v2820 = vsel %vm345, %v2819, %v2818
  %v2821 = vrot.slane %v2561, 2
  %v2822 = vsel %vm348, %v2821, %v2820
  %v2823 = vrot.slane %v2562, 1
  %v2824 = vsel %vm351, %v2823, %v2822
  %v2825 = vrot.slane %v2564, 7
  %v2826 = vsel %vm333, %v2825, %v2563
  %v2827 = vrot.slane %v2565, 6
  %v2828 = vsel %vm336, %v2827, %v2826
  %v2829 = vrot.slane %v2566, 5
  %v2830 = vsel %vm339, %v2829, %v2828
  %v2831 = vrot.slane %v2567, 4
  %v2832 = vsel %vm342, %v2831, %v2830
  %v2833 = vrot.slane %v2568, 3
  %v2834 = vsel %vm345, %v2833, %v2832
  %v2835 = vrot.slane %v2569, 2
  %v2836 = vsel %vm348, %v2835, %v2834
  %v2837 = vrot.slane %v2570, 1
  %v2838 = vsel %vm351, %v2837, %v2836
  %v2839 = vrot.slane %v2572, 7
  %v2840 = vsel %vm333, %v2839, %v2571
  %v2841 = vrot.slane %v2573, 6
  %v2842 = vsel %vm336, %v2841, %v2840
  %v2843 = vrot.slane %v2574, 5
  %v2844 = vsel %vm339, %v2843, %v2842
  %v2845 = vrot.slane %v2575, 4
  %v2846 = vsel %vm342, %v2845, %v2844
  %v2847 = vrot.slane %v2576, 3
  %v2848 = vsel %vm345, %v2847, %v2846
  %v2849 = vrot.slane %v2577, 2
  %v2850 = vsel %vm348, %v2849, %v2848
  %v2851 = vrot.slane %v2578, 1
  %v2852 = vsel %vm351, %v2851, %v2850
  %v2853 = vrot.slane %v2580, 7
  %v2854 = vsel %vm333, %v2853, %v2579
  %v2855 = vrot.slane %v2581, 6
  %v2856 = vsel %vm336, %v2855, %v2854
  %v2857 = vrot.slane %v2582, 5
  %v2858 = vsel %vm339, %v2857, %v2856
  %v2859 = vrot.slane %v2583, 4
  %v2860 = vsel %vm342, %v2859, %v2858
  %v2861 = vrot.slane %v2584, 3
  %v2862 = vsel %vm345, %v2861, %v2860
  %v2863 = vrot.slane %v2585, 2
  %v2864 = vsel %vm348, %v2863, %v2862
  %v2865 = vrot.slane %v2586, 1
  %v2866 = vsel %vm351, %v2865, %v2864
  %v2867 = vrot.slane %v2588, 7
  %v2868 = vsel %vm333, %v2867, %v2587
  %v2869 = vrot.slane %v2589, 6
  %v2870 = vsel %vm336, %v2869, %v2868
  %v2871 = vrot.slane %v2590, 5
  %v2872 = vsel %vm339, %v2871, %v2870
  %v2873 = vrot.slane %v2591, 4
  %v2874 = vsel %vm342, %v2873, %v2872
  %v2875 = vrot.slane %v2592, 3
  %v2876 = vsel %vm345, %v2875, %v2874
  %v2877 = vrot.slane %v2593, 2
  %v2878 = vsel %vm348, %v2877, %v2876
  %v2879 = vrot.slane %v2594, 1
  %v2880 = vsel %vm351, %v2879, %v2878
  %v2881 = vrot.slane %v2596, 7
  %v2882 = vsel %vm333, %v2881, %v2595
  %v2883 = vrot.slane %v2597, 6
  %v2884 = vsel %vm336, %v2883, %v2882
  %v2885 = vrot.slane %v2598, 5
  %v2886 = vsel %vm339, %v2885, %v2884
  %v2887 = vrot.slane %v2599, 4
  %v2888 = vsel %vm342, %v2887, %v2886
  %v2889 = vrot.slane %v2600, 3
  %v2890 = vsel %vm345, %v2889, %v2888
  %v2891 = vrot.slane %v2601, 2
  %v2892 = vsel %vm348, %v2891, %v2890
  %v2893 = vrot.slane %v2602, 1
  %v2894 = vsel %vm351, %v2893, %v2892
  %v2895 = vrot.slane %v2604, 7
  %v2896 = vsel %vm333, %v2895, %v2603
  %v2897 = vrot.slane %v2605, 6
  %v2898 = vsel %vm336, %v2897, %v2896
  %v2899 = vrot.slane %v2606, 5
  %v2900 = vsel %vm339, %v2899, %v2898
  %v2901 = vrot.slane %v2607, 4
  %v2902 = vsel %vm342, %v2901, %v2900
  %v2903 = vrot.slane %v2608, 3
  %v2904 = vsel %vm345, %v2903, %v2902
  %v2905 = vrot.slane %v2609, 2
  %v2906 = vsel %vm348, %v2905, %v2904
  %v2907 = vrot.slane %v2610, 1
  %v2908 = vsel %vm351, %v2907, %v2906
  %v2909 = vrot.slane %v2612, 7
  %v2910 = vsel %vm333, %v2909, %v2611
  %v2911 = vrot.slane %v2613, 6
  %v2912 = vsel %vm336, %v2911, %v2910
  %v2913 = vrot.slane %v2614, 5
  %v2914 = vsel %vm339, %v2913, %v2912
  %v2915 = vrot.slane %v2615, 4
  %v2916 = vsel %vm342, %v2915, %v2914
  %v2917 = vrot.slane %v2616, 3
  %v2918 = vsel %vm345, %v2917, %v2916
  %v2919 = vrot.slane %v2617, 2
  %v2920 = vsel %vm348, %v2919, %v2918
  %v2921 = vrot.slane %v2618, 1
  %v2922 = vsel %vm351, %v2921, %v2920
  %v2923 = vrot.slane %v2620, 7
  %v2924 = vsel %vm333, %v2923, %v2619
  %v2925 = vrot.slane %v2621, 6
  %v2926 = vsel %vm336, %v2925, %v2924
  %v2927 = vrot.slane %v2622, 5
  %v2928 = vsel %vm339, %v2927, %v2926
  %v2929 = vrot.slane %v2623, 4
  %v2930 = vsel %vm342, %v2929, %v2928
  %v2931 = vrot.slane %v2624, 3
  %v2932 = vsel %vm345, %v2931, %v2930
  %v2933 = vrot.slane %v2625, 2
  %v2934 = vsel %vm348, %v2933, %v2932
  %v2935 = vrot.slane %v2626, 1
  %v2936 = vsel %vm351, %v2935, %v2934
  %v2937 = vrot.slane %v2628, 7
  %v2938 = vsel %vm333, %v2937, %v2627
  %v2939 = vrot.slane %v2629, 6
  %v2940 = vsel %vm336, %v2939, %v2938
  %v2941 = vrot.slane %v2630, 5
  %v2942 = vsel %vm339, %v2941, %v2940
  %v2943 = vrot.slane %v2631, 4
  %v2944 = vsel %vm342, %v2943, %v2942
  %v2945 = vrot.slane %v2632, 3
  %v2946 = vsel %vm345, %v2945, %v2944
  %v2947 = vrot.slane %v2633, 2
  %v2948 = vsel %vm348, %v2947, %v2946
  %v2949 = vrot.slane %v2634, 1
  %v2950 = vsel %vm351, %v2949, %v2948
  %v2951 = vrot.slane %v2636, 7
  %v2952 = vsel %vm333, %v2951, %v2635
  %v2953 = vrot.slane %v2637, 6
  %v2954 = vsel %vm336, %v2953, %v2952
  %v2955 = vrot.slane %v2638, 5
  %v2956 = vsel %vm339, %v2955, %v2954
  %v2957 = vrot.slane %v2639, 4
  %v2958 = vsel %vm342, %v2957, %v2956
  %v2959 = vrot.slane %v2640, 3
  %v2960 = vsel %vm345, %v2959, %v2958
  %v2961 = vrot.slane %v2641, 2
  %v2962 = vsel %vm348, %v2961, %v2960
  %v2963 = vrot.slane %v2642, 1
  %v2964 = vsel %vm351, %v2963, %v2962
  %v2965 = vrot.slane %v2644, 7
  %v2966 = vsel %vm333, %v2965, %v2643
  %v2967 = vrot.slane %v2645, 6
  %v2968 = vsel %vm336, %v2967, %v2966
  %v2969 = vrot.slane %v2646, 5
  %v2970 = vsel %vm339, %v2969, %v2968
  %v2971 = vrot.slane %v2647, 4
  %v2972 = vsel %vm342, %v2971, %v2970
  %v2973 = vrot.slane %v2648, 3
  %v2974 = vsel %vm345, %v2973, %v2972
  %v2975 = vrot.slane %v2649, 2
  %v2976 = vsel %vm348, %v2975, %v2974
  %v2977 = vrot.slane %v2650, 1
  %v2978 = vsel %vm351, %v2977, %v2976
  %v2979 = vrot.slane %v2652, 7
  %v2980 = vsel %vm333, %v2979, %v2651
  %v2981 = vrot.slane %v2653, 6
  %v2982 = vsel %vm336, %v2981, %v2980
  %v2983 = vrot.slane %v2654, 5
  %v2984 = vsel %vm339, %v2983, %v2982
  %v2985 = vrot.slane %v2655, 4
  %v2986 = vsel %vm342, %v2985, %v2984
  %v2987 = vrot.slane %v2656, 3
  %v2988 = vsel %vm345, %v2987, %v2986
  %v2989 = vrot.slane %v2657, 2
  %v2990 = vsel %vm348, %v2989, %v2988
  %v2991 = vrot.slane %v2658, 1
  %v2992 = vsel %vm351, %v2991, %v2990
  %v2993 = vrot.slane %v2660, 7
  %v2994 = vsel %vm333, %v2993, %v2659
  %v2995 = vrot.slane %v2661, 6
  %v2996 = vsel %vm336, %v2995, %v2994
  %v2997 = vrot.slane %v2662, 5
  %v2998 = vsel %vm339, %v2997, %v2996
  %v2999 = vrot.slane %v2663, 4
  %v3000 = vsel %vm342, %v2999, %v2998
  %v3001 = vrot.slane %v2664, 3
  %v3002 = vsel %vm345, %v3001, %v3000
  %v3003 = vrot.slane %v2665, 2
  %v3004 = vsel %vm348, %v3003, %v3002
  %v3005 = vrot.slane %v2666, 1
  %v3006 = vsel %vm351, %v3005, %v3004
  %v3007 = vrot.slane %v2668, 7
  %v3008 = vsel %vm333, %v3007, %v2667
  %v3009 = vrot.slane %v2669, 6
  %v3010 = vsel %vm336, %v3009, %v3008
  %v3011 = vrot.slane %v2670, 5
  %v3012 = vsel %vm339, %v3011, %v3010
  %v3013 = vrot.slane %v2671, 4
  %v3014 = vsel %vm342, %v3013, %v3012
  %v3015 = vrot.slane %v2672, 3
  %v3016 = vsel %vm345, %v3015, %v3014
  %v3017 = vrot.slane %v2673, 2
  %v3018 = vsel %vm348, %v3017, %v3016
  %v3019 = vrot.slane %v2674, 1
  %v3020 = vsel %vm351, %v3019, %v3018
  %v3021 = vrot.slane %v2676, 7
  %v3022 = vsel %vm333, %v3021, %v2675
  %v3023 = vrot.slane %v2677, 6
  %v3024 = vsel %vm336, %v3023, %v3022
  %v3025 = vrot.slane %v2678, 5
  %v3026 = vsel %vm339, %v3025, %v3024
  %v3027 = vrot.slane %v2679, 4
  %v3028 = vsel %vm342, %v3027, %v3026
  %v3029 = vrot.slane %v2680, 3
  %v3030 = vsel %vm345, %v3029, %v3028
  %v3031 = vrot.slane %v2681, 2
  %v3032 = vsel %vm348, %v3031, %v3030
  %v3033 = vrot.slane %v2682, 1
  %v3034 = vsel %vm351, %v3033, %v3032
  %v3035 = vsel %vm563, %v2824, 0
  %v3037 = vsel %vm563, %v2838, 0
  %v3039 = vsel %vm563, %v2852, 0
  %v3041 = vsel %vm563, %v2866, 0
  %v3043 = vsel %vm563, %v2880, 0
  %v3045 = vsel %vm563, %v2894, 0
  %v3047 = vsel %vm563, %v2908, 0
  %v3049 = vsel %vm563, %v2922, 0
  %v3051 = vsel %vm563, %v2936, 0
  %v3053 = vsel %vm563, %v2950, 0
  %v3055 = vsel %vm563, %v2964, 0
  %v3057 = vsel %vm563, %v2978, 0
  %v3059 = vsel %vm563, %v2992, 0
  %v3061 = vsel %vm563, %v3006, 0
  %v3063 = vsel %vm563, %v3020, 0
  %v3065 = vsel %vm563, %v3034, 0
  %3067 = vmatpush.msra.mxu0 0.0
  %3068 = vmatpush.msra.mxu0 0.0
  %3069 = vmatpush.msra.mxu0 0.0
  %3070 = vmatpush.msra.mxu0 0.0
  %3071 = vmatpush.msra.mxu0 0.0
  %3072 = vmatpush.msra.mxu0 0.0
  %3073 = vmatpush.msra.mxu0 0.0
  %3074 = vmatpush.msra.mxu0 0.0
  %3075 = vmatpush.msra.mxu0 0.0
  %3076 = vmatpush.msra.mxu0 0.0
  %3077 = vmatpush.msra.mxu0 0.0
  %3078 = vmatpush.msra.mxu0 0.0
  %3079 = vmatpush.msra.mxu0 %v34
  %3080 = vmatpush.msra.mxu0 %v33
  %3081 = vmatpush.msra.mxu0 %v32
  %3082 = vmatpush.msra.mxu0 %v31
  %3083 = vmatmul.f32.gmra.mxu0 %v3035
  %v3084 = vpop.f32.mrf.mxu0
  %v3085 = vadd.f32 0.0, %v3084
  %3086 = vmatmul.f32.gmra.mxu0 %v3037
  %v3087 = vpop.f32.mrf.mxu0
  %v3088 = vadd.f32 0.0, %v3087
  %3089 = vmatmul.f32.gmra.mxu0 %v3039
  %v3090 = vpop.f32.mrf.mxu0
  %v3091 = vadd.f32 0.0, %v3090
  %3092 = vmatmul.f32.gmra.mxu0 %v3041
  %v3093 = vpop.f32.mrf.mxu0
  %v3094 = vadd.f32 0.0, %v3093
  %3095 = vmatmul.f32.gmra.mxu0 %v3043
  %v3096 = vpop.f32.mrf.mxu0
  %v3097 = vadd.f32 0.0, %v3096
  %3098 = vmatmul.f32.gmra.mxu0 %v3045
  %v3099 = vpop.f32.mrf.mxu0
  %v3100 = vadd.f32 0.0, %v3099
  %3101 = vmatmul.f32.gmra.mxu0 %v3047
  %v3102 = vpop.f32.mrf.mxu0
  %v3103 = vadd.f32 0.0, %v3102
  %3104 = vmatmul.f32.gmra.mxu0 %v3049
  %v3105 = vpop.f32.mrf.mxu0
  %v3106 = vadd.f32 0.0, %v3105
  %3107 = vmatmul.f32.gmra.mxu0 %v3051
  %v3108 = vpop.f32.mrf.mxu0
  %v3109 = vadd.f32 0.0, %v3108
  %3110 = vmatmul.f32.gmra.mxu0 %v3053
  %v3111 = vpop.f32.mrf.mxu0
  %v3112 = vadd.f32 0.0, %v3111
  %3113 = vmatmul.f32.gmra.mxu0 %v3055
  %v3114 = vpop.f32.mrf.mxu0
  %v3115 = vadd.f32 0.0, %v3114
  %3116 = vmatmul.f32.gmra.mxu0 %v3057
  %v3117 = vpop.f32.mrf.mxu0
  %v3118 = vadd.f32 0.0, %v3117
  %3119 = vmatmul.f32.gmra.mxu0 %v3059
  %v3120 = vpop.f32.mrf.mxu0
  %v3121 = vadd.f32 0.0, %v3120
  %3122 = vmatmul.f32.gmra.mxu0 %v3061
  %v3123 = vpop.f32.mrf.mxu0
  %v3124 = vadd.f32 0.0, %v3123
  %3125 = vmatmul.f32.gmra.mxu0 %v3063
  %v3126 = vpop.f32.mrf.mxu0
  %v3127 = vadd.f32 0.0, %v3126
  %3128 = vmatmul.f32.gmra.mxu0 %v3065
  %v3129 = vpop.f32.mrf.mxu0
  %v3130 = vadd.f32 0.0, %v3129
  %3131 = vdwg.mxu0
  %3132 = vxpose.xlu0.b32.start [1/16] %v3085, 128
  %3133 = vxpose.xlu0.b32.cont [2/16] %v3088, 128
  %3134 = vxpose.xlu0.b32.cont [3/16] %v3091, 128
  %3135 = vxpose.xlu0.b32.cont [4/16] %v3094, 128
  %3136 = vxpose.xlu0.b32.cont [5/16] %v3097, 128
  %3137 = vxpose.xlu0.b32.cont [6/16] %v3100, 128
  %3138 = vxpose.xlu0.b32.cont [7/16] %v3103, 128
  %3139 = vxpose.xlu0.b32.cont [8/16] %v3106, 128
  %3140 = vxpose.xlu0.b32.cont [9/16] %v3109, 128
  %3141 = vxpose.xlu0.b32.cont [10/16] %v3112, 128
  %3142 = vxpose.xlu0.b32.cont [11/16] %v3115, 128
  %3143 = vxpose.xlu0.b32.cont [12/16] %v3118, 128
  %3144 = vxpose.xlu0.b32.cont [13/16] %v3121, 128
  %3145 = vxpose.xlu0.b32.cont [14/16] %v3124, 128
  %3146 = vxpose.xlu0.b32.cont [15/16] %v3127, 128
  %3147 = vxpose.xlu0.b32.end [16/16] %v3130, 128
  %v3148 = vpop.trf.xlu0
  %v3149 = vpop.trf.xlu0
  %v3150 = vpop.trf.xlu0
  %v3151 = vpop.trf.xlu0
  %v3152 = vpop.trf.xlu0
  %v3153 = vpop.trf.xlu0
  %v3154 = vpop.trf.xlu0
  %v3155 = vpop.trf.xlu0
  %v3156 = vpop.trf.xlu0
  %v3157 = vpop.trf.xlu0
  %v3158 = vpop.trf.xlu0
  %v3159 = vpop.trf.xlu0
  %v3160 = vpop.trf.xlu0
  %v3161 = vpop.trf.xlu0
  %v3162 = vpop.trf.xlu0
  %v3163 = vpop.trf.xlu0
  %v3164 = vadd.f32 %v3148, %v696
  %v3165 = vperm.slane %v71, 3
  %vm3166 = vcmp.eq.s32.totalorder %v74, %v3165
  %v3167 = vsel %vm3166, 1, 0
  %v3168 = vcvt.s32.f32 %v3167
  %v3170 = vsel %vm1578, %v2392, 0
  %3172 = vmatpush.msra.mxu0 0.0
  %3173 = vmatpush.msra.mxu0 0.0
  %3174 = vmatpush.msra.mxu0 0.0
  %3175 = vmatpush.msra.mxu0 0.0
  %3176 = vmatpush.msra.mxu0 0.0
  %3177 = vmatpush.msra.mxu0 0.0
  %3178 = vmatpush.msra.mxu0 0.0
  %3179 = vmatpush.msra.mxu0 0.0
  %3180 = vmatpush.msra.mxu0 0.0
  %3181 = vmatpush.msra.mxu0 0.0
  %3182 = vmatpush.msra.mxu0 0.0
  %3183 = vmatpush.msra.mxu0 0.0
  %3184 = vmatpush.msra.mxu0 0.0
  %3185 = vmatpush.msra.mxu0 0.0
  %3186 = vmatpush.msra.mxu0 0.0
  %3187 = vmatpush.msra.mxu0 %v3170
  %3188 = vmatmul.f32.gmra.mxu0 %v1576
  %v3189 = vpop.f32.mrf.mxu0
  %v3190 = vadd.f32 %v3164, %v3189
  %3191 = vdwg.mxu0
  %v3192 = vmul.f32 %v3168, %v3190
  %v3193 = vsel %vm1578, %v3192, 0.0
  %v3194 = vrot.slane %v3193, 4
  %v3195 = vadd.f32 %v3193, %v3194
  %v3196 = vrot.slane %v3195, 2
  %v3197 = vadd.f32 %v3195, %v3196
  %v3198 = vrot.slane %v3197, 1
  %v3199 = vadd.f32 %v3197, %v3198
  %v3200 = vmul.f32 %v3199, %v1565
  %3202 = vst [vmem:[#allocation1] sm:$0xff] %v3200
  %s3203 = scalar_lea.vmem [#allocation1], 3
  %v3204 = vld [vmem:[%s3203] ss:$9 sm:$0xff]
  %v3206 = vadd.f32 %v2430, %v3204
  %v3208 = vrot.slane %v2490, 1
  %v3209 = vrot.slane %v2490, 2
  %v3210 = vrot.slane %v2490, 3
  %v3211 = vrot.slane %v2490, 4
  %v3212 = vperm.slane %v2490, 0
  %v3213 = vperm.slane %v3208, 0
  %v3214 = vperm.slane %v3209, 0
  %v3215 = vperm.slane %v3210, 0
  %v3216 = vperm.slane %v3211, 0
  %v3222 = vadd.f32 %v3212, %v1628
  %v3223 = vadd.f32 %v3213, %v1635
  %v3224 = vadd.f32 %v3214, %v1642
  %v3225 = vadd.f32 %v3215, %v1649
  %v3226 = vadd.f32 %v3216, %v1656
  %v3227 = vsel %vm1578, %v3222, -inf
  %v3228 = vsel %vm1578, %v3223, -inf
  %v3229 = vsel %vm1578, %v3224, -inf
  %v3230 = vsel %vm1578, %v3225, -inf
  %v3231 = vsel %vm1578, %v3226, -inf
  %v3232 = vmax.f32 %v3227, %v3231
  %v3233 = vmax.f32 %v3232, %v3228
  %v3234 = vmax.f32 %v3229, %v3230
  %v3235 = vmax.f32 %v3233, %v3234
  %v3236 = vsub.f32 %v3222, %v3235
  %v3237 = vsub.f32 %v3223, %v3235
  %v3238 = vsub.f32 %v3224, %v3235
  %v3239 = vsub.f32 %v3225, %v3235
  %v3240 = vsub.f32 %v3226, %v3235
  %v3241 = vmul.f32 %v3236, 1.442695
  %v3242 = vpow.pop %v3241
  %v3243 = vmul.f32 %v3237, 1.442695
  %v3244 = vpow.pop %v3243
  %v3245 = vmul.f32 %v3238, 1.442695
  %v3246 = vpow.pop %v3245
  %v3247 = vmul.f32 %v3239, 1.442695
  %v3248 = vpow.pop %v3247
  %v3249 = vmul.f32 %v3240, 1.442695
  %v3250 = vpow.pop %v3249
  %v3251 = vsel %vm1578, %v3242, 0.0
  %v3252 = vsel %vm1578, %v3244, 0.0
  %v3253 = vadd.f32 %v3251, %v3252
  %v3254 = vsel %vm1578, %v3246, 0.0
  %v3255 = vadd.f32 %v3253, %v3254
  %v3256 = vsel %vm1578, %v3248, 0.0
  %v3257 = vadd.f32 %v3255, %v3256
  %v3258 = vsel %vm1578, %v3250, 0.0
  %v3259 = vadd.f32 %v3257, %v3258
  %v3260 = vlog2.pop %v3259
  %v3261 = vmul.f32 %v3260, 0.6931472
  %v3262 = vadd.f32 %v3235, %v3261
  %v3263 = vadd.f32 %v3262, %v3164
  %v3264 = vperm.slane %v1710, 3
  %vm3265 = vcmp.eq.s32.totalorder %v3264, 1
  %v3266 = vsel %vm3265, %v3263, %v2490
  %v3268 = vrot.slane %v2547, 1
  %v3269 = vrot.slane %v2547, 2
  %v3270 = vrot.slane %v2547, 3
  %v3271 = vrot.slane %v2547, 4
  %v3272 = vperm.slane %v2547, 0
  %v3273 = vperm.slane %v3268, 0
  %v3274 = vperm.slane %v3269, 0
  %v3275 = vperm.slane %v3270, 0
  %v3276 = vperm.slane %v3271, 0
  %v3282 = vadd.f32 %v3272, %v1628
  %v3283 = vadd.f32 %v3273, %v1635
  %v3284 = vadd.f32 %v3274, %v1642
  %v3285 = vadd.f32 %v3275, %v1649
  %v3286 = vadd.f32 %v3276, %v1656
  %v3287 = vsel %vm1578, %v3282, -inf
  %v3288 = vsel %vm1578, %v3283, -inf
  %v3289 = vsel %vm1578, %v3284, -inf
  %v3290 = vsel %vm1578, %v3285, -inf
  %v3291 = vsel %vm1578, %v3286, -inf
  %v3292 = vmax.f32 %v3287, %v3291
  %v3293 = vmax.f32 %v3292, %v3288
  %v3294 = vmax.f32 %v3289, %v3290
  %v3295 = vmax.f32 %v3293, %v3294
  %vm3296 = vcmp.eq.f32.partialorder %v3282, %v3295
  %vm3297 = vcmp.eq.f32.partialorder %v3283, %v3295
  %vm3298 = vcmp.eq.f32.partialorder %v3284, %v3295
  %vm3299 = vcmp.eq.f32.partialorder %v3285, %v3295
  %vm3300 = vcmp.eq.f32.partialorder %v3286, %v3295
  %v3301 = vsel %vm3296, 0, 5
  %v3302 = vsel %vm3297, 1, 5
  %v3303 = vsel %vm3298, 2, 5
  %v3304 = vsel %vm3299, 3, 5
  %v3305 = vsel %vm3300, 4, 5
  %v3306 = vsel %vm1578, %v3301, 2147483647
  %v3307 = vsel %vm1578, %v3302, 2147483647
  %v3308 = vsel %vm1578, %v3303, 2147483647
  %v3309 = vsel %vm1578, %v3304, 2147483647
  %v3310 = vsel %vm1578, %v3305, 2147483647
  %vm3311 = vcmp.lt.s32.totalorder %v3306, %v3310
  %v3312 = vsel %vm3311, %v3306, %v3310
  %vm3313 = vcmp.lt.s32.totalorder %v3312, %v3307
  %v3314 = vsel %vm3313, %v3312, %v3307
  %vm3315 = vcmp.lt.s32.totalorder %v3308, %v3309
  %v3316 = vsel %vm3315, %v3308, %v3309
  %vm3317 = vcmp.lt.s32.totalorder %v3314, %v3316
  %v3318 = vsel %vm3317, %v3314, %v3316
  %s3319 = smul.u32 %s2554, 8
  %s3320 = scalar_lea.vmem [#allocation8], %s3319
  %3321 = vst [vmem:[%s3320] sm:$0x1f] %v3318
  %v3322 = vadd.f32 %v3295, %v3164
  %v3323 = vsel %vm3265, %v3322, %v2547
  %v3324 = vrot.slane %v2549, 7
  %v3325 = vsel %vm1771, %v71, %v3324
  %3326 = vst [vmem:[#allocation1] sm:$0xff] %v72
  %s3327 = scalar_lea.vmem [#allocation1], 3
  %v3328 = vld [vmem:[%s3327] ss:$9 sm:$0xff]
  %v3329 = vadd.s32 %v2553, %v3328
  %s3330 = sadd.s32 %s75, 4
  %v3331 = vld [vmem:[%s0 + $0x4] sm:$0x1]
  %v3332 = vld [vmem:[%s0 + $0xc] sm:$0x1]
  %v3333 = vld [vmem:[%s0 + $0x14] sm:$0x1]
  %v3334 = vld [vmem:[%s0 + $0x1c] sm:$0x1]
  %v3335 = vld [vmem:[%s0 + $0x24] sm:$0x1]
  %v3336 = vld [vmem:[%s0 + $0x2c] sm:$0x1]
  %v3337 = vld [vmem:[%s0 + $0x34] sm:$0x1]
  %v3338 = vld [vmem:[%s0 + $0x3c] sm:$0x1]
  %v3339 = vld [vmem:[%s0 + $0x44] sm:$0x1]
  %v3340 = vld [vmem:[%s0 + $0x4c] sm:$0x1]
  %v3341 = vld [vmem:[%s0 + $0x54] sm:$0x1]
  %v3342 = vld [vmem:[%s0 + $0x5c] sm:$0x1]
  %v3343 = vld [vmem:[%s0 + $0x64] sm:$0x1]
  %v3344 = vld [vmem:[%s0 + $0x6c] sm:$0x1]
  %v3345 = vld [vmem:[%s0 + $0x74] sm:$0x1]
  %v3346 = vld [vmem:[%s0 + $0x7c] sm:$0x1]
  %v3347 = vld [vmem:[%s0 + $0x84] sm:$0x1]
  %v3348 = vld [vmem:[%s0 + $0x8c] sm:$0x1]
  %v3349 = vld [vmem:[%s0 + $0x94] sm:$0x1]
  %v3350 = vld [vmem:[%s0 + $0x9c] sm:$0x1]
  %v3351 = vld [vmem:[%s0 + $0xa4] sm:$0x1]
  %v3352 = vld [vmem:[%s0 + $0xac] sm:$0x1]
  %v3353 = vld [vmem:[%s0 + $0xb4] sm:$0x1]
  %v3354 = vld [vmem:[%s0 + $0xbc] sm:$0x1]
  %v3355 = vld [vmem:[%s0 + $0xc4] sm:$0x1]
  %v3356 = vld [vmem:[%s0 + $0xcc] sm:$0x1]
  %v3357 = vld [vmem:[%s0 + $0xd4] sm:$0x1]
  %v3358 = vld [vmem:[%s0 + $0xdc] sm:$0x1]
  %v3359 = vld [vmem:[%s0 + $0xe4] sm:$0x1]
  %v3360 = vld [vmem:[%s0 + $0xec] sm:$0x1]
  %v3361 = vld [vmem:[%s0 + $0xf4] sm:$0x1]
  %v3362 = vld [vmem:[%s0 + $0xfc] sm:$0x1]
  %v3363 = vld [vmem:[%s0 + $0x104] sm:$0x1]
  %v3364 = vld [vmem:[%s0 + $0x10c] sm:$0x1]
  %v3365 = vld [vmem:[%s0 + $0x114] sm:$0x1]
  %v3366 = vld [vmem:[%s0 + $0x11c] sm:$0x1]
  %v3367 = vld [vmem:[%s0 + $0x124] sm:$0x1]
  %v3368 = vld [vmem:[%s0 + $0x12c] sm:$0x1]
  %v3369 = vld [vmem:[%s0 + $0x134] sm:$0x1]
  %v3370 = vld [vmem:[%s0 + $0x13c] sm:$0x1]
  %v3371 = vld [vmem:[%s0 + $0x144] sm:$0x1]
  %v3372 = vld [vmem:[%s0 + $0x14c] sm:$0x1]
  %v3373 = vld [vmem:[%s0 + $0x154] sm:$0x1]
  %v3374 = vld [vmem:[%s0 + $0x15c] sm:$0x1]
  %v3375 = vld [vmem:[%s0 + $0x164] sm:$0x1]
  %v3376 = vld [vmem:[%s0 + $0x16c] sm:$0x1]
  %v3377 = vld [vmem:[%s0 + $0x174] sm:$0x1]
  %v3378 = vld [vmem:[%s0 + $0x17c] sm:$0x1]
  %v3379 = vld [vmem:[%s0 + $0x184] sm:$0x1]
  %v3380 = vld [vmem:[%s0 + $0x18c] sm:$0x1]
  %v3381 = vld [vmem:[%s0 + $0x194] sm:$0x1]
  %v3382 = vld [vmem:[%s0 + $0x19c] sm:$0x1]
  %v3383 = vld [vmem:[%s0 + $0x1a4] sm:$0x1]
  %v3384 = vld [vmem:[%s0 + $0x1ac] sm:$0x1]
  %v3385 = vld [vmem:[%s0 + $0x1b4] sm:$0x1]
  %v3386 = vld [vmem:[%s0 + $0x1bc] sm:$0x1]
  %v3387 = vld [vmem:[%s0 + $0x1c4] sm:$0x1]
  %v3388 = vld [vmem:[%s0 + $0x1cc] sm:$0x1]
  %v3389 = vld [vmem:[%s0 + $0x1d4] sm:$0x1]
  %v3390 = vld [vmem:[%s0 + $0x1dc] sm:$0x1]
  %v3391 = vld [vmem:[%s0 + $0x1e4] sm:$0x1]
  %v3392 = vld [vmem:[%s0 + $0x1ec] sm:$0x1]
  %v3393 = vld [vmem:[%s0 + $0x1f4] sm:$0x1]
  %v3394 = vld [vmem:[%s0 + $0x1fc] sm:$0x1]
  %v3395 = vld [vmem:[%s0 + $0x204] sm:$0x1]
  %v3396 = vld [vmem:[%s0 + $0x20c] sm:$0x1]
  %v3397 = vld [vmem:[%s0 + $0x214] sm:$0x1]
  %v3398 = vld [vmem:[%s0 + $0x21c] sm:$0x1]
  %v3399 = vld [vmem:[%s0 + $0x224] sm:$0x1]
  %v3400 = vld [vmem:[%s0 + $0x22c] sm:$0x1]
  %v3401 = vld [vmem:[%s0 + $0x234] sm:$0x1]
  %v3402 = vld [vmem:[%s0 + $0x23c] sm:$0x1]
  %v3403 = vld [vmem:[%s0 + $0x244] sm:$0x1]
  %v3404 = vld [vmem:[%s0 + $0x24c] sm:$0x1]
  %v3405 = vld [vmem:[%s0 + $0x254] sm:$0x1]
  %v3406 = vld [vmem:[%s0 + $0x25c] sm:$0x1]
  %v3407 = vld [vmem:[%s0 + $0x264] sm:$0x1]
  %v3408 = vld [vmem:[%s0 + $0x26c] sm:$0x1]
  %v3409 = vld [vmem:[%s0 + $0x274] sm:$0x1]
  %v3410 = vld [vmem:[%s0 + $0x27c] sm:$0x1]
  %v3411 = vld [vmem:[%s0 + $0x284] sm:$0x1]
  %v3412 = vld [vmem:[%s0 + $0x28c] sm:$0x1]
  %v3413 = vld [vmem:[%s0 + $0x294] sm:$0x1]
  %v3414 = vld [vmem:[%s0 + $0x29c] sm:$0x1]
  %v3415 = vld [vmem:[%s0 + $0x2a4] sm:$0x1]
  %v3416 = vld [vmem:[%s0 + $0x2ac] sm:$0x1]
  %v3417 = vld [vmem:[%s0 + $0x2b4] sm:$0x1]
  %v3418 = vld [vmem:[%s0 + $0x2bc] sm:$0x1]
  %v3419 = vld [vmem:[%s0 + $0x2c4] sm:$0x1]
  %v3420 = vld [vmem:[%s0 + $0x2cc] sm:$0x1]
  %v3421 = vld [vmem:[%s0 + $0x2d4] sm:$0x1]
  %v3422 = vld [vmem:[%s0 + $0x2dc] sm:$0x1]
  %v3423 = vld [vmem:[%s0 + $0x2e4] sm:$0x1]
  %v3424 = vld [vmem:[%s0 + $0x2ec] sm:$0x1]
  %v3425 = vld [vmem:[%s0 + $0x2f4] sm:$0x1]
  %v3426 = vld [vmem:[%s0 + $0x2fc] sm:$0x1]
  %v3427 = vld [vmem:[%s0 + $0x304] sm:$0x1]
  %v3428 = vld [vmem:[%s0 + $0x30c] sm:$0x1]
  %v3429 = vld [vmem:[%s0 + $0x314] sm:$0x1]
  %v3430 = vld [vmem:[%s0 + $0x31c] sm:$0x1]
  %v3431 = vld [vmem:[%s0 + $0x324] sm:$0x1]
  %v3432 = vld [vmem:[%s0 + $0x32c] sm:$0x1]
  %v3433 = vld [vmem:[%s0 + $0x334] sm:$0x1]
  %v3434 = vld [vmem:[%s0 + $0x33c] sm:$0x1]
  %v3435 = vld [vmem:[%s0 + $0x344] sm:$0x1]
  %v3436 = vld [vmem:[%s0 + $0x34c] sm:$0x1]
  %v3437 = vld [vmem:[%s0 + $0x354] sm:$0x1]
  %v3438 = vld [vmem:[%s0 + $0x35c] sm:$0x1]
  %v3439 = vld [vmem:[%s0 + $0x364] sm:$0x1]
  %v3440 = vld [vmem:[%s0 + $0x36c] sm:$0x1]
  %v3441 = vld [vmem:[%s0 + $0x374] sm:$0x1]
  %v3442 = vld [vmem:[%s0 + $0x37c] sm:$0x1]
  %v3443 = vld [vmem:[%s0 + $0x384] sm:$0x1]
  %v3444 = vld [vmem:[%s0 + $0x38c] sm:$0x1]
  %v3445 = vld [vmem:[%s0 + $0x394] sm:$0x1]
  %v3446 = vld [vmem:[%s0 + $0x39c] sm:$0x1]
  %v3447 = vld [vmem:[%s0 + $0x3a4] sm:$0x1]
  %v3448 = vld [vmem:[%s0 + $0x3ac] sm:$0x1]
  %v3449 = vld [vmem:[%s0 + $0x3b4] sm:$0x1]
  %v3450 = vld [vmem:[%s0 + $0x3bc] sm:$0x1]
  %v3451 = vld [vmem:[%s0 + $0x3c4] sm:$0x1]
  %v3452 = vld [vmem:[%s0 + $0x3cc] sm:$0x1]
  %v3453 = vld [vmem:[%s0 + $0x3d4] sm:$0x1]
  %v3454 = vld [vmem:[%s0 + $0x3dc] sm:$0x1]
  %v3455 = vld [vmem:[%s0 + $0x3e4] sm:$0x1]
  %v3456 = vld [vmem:[%s0 + $0x3ec] sm:$0x1]
  %v3457 = vld [vmem:[%s0 + $0x3f4] sm:$0x1]
  %v3458 = vld [vmem:[%s0 + $0x3fc] sm:$0x1]
  %v3587 = vrot.slane %v3332, 7
  %v3588 = vsel %vm333, %v3587, %v3331
  %v3589 = vrot.slane %v3333, 6
  %v3590 = vsel %vm336, %v3589, %v3588
  %v3591 = vrot.slane %v3334, 5
  %v3592 = vsel %vm339, %v3591, %v3590
  %v3593 = vrot.slane %v3335, 4
  %v3594 = vsel %vm342, %v3593, %v3592
  %v3595 = vrot.slane %v3336, 3
  %v3596 = vsel %vm345, %v3595, %v3594
  %v3597 = vrot.slane %v3337, 2
  %v3598 = vsel %vm348, %v3597, %v3596
  %v3599 = vrot.slane %v3338, 1
  %v3600 = vsel %vm351, %v3599, %v3598
  %v3601 = vrot.slane %v3340, 7
  %v3602 = vsel %vm333, %v3601, %v3339
  %v3603 = vrot.slane %v3341, 6
  %v3604 = vsel %vm336, %v3603, %v3602
  %v3605 = vrot.slane %v3342, 5
  %v3606 = vsel %vm339, %v3605, %v3604
  %v3607 = vrot.slane %v3343, 4
  %v3608 = vsel %vm342, %v3607, %v3606
  %v3609 = vrot.slane %v3344, 3
  %v3610 = vsel %vm345, %v3609, %v3608
  %v3611 = vrot.slane %v3345, 2
  %v3612 = vsel %vm348, %v3611, %v3610
  %v3613 = vrot.slane %v3346, 1
  %v3614 = vsel %vm351, %v3613, %v3612
  %v3615 = vrot.slane %v3348, 7
  %v3616 = vsel %vm333, %v3615, %v3347
  %v3617 = vrot.slane %v3349, 6
  %v3618 = vsel %vm336, %v3617, %v3616
  %v3619 = vrot.slane %v3350, 5
  %v3620 = vsel %vm339, %v3619, %v3618
  %v3621 = vrot.slane %v3351, 4
  %v3622 = vsel %vm342, %v3621, %v3620
  %v3623 = vrot.slane %v3352, 3
  %v3624 = vsel %vm345, %v3623, %v3622
  %v3625 = vrot.slane %v3353, 2
  %v3626 = vsel %vm348, %v3625, %v3624
  %v3627 = vrot.slane %v3354, 1
  %v3628 = vsel %vm351, %v3627, %v3626
  %v3629 = vrot.slane %v3356, 7
  %v3630 = vsel %vm333, %v3629, %v3355
  %v3631 = vrot.slane %v3357, 6
  %v3632 = vsel %vm336, %v3631, %v3630
  %v3633 = vrot.slane %v3358, 5
  %v3634 = vsel %vm339, %v3633, %v3632
  %v3635 = vrot.slane %v3359, 4
  %v3636 = vsel %vm342, %v3635, %v3634
  %v3637 = vrot.slane %v3360, 3
  %v3638 = vsel %vm345, %v3637, %v3636
  %v3639 = vrot.slane %v3361, 2
  %v3640 = vsel %vm348, %v3639, %v3638
  %v3641 = vrot.slane %v3362, 1
  %v3642 = vsel %vm351, %v3641, %v3640
  %v3643 = vrot.slane %v3364, 7
  %v3644 = vsel %vm333, %v3643, %v3363
  %v3645 = vrot.slane %v3365, 6
  %v3646 = vsel %vm336, %v3645, %v3644
  %v3647 = vrot.slane %v3366, 5
  %v3648 = vsel %vm339, %v3647, %v3646
  %v3649 = vrot.slane %v3367, 4
  %v3650 = vsel %vm342, %v3649, %v3648
  %v3651 = vrot.slane %v3368, 3
  %v3652 = vsel %vm345, %v3651, %v3650
  %v3653 = vrot.slane %v3369, 2
  %v3654 = vsel %vm348, %v3653, %v3652
  %v3655 = vrot.slane %v3370, 1
  %v3656 = vsel %vm351, %v3655, %v3654
  %v3657 = vrot.slane %v3372, 7
  %v3658 = vsel %vm333, %v3657, %v3371
  %v3659 = vrot.slane %v3373, 6
  %v3660 = vsel %vm336, %v3659, %v3658
  %v3661 = vrot.slane %v3374, 5
  %v3662 = vsel %vm339, %v3661, %v3660
  %v3663 = vrot.slane %v3375, 4
  %v3664 = vsel %vm342, %v3663, %v3662
  %v3665 = vrot.slane %v3376, 3
  %v3666 = vsel %vm345, %v3665, %v3664
  %v3667 = vrot.slane %v3377, 2
  %v3668 = vsel %vm348, %v3667, %v3666
  %v3669 = vrot.slane %v3378, 1
  %v3670 = vsel %vm351, %v3669, %v3668
  %v3671 = vrot.slane %v3380, 7
  %v3672 = vsel %vm333, %v3671, %v3379
  %v3673 = vrot.slane %v3381, 6
  %v3674 = vsel %vm336, %v3673, %v3672
  %v3675 = vrot.slane %v3382, 5
  %v3676 = vsel %vm339, %v3675, %v3674
  %v3677 = vrot.slane %v3383, 4
  %v3678 = vsel %vm342, %v3677, %v3676
  %v3679 = vrot.slane %v3384, 3
  %v3680 = vsel %vm345, %v3679, %v3678
  %v3681 = vrot.slane %v3385, 2
  %v3682 = vsel %vm348, %v3681, %v3680
  %v3683 = vrot.slane %v3386, 1
  %v3684 = vsel %vm351, %v3683, %v3682
  %v3685 = vrot.slane %v3388, 7
  %v3686 = vsel %vm333, %v3685, %v3387
  %v3687 = vrot.slane %v3389, 6
  %v3688 = vsel %vm336, %v3687, %v3686
  %v3689 = vrot.slane %v3390, 5
  %v3690 = vsel %vm339, %v3689, %v3688
  %v3691 = vrot.slane %v3391, 4
  %v3692 = vsel %vm342, %v3691, %v3690
  %v3693 = vrot.slane %v3392, 3
  %v3694 = vsel %vm345, %v3693, %v3692
  %v3695 = vrot.slane %v3393, 2
  %v3696 = vsel %vm348, %v3695, %v3694
  %v3697 = vrot.slane %v3394, 1
  %v3698 = vsel %vm351, %v3697, %v3696
  %v3699 = vrot.slane %v3396, 7
  %v3700 = vsel %vm333, %v3699, %v3395
  %v3701 = vrot.slane %v3397, 6
  %v3702 = vsel %vm336, %v3701, %v3700
  %v3703 = vrot.slane %v3398, 5
  %v3704 = vsel %vm339, %v3703, %v3702
  %v3705 = vrot.slane %v3399, 4
  %v3706 = vsel %vm342, %v3705, %v3704
  %v3707 = vrot.slane %v3400, 3
  %v3708 = vsel %vm345, %v3707, %v3706
  %v3709 = vrot.slane %v3401, 2
  %v3710 = vsel %vm348, %v3709, %v3708
  %v3711 = vrot.slane %v3402, 1
  %v3712 = vsel %vm351, %v3711, %v3710
  %v3713 = vrot.slane %v3404, 7
  %v3714 = vsel %vm333, %v3713, %v3403
  %v3715 = vrot.slane %v3405, 6
  %v3716 = vsel %vm336, %v3715, %v3714
  %v3717 = vrot.slane %v3406, 5
  %v3718 = vsel %vm339, %v3717, %v3716
  %v3719 = vrot.slane %v3407, 4
  %v3720 = vsel %vm342, %v3719, %v3718
  %v3721 = vrot.slane %v3408, 3
  %v3722 = vsel %vm345, %v3721, %v3720
  %v3723 = vrot.slane %v3409, 2
  %v3724 = vsel %vm348, %v3723, %v3722
  %v3725 = vrot.slane %v3410, 1
  %v3726 = vsel %vm351, %v3725, %v3724
  %v3727 = vrot.slane %v3412, 7
  %v3728 = vsel %vm333, %v3727, %v3411
  %v3729 = vrot.slane %v3413, 6
  %v3730 = vsel %vm336, %v3729, %v3728
  %v3731 = vrot.slane %v3414, 5
  %v3732 = vsel %vm339, %v3731, %v3730
  %v3733 = vrot.slane %v3415, 4
  %v3734 = vsel %vm342, %v3733, %v3732
  %v3735 = vrot.slane %v3416, 3
  %v3736 = vsel %vm345, %v3735, %v3734
  %v3737 = vrot.slane %v3417, 2
  %v3738 = vsel %vm348, %v3737, %v3736
  %v3739 = vrot.slane %v3418, 1
  %v3740 = vsel %vm351, %v3739, %v3738
  %v3741 = vrot.slane %v3420, 7
  %v3742 = vsel %vm333, %v3741, %v3419
  %v3743 = vrot.slane %v3421, 6
  %v3744 = vsel %vm336, %v3743, %v3742
  %v3745 = vrot.slane %v3422, 5
  %v3746 = vsel %vm339, %v3745, %v3744
  %v3747 = vrot.slane %v3423, 4
  %v3748 = vsel %vm342, %v3747, %v3746
  %v3749 = vrot.slane %v3424, 3
  %v3750 = vsel %vm345, %v3749, %v3748
  %v3751 = vrot.slane %v3425, 2
  %v3752 = vsel %vm348, %v3751, %v3750
  %v3753 = vrot.slane %v3426, 1
  %v3754 = vsel %vm351, %v3753, %v3752
  %v3755 = vrot.slane %v3428, 7
  %v3756 = vsel %vm333, %v3755, %v3427
  %v3757 = vrot.slane %v3429, 6
  %v3758 = vsel %vm336, %v3757, %v3756
  %v3759 = vrot.slane %v3430, 5
  %v3760 = vsel %vm339, %v3759, %v3758
  %v3761 = vrot.slane %v3431, 4
  %v3762 = vsel %vm342, %v3761, %v3760
  %v3763 = vrot.slane %v3432, 3
  %v3764 = vsel %vm345, %v3763, %v3762
  %v3765 = vrot.slane %v3433, 2
  %v3766 = vsel %vm348, %v3765, %v3764
  %v3767 = vrot.slane %v3434, 1
  %v3768 = vsel %vm351, %v3767, %v3766
  %v3769 = vrot.slane %v3436, 7
  %v3770 = vsel %vm333, %v3769, %v3435
  %v3771 = vrot.slane %v3437, 6
  %v3772 = vsel %vm336, %v3771, %v3770
  %v3773 = vrot.slane %v3438, 5
  %v3774 = vsel %vm339, %v3773, %v3772
  %v3775 = vrot.slane %v3439, 4
  %v3776 = vsel %vm342, %v3775, %v3774
  %v3777 = vrot.slane %v3440, 3
  %v3778 = vsel %vm345, %v3777, %v3776
  %v3779 = vrot.slane %v3441, 2
  %v3780 = vsel %vm348, %v3779, %v3778
  %v3781 = vrot.slane %v3442, 1
  %v3782 = vsel %vm351, %v3781, %v3780
  %v3783 = vrot.slane %v3444, 7
  %v3784 = vsel %vm333, %v3783, %v3443
  %v3785 = vrot.slane %v3445, 6
  %v3786 = vsel %vm336, %v3785, %v3784
  %v3787 = vrot.slane %v3446, 5
  %v3788 = vsel %vm339, %v3787, %v3786
  %v3789 = vrot.slane %v3447, 4
  %v3790 = vsel %vm342, %v3789, %v3788
  %v3791 = vrot.slane %v3448, 3
  %v3792 = vsel %vm345, %v3791, %v3790
  %v3793 = vrot.slane %v3449, 2
  %v3794 = vsel %vm348, %v3793, %v3792
  %v3795 = vrot.slane %v3450, 1
  %v3796 = vsel %vm351, %v3795, %v3794
  %v3797 = vrot.slane %v3452, 7
  %v3798 = vsel %vm333, %v3797, %v3451
  %v3799 = vrot.slane %v3453, 6
  %v3800 = vsel %vm336, %v3799, %v3798
  %v3801 = vrot.slane %v3454, 5
  %v3802 = vsel %vm339, %v3801, %v3800
  %v3803 = vrot.slane %v3455, 4
  %v3804 = vsel %vm342, %v3803, %v3802
  %v3805 = vrot.slane %v3456, 3
  %v3806 = vsel %vm345, %v3805, %v3804
  %v3807 = vrot.slane %v3457, 2
  %v3808 = vsel %vm348, %v3807, %v3806
  %v3809 = vrot.slane %v3458, 1
  %v3810 = vsel %vm351, %v3809, %v3808
  %v3811 = vsel %vm563, %v3600, 0
  %v3813 = vsel %vm563, %v3614, 0
  %v3815 = vsel %vm563, %v3628, 0
  %v3817 = vsel %vm563, %v3642, 0
  %v3819 = vsel %vm563, %v3656, 0
  %v3821 = vsel %vm563, %v3670, 0
  %v3823 = vsel %vm563, %v3684, 0
  %v3825 = vsel %vm563, %v3698, 0
  %v3827 = vsel %vm563, %v3712, 0
  %v3829 = vsel %vm563, %v3726, 0
  %v3831 = vsel %vm563, %v3740, 0
  %v3833 = vsel %vm563, %v3754, 0
  %v3835 = vsel %vm563, %v3768, 0
  %v3837 = vsel %vm563, %v3782, 0
  %v3839 = vsel %vm563, %v3796, 0
  %v3841 = vsel %vm563, %v3810, 0
  %3843 = vmatpush.msra.mxu0 0.0
  %3844 = vmatpush.msra.mxu0 0.0
  %3845 = vmatpush.msra.mxu0 0.0
  %3846 = vmatpush.msra.mxu0 0.0
  %3847 = vmatpush.msra.mxu0 0.0
  %3848 = vmatpush.msra.mxu0 0.0
  %3849 = vmatpush.msra.mxu0 0.0
  %3850 = vmatpush.msra.mxu0 0.0
  %3851 = vmatpush.msra.mxu0 0.0
  %3852 = vmatpush.msra.mxu0 0.0
  %3853 = vmatpush.msra.mxu0 0.0
  %3854 = vmatpush.msra.mxu0 0.0
  %3855 = vmatpush.msra.mxu0 %v34
  %3856 = vmatpush.msra.mxu0 %v33
  %3857 = vmatpush.msra.mxu0 %v32
  %3858 = vmatpush.msra.mxu0 %v31
  %3859 = vmatmul.f32.gmra.mxu0 %v3811
  %v3860 = vpop.f32.mrf.mxu0
  %v3861 = vadd.f32 0.0, %v3860
  %3862 = vmatmul.f32.gmra.mxu0 %v3813
  %v3863 = vpop.f32.mrf.mxu0
  %v3864 = vadd.f32 0.0, %v3863
  %3865 = vmatmul.f32.gmra.mxu0 %v3815
  %v3866 = vpop.f32.mrf.mxu0
  %v3867 = vadd.f32 0.0, %v3866
  %3868 = vmatmul.f32.gmra.mxu0 %v3817
  %v3869 = vpop.f32.mrf.mxu0
  %v3870 = vadd.f32 0.0, %v3869
  %3871 = vmatmul.f32.gmra.mxu0 %v3819
  %v3872 = vpop.f32.mrf.mxu0
  %v3873 = vadd.f32 0.0, %v3872
  %3874 = vmatmul.f32.gmra.mxu0 %v3821
  %v3875 = vpop.f32.mrf.mxu0
  %v3876 = vadd.f32 0.0, %v3875
  %3877 = vmatmul.f32.gmra.mxu0 %v3823
  %v3878 = vpop.f32.mrf.mxu0
  %v3879 = vadd.f32 0.0, %v3878
  %3880 = vmatmul.f32.gmra.mxu0 %v3825
  %v3881 = vpop.f32.mrf.mxu0
  %v3882 = vadd.f32 0.0, %v3881
  %3883 = vmatmul.f32.gmra.mxu0 %v3827
  %v3884 = vpop.f32.mrf.mxu0
  %v3885 = vadd.f32 0.0, %v3884
  %3886 = vmatmul.f32.gmra.mxu0 %v3829
  %v3887 = vpop.f32.mrf.mxu0
  %v3888 = vadd.f32 0.0, %v3887
  %3889 = vmatmul.f32.gmra.mxu0 %v3831
  %v3890 = vpop.f32.mrf.mxu0
  %v3891 = vadd.f32 0.0, %v3890
  %3892 = vmatmul.f32.gmra.mxu0 %v3833
  %v3893 = vpop.f32.mrf.mxu0
  %v3894 = vadd.f32 0.0, %v3893
  %3895 = vmatmul.f32.gmra.mxu0 %v3835
  %v3896 = vpop.f32.mrf.mxu0
  %v3897 = vadd.f32 0.0, %v3896
  %3898 = vmatmul.f32.gmra.mxu0 %v3837
  %v3899 = vpop.f32.mrf.mxu0
  %v3900 = vadd.f32 0.0, %v3899
  %3901 = vmatmul.f32.gmra.mxu0 %v3839
  %v3902 = vpop.f32.mrf.mxu0
  %v3903 = vadd.f32 0.0, %v3902
  %3904 = vmatmul.f32.gmra.mxu0 %v3841
  %v3905 = vpop.f32.mrf.mxu0
  %v3906 = vadd.f32 0.0, %v3905
  %3907 = vdwg.mxu0
  %3908 = vxpose.xlu0.b32.start [1/16] %v3861, 128
  %3909 = vxpose.xlu0.b32.cont [2/16] %v3864, 128
  %3910 = vxpose.xlu0.b32.cont [3/16] %v3867, 128
  %3911 = vxpose.xlu0.b32.cont [4/16] %v3870, 128
  %3912 = vxpose.xlu0.b32.cont [5/16] %v3873, 128
  %3913 = vxpose.xlu0.b32.cont [6/16] %v3876, 128
  %3914 = vxpose.xlu0.b32.cont [7/16] %v3879, 128
  %3915 = vxpose.xlu0.b32.cont [8/16] %v3882, 128
  %3916 = vxpose.xlu0.b32.cont [9/16] %v3885, 128
  %3917 = vxpose.xlu0.b32.cont [10/16] %v3888, 128
  %3918 = vxpose.xlu0.b32.cont [11/16] %v3891, 128
  %3919 = vxpose.xlu0.b32.cont [12/16] %v3894, 128
  %3920 = vxpose.xlu0.b32.cont [13/16] %v3897, 128
  %3921 = vxpose.xlu0.b32.cont [14/16] %v3900, 128
  %3922 = vxpose.xlu0.b32.cont [15/16] %v3903, 128
  %3923 = vxpose.xlu0.b32.end [16/16] %v3906, 128
  %v3924 = vpop.trf.xlu0
  %v3925 = vpop.trf.xlu0
  %v3926 = vpop.trf.xlu0
  %v3927 = vpop.trf.xlu0
  %v3928 = vpop.trf.xlu0
  %v3929 = vpop.trf.xlu0
  %v3930 = vpop.trf.xlu0
  %v3931 = vpop.trf.xlu0
  %v3932 = vpop.trf.xlu0
  %v3933 = vpop.trf.xlu0
  %v3934 = vpop.trf.xlu0
  %v3935 = vpop.trf.xlu0
  %v3936 = vpop.trf.xlu0
  %v3937 = vpop.trf.xlu0
  %v3938 = vpop.trf.xlu0
  %v3939 = vpop.trf.xlu0
  %v3940 = vadd.f32 %v3924, %v696
  %v3941 = vperm.slane %v71, 4
  %vm3942 = vcmp.eq.s32.totalorder %v74, %v3941
  %v3943 = vsel %vm3942, 1, 0
  %v3944 = vcvt.s32.f32 %v3943
  %v3946 = vsel %vm1578, %v3168, 0
  %3948 = vmatpush.msra.mxu0 0.0
  %3949 = vmatpush.msra.mxu0 0.0
  %3950 = vmatpush.msra.mxu0 0.0
  %3951 = vmatpush.msra.mxu0 0.0
  %3952 = vmatpush.msra.mxu0 0.0
  %3953 = vmatpush.msra.mxu0 0.0
  %3954 = vmatpush.msra.mxu0 0.0
  %3955 = vmatpush.msra.mxu0 0.0
  %3956 = vmatpush.msra.mxu0 0.0
  %3957 = vmatpush.msra.mxu0 0.0
  %3958 = vmatpush.msra.mxu0 0.0
  %3959 = vmatpush.msra.mxu0 0.0
  %3960 = vmatpush.msra.mxu0 0.0
  %3961 = vmatpush.msra.mxu0 0.0
  %3962 = vmatpush.msra.mxu0 0.0
  %3963 = vmatpush.msra.mxu0 %v3946
  %3964 = vmatmul.f32.gmra.mxu0 %v1576
  %v3965 = vpop.f32.mrf.mxu0
  %v3966 = vadd.f32 %v3940, %v3965
  %3967 = vdwg.mxu0
  %v3968 = vmul.f32 %v3944, %v3966
  %v3969 = vsel %vm1578, %v3968, 0.0
  %v3970 = vrot.slane %v3969, 4
  %v3971 = vadd.f32 %v3969, %v3970
  %v3972 = vrot.slane %v3971, 2
  %v3973 = vadd.f32 %v3971, %v3972
  %v3974 = vrot.slane %v3973, 1
  %v3975 = vadd.f32 %v3973, %v3974
  %v3976 = vmul.f32 %v3975, %v1565
  %3978 = vst [vmem:[#allocation1] sm:$0xff] %v3976
  %s3979 = scalar_lea.vmem [#allocation1], 4
  %v3980 = vld [vmem:[%s3979] ss:$9 sm:$0xff]
  %v3982 = vadd.f32 %v3206, %v3980
  %v3984 = vrot.slane %v3266, 1
  %v3985 = vrot.slane %v3266, 2
  %v3986 = vrot.slane %v3266, 3
  %v3987 = vrot.slane %v3266, 4
  %v3988 = vperm.slane %v3266, 0
  %v3989 = vperm.slane %v3984, 0
  %v3990 = vperm.slane %v3985, 0
  %v3991 = vperm.slane %v3986, 0
  %v3992 = vperm.slane %v3987, 0
  %v3998 = vadd.f32 %v3988, %v1628
  %v3999 = vadd.f32 %v3989, %v1635
  %v4000 = vadd.f32 %v3990, %v1642
  %v4001 = vadd.f32 %v3991, %v1649
  %v4002 = vadd.f32 %v3992, %v1656
  %v4003 = vsel %vm1578, %v3998, -inf
  %v4004 = vsel %vm1578, %v3999, -inf
  %v4005 = vsel %vm1578, %v4000, -inf
  %v4006 = vsel %vm1578, %v4001, -inf
  %v4007 = vsel %vm1578, %v4002, -inf
  %v4008 = vmax.f32 %v4003, %v4007
  %v4009 = vmax.f32 %v4008, %v4004
  %v4010 = vmax.f32 %v4005, %v4006
  %v4011 = vmax.f32 %v4009, %v4010
  %v4012 = vsub.f32 %v3998, %v4011
  %v4013 = vsub.f32 %v3999, %v4011
  %v4014 = vsub.f32 %v4000, %v4011
  %v4015 = vsub.f32 %v4001, %v4011
  %v4016 = vsub.f32 %v4002, %v4011
  %v4017 = vmul.f32 %v4012, 1.442695
  %v4018 = vpow.pop %v4017
  %v4019 = vmul.f32 %v4013, 1.442695
  %v4020 = vpow.pop %v4019
  %v4021 = vmul.f32 %v4014, 1.442695
  %v4022 = vpow.pop %v4021
  %v4023 = vmul.f32 %v4015, 1.442695
  %v4024 = vpow.pop %v4023
  %v4025 = vmul.f32 %v4016, 1.442695
  %v4026 = vpow.pop %v4025
  %v4027 = vsel %vm1578, %v4018, 0.0
  %v4028 = vsel %vm1578, %v4020, 0.0
  %v4029 = vadd.f32 %v4027, %v4028
  %v4030 = vsel %vm1578, %v4022, 0.0
  %v4031 = vadd.f32 %v4029, %v4030
  %v4032 = vsel %vm1578, %v4024, 0.0
  %v4033 = vadd.f32 %v4031, %v4032
  %v4034 = vsel %vm1578, %v4026, 0.0
  %v4035 = vadd.f32 %v4033, %v4034
  %v4036 = vlog2.pop %v4035
  %v4037 = vmul.f32 %v4036, 0.6931472
  %v4038 = vadd.f32 %v4011, %v4037
  %v4039 = vadd.f32 %v4038, %v3940
  %v4040 = vperm.slane %v1710, 4
  %vm4041 = vcmp.eq.s32.totalorder %v4040, 1
  %v4042 = vsel %vm4041, %v4039, %v3266
  %v4044 = vrot.slane %v3323, 1
  %v4045 = vrot.slane %v3323, 2
  %v4046 = vrot.slane %v3323, 3
  %v4047 = vrot.slane %v3323, 4
  %v4048 = vperm.slane %v3323, 0
  %v4049 = vperm.slane %v4044, 0
  %v4050 = vperm.slane %v4045, 0
  %v4051 = vperm.slane %v4046, 0
  %v4052 = vperm.slane %v4047, 0
  %v4058 = vadd.f32 %v4048, %v1628
  %v4059 = vadd.f32 %v4049, %v1635
  %v4060 = vadd.f32 %v4050, %v1642
  %v4061 = vadd.f32 %v4051, %v1649
  %v4062 = vadd.f32 %v4052, %v1656
  %v4063 = vsel %vm1578, %v4058, -inf
  %v4064 = vsel %vm1578, %v4059, -inf
  %v4065 = vsel %vm1578, %v4060, -inf
  %v4066 = vsel %vm1578, %v4061, -inf
  %v4067 = vsel %vm1578, %v4062, -inf
  %v4068 = vmax.f32 %v4063, %v4067
  %v4069 = vmax.f32 %v4068, %v4064
  %v4070 = vmax.f32 %v4065, %v4066
  %v4071 = vmax.f32 %v4069, %v4070
  %vm4072 = vcmp.eq.f32.partialorder %v4058, %v4071
  %vm4073 = vcmp.eq.f32.partialorder %v4059, %v4071
  %vm4074 = vcmp.eq.f32.partialorder %v4060, %v4071
  %vm4075 = vcmp.eq.f32.partialorder %v4061, %v4071
  %vm4076 = vcmp.eq.f32.partialorder %v4062, %v4071
  %v4077 = vsel %vm4072, 0, 5
  %v4078 = vsel %vm4073, 1, 5
  %v4079 = vsel %vm4074, 2, 5
  %v4080 = vsel %vm4075, 3, 5
  %v4081 = vsel %vm4076, 4, 5
  %v4082 = vsel %vm1578, %v4077, 2147483647
  %v4083 = vsel %vm1578, %v4078, 2147483647
  %v4084 = vsel %vm1578, %v4079, 2147483647
  %v4085 = vsel %vm1578, %v4080, 2147483647
  %v4086 = vsel %vm1578, %v4081, 2147483647
  %vm4087 = vcmp.lt.s32.totalorder %v4082, %v4086
  %v4088 = vsel %vm4087, %v4082, %v4086
  %vm4089 = vcmp.lt.s32.totalorder %v4088, %v4083
  %v4090 = vsel %vm4089, %v4088, %v4083
  %vm4091 = vcmp.lt.s32.totalorder %v4084, %v4085
  %v4092 = vsel %vm4091, %v4084, %v4085
  %vm4093 = vcmp.lt.s32.totalorder %v4090, %v4092
  %v4094 = vsel %vm4093, %v4090, %v4092
  %s4095 = smul.u32 %s3330, 8
  %s4096 = scalar_lea.vmem [#allocation8], %s4095
  %4097 = vst [vmem:[%s4096] sm:$0x1f] %v4094
  %v4098 = vadd.f32 %v4071, %v3940
  %v4099 = vsel %vm4041, %v4098, %v3323
  %v4100 = vrot.slane %v3325, 7
  %v4101 = vsel %vm1771, %v71, %v4100
  %4102 = vst [vmem:[#allocation1] sm:$0xff] %v72
  %s4103 = scalar_lea.vmem [#allocation1], 4
  %v4104 = vld [vmem:[%s4103] ss:$9 sm:$0xff]
  %v4105 = vadd.s32 %v3329, %v4104
  %s4106 = sadd.s32 %s75, 5
  %v4107 = vld [vmem:[%s0 + $0x5] sm:$0x1]
  %v4108 = vld [vmem:[%s0 + $0xd] sm:$0x1]
  %v4109 = vld [vmem:[%s0 + $0x15] sm:$0x1]
  %v4110 = vld [vmem:[%s0 + $0x1d] sm:$0x1]
  %v4111 = vld [vmem:[%s0 + $0x25] sm:$0x1]
  %v4112 = vld [vmem:[%s0 + $0x2d] sm:$0x1]
  %v4113 = vld [vmem:[%s0 + $0x35] sm:$0x1]
  %v4114 = vld [vmem:[%s0 + $0x3d] sm:$0x1]
  %v4115 = vld [vmem:[%s0 + $0x45] sm:$0x1]
  %v4116 = vld [vmem:[%s0 + $0x4d] sm:$0x1]
  %v4117 = vld [vmem:[%s0 + $0x55] sm:$0x1]
  %v4118 = vld [vmem:[%s0 + $0x5d] sm:$0x1]
  %v4119 = vld [vmem:[%s0 + $0x65] sm:$0x1]
  %v4120 = vld [vmem:[%s0 + $0x6d] sm:$0x1]
  %v4121 = vld [vmem:[%s0 + $0x75] sm:$0x1]
  %v4122 = vld [vmem:[%s0 + $0x7d] sm:$0x1]
  %v4123 = vld [vmem:[%s0 + $0x85] sm:$0x1]
  %v4124 = vld [vmem:[%s0 + $0x8d] sm:$0x1]
  %v4125 = vld [vmem:[%s0 + $0x95] sm:$0x1]
  %v4126 = vld [vmem:[%s0 + $0x9d] sm:$0x1]
  %v4127 = vld [vmem:[%s0 + $0xa5] sm:$0x1]
  %v4128 = vld [vmem:[%s0 + $0xad] sm:$0x1]
  %v4129 = vld [vmem:[%s0 + $0xb5] sm:$0x1]
  %v4130 = vld [vmem:[%s0 + $0xbd] sm:$0x1]
  %v4131 = vld [vmem:[%s0 + $0xc5] sm:$0x1]
  %v4132 = vld [vmem:[%s0 + $0xcd] sm:$0x1]
  %v4133 = vld [vmem:[%s0 + $0xd5] sm:$0x1]
  %v4134 = vld [vmem:[%s0 + $0xdd] sm:$0x1]
  %v4135 = vld [vmem:[%s0 + $0xe5] sm:$0x1]
  %v4136 = vld [vmem:[%s0 + $0xed] sm:$0x1]
  %v4137 = vld [vmem:[%s0 + $0xf5] sm:$0x1]
  %v4138 = vld [vmem:[%s0 + $0xfd] sm:$0x1]
  %v4139 = vld [vmem:[%s0 + $0x105] sm:$0x1]
  %v4140 = vld [vmem:[%s0 + $0x10d] sm:$0x1]
  %v4141 = vld [vmem:[%s0 + $0x115] sm:$0x1]
  %v4142 = vld [vmem:[%s0 + $0x11d] sm:$0x1]
  %v4143 = vld [vmem:[%s0 + $0x125] sm:$0x1]
  %v4144 = vld [vmem:[%s0 + $0x12d] sm:$0x1]
  %v4145 = vld [vmem:[%s0 + $0x135] sm:$0x1]
  %v4146 = vld [vmem:[%s0 + $0x13d] sm:$0x1]
  %v4147 = vld [vmem:[%s0 + $0x145] sm:$0x1]
  %v4148 = vld [vmem:[%s0 + $0x14d] sm:$0x1]
  %v4149 = vld [vmem:[%s0 + $0x155] sm:$0x1]
  %v4150 = vld [vmem:[%s0 + $0x15d] sm:$0x1]
  %v4151 = vld [vmem:[%s0 + $0x165] sm:$0x1]
  %v4152 = vld [vmem:[%s0 + $0x16d] sm:$0x1]
  %v4153 = vld [vmem:[%s0 + $0x175] sm:$0x1]
  %v4154 = vld [vmem:[%s0 + $0x17d] sm:$0x1]
  %v4155 = vld [vmem:[%s0 + $0x185] sm:$0x1]
  %v4156 = vld [vmem:[%s0 + $0x18d] sm:$0x1]
  %v4157 = vld [vmem:[%s0 + $0x195] sm:$0x1]
  %v4158 = vld [vmem:[%s0 + $0x19d] sm:$0x1]
  %v4159 = vld [vmem:[%s0 + $0x1a5] sm:$0x1]
  %v4160 = vld [vmem:[%s0 + $0x1ad] sm:$0x1]
  %v4161 = vld [vmem:[%s0 + $0x1b5] sm:$0x1]
  %v4162 = vld [vmem:[%s0 + $0x1bd] sm:$0x1]
  %v4163 = vld [vmem:[%s0 + $0x1c5] sm:$0x1]
  %v4164 = vld [vmem:[%s0 + $0x1cd] sm:$0x1]
  %v4165 = vld [vmem:[%s0 + $0x1d5] sm:$0x1]
  %v4166 = vld [vmem:[%s0 + $0x1dd] sm:$0x1]
  %v4167 = vld [vmem:[%s0 + $0x1e5] sm:$0x1]
  %v4168 = vld [vmem:[%s0 + $0x1ed] sm:$0x1]
  %v4169 = vld [vmem:[%s0 + $0x1f5] sm:$0x1]
  %v4170 = vld [vmem:[%s0 + $0x1fd] sm:$0x1]
  %v4171 = vld [vmem:[%s0 + $0x205] sm:$0x1]
  %v4172 = vld [vmem:[%s0 + $0x20d] sm:$0x1]
  %v4173 = vld [vmem:[%s0 + $0x215] sm:$0x1]
  %v4174 = vld [vmem:[%s0 + $0x21d] sm:$0x1]
  %v4175 = vld [vmem:[%s0 + $0x225] sm:$0x1]
  %v4176 = vld [vmem:[%s0 + $0x22d] sm:$0x1]
  %v4177 = vld [vmem:[%s0 + $0x235] sm:$0x1]
  %v4178 = vld [vmem:[%s0 + $0x23d] sm:$0x1]
  %v4179 = vld [vmem:[%s0 + $0x245] sm:$0x1]
  %v4180 = vld [vmem:[%s0 + $0x24d] sm:$0x1]
  %v4181 = vld [vmem:[%s0 + $0x255] sm:$0x1]
  %v4182 = vld [vmem:[%s0 + $0x25d] sm:$0x1]
  %v4183 = vld [vmem:[%s0 + $0x265] sm:$0x1]
  %v4184 = vld [vmem:[%s0 + $0x26d] sm:$0x1]
  %v4185 = vld [vmem:[%s0 + $0x275] sm:$0x1]
  %v4186 = vld [vmem:[%s0 + $0x27d] sm:$0x1]
  %v4187 = vld [vmem:[%s0 + $0x285] sm:$0x1]
  %v4188 = vld [vmem:[%s0 + $0x28d] sm:$0x1]
  %v4189 = vld [vmem:[%s0 + $0x295] sm:$0x1]
  %v4190 = vld [vmem:[%s0 + $0x29d] sm:$0x1]
  %v4191 = vld [vmem:[%s0 + $0x2a5] sm:$0x1]
  %v4192 = vld [vmem:[%s0 + $0x2ad] sm:$0x1]
  %v4193 = vld [vmem:[%s0 + $0x2b5] sm:$0x1]
  %v4194 = vld [vmem:[%s0 + $0x2bd] sm:$0x1]
  %v4195 = vld [vmem:[%s0 + $0x2c5] sm:$0x1]
  %v4196 = vld [vmem:[%s0 + $0x2cd] sm:$0x1]
  %v4197 = vld [vmem:[%s0 + $0x2d5] sm:$0x1]
  %v4198 = vld [vmem:[%s0 + $0x2dd] sm:$0x1]
  %v4199 = vld [vmem:[%s0 + $0x2e5] sm:$0x1]
  %v4200 = vld [vmem:[%s0 + $0x2ed] sm:$0x1]
  %v4201 = vld [vmem:[%s0 + $0x2f5] sm:$0x1]
  %v4202 = vld [vmem:[%s0 + $0x2fd] sm:$0x1]
  %v4203 = vld [vmem:[%s0 + $0x305] sm:$0x1]
  %v4204 = vld [vmem:[%s0 + $0x30d] sm:$0x1]
  %v4205 = vld [vmem:[%s0 + $0x315] sm:$0x1]
  %v4206 = vld [vmem:[%s0 + $0x31d] sm:$0x1]
  %v4207 = vld [vmem:[%s0 + $0x325] sm:$0x1]
  %v4208 = vld [vmem:[%s0 + $0x32d] sm:$0x1]
  %v4209 = vld [vmem:[%s0 + $0x335] sm:$0x1]
  %v4210 = vld [vmem:[%s0 + $0x33d] sm:$0x1]
  %v4211 = vld [vmem:[%s0 + $0x345] sm:$0x1]
  %v4212 = vld [vmem:[%s0 + $0x34d] sm:$0x1]
  %v4213 = vld [vmem:[%s0 + $0x355] sm:$0x1]
  %v4214 = vld [vmem:[%s0 + $0x35d] sm:$0x1]
  %v4215 = vld [vmem:[%s0 + $0x365] sm:$0x1]
  %v4216 = vld [vmem:[%s0 + $0x36d] sm:$0x1]
  %v4217 = vld [vmem:[%s0 + $0x375] sm:$0x1]
  %v4218 = vld [vmem:[%s0 + $0x37d] sm:$0x1]
  %v4219 = vld [vmem:[%s0 + $0x385] sm:$0x1]
  %v4220 = vld [vmem:[%s0 + $0x38d] sm:$0x1]
  %v4221 = vld [vmem:[%s0 + $0x395] sm:$0x1]
  %v4222 = vld [vmem:[%s0 + $0x39d] sm:$0x1]
  %v4223 = vld [vmem:[%s0 + $0x3a5] sm:$0x1]
  %v4224 = vld [vmem:[%s0 + $0x3ad] sm:$0x1]
  %v4225 = vld [vmem:[%s0 + $0x3b5] sm:$0x1]
  %v4226 = vld [vmem:[%s0 + $0x3bd] sm:$0x1]
  %v4227 = vld [vmem:[%s0 + $0x3c5] sm:$0x1]
  %v4228 = vld [vmem:[%s0 + $0x3cd] sm:$0x1]
  %v4229 = vld [vmem:[%s0 + $0x3d5] sm:$0x1]
  %v4230 = vld [vmem:[%s0 + $0x3dd] sm:$0x1]
  %v4231 = vld [vmem:[%s0 + $0x3e5] sm:$0x1]
  %v4232 = vld [vmem:[%s0 + $0x3ed] sm:$0x1]
  %v4233 = vld [vmem:[%s0 + $0x3f5] sm:$0x1]
  %v4234 = vld [vmem:[%s0 + $0x3fd] sm:$0x1]
  %v4363 = vrot.slane %v4108, 7
  %v4364 = vsel %vm333, %v4363, %v4107
  %v4365 = vrot.slane %v4109, 6
  %v4366 = vsel %vm336, %v4365, %v4364
  %v4367 = vrot.slane %v4110, 5
  %v4368 = vsel %vm339, %v4367, %v4366
  %v4369 = vrot.slane %v4111, 4
  %v4370 = vsel %vm342, %v4369, %v4368
  %v4371 = vrot.slane %v4112, 3
  %v4372 = vsel %vm345, %v4371, %v4370
  %v4373 = vrot.slane %v4113, 2
  %v4374 = vsel %vm348, %v4373, %v4372
  %v4375 = vrot.slane %v4114, 1
  %v4376 = vsel %vm351, %v4375, %v4374
  %v4377 = vrot.slane %v4116, 7
  %v4378 = vsel %vm333, %v4377, %v4115
  %v4379 = vrot.slane %v4117, 6
  %v4380 = vsel %vm336, %v4379, %v4378
  %v4381 = vrot.slane %v4118, 5
  %v4382 = vsel %vm339, %v4381, %v4380
  %v4383 = vrot.slane %v4119, 4
  %v4384 = vsel %vm342, %v4383, %v4382
  %v4385 = vrot.slane %v4120, 3
  %v4386 = vsel %vm345, %v4385, %v4384
  %v4387 = vrot.slane %v4121, 2
  %v4388 = vsel %vm348, %v4387, %v4386
  %v4389 = vrot.slane %v4122, 1
  %v4390 = vsel %vm351, %v4389, %v4388
  %v4391 = vrot.slane %v4124, 7
  %v4392 = vsel %vm333, %v4391, %v4123
  %v4393 = vrot.slane %v4125, 6
  %v4394 = vsel %vm336, %v4393, %v4392
  %v4395 = vrot.slane %v4126, 5
  %v4396 = vsel %vm339, %v4395, %v4394
  %v4397 = vrot.slane %v4127, 4
  %v4398 = vsel %vm342, %v4397, %v4396
  %v4399 = vrot.slane %v4128, 3
  %v4400 = vsel %vm345, %v4399, %v4398
  %v4401 = vrot.slane %v4129, 2
  %v4402 = vsel %vm348, %v4401, %v4400
  %v4403 = vrot.slane %v4130, 1
  %v4404 = vsel %vm351, %v4403, %v4402
  %v4405 = vrot.slane %v4132, 7
  %v4406 = vsel %vm333, %v4405, %v4131
  %v4407 = vrot.slane %v4133, 6
  %v4408 = vsel %vm336, %v4407, %v4406
  %v4409 = vrot.slane %v4134, 5
  %v4410 = vsel %vm339, %v4409, %v4408
  %v4411 = vrot.slane %v4135, 4
  %v4412 = vsel %vm342, %v4411, %v4410
  %v4413 = vrot.slane %v4136, 3
  %v4414 = vsel %vm345, %v4413, %v4412
  %v4415 = vrot.slane %v4137, 2
  %v4416 = vsel %vm348, %v4415, %v4414
  %v4417 = vrot.slane %v4138, 1
  %v4418 = vsel %vm351, %v4417, %v4416
  %v4419 = vrot.slane %v4140, 7
  %v4420 = vsel %vm333, %v4419, %v4139
  %v4421 = vrot.slane %v4141, 6
  %v4422 = vsel %vm336, %v4421, %v4420
  %v4423 = vrot.slane %v4142, 5
  %v4424 = vsel %vm339, %v4423, %v4422
  %v4425 = vrot.slane %v4143, 4
  %v4426 = vsel %vm342, %v4425, %v4424
  %v4427 = vrot.slane %v4144, 3
  %v4428 = vsel %vm345, %v4427, %v4426
  %v4429 = vrot.slane %v4145, 2
  %v4430 = vsel %vm348, %v4429, %v4428
  %v4431 = vrot.slane %v4146, 1
  %v4432 = vsel %vm351, %v4431, %v4430
  %v4433 = vrot.slane %v4148, 7
  %v4434 = vsel %vm333, %v4433, %v4147
  %v4435 = vrot.slane %v4149, 6
  %v4436 = vsel %vm336, %v4435, %v4434
  %v4437 = vrot.slane %v4150, 5
  %v4438 = vsel %vm339, %v4437, %v4436
  %v4439 = vrot.slane %v4151, 4
  %v4440 = vsel %vm342, %v4439, %v4438
  %v4441 = vrot.slane %v4152, 3
  %v4442 = vsel %vm345, %v4441, %v4440
  %v4443 = vrot.slane %v4153, 2
  %v4444 = vsel %vm348, %v4443, %v4442
  %v4445 = vrot.slane %v4154, 1
  %v4446 = vsel %vm351, %v4445, %v4444
  %v4447 = vrot.slane %v4156, 7
  %v4448 = vsel %vm333, %v4447, %v4155
  %v4449 = vrot.slane %v4157, 6
  %v4450 = vsel %vm336, %v4449, %v4448
  %v4451 = vrot.slane %v4158, 5
  %v4452 = vsel %vm339, %v4451, %v4450
  %v4453 = vrot.slane %v4159, 4
  %v4454 = vsel %vm342, %v4453, %v4452
  %v4455 = vrot.slane %v4160, 3
  %v4456 = vsel %vm345, %v4455, %v4454
  %v4457 = vrot.slane %v4161, 2
  %v4458 = vsel %vm348, %v4457, %v4456
  %v4459 = vrot.slane %v4162, 1
  %v4460 = vsel %vm351, %v4459, %v4458
  %v4461 = vrot.slane %v4164, 7
  %v4462 = vsel %vm333, %v4461, %v4163
  %v4463 = vrot.slane %v4165, 6
  %v4464 = vsel %vm336, %v4463, %v4462
  %v4465 = vrot.slane %v4166, 5
  %v4466 = vsel %vm339, %v4465, %v4464
  %v4467 = vrot.slane %v4167, 4
  %v4468 = vsel %vm342, %v4467, %v4466
  %v4469 = vrot.slane %v4168, 3
  %v4470 = vsel %vm345, %v4469, %v4468
  %v4471 = vrot.slane %v4169, 2
  %v4472 = vsel %vm348, %v4471, %v4470
  %v4473 = vrot.slane %v4170, 1
  %v4474 = vsel %vm351, %v4473, %v4472
  %v4475 = vrot.slane %v4172, 7
  %v4476 = vsel %vm333, %v4475, %v4171
  %v4477 = vrot.slane %v4173, 6
  %v4478 = vsel %vm336, %v4477, %v4476
  %v4479 = vrot.slane %v4174, 5
  %v4480 = vsel %vm339, %v4479, %v4478
  %v4481 = vrot.slane %v4175, 4
  %v4482 = vsel %vm342, %v4481, %v4480
  %v4483 = vrot.slane %v4176, 3
  %v4484 = vsel %vm345, %v4483, %v4482
  %v4485 = vrot.slane %v4177, 2
  %v4486 = vsel %vm348, %v4485, %v4484
  %v4487 = vrot.slane %v4178, 1
  %v4488 = vsel %vm351, %v4487, %v4486
  %v4489 = vrot.slane %v4180, 7
  %v4490 = vsel %vm333, %v4489, %v4179
  %v4491 = vrot.slane %v4181, 6
  %v4492 = vsel %vm336, %v4491, %v4490
  %v4493 = vrot.slane %v4182, 5
  %v4494 = vsel %vm339, %v4493, %v4492
  %v4495 = vrot.slane %v4183, 4
  %v4496 = vsel %vm342, %v4495, %v4494
  %v4497 = vrot.slane %v4184, 3
  %v4498 = vsel %vm345, %v4497, %v4496
  %v4499 = vrot.slane %v4185, 2
  %v4500 = vsel %vm348, %v4499, %v4498
  %v4501 = vrot.slane %v4186, 1
  %v4502 = vsel %vm351, %v4501, %v4500
  %v4503 = vrot.slane %v4188, 7
  %v4504 = vsel %vm333, %v4503, %v4187
  %v4505 = vrot.slane %v4189, 6
  %v4506 = vsel %vm336, %v4505, %v4504
  %v4507 = vrot.slane %v4190, 5
  %v4508 = vsel %vm339, %v4507, %v4506
  %v4509 = vrot.slane %v4191, 4
  %v4510 = vsel %vm342, %v4509, %v4508
  %v4511 = vrot.slane %v4192, 3
  %v4512 = vsel %vm345, %v4511, %v4510
  %v4513 = vrot.slane %v4193, 2
  %v4514 = vsel %vm348, %v4513, %v4512
  %v4515 = vrot.slane %v4194, 1
  %v4516 = vsel %vm351, %v4515, %v4514
  %v4517 = vrot.slane %v4196, 7
  %v4518 = vsel %vm333, %v4517, %v4195
  %v4519 = vrot.slane %v4197, 6
  %v4520 = vsel %vm336, %v4519, %v4518
  %v4521 = vrot.slane %v4198, 5
  %v4522 = vsel %vm339, %v4521, %v4520
  %v4523 = vrot.slane %v4199, 4
  %v4524 = vsel %vm342, %v4523, %v4522
  %v4525 = vrot.slane %v4200, 3
  %v4526 = vsel %vm345, %v4525, %v4524
  %v4527 = vrot.slane %v4201, 2
  %v4528 = vsel %vm348, %v4527, %v4526
  %v4529 = vrot.slane %v4202, 1
  %v4530 = vsel %vm351, %v4529, %v4528
  %v4531 = vrot.slane %v4204, 7
  %v4532 = vsel %vm333, %v4531, %v4203
  %v4533 = vrot.slane %v4205, 6
  %v4534 = vsel %vm336, %v4533, %v4532
  %v4535 = vrot.slane %v4206, 5
  %v4536 = vsel %vm339, %v4535, %v4534
  %v4537 = vrot.slane %v4207, 4
  %v4538 = vsel %vm342, %v4537, %v4536
  %v4539 = vrot.slane %v4208, 3
  %v4540 = vsel %vm345, %v4539, %v4538
  %v4541 = vrot.slane %v4209, 2
  %v4542 = vsel %vm348, %v4541, %v4540
  %v4543 = vrot.slane %v4210, 1
  %v4544 = vsel %vm351, %v4543, %v4542
  %v4545 = vrot.slane %v4212, 7
  %v4546 = vsel %vm333, %v4545, %v4211
  %v4547 = vrot.slane %v4213, 6
  %v4548 = vsel %vm336, %v4547, %v4546
  %v4549 = vrot.slane %v4214, 5
  %v4550 = vsel %vm339, %v4549, %v4548
  %v4551 = vrot.slane %v4215, 4
  %v4552 = vsel %vm342, %v4551, %v4550
  %v4553 = vrot.slane %v4216, 3
  %v4554 = vsel %vm345, %v4553, %v4552
  %v4555 = vrot.slane %v4217, 2
  %v4556 = vsel %vm348, %v4555, %v4554
  %v4557 = vrot.slane %v4218, 1
  %v4558 = vsel %vm351, %v4557, %v4556
  %v4559 = vrot.slane %v4220, 7
  %v4560 = vsel %vm333, %v4559, %v4219
  %v4561 = vrot.slane %v4221, 6
  %v4562 = vsel %vm336, %v4561, %v4560
  %v4563 = vrot.slane %v4222, 5
  %v4564 = vsel %vm339, %v4563, %v4562
  %v4565 = vrot.slane %v4223, 4
  %v4566 = vsel %vm342, %v4565, %v4564
  %v4567 = vrot.slane %v4224, 3
  %v4568 = vsel %vm345, %v4567, %v4566
  %v4569 = vrot.slane %v4225, 2
  %v4570 = vsel %vm348, %v4569, %v4568
  %v4571 = vrot.slane %v4226, 1
  %v4572 = vsel %vm351, %v4571, %v4570
  %v4573 = vrot.slane %v4228, 7
  %v4574 = vsel %vm333, %v4573, %v4227
  %v4575 = vrot.slane %v4229, 6
  %v4576 = vsel %vm336, %v4575, %v4574
  %v4577 = vrot.slane %v4230, 5
  %v4578 = vsel %vm339, %v4577, %v4576
  %v4579 = vrot.slane %v4231, 4
  %v4580 = vsel %vm342, %v4579, %v4578
  %v4581 = vrot.slane %v4232, 3
  %v4582 = vsel %vm345, %v4581, %v4580
  %v4583 = vrot.slane %v4233, 2
  %v4584 = vsel %vm348, %v4583, %v4582
  %v4585 = vrot.slane %v4234, 1
  %v4586 = vsel %vm351, %v4585, %v4584
  %v4587 = vsel %vm563, %v4376, 0
  %v4589 = vsel %vm563, %v4390, 0
  %v4591 = vsel %vm563, %v4404, 0
  %v4593 = vsel %vm563, %v4418, 0
  %v4595 = vsel %vm563, %v4432, 0
  %v4597 = vsel %vm563, %v4446, 0
  %v4599 = vsel %vm563, %v4460, 0
  %v4601 = vsel %vm563, %v4474, 0
  %v4603 = vsel %vm563, %v4488, 0
  %v4605 = vsel %vm563, %v4502, 0
  %v4607 = vsel %vm563, %v4516, 0
  %v4609 = vsel %vm563, %v4530, 0
  %v4611 = vsel %vm563, %v4544, 0
  %v4613 = vsel %vm563, %v4558, 0
  %v4615 = vsel %vm563, %v4572, 0
  %v4617 = vsel %vm563, %v4586, 0
  %4619 = vmatpush.msra.mxu0 0.0
  %4620 = vmatpush.msra.mxu0 0.0
  %4621 = vmatpush.msra.mxu0 0.0
  %4622 = vmatpush.msra.mxu0 0.0
  %4623 = vmatpush.msra.mxu0 0.0
  %4624 = vmatpush.msra.mxu0 0.0
  %4625 = vmatpush.msra.mxu0 0.0
  %4626 = vmatpush.msra.mxu0 0.0
  %4627 = vmatpush.msra.mxu0 0.0
  %4628 = vmatpush.msra.mxu0 0.0
  %4629 = vmatpush.msra.mxu0 0.0
  %4630 = vmatpush.msra.mxu0 0.0
  %4631 = vmatpush.msra.mxu0 %v34
  %4632 = vmatpush.msra.mxu0 %v33
  %4633 = vmatpush.msra.mxu0 %v32
  %4634 = vmatpush.msra.mxu0 %v31
  %4635 = vmatmul.f32.gmra.mxu0 %v4587
  %v4636 = vpop.f32.mrf.mxu0
  %v4637 = vadd.f32 0.0, %v4636
  %4638 = vmatmul.f32.gmra.mxu0 %v4589
  %v4639 = vpop.f32.mrf.mxu0
  %v4640 = vadd.f32 0.0, %v4639
  %4641 = vmatmul.f32.gmra.mxu0 %v4591
  %v4642 = vpop.f32.mrf.mxu0
  %v4643 = vadd.f32 0.0, %v4642
  %4644 = vmatmul.f32.gmra.mxu0 %v4593
  %v4645 = vpop.f32.mrf.mxu0
  %v4646 = vadd.f32 0.0, %v4645
  %4647 = vmatmul.f32.gmra.mxu0 %v4595
  %v4648 = vpop.f32.mrf.mxu0
  %v4649 = vadd.f32 0.0, %v4648
  %4650 = vmatmul.f32.gmra.mxu0 %v4597
  %v4651 = vpop.f32.mrf.mxu0
  %v4652 = vadd.f32 0.0, %v4651
  %4653 = vmatmul.f32.gmra.mxu0 %v4599
  %v4654 = vpop.f32.mrf.mxu0
  %v4655 = vadd.f32 0.0, %v4654
  %4656 = vmatmul.f32.gmra.mxu0 %v4601
  %v4657 = vpop.f32.mrf.mxu0
  %v4658 = vadd.f32 0.0, %v4657
  %4659 = vmatmul.f32.gmra.mxu0 %v4603
  %v4660 = vpop.f32.mrf.mxu0
  %v4661 = vadd.f32 0.0, %v4660
  %4662 = vmatmul.f32.gmra.mxu0 %v4605
  %v4663 = vpop.f32.mrf.mxu0
  %v4664 = vadd.f32 0.0, %v4663
  %4665 = vmatmul.f32.gmra.mxu0 %v4607
  %v4666 = vpop.f32.mrf.mxu0
  %v4667 = vadd.f32 0.0, %v4666
  %4668 = vmatmul.f32.gmra.mxu0 %v4609
  %v4669 = vpop.f32.mrf.mxu0
  %v4670 = vadd.f32 0.0, %v4669
  %4671 = vmatmul.f32.gmra.mxu0 %v4611
  %v4672 = vpop.f32.mrf.mxu0
  %v4673 = vadd.f32 0.0, %v4672
  %4674 = vmatmul.f32.gmra.mxu0 %v4613
  %v4675 = vpop.f32.mrf.mxu0
  %v4676 = vadd.f32 0.0, %v4675
  %4677 = vmatmul.f32.gmra.mxu0 %v4615
  %v4678 = vpop.f32.mrf.mxu0
  %v4679 = vadd.f32 0.0, %v4678
  %4680 = vmatmul.f32.gmra.mxu0 %v4617
  %v4681 = vpop.f32.mrf.mxu0
  %v4682 = vadd.f32 0.0, %v4681
  %4683 = vdwg.mxu0
  %4684 = vxpose.xlu0.b32.start [1/16] %v4637, 128
  %4685 = vxpose.xlu0.b32.cont [2/16] %v4640, 128
  %4686 = vxpose.xlu0.b32.cont [3/16] %v4643, 128
  %4687 = vxpose.xlu0.b32.cont [4/16] %v4646, 128
  %4688 = vxpose.xlu0.b32.cont [5/16] %v4649, 128
  %4689 = vxpose.xlu0.b32.cont [6/16] %v4652, 128
  %4690 = vxpose.xlu0.b32.cont [7/16] %v4655, 128
  %4691 = vxpose.xlu0.b32.cont [8/16] %v4658, 128
  %4692 = vxpose.xlu0.b32.cont [9/16] %v4661, 128
  %4693 = vxpose.xlu0.b32.cont [10/16] %v4664, 128
  %4694 = vxpose.xlu0.b32.cont [11/16] %v4667, 128
  %4695 = vxpose.xlu0.b32.cont [12/16] %v4670, 128
  %4696 = vxpose.xlu0.b32.cont [13/16] %v4673, 128
  %4697 = vxpose.xlu0.b32.cont [14/16] %v4676, 128
  %4698 = vxpose.xlu0.b32.cont [15/16] %v4679, 128
  %4699 = vxpose.xlu0.b32.end [16/16] %v4682, 128
  %v4700 = vpop.trf.xlu0
  %v4701 = vpop.trf.xlu0
  %v4702 = vpop.trf.xlu0
  %v4703 = vpop.trf.xlu0
  %v4704 = vpop.trf.xlu0
  %v4705 = vpop.trf.xlu0
  %v4706 = vpop.trf.xlu0
  %v4707 = vpop.trf.xlu0
  %v4708 = vpop.trf.xlu0
  %v4709 = vpop.trf.xlu0
  %v4710 = vpop.trf.xlu0
  %v4711 = vpop.trf.xlu0
  %v4712 = vpop.trf.xlu0
  %v4713 = vpop.trf.xlu0
  %v4714 = vpop.trf.xlu0
  %v4715 = vpop.trf.xlu0
  %v4716 = vadd.f32 %v4700, %v696
  %v4717 = vperm.slane %v71, 5
  %vm4718 = vcmp.eq.s32.totalorder %v74, %v4717
  %v4719 = vsel %vm4718, 1, 0
  %v4720 = vcvt.s32.f32 %v4719
  %v4722 = vsel %vm1578, %v3944, 0
  %4724 = vmatpush.msra.mxu0 0.0
  %4725 = vmatpush.msra.mxu0 0.0
  %4726 = vmatpush.msra.mxu0 0.0
  %4727 = vmatpush.msra.mxu0 0.0
  %4728 = vmatpush.msra.mxu0 0.0
  %4729 = vmatpush.msra.mxu0 0.0
  %4730 = vmatpush.msra.mxu0 0.0
  %4731 = vmatpush.msra.mxu0 0.0
  %4732 = vmatpush.msra.mxu0 0.0
  %4733 = vmatpush.msra.mxu0 0.0
  %4734 = vmatpush.msra.mxu0 0.0
  %4735 = vmatpush.msra.mxu0 0.0
  %4736 = vmatpush.msra.mxu0 0.0
  %4737 = vmatpush.msra.mxu0 0.0
  %4738 = vmatpush.msra.mxu0 0.0
  %4739 = vmatpush.msra.mxu0 %v4722
  %4740 = vmatmul.f32.gmra.mxu0 %v1576
  %v4741 = vpop.f32.mrf.mxu0
  %v4742 = vadd.f32 %v4716, %v4741
  %4743 = vdwg.mxu0
  %v4744 = vmul.f32 %v4720, %v4742
  %v4745 = vsel %vm1578, %v4744, 0.0
  %v4746 = vrot.slane %v4745, 4
  %v4747 = vadd.f32 %v4745, %v4746
  %v4748 = vrot.slane %v4747, 2
  %v4749 = vadd.f32 %v4747, %v4748
  %v4750 = vrot.slane %v4749, 1
  %v4751 = vadd.f32 %v4749, %v4750
  %v4752 = vmul.f32 %v4751, %v1565
  %4754 = vst [vmem:[#allocation1] sm:$0xff] %v4752
  %s4755 = scalar_lea.vmem [#allocation1], 5
  %v4756 = vld [vmem:[%s4755] ss:$9 sm:$0xff]
  %v4758 = vadd.f32 %v3982, %v4756
  %v4760 = vrot.slane %v4042, 1
  %v4761 = vrot.slane %v4042, 2
  %v4762 = vrot.slane %v4042, 3
  %v4763 = vrot.slane %v4042, 4
  %v4764 = vperm.slane %v4042, 0
  %v4765 = vperm.slane %v4760, 0
  %v4766 = vperm.slane %v4761, 0
  %v4767 = vperm.slane %v4762, 0
  %v4768 = vperm.slane %v4763, 0
  %v4774 = vadd.f32 %v4764, %v1628
  %v4775 = vadd.f32 %v4765, %v1635
  %v4776 = vadd.f32 %v4766, %v1642
  %v4777 = vadd.f32 %v4767, %v1649
  %v4778 = vadd.f32 %v4768, %v1656
  %v4779 = vsel %vm1578, %v4774, -inf
  %v4780 = vsel %vm1578, %v4775, -inf
  %v4781 = vsel %vm1578, %v4776, -inf
  %v4782 = vsel %vm1578, %v4777, -inf
  %v4783 = vsel %vm1578, %v4778, -inf
  %v4784 = vmax.f32 %v4779, %v4783
  %v4785 = vmax.f32 %v4784, %v4780
  %v4786 = vmax.f32 %v4781, %v4782
  %v4787 = vmax.f32 %v4785, %v4786
  %v4788 = vsub.f32 %v4774, %v4787
  %v4789 = vsub.f32 %v4775, %v4787
  %v4790 = vsub.f32 %v4776, %v4787
  %v4791 = vsub.f32 %v4777, %v4787
  %v4792 = vsub.f32 %v4778, %v4787
  %v4793 = vmul.f32 %v4788, 1.442695
  %v4794 = vpow.pop %v4793
  %v4795 = vmul.f32 %v4789, 1.442695
  %v4796 = vpow.pop %v4795
  %v4797 = vmul.f32 %v4790, 1.442695
  %v4798 = vpow.pop %v4797
  %v4799 = vmul.f32 %v4791, 1.442695
  %v4800 = vpow.pop %v4799
  %v4801 = vmul.f32 %v4792, 1.442695
  %v4802 = vpow.pop %v4801
  %v4803 = vsel %vm1578, %v4794, 0.0
  %v4804 = vsel %vm1578, %v4796, 0.0
  %v4805 = vadd.f32 %v4803, %v4804
  %v4806 = vsel %vm1578, %v4798, 0.0
  %v4807 = vadd.f32 %v4805, %v4806
  %v4808 = vsel %vm1578, %v4800, 0.0
  %v4809 = vadd.f32 %v4807, %v4808
  %v4810 = vsel %vm1578, %v4802, 0.0
  %v4811 = vadd.f32 %v4809, %v4810
  %v4812 = vlog2.pop %v4811
  %v4813 = vmul.f32 %v4812, 0.6931472
  %v4814 = vadd.f32 %v4787, %v4813
  %v4815 = vadd.f32 %v4814, %v4716
  %v4816 = vperm.slane %v1710, 5
  %vm4817 = vcmp.eq.s32.totalorder %v4816, 1
  %v4818 = vsel %vm4817, %v4815, %v4042
  %v4820 = vrot.slane %v4099, 1
  %v4821 = vrot.slane %v4099, 2
  %v4822 = vrot.slane %v4099, 3
  %v4823 = vrot.slane %v4099, 4
  %v4824 = vperm.slane %v4099, 0
  %v4825 = vperm.slane %v4820, 0
  %v4826 = vperm.slane %v4821, 0
  %v4827 = vperm.slane %v4822, 0
  %v4828 = vperm.slane %v4823, 0
  %v4834 = vadd.f32 %v4824, %v1628
  %v4835 = vadd.f32 %v4825, %v1635
  %v4836 = vadd.f32 %v4826, %v1642
  %v4837 = vadd.f32 %v4827, %v1649
  %v4838 = vadd.f32 %v4828, %v1656
  %v4839 = vsel %vm1578, %v4834, -inf
  %v4840 = vsel %vm1578, %v4835, -inf
  %v4841 = vsel %vm1578, %v4836, -inf
  %v4842 = vsel %vm1578, %v4837, -inf
  %v4843 = vsel %vm1578, %v4838, -inf
  %v4844 = vmax.f32 %v4839, %v4843
  %v4845 = vmax.f32 %v4844, %v4840
  %v4846 = vmax.f32 %v4841, %v4842
  %v4847 = vmax.f32 %v4845, %v4846
  %vm4848 = vcmp.eq.f32.partialorder %v4834, %v4847
  %vm4849 = vcmp.eq.f32.partialorder %v4835, %v4847
  %vm4850 = vcmp.eq.f32.partialorder %v4836, %v4847
  %vm4851 = vcmp.eq.f32.partialorder %v4837, %v4847
  %vm4852 = vcmp.eq.f32.partialorder %v4838, %v4847
  %v4853 = vsel %vm4848, 0, 5
  %v4854 = vsel %vm4849, 1, 5
  %v4855 = vsel %vm4850, 2, 5
  %v4856 = vsel %vm4851, 3, 5
  %v4857 = vsel %vm4852, 4, 5
  %v4858 = vsel %vm1578, %v4853, 2147483647
  %v4859 = vsel %vm1578, %v4854, 2147483647
  %v4860 = vsel %vm1578, %v4855, 2147483647
  %v4861 = vsel %vm1578, %v4856, 2147483647
  %v4862 = vsel %vm1578, %v4857, 2147483647
  %vm4863 = vcmp.lt.s32.totalorder %v4858, %v4862
  %v4864 = vsel %vm4863, %v4858, %v4862
  %vm4865 = vcmp.lt.s32.totalorder %v4864, %v4859
  %v4866 = vsel %vm4865, %v4864, %v4859
  %vm4867 = vcmp.lt.s32.totalorder %v4860, %v4861
  %v4868 = vsel %vm4867, %v4860, %v4861
  %vm4869 = vcmp.lt.s32.totalorder %v4866, %v4868
  %v4870 = vsel %vm4869, %v4866, %v4868
  %s4871 = smul.u32 %s4106, 8
  %s4872 = scalar_lea.vmem [#allocation8], %s4871
  %4873 = vst [vmem:[%s4872] sm:$0x1f] %v4870
  %v4874 = vadd.f32 %v4847, %v4716
  %v4875 = vsel %vm4817, %v4874, %v4099
  %v4876 = vrot.slane %v4101, 7
  %v4877 = vsel %vm1771, %v71, %v4876
  %4878 = vst [vmem:[#allocation1] sm:$0xff] %v72
  %s4879 = scalar_lea.vmem [#allocation1], 5
  %v4880 = vld [vmem:[%s4879] ss:$9 sm:$0xff]
  %v4881 = vadd.s32 %v4105, %v4880
  %s4882 = sadd.s32 %s75, 6
  %v4883 = vld [vmem:[%s0 + $0x6] sm:$0x1]
  %v4884 = vld [vmem:[%s0 + $0xe] sm:$0x1]
  %v4885 = vld [vmem:[%s0 + $0x16] sm:$0x1]
  %v4886 = vld [vmem:[%s0 + $0x1e] sm:$0x1]
  %v4887 = vld [vmem:[%s0 + $0x26] sm:$0x1]
  %v4888 = vld [vmem:[%s0 + $0x2e] sm:$0x1]
  %v4889 = vld [vmem:[%s0 + $0x36] sm:$0x1]
  %v4890 = vld [vmem:[%s0 + $0x3e] sm:$0x1]
  %v4891 = vld [vmem:[%s0 + $0x46] sm:$0x1]
  %v4892 = vld [vmem:[%s0 + $0x4e] sm:$0x1]
  %v4893 = vld [vmem:[%s0 + $0x56] sm:$0x1]
  %v4894 = vld [vmem:[%s0 + $0x5e] sm:$0x1]
  %v4895 = vld [vmem:[%s0 + $0x66] sm:$0x1]
  %v4896 = vld [vmem:[%s0 + $0x6e] sm:$0x1]
  %v4897 = vld [vmem:[%s0 + $0x76] sm:$0x1]
  %v4898 = vld [vmem:[%s0 + $0x7e] sm:$0x1]
  %v4899 = vld [vmem:[%s0 + $0x86] sm:$0x1]
  %v4900 = vld [vmem:[%s0 + $0x8e] sm:$0x1]
  %v4901 = vld [vmem:[%s0 + $0x96] sm:$0x1]
  %v4902 = vld [vmem:[%s0 + $0x9e] sm:$0x1]
  %v4903 = vld [vmem:[%s0 + $0xa6] sm:$0x1]
  %v4904 = vld [vmem:[%s0 + $0xae] sm:$0x1]
  %v4905 = vld [vmem:[%s0 + $0xb6] sm:$0x1]
  %v4906 = vld [vmem:[%s0 + $0xbe] sm:$0x1]
  %v4907 = vld [vmem:[%s0 + $0xc6] sm:$0x1]
  %v4908 = vld [vmem:[%s0 + $0xce] sm:$0x1]
  %v4909 = vld [vmem:[%s0 + $0xd6] sm:$0x1]
  %v4910 = vld [vmem:[%s0 + $0xde] sm:$0x1]
  %v4911 = vld [vmem:[%s0 + $0xe6] sm:$0x1]
  %v4912 = vld [vmem:[%s0 + $0xee] sm:$0x1]
  %v4913 = vld [vmem:[%s0 + $0xf6] sm:$0x1]
  %v4914 = vld [vmem:[%s0 + $0xfe] sm:$0x1]
  %v4915 = vld [vmem:[%s0 + $0x106] sm:$0x1]
  %v4916 = vld [vmem:[%s0 + $0x10e] sm:$0x1]
  %v4917 = vld [vmem:[%s0 + $0x116] sm:$0x1]
  %v4918 = vld [vmem:[%s0 + $0x11e] sm:$0x1]
  %v4919 = vld [vmem:[%s0 + $0x126] sm:$0x1]
  %v4920 = vld [vmem:[%s0 + $0x12e] sm:$0x1]
  %v4921 = vld [vmem:[%s0 + $0x136] sm:$0x1]
  %v4922 = vld [vmem:[%s0 + $0x13e] sm:$0x1]
  %v4923 = vld [vmem:[%s0 + $0x146] sm:$0x1]
  %v4924 = vld [vmem:[%s0 + $0x14e] sm:$0x1]
  %v4925 = vld [vmem:[%s0 + $0x156] sm:$0x1]
  %v4926 = vld [vmem:[%s0 + $0x15e] sm:$0x1]
  %v4927 = vld [vmem:[%s0 + $0x166] sm:$0x1]
  %v4928 = vld [vmem:[%s0 + $0x16e] sm:$0x1]
  %v4929 = vld [vmem:[%s0 + $0x176] sm:$0x1]
  %v4930 = vld [vmem:[%s0 + $0x17e] sm:$0x1]
  %v4931 = vld [vmem:[%s0 + $0x186] sm:$0x1]
  %v4932 = vld [vmem:[%s0 + $0x18e] sm:$0x1]
  %v4933 = vld [vmem:[%s0 + $0x196] sm:$0x1]
  %v4934 = vld [vmem:[%s0 + $0x19e] sm:$0x1]
  %v4935 = vld [vmem:[%s0 + $0x1a6] sm:$0x1]
  %v4936 = vld [vmem:[%s0 + $0x1ae] sm:$0x1]
  %v4937 = vld [vmem:[%s0 + $0x1b6] sm:$0x1]
  %v4938 = vld [vmem:[%s0 + $0x1be] sm:$0x1]
  %v4939 = vld [vmem:[%s0 + $0x1c6] sm:$0x1]
  %v4940 = vld [vmem:[%s0 + $0x1ce] sm:$0x1]
  %v4941 = vld [vmem:[%s0 + $0x1d6] sm:$0x1]
  %v4942 = vld [vmem:[%s0 + $0x1de] sm:$0x1]
  %v4943 = vld [vmem:[%s0 + $0x1e6] sm:$0x1]
  %v4944 = vld [vmem:[%s0 + $0x1ee] sm:$0x1]
  %v4945 = vld [vmem:[%s0 + $0x1f6] sm:$0x1]
  %v4946 = vld [vmem:[%s0 + $0x1fe] sm:$0x1]
  %v4947 = vld [vmem:[%s0 + $0x206] sm:$0x1]
  %v4948 = vld [vmem:[%s0 + $0x20e] sm:$0x1]
  %v4949 = vld [vmem:[%s0 + $0x216] sm:$0x1]
  %v4950 = vld [vmem:[%s0 + $0x21e] sm:$0x1]
  %v4951 = vld [vmem:[%s0 + $0x226] sm:$0x1]
  %v4952 = vld [vmem:[%s0 + $0x22e] sm:$0x1]
  %v4953 = vld [vmem:[%s0 + $0x236] sm:$0x1]
  %v4954 = vld [vmem:[%s0 + $0x23e] sm:$0x1]
  %v4955 = vld [vmem:[%s0 + $0x246] sm:$0x1]
  %v4956 = vld [vmem:[%s0 + $0x24e] sm:$0x1]
  %v4957 = vld [vmem:[%s0 + $0x256] sm:$0x1]
  %v4958 = vld [vmem:[%s0 + $0x25e] sm:$0x1]
  %v4959 = vld [vmem:[%s0 + $0x266] sm:$0x1]
  %v4960 = vld [vmem:[%s0 + $0x26e] sm:$0x1]
  %v4961 = vld [vmem:[%s0 + $0x276] sm:$0x1]
  %v4962 = vld [vmem:[%s0 + $0x27e] sm:$0x1]
  %v4963 = vld [vmem:[%s0 + $0x286] sm:$0x1]
  %v4964 = vld [vmem:[%s0 + $0x28e] sm:$0x1]
  %v4965 = vld [vmem:[%s0 + $0x296] sm:$0x1]
  %v4966 = vld [vmem:[%s0 + $0x29e] sm:$0x1]
  %v4967 = vld [vmem:[%s0 + $0x2a6] sm:$0x1]
  %v4968 = vld [vmem:[%s0 + $0x2ae] sm:$0x1]
  %v4969 = vld [vmem:[%s0 + $0x2b6] sm:$0x1]
  %v4970 = vld [vmem:[%s0 + $0x2be] sm:$0x1]
  %v4971 = vld [vmem:[%s0 + $0x2c6] sm:$0x1]
  %v4972 = vld [vmem:[%s0 + $0x2ce] sm:$0x1]
  %v4973 = vld [vmem:[%s0 + $0x2d6] sm:$0x1]
  %v4974 = vld [vmem:[%s0 + $0x2de] sm:$0x1]
  %v4975 = vld [vmem:[%s0 + $0x2e6] sm:$0x1]
  %v4976 = vld [vmem:[%s0 + $0x2ee] sm:$0x1]
  %v4977 = vld [vmem:[%s0 + $0x2f6] sm:$0x1]
  %v4978 = vld [vmem:[%s0 + $0x2fe] sm:$0x1]
  %v4979 = vld [vmem:[%s0 + $0x306] sm:$0x1]
  %v4980 = vld [vmem:[%s0 + $0x30e] sm:$0x1]
  %v4981 = vld [vmem:[%s0 + $0x316] sm:$0x1]
  %v4982 = vld [vmem:[%s0 + $0x31e] sm:$0x1]
  %v4983 = vld [vmem:[%s0 + $0x326] sm:$0x1]
  %v4984 = vld [vmem:[%s0 + $0x32e] sm:$0x1]
  %v4985 = vld [vmem:[%s0 + $0x336] sm:$0x1]
  %v4986 = vld [vmem:[%s0 + $0x33e] sm:$0x1]
  %v4987 = vld [vmem:[%s0 + $0x346] sm:$0x1]
  %v4988 = vld [vmem:[%s0 + $0x34e] sm:$0x1]
  %v4989 = vld [vmem:[%s0 + $0x356] sm:$0x1]
  %v4990 = vld [vmem:[%s0 + $0x35e] sm:$0x1]
  %v4991 = vld [vmem:[%s0 + $0x366] sm:$0x1]
  %v4992 = vld [vmem:[%s0 + $0x36e] sm:$0x1]
  %v4993 = vld [vmem:[%s0 + $0x376] sm:$0x1]
  %v4994 = vld [vmem:[%s0 + $0x37e] sm:$0x1]
  %v4995 = vld [vmem:[%s0 + $0x386] sm:$0x1]
  %v4996 = vld [vmem:[%s0 + $0x38e] sm:$0x1]
  %v4997 = vld [vmem:[%s0 + $0x396] sm:$0x1]
  %v4998 = vld [vmem:[%s0 + $0x39e] sm:$0x1]
  %v4999 = vld [vmem:[%s0 + $0x3a6] sm:$0x1]
  %v5000 = vld [vmem:[%s0 + $0x3ae] sm:$0x1]
  %v5001 = vld [vmem:[%s0 + $0x3b6] sm:$0x1]
  %v5002 = vld [vmem:[%s0 + $0x3be] sm:$0x1]
  %v5003 = vld [vmem:[%s0 + $0x3c6] sm:$0x1]
  %v5004 = vld [vmem:[%s0 + $0x3ce] sm:$0x1]
  %v5005 = vld [vmem:[%s0 + $0x3d6] sm:$0x1]
  %v5006 = vld [vmem:[%s0 + $0x3de] sm:$0x1]
  %v5007 = vld [vmem:[%s0 + $0x3e6] sm:$0x1]
  %v5008 = vld [vmem:[%s0 + $0x3ee] sm:$0x1]
  %v5009 = vld [vmem:[%s0 + $0x3f6] sm:$0x1]
  %v5010 = vld [vmem:[%s0 + $0x3fe] sm:$0x1]
  %v5139 = vrot.slane %v4884, 7
  %v5140 = vsel %vm333, %v5139, %v4883
  %v5141 = vrot.slane %v4885, 6
  %v5142 = vsel %vm336, %v5141, %v5140
  %v5143 = vrot.slane %v4886, 5
  %v5144 = vsel %vm339, %v5143, %v5142
  %v5145 = vrot.slane %v4887, 4
  %v5146 = vsel %vm342, %v5145, %v5144
  %v5147 = vrot.slane %v4888, 3
  %v5148 = vsel %vm345, %v5147, %v5146
  %v5149 = vrot.slane %v4889, 2
  %v5150 = vsel %vm348, %v5149, %v5148
  %v5151 = vrot.slane %v4890, 1
  %v5152 = vsel %vm351, %v5151, %v5150
  %v5153 = vrot.slane %v4892, 7
  %v5154 = vsel %vm333, %v5153, %v4891
  %v5155 = vrot.slane %v4893, 6
  %v5156 = vsel %vm336, %v5155, %v5154
  %v5157 = vrot.slane %v4894, 5
  %v5158 = vsel %vm339, %v5157, %v5156
  %v5159 = vrot.slane %v4895, 4
  %v5160 = vsel %vm342, %v5159, %v5158
  %v5161 = vrot.slane %v4896, 3
  %v5162 = vsel %vm345, %v5161, %v5160
  %v5163 = vrot.slane %v4897, 2
  %v5164 = vsel %vm348, %v5163, %v5162
  %v5165 = vrot.slane %v4898, 1
  %v5166 = vsel %vm351, %v5165, %v5164
  %v5167 = vrot.slane %v4900, 7
  %v5168 = vsel %vm333, %v5167, %v4899
  %v5169 = vrot.slane %v4901, 6
  %v5170 = vsel %vm336, %v5169, %v5168
  %v5171 = vrot.slane %v4902, 5
  %v5172 = vsel %vm339, %v5171, %v5170
  %v5173 = vrot.slane %v4903, 4
  %v5174 = vsel %vm342, %v5173, %v5172
  %v5175 = vrot.slane %v4904, 3
  %v5176 = vsel %vm345, %v5175, %v5174
  %v5177 = vrot.slane %v4905, 2
  %v5178 = vsel %vm348, %v5177, %v5176
  %v5179 = vrot.slane %v4906, 1
  %v5180 = vsel %vm351, %v5179, %v5178
  %v5181 = vrot.slane %v4908, 7
  %v5182 = vsel %vm333, %v5181, %v4907
  %v5183 = vrot.slane %v4909, 6
  %v5184 = vsel %vm336, %v5183, %v5182
  %v5185 = vrot.slane %v4910, 5
  %v5186 = vsel %vm339, %v5185, %v5184
  %v5187 = vrot.slane %v4911, 4
  %v5188 = vsel %vm342, %v5187, %v5186
  %v5189 = vrot.slane %v4912, 3
  %v5190 = vsel %vm345, %v5189, %v5188
  %v5191 = vrot.slane %v4913, 2
  %v5192 = vsel %vm348, %v5191, %v5190
  %v5193 = vrot.slane %v4914, 1
  %v5194 = vsel %vm351, %v5193, %v5192
  %v5195 = vrot.slane %v4916, 7
  %v5196 = vsel %vm333, %v5195, %v4915
  %v5197 = vrot.slane %v4917, 6
  %v5198 = vsel %vm336, %v5197, %v5196
  %v5199 = vrot.slane %v4918, 5
  %v5200 = vsel %vm339, %v5199, %v5198
  %v5201 = vrot.slane %v4919, 4
  %v5202 = vsel %vm342, %v5201, %v5200
  %v5203 = vrot.slane %v4920, 3
  %v5204 = vsel %vm345, %v5203, %v5202
  %v5205 = vrot.slane %v4921, 2
  %v5206 = vsel %vm348, %v5205, %v5204
  %v5207 = vrot.slane %v4922, 1
  %v5208 = vsel %vm351, %v5207, %v5206
  %v5209 = vrot.slane %v4924, 7
  %v5210 = vsel %vm333, %v5209, %v4923
  %v5211 = vrot.slane %v4925, 6
  %v5212 = vsel %vm336, %v5211, %v5210
  %v5213 = vrot.slane %v4926, 5
  %v5214 = vsel %vm339, %v5213, %v5212
  %v5215 = vrot.slane %v4927, 4
  %v5216 = vsel %vm342, %v5215, %v5214
  %v5217 = vrot.slane %v4928, 3
  %v5218 = vsel %vm345, %v5217, %v5216
  %v5219 = vrot.slane %v4929, 2
  %v5220 = vsel %vm348, %v5219, %v5218
  %v5221 = vrot.slane %v4930, 1
  %v5222 = vsel %vm351, %v5221, %v5220
  %v5223 = vrot.slane %v4932, 7
  %v5224 = vsel %vm333, %v5223, %v4931
  %v5225 = vrot.slane %v4933, 6
  %v5226 = vsel %vm336, %v5225, %v5224
  %v5227 = vrot.slane %v4934, 5
  %v5228 = vsel %vm339, %v5227, %v5226
  %v5229 = vrot.slane %v4935, 4
  %v5230 = vsel %vm342, %v5229, %v5228
  %v5231 = vrot.slane %v4936, 3
  %v5232 = vsel %vm345, %v5231, %v5230
  %v5233 = vrot.slane %v4937, 2
  %v5234 = vsel %vm348, %v5233, %v5232
  %v5235 = vrot.slane %v4938, 1
  %v5236 = vsel %vm351, %v5235, %v5234
  %v5237 = vrot.slane %v4940, 7
  %v5238 = vsel %vm333, %v5237, %v4939
  %v5239 = vrot.slane %v4941, 6
  %v5240 = vsel %vm336, %v5239, %v5238
  %v5241 = vrot.slane %v4942, 5
  %v5242 = vsel %vm339, %v5241, %v5240
  %v5243 = vrot.slane %v4943, 4
  %v5244 = vsel %vm342, %v5243, %v5242
  %v5245 = vrot.slane %v4944, 3
  %v5246 = vsel %vm345, %v5245, %v5244
  %v5247 = vrot.slane %v4945, 2
  %v5248 = vsel %vm348, %v5247, %v5246
  %v5249 = vrot.slane %v4946, 1
  %v5250 = vsel %vm351, %v5249, %v5248
  %v5251 = vrot.slane %v4948, 7
  %v5252 = vsel %vm333, %v5251, %v4947
  %v5253 = vrot.slane %v4949, 6
  %v5254 = vsel %vm336, %v5253, %v5252
  %v5255 = vrot.slane %v4950, 5
  %v5256 = vsel %vm339, %v5255, %v5254
  %v5257 = vrot.slane %v4951, 4
  %v5258 = vsel %vm342, %v5257, %v5256
  %v5259 = vrot.slane %v4952, 3
  %v5260 = vsel %vm345, %v5259, %v5258
  %v5261 = vrot.slane %v4953, 2
  %v5262 = vsel %vm348, %v5261, %v5260
  %v5263 = vrot.slane %v4954, 1
  %v5264 = vsel %vm351, %v5263, %v5262
  %v5265 = vrot.slane %v4956, 7
  %v5266 = vsel %vm333, %v5265, %v4955
  %v5267 = vrot.slane %v4957, 6
  %v5268 = vsel %vm336, %v5267, %v5266
  %v5269 = vrot.slane %v4958, 5
  %v5270 = vsel %vm339, %v5269, %v5268
  %v5271 = vrot.slane %v4959, 4
  %v5272 = vsel %vm342, %v5271, %v5270
  %v5273 = vrot.slane %v4960, 3
  %v5274 = vsel %vm345, %v5273, %v5272
  %v5275 = vrot.slane %v4961, 2
  %v5276 = vsel %vm348, %v5275, %v5274
  %v5277 = vrot.slane %v4962, 1
  %v5278 = vsel %vm351, %v5277, %v5276
  %v5279 = vrot.slane %v4964, 7
  %v5280 = vsel %vm333, %v5279, %v4963
  %v5281 = vrot.slane %v4965, 6
  %v5282 = vsel %vm336, %v5281, %v5280
  %v5283 = vrot.slane %v4966, 5
  %v5284 = vsel %vm339, %v5283, %v5282
  %v5285 = vrot.slane %v4967, 4
  %v5286 = vsel %vm342, %v5285, %v5284
  %v5287 = vrot.slane %v4968, 3
  %v5288 = vsel %vm345, %v5287, %v5286
  %v5289 = vrot.slane %v4969, 2
  %v5290 = vsel %vm348, %v5289, %v5288
  %v5291 = vrot.slane %v4970, 1
  %v5292 = vsel %vm351, %v5291, %v5290
  %v5293 = vrot.slane %v4972, 7
  %v5294 = vsel %vm333, %v5293, %v4971
  %v5295 = vrot.slane %v4973, 6
  %v5296 = vsel %vm336, %v5295, %v5294
  %v5297 = vrot.slane %v4974, 5
  %v5298 = vsel %vm339, %v5297, %v5296
  %v5299 = vrot.slane %v4975, 4
  %v5300 = vsel %vm342, %v5299, %v5298
  %v5301 = vrot.slane %v4976, 3
  %v5302 = vsel %vm345, %v5301, %v5300
  %v5303 = vrot.slane %v4977, 2
  %v5304 = vsel %vm348, %v5303, %v5302
  %v5305 = vrot.slane %v4978, 1
  %v5306 = vsel %vm351, %v5305, %v5304
  %v5307 = vrot.slane %v4980, 7
  %v5308 = vsel %vm333, %v5307, %v4979
  %v5309 = vrot.slane %v4981, 6
  %v5310 = vsel %vm336, %v5309, %v5308
  %v5311 = vrot.slane %v4982, 5
  %v5312 = vsel %vm339, %v5311, %v5310
  %v5313 = vrot.slane %v4983, 4
  %v5314 = vsel %vm342, %v5313, %v5312
  %v5315 = vrot.slane %v4984, 3
  %v5316 = vsel %vm345, %v5315, %v5314
  %v5317 = vrot.slane %v4985, 2
  %v5318 = vsel %vm348, %v5317, %v5316
  %v5319 = vrot.slane %v4986, 1
  %v5320 = vsel %vm351, %v5319, %v5318
  %v5321 = vrot.slane %v4988, 7
  %v5322 = vsel %vm333, %v5321, %v4987
  %v5323 = vrot.slane %v4989, 6
  %v5324 = vsel %vm336, %v5323, %v5322
  %v5325 = vrot.slane %v4990, 5
  %v5326 = vsel %vm339, %v5325, %v5324
  %v5327 = vrot.slane %v4991, 4
  %v5328 = vsel %vm342, %v5327, %v5326
  %v5329 = vrot.slane %v4992, 3
  %v5330 = vsel %vm345, %v5329, %v5328
  %v5331 = vrot.slane %v4993, 2
  %v5332 = vsel %vm348, %v5331, %v5330
  %v5333 = vrot.slane %v4994, 1
  %v5334 = vsel %vm351, %v5333, %v5332
  %v5335 = vrot.slane %v4996, 7
  %v5336 = vsel %vm333, %v5335, %v4995
  %v5337 = vrot.slane %v4997, 6
  %v5338 = vsel %vm336, %v5337, %v5336
  %v5339 = vrot.slane %v4998, 5
  %v5340 = vsel %vm339, %v5339, %v5338
  %v5341 = vrot.slane %v4999, 4
  %v5342 = vsel %vm342, %v5341, %v5340
  %v5343 = vrot.slane %v5000, 3
  %v5344 = vsel %vm345, %v5343, %v5342
  %v5345 = vrot.slane %v5001, 2
  %v5346 = vsel %vm348, %v5345, %v5344
  %v5347 = vrot.slane %v5002, 1
  %v5348 = vsel %vm351, %v5347, %v5346
  %v5349 = vrot.slane %v5004, 7
  %v5350 = vsel %vm333, %v5349, %v5003
  %v5351 = vrot.slane %v5005, 6
  %v5352 = vsel %vm336, %v5351, %v5350
  %v5353 = vrot.slane %v5006, 5
  %v5354 = vsel %vm339, %v5353, %v5352
  %v5355 = vrot.slane %v5007, 4
  %v5356 = vsel %vm342, %v5355, %v5354
  %v5357 = vrot.slane %v5008, 3
  %v5358 = vsel %vm345, %v5357, %v5356
  %v5359 = vrot.slane %v5009, 2
  %v5360 = vsel %vm348, %v5359, %v5358
  %v5361 = vrot.slane %v5010, 1
  %v5362 = vsel %vm351, %v5361, %v5360
  %v5363 = vsel %vm563, %v5152, 0
  %v5365 = vsel %vm563, %v5166, 0
  %v5367 = vsel %vm563, %v5180, 0
  %v5369 = vsel %vm563, %v5194, 0
  %v5371 = vsel %vm563, %v5208, 0
  %v5373 = vsel %vm563, %v5222, 0
  %v5375 = vsel %vm563, %v5236, 0
  %v5377 = vsel %vm563, %v5250, 0
  %v5379 = vsel %vm563, %v5264, 0
  %v5381 = vsel %vm563, %v5278, 0
  %v5383 = vsel %vm563, %v5292, 0
  %v5385 = vsel %vm563, %v5306, 0
  %v5387 = vsel %vm563, %v5320, 0
  %v5389 = vsel %vm563, %v5334, 0
  %v5391 = vsel %vm563, %v5348, 0
  %v5393 = vsel %vm563, %v5362, 0
  %5395 = vmatpush.msra.mxu0 0.0
  %5396 = vmatpush.msra.mxu0 0.0
  %5397 = vmatpush.msra.mxu0 0.0
  %5398 = vmatpush.msra.mxu0 0.0
  %5399 = vmatpush.msra.mxu0 0.0
  %5400 = vmatpush.msra.mxu0 0.0
  %5401 = vmatpush.msra.mxu0 0.0
  %5402 = vmatpush.msra.mxu0 0.0
  %5403 = vmatpush.msra.mxu0 0.0
  %5404 = vmatpush.msra.mxu0 0.0
  %5405 = vmatpush.msra.mxu0 0.0
  %5406 = vmatpush.msra.mxu0 0.0
  %5407 = vmatpush.msra.mxu0 %v34
  %5408 = vmatpush.msra.mxu0 %v33
  %5409 = vmatpush.msra.mxu0 %v32
  %5410 = vmatpush.msra.mxu0 %v31
  %5411 = vmatmul.f32.gmra.mxu0 %v5363
  %v5412 = vpop.f32.mrf.mxu0
  %v5413 = vadd.f32 0.0, %v5412
  %5414 = vmatmul.f32.gmra.mxu0 %v5365
  %v5415 = vpop.f32.mrf.mxu0
  %v5416 = vadd.f32 0.0, %v5415
  %5417 = vmatmul.f32.gmra.mxu0 %v5367
  %v5418 = vpop.f32.mrf.mxu0
  %v5419 = vadd.f32 0.0, %v5418
  %5420 = vmatmul.f32.gmra.mxu0 %v5369
  %v5421 = vpop.f32.mrf.mxu0
  %v5422 = vadd.f32 0.0, %v5421
  %5423 = vmatmul.f32.gmra.mxu0 %v5371
  %v5424 = vpop.f32.mrf.mxu0
  %v5425 = vadd.f32 0.0, %v5424
  %5426 = vmatmul.f32.gmra.mxu0 %v5373
  %v5427 = vpop.f32.mrf.mxu0
  %v5428 = vadd.f32 0.0, %v5427
  %5429 = vmatmul.f32.gmra.mxu0 %v5375
  %v5430 = vpop.f32.mrf.mxu0
  %v5431 = vadd.f32 0.0, %v5430
  %5432 = vmatmul.f32.gmra.mxu0 %v5377
  %v5433 = vpop.f32.mrf.mxu0
  %v5434 = vadd.f32 0.0, %v5433
  %5435 = vmatmul.f32.gmra.mxu0 %v5379
  %v5436 = vpop.f32.mrf.mxu0
  %v5437 = vadd.f32 0.0, %v5436
  %5438 = vmatmul.f32.gmra.mxu0 %v5381
  %v5439 = vpop.f32.mrf.mxu0
  %v5440 = vadd.f32 0.0, %v5439
  %5441 = vmatmul.f32.gmra.mxu0 %v5383
  %v5442 = vpop.f32.mrf.mxu0
  %v5443 = vadd.f32 0.0, %v5442
  %5444 = vmatmul.f32.gmra.mxu0 %v5385
  %v5445 = vpop.f32.mrf.mxu0
  %v5446 = vadd.f32 0.0, %v5445
  %5447 = vmatmul.f32.gmra.mxu0 %v5387
  %v5448 = vpop.f32.mrf.mxu0
  %v5449 = vadd.f32 0.0, %v5448
  %5450 = vmatmul.f32.gmra.mxu0 %v5389
  %v5451 = vpop.f32.mrf.mxu0
  %v5452 = vadd.f32 0.0, %v5451
  %5453 = vmatmul.f32.gmra.mxu0 %v5391
  %v5454 = vpop.f32.mrf.mxu0
  %v5455 = vadd.f32 0.0, %v5454
  %5456 = vmatmul.f32.gmra.mxu0 %v5393
  %v5457 = vpop.f32.mrf.mxu0
  %v5458 = vadd.f32 0.0, %v5457
  %5459 = vdwg.mxu0
  %5460 = vxpose.xlu0.b32.start [1/16] %v5413, 128
  %5461 = vxpose.xlu0.b32.cont [2/16] %v5416, 128
  %5462 = vxpose.xlu0.b32.cont [3/16] %v5419, 128
  %5463 = vxpose.xlu0.b32.cont [4/16] %v5422, 128
  %5464 = vxpose.xlu0.b32.cont [5/16] %v5425, 128
  %5465 = vxpose.xlu0.b32.cont [6/16] %v5428, 128
  %5466 = vxpose.xlu0.b32.cont [7/16] %v5431, 128
  %5467 = vxpose.xlu0.b32.cont [8/16] %v5434, 128
  %5468 = vxpose.xlu0.b32.cont [9/16] %v5437, 128
  %5469 = vxpose.xlu0.b32.cont [10/16] %v5440, 128
  %5470 = vxpose.xlu0.b32.cont [11/16] %v5443, 128
  %5471 = vxpose.xlu0.b32.cont [12/16] %v5446, 128
  %5472 = vxpose.xlu0.b32.cont [13/16] %v5449, 128
  %5473 = vxpose.xlu0.b32.cont [14/16] %v5452, 128
  %5474 = vxpose.xlu0.b32.cont [15/16] %v5455, 128
  %5475 = vxpose.xlu0.b32.end [16/16] %v5458, 128
  %v5476 = vpop.trf.xlu0
  %v5477 = vpop.trf.xlu0
  %v5478 = vpop.trf.xlu0
  %v5479 = vpop.trf.xlu0
  %v5480 = vpop.trf.xlu0
  %v5481 = vpop.trf.xlu0
  %v5482 = vpop.trf.xlu0
  %v5483 = vpop.trf.xlu0
  %v5484 = vpop.trf.xlu0
  %v5485 = vpop.trf.xlu0
  %v5486 = vpop.trf.xlu0
  %v5487 = vpop.trf.xlu0
  %v5488 = vpop.trf.xlu0
  %v5489 = vpop.trf.xlu0
  %v5490 = vpop.trf.xlu0
  %v5491 = vpop.trf.xlu0
  %v5492 = vadd.f32 %v5476, %v696
  %v5493 = vperm.slane %v71, 6
  %vm5494 = vcmp.eq.s32.totalorder %v74, %v5493
  %v5495 = vsel %vm5494, 1, 0
  %v5496 = vcvt.s32.f32 %v5495
  %v5498 = vsel %vm1578, %v4720, 0
  %5500 = vmatpush.msra.mxu0 0.0
  %5501 = vmatpush.msra.mxu0 0.0
  %5502 = vmatpush.msra.mxu0 0.0
  %5503 = vmatpush.msra.mxu0 0.0
  %5504 = vmatpush.msra.mxu0 0.0
  %5505 = vmatpush.msra.mxu0 0.0
  %5506 = vmatpush.msra.mxu0 0.0
  %5507 = vmatpush.msra.mxu0 0.0
  %5508 = vmatpush.msra.mxu0 0.0
  %5509 = vmatpush.msra.mxu0 0.0
  %5510 = vmatpush.msra.mxu0 0.0
  %5511 = vmatpush.msra.mxu0 0.0
  %5512 = vmatpush.msra.mxu0 0.0
  %5513 = vmatpush.msra.mxu0 0.0
  %5514 = vmatpush.msra.mxu0 0.0
  %5515 = vmatpush.msra.mxu0 %v5498
  %5516 = vmatmul.f32.gmra.mxu0 %v1576
  %v5517 = vpop.f32.mrf.mxu0
  %v5518 = vadd.f32 %v5492, %v5517
  %5519 = vdwg.mxu0
  %v5520 = vmul.f32 %v5496, %v5518
  %v5521 = vsel %vm1578, %v5520, 0.0
  %v5522 = vrot.slane %v5521, 4
  %v5523 = vadd.f32 %v5521, %v5522
  %v5524 = vrot.slane %v5523, 2
  %v5525 = vadd.f32 %v5523, %v5524
  %v5526 = vrot.slane %v5525, 1
  %v5527 = vadd.f32 %v5525, %v5526
  %v5528 = vmul.f32 %v5527, %v1565
  %5530 = vst [vmem:[#allocation1] sm:$0xff] %v5528
  %s5531 = scalar_lea.vmem [#allocation1], 6
  %v5532 = vld [vmem:[%s5531] ss:$9 sm:$0xff]
  %v5534 = vadd.f32 %v4758, %v5532
  %v5536 = vrot.slane %v4818, 1
  %v5537 = vrot.slane %v4818, 2
  %v5538 = vrot.slane %v4818, 3
  %v5539 = vrot.slane %v4818, 4
  %v5540 = vperm.slane %v4818, 0
  %v5541 = vperm.slane %v5536, 0
  %v5542 = vperm.slane %v5537, 0
  %v5543 = vperm.slane %v5538, 0
  %v5544 = vperm.slane %v5539, 0
  %v5550 = vadd.f32 %v5540, %v1628
  %v5551 = vadd.f32 %v5541, %v1635
  %v5552 = vadd.f32 %v5542, %v1642
  %v5553 = vadd.f32 %v5543, %v1649
  %v5554 = vadd.f32 %v5544, %v1656
  %v5555 = vsel %vm1578, %v5550, -inf
  %v5556 = vsel %vm1578, %v5551, -inf
  %v5557 = vsel %vm1578, %v5552, -inf
  %v5558 = vsel %vm1578, %v5553, -inf
  %v5559 = vsel %vm1578, %v5554, -inf
  %v5560 = vmax.f32 %v5555, %v5559
  %v5561 = vmax.f32 %v5560, %v5556
  %v5562 = vmax.f32 %v5557, %v5558
  %v5563 = vmax.f32 %v5561, %v5562
  %v5564 = vsub.f32 %v5550, %v5563
  %v5565 = vsub.f32 %v5551, %v5563
  %v5566 = vsub.f32 %v5552, %v5563
  %v5567 = vsub.f32 %v5553, %v5563
  %v5568 = vsub.f32 %v5554, %v5563
  %v5569 = vmul.f32 %v5564, 1.442695
  %v5570 = vpow.pop %v5569
  %v5571 = vmul.f32 %v5565, 1.442695
  %v5572 = vpow.pop %v5571
  %v5573 = vmul.f32 %v5566, 1.442695
  %v5574 = vpow.pop %v5573
  %v5575 = vmul.f32 %v5567, 1.442695
  %v5576 = vpow.pop %v5575
  %v5577 = vmul.f32 %v5568, 1.442695
  %v5578 = vpow.pop %v5577
  %v5579 = vsel %vm1578, %v5570, 0.0
  %v5580 = vsel %vm1578, %v5572, 0.0
  %v5581 = vadd.f32 %v5579, %v5580
  %v5582 = vsel %vm1578, %v5574, 0.0
  %v5583 = vadd.f32 %v5581, %v5582
  %v5584 = vsel %vm1578, %v5576, 0.0
  %v5585 = vadd.f32 %v5583, %v5584
  %v5586 = vsel %vm1578, %v5578, 0.0
  %v5587 = vadd.f32 %v5585, %v5586
  %v5588 = vlog2.pop %v5587
  %v5589 = vmul.f32 %v5588, 0.6931472
  %v5590 = vadd.f32 %v5563, %v5589
  %v5591 = vadd.f32 %v5590, %v5492
  %v5592 = vperm.slane %v1710, 6
  %vm5593 = vcmp.eq.s32.totalorder %v5592, 1
  %v5594 = vsel %vm5593, %v5591, %v4818
  %v5596 = vrot.slane %v4875, 1
  %v5597 = vrot.slane %v4875, 2
  %v5598 = vrot.slane %v4875, 3
  %v5599 = vrot.slane %v4875, 4
  %v5600 = vperm.slane %v4875, 0
  %v5601 = vperm.slane %v5596, 0
  %v5602 = vperm.slane %v5597, 0
  %v5603 = vperm.slane %v5598, 0
  %v5604 = vperm.slane %v5599, 0
  %v5610 = vadd.f32 %v5600, %v1628
  %v5611 = vadd.f32 %v5601, %v1635
  %v5612 = vadd.f32 %v5602, %v1642
  %v5613 = vadd.f32 %v5603, %v1649
  %v5614 = vadd.f32 %v5604, %v1656
  %v5615 = vsel %vm1578, %v5610, -inf
  %v5616 = vsel %vm1578, %v5611, -inf
  %v5617 = vsel %vm1578, %v5612, -inf
  %v5618 = vsel %vm1578, %v5613, -inf
  %v5619 = vsel %vm1578, %v5614, -inf
  %v5620 = vmax.f32 %v5615, %v5619
  %v5621 = vmax.f32 %v5620, %v5616
  %v5622 = vmax.f32 %v5617, %v5618
  %v5623 = vmax.f32 %v5621, %v5622
  %vm5624 = vcmp.eq.f32.partialorder %v5610, %v5623
  %vm5625 = vcmp.eq.f32.partialorder %v5611, %v5623
  %vm5626 = vcmp.eq.f32.partialorder %v5612, %v5623
  %vm5627 = vcmp.eq.f32.partialorder %v5613, %v5623
  %vm5628 = vcmp.eq.f32.partialorder %v5614, %v5623
  %v5629 = vsel %vm5624, 0, 5
  %v5630 = vsel %vm5625, 1, 5
  %v5631 = vsel %vm5626, 2, 5
  %v5632 = vsel %vm5627, 3, 5
  %v5633 = vsel %vm5628, 4, 5
  %v5634 = vsel %vm1578, %v5629, 2147483647
  %v5635 = vsel %vm1578, %v5630, 2147483647
  %v5636 = vsel %vm1578, %v5631, 2147483647
  %v5637 = vsel %vm1578, %v5632, 2147483647
  %v5638 = vsel %vm1578, %v5633, 2147483647
  %vm5639 = vcmp.lt.s32.totalorder %v5634, %v5638
  %v5640 = vsel %vm5639, %v5634, %v5638
  %vm5641 = vcmp.lt.s32.totalorder %v5640, %v5635
  %v5642 = vsel %vm5641, %v5640, %v5635
  %vm5643 = vcmp.lt.s32.totalorder %v5636, %v5637
  %v5644 = vsel %vm5643, %v5636, %v5637
  %vm5645 = vcmp.lt.s32.totalorder %v5642, %v5644
  %v5646 = vsel %vm5645, %v5642, %v5644
  %s5647 = smul.u32 %s4882, 8
  %s5648 = scalar_lea.vmem [#allocation8], %s5647
  %5649 = vst [vmem:[%s5648] sm:$0x1f] %v5646
  %v5650 = vadd.f32 %v5623, %v5492
  %v5651 = vsel %vm5593, %v5650, %v4875
  %v5652 = vrot.slane %v4877, 7
  %v5653 = vsel %vm1771, %v71, %v5652
  %5654 = vst [vmem:[#allocation1] sm:$0xff] %v72
  %s5655 = scalar_lea.vmem [#allocation1], 6
  %v5656 = vld [vmem:[%s5655] ss:$9 sm:$0xff]
  %v5657 = vadd.s32 %v4881, %v5656
  %s5658 = sadd.s32 %s75, 7
  %v5659 = vld [vmem:[%s0 + $0x7] sm:$0x1]
  %v5660 = vld [vmem:[%s0 + $0xf] sm:$0x1]
  %v5661 = vld [vmem:[%s0 + $0x17] sm:$0x1]
  %v5662 = vld [vmem:[%s0 + $0x1f] sm:$0x1]
  %v5663 = vld [vmem:[%s0 + $0x27] sm:$0x1]
  %v5664 = vld [vmem:[%s0 + $0x2f] sm:$0x1]
  %v5665 = vld [vmem:[%s0 + $0x37] sm:$0x1]
  %v5666 = vld [vmem:[%s0 + $0x3f] sm:$0x1]
  %v5667 = vld [vmem:[%s0 + $0x47] sm:$0x1]
  %v5668 = vld [vmem:[%s0 + $0x4f] sm:$0x1]
  %v5669 = vld [vmem:[%s0 + $0x57] sm:$0x1]
  %v5670 = vld [vmem:[%s0 + $0x5f] sm:$0x1]
  %v5671 = vld [vmem:[%s0 + $0x67] sm:$0x1]
  %v5672 = vld [vmem:[%s0 + $0x6f] sm:$0x1]
  %v5673 = vld [vmem:[%s0 + $0x77] sm:$0x1]
  %v5674 = vld [vmem:[%s0 + $0x7f] sm:$0x1]
  %v5675 = vld [vmem:[%s0 + $0x87] sm:$0x1]
  %v5676 = vld [vmem:[%s0 + $0x8f] sm:$0x1]
  %v5677 = vld [vmem:[%s0 + $0x97] sm:$0x1]
  %v5678 = vld [vmem:[%s0 + $0x9f] sm:$0x1]
  %v5679 = vld [vmem:[%s0 + $0xa7] sm:$0x1]
  %v5680 = vld [vmem:[%s0 + $0xaf] sm:$0x1]
  %v5681 = vld [vmem:[%s0 + $0xb7] sm:$0x1]
  %v5682 = vld [vmem:[%s0 + $0xbf] sm:$0x1]
  %v5683 = vld [vmem:[%s0 + $0xc7] sm:$0x1]
  %v5684 = vld [vmem:[%s0 + $0xcf] sm:$0x1]
  %v5685 = vld [vmem:[%s0 + $0xd7] sm:$0x1]
  %v5686 = vld [vmem:[%s0 + $0xdf] sm:$0x1]
  %v5687 = vld [vmem:[%s0 + $0xe7] sm:$0x1]
  %v5688 = vld [vmem:[%s0 + $0xef] sm:$0x1]
  %v5689 = vld [vmem:[%s0 + $0xf7] sm:$0x1]
  %v5690 = vld [vmem:[%s0 + $0xff] sm:$0x1]
  %v5691 = vld [vmem:[%s0 + $0x107] sm:$0x1]
  %v5692 = vld [vmem:[%s0 + $0x10f] sm:$0x1]
  %v5693 = vld [vmem:[%s0 + $0x117] sm:$0x1]
  %v5694 = vld [vmem:[%s0 + $0x11f] sm:$0x1]
  %v5695 = vld [vmem:[%s0 + $0x127] sm:$0x1]
  %v5696 = vld [vmem:[%s0 + $0x12f] sm:$0x1]
  %v5697 = vld [vmem:[%s0 + $0x137] sm:$0x1]
  %v5698 = vld [vmem:[%s0 + $0x13f] sm:$0x1]
  %v5699 = vld [vmem:[%s0 + $0x147] sm:$0x1]
  %v5700 = vld [vmem:[%s0 + $0x14f] sm:$0x1]
  %v5701 = vld [vmem:[%s0 + $0x157] sm:$0x1]
  %v5702 = vld [vmem:[%s0 + $0x15f] sm:$0x1]
  %v5703 = vld [vmem:[%s0 + $0x167] sm:$0x1]
  %v5704 = vld [vmem:[%s0 + $0x16f] sm:$0x1]
  %v5705 = vld [vmem:[%s0 + $0x177] sm:$0x1]
  %v5706 = vld [vmem:[%s0 + $0x17f] sm:$0x1]
  %v5707 = vld [vmem:[%s0 + $0x187] sm:$0x1]
  %v5708 = vld [vmem:[%s0 + $0x18f] sm:$0x1]
  %v5709 = vld [vmem:[%s0 + $0x197] sm:$0x1]
  %v5710 = vld [vmem:[%s0 + $0x19f] sm:$0x1]
  %v5711 = vld [vmem:[%s0 + $0x1a7] sm:$0x1]
  %v5712 = vld [vmem:[%s0 + $0x1af] sm:$0x1]
  %v5713 = vld [vmem:[%s0 + $0x1b7] sm:$0x1]
  %v5714 = vld [vmem:[%s0 + $0x1bf] sm:$0x1]
  %v5715 = vld [vmem:[%s0 + $0x1c7] sm:$0x1]
  %v5716 = vld [vmem:[%s0 + $0x1cf] sm:$0x1]
  %v5717 = vld [vmem:[%s0 + $0x1d7] sm:$0x1]
  %v5718 = vld [vmem:[%s0 + $0x1df] sm:$0x1]
  %v5719 = vld [vmem:[%s0 + $0x1e7] sm:$0x1]
  %v5720 = vld [vmem:[%s0 + $0x1ef] sm:$0x1]
  %v5721 = vld [vmem:[%s0 + $0x1f7] sm:$0x1]
  %v5722 = vld [vmem:[%s0 + $0x1ff] sm:$0x1]
  %v5723 = vld [vmem:[%s0 + $0x207] sm:$0x1]
  %v5724 = vld [vmem:[%s0 + $0x20f] sm:$0x1]
  %v5725 = vld [vmem:[%s0 + $0x217] sm:$0x1]
  %v5726 = vld [vmem:[%s0 + $0x21f] sm:$0x1]
  %v5727 = vld [vmem:[%s0 + $0x227] sm:$0x1]
  %v5728 = vld [vmem:[%s0 + $0x22f] sm:$0x1]
  %v5729 = vld [vmem:[%s0 + $0x237] sm:$0x1]
  %v5730 = vld [vmem:[%s0 + $0x23f] sm:$0x1]
  %v5731 = vld [vmem:[%s0 + $0x247] sm:$0x1]
  %v5732 = vld [vmem:[%s0 + $0x24f] sm:$0x1]
  %v5733 = vld [vmem:[%s0 + $0x257] sm:$0x1]
  %v5734 = vld [vmem:[%s0 + $0x25f] sm:$0x1]
  %v5735 = vld [vmem:[%s0 + $0x267] sm:$0x1]
  %v5736 = vld [vmem:[%s0 + $0x26f] sm:$0x1]
  %v5737 = vld [vmem:[%s0 + $0x277] sm:$0x1]
  %v5738 = vld [vmem:[%s0 + $0x27f] sm:$0x1]
  %v5739 = vld [vmem:[%s0 + $0x287] sm:$0x1]
  %v5740 = vld [vmem:[%s0 + $0x28f] sm:$0x1]
  %v5741 = vld [vmem:[%s0 + $0x297] sm:$0x1]
  %v5742 = vld [vmem:[%s0 + $0x29f] sm:$0x1]
  %v5743 = vld [vmem:[%s0 + $0x2a7] sm:$0x1]
  %v5744 = vld [vmem:[%s0 + $0x2af] sm:$0x1]
  %v5745 = vld [vmem:[%s0 + $0x2b7] sm:$0x1]
  %v5746 = vld [vmem:[%s0 + $0x2bf] sm:$0x1]
  %v5747 = vld [vmem:[%s0 + $0x2c7] sm:$0x1]
  %v5748 = vld [vmem:[%s0 + $0x2cf] sm:$0x1]
  %v5749 = vld [vmem:[%s0 + $0x2d7] sm:$0x1]
  %v5750 = vld [vmem:[%s0 + $0x2df] sm:$0x1]
  %v5751 = vld [vmem:[%s0 + $0x2e7] sm:$0x1]
  %v5752 = vld [vmem:[%s0 + $0x2ef] sm:$0x1]
  %v5753 = vld [vmem:[%s0 + $0x2f7] sm:$0x1]
  %v5754 = vld [vmem:[%s0 + $0x2ff] sm:$0x1]
  %v5755 = vld [vmem:[%s0 + $0x307] sm:$0x1]
  %v5756 = vld [vmem:[%s0 + $0x30f] sm:$0x1]
  %v5757 = vld [vmem:[%s0 + $0x317] sm:$0x1]
  %v5758 = vld [vmem:[%s0 + $0x31f] sm:$0x1]
  %v5759 = vld [vmem:[%s0 + $0x327] sm:$0x1]
  %v5760 = vld [vmem:[%s0 + $0x32f] sm:$0x1]
  %v5761 = vld [vmem:[%s0 + $0x337] sm:$0x1]
  %v5762 = vld [vmem:[%s0 + $0x33f] sm:$0x1]
  %v5763 = vld [vmem:[%s0 + $0x347] sm:$0x1]
  %v5764 = vld [vmem:[%s0 + $0x34f] sm:$0x1]
  %v5765 = vld [vmem:[%s0 + $0x357] sm:$0x1]
  %v5766 = vld [vmem:[%s0 + $0x35f] sm:$0x1]
  %v5767 = vld [vmem:[%s0 + $0x367] sm:$0x1]
  %v5768 = vld [vmem:[%s0 + $0x36f] sm:$0x1]
  %v5769 = vld [vmem:[%s0 + $0x377] sm:$0x1]
  %v5770 = vld [vmem:[%s0 + $0x37f] sm:$0x1]
  %v5771 = vld [vmem:[%s0 + $0x387] sm:$0x1]
  %v5772 = vld [vmem:[%s0 + $0x38f] sm:$0x1]
  %v5773 = vld [vmem:[%s0 + $0x397] sm:$0x1]
  %v5774 = vld [vmem:[%s0 + $0x39f] sm:$0x1]
  %v5775 = vld [vmem:[%s0 + $0x3a7] sm:$0x1]
  %v5776 = vld [vmem:[%s0 + $0x3af] sm:$0x1]
  %v5777 = vld [vmem:[%s0 + $0x3b7] sm:$0x1]
  %v5778 = vld [vmem:[%s0 + $0x3bf] sm:$0x1]
  %v5779 = vld [vmem:[%s0 + $0x3c7] sm:$0x1]
  %v5780 = vld [vmem:[%s0 + $0x3cf] sm:$0x1]
  %v5781 = vld [vmem:[%s0 + $0x3d7] sm:$0x1]
  %v5782 = vld [vmem:[%s0 + $0x3df] sm:$0x1]
  %v5783 = vld [vmem:[%s0 + $0x3e7] sm:$0x1]
  %v5784 = vld [vmem:[%s0 + $0x3ef] sm:$0x1]
  %v5785 = vld [vmem:[%s0 + $0x3f7] sm:$0x1]
  %v5786 = vld [vmem:[%s0 + $0x3ff] sm:$0x1]
  %v5915 = vrot.slane %v5660, 7
  %v5916 = vsel %vm333, %v5915, %v5659
  %v5917 = vrot.slane %v5661, 6
  %v5918 = vsel %vm336, %v5917, %v5916
  %v5919 = vrot.slane %v5662, 5
  %v5920 = vsel %vm339, %v5919, %v5918
  %v5921 = vrot.slane %v5663, 4
  %v5922 = vsel %vm342, %v5921, %v5920
  %v5923 = vrot.slane %v5664, 3
  %v5924 = vsel %vm345, %v5923, %v5922
  %v5925 = vrot.slane %v5665, 2
  %v5926 = vsel %vm348, %v5925, %v5924
  %v5927 = vrot.slane %v5666, 1
  %v5928 = vsel %vm351, %v5927, %v5926
  %v5929 = vrot.slane %v5668, 7
  %v5930 = vsel %vm333, %v5929, %v5667
  %v5931 = vrot.slane %v5669, 6
  %v5932 = vsel %vm336, %v5931, %v5930
  %v5933 = vrot.slane %v5670, 5
  %v5934 = vsel %vm339, %v5933, %v5932
  %v5935 = vrot.slane %v5671, 4
  %v5936 = vsel %vm342, %v5935, %v5934
  %v5937 = vrot.slane %v5672, 3
  %v5938 = vsel %vm345, %v5937, %v5936
  %v5939 = vrot.slane %v5673, 2
  %v5940 = vsel %vm348, %v5939, %v5938
  %v5941 = vrot.slane %v5674, 1
  %v5942 = vsel %vm351, %v5941, %v5940
  %v5943 = vrot.slane %v5676, 7
  %v5944 = vsel %vm333, %v5943, %v5675
  %v5945 = vrot.slane %v5677, 6
  %v5946 = vsel %vm336, %v5945, %v5944
  %v5947 = vrot.slane %v5678, 5
  %v5948 = vsel %vm339, %v5947, %v5946
  %v5949 = vrot.slane %v5679, 4
  %v5950 = vsel %vm342, %v5949, %v5948
  %v5951 = vrot.slane %v5680, 3
  %v5952 = vsel %vm345, %v5951, %v5950
  %v5953 = vrot.slane %v5681, 2
  %v5954 = vsel %vm348, %v5953, %v5952
  %v5955 = vrot.slane %v5682, 1
  %v5956 = vsel %vm351, %v5955, %v5954
  %v5957 = vrot.slane %v5684, 7
  %v5958 = vsel %vm333, %v5957, %v5683
  %v5959 = vrot.slane %v5685, 6
  %v5960 = vsel %vm336, %v5959, %v5958
  %v5961 = vrot.slane %v5686, 5
  %v5962 = vsel %vm339, %v5961, %v5960
  %v5963 = vrot.slane %v5687, 4
  %v5964 = vsel %vm342, %v5963, %v5962
  %v5965 = vrot.slane %v5688, 3
  %v5966 = vsel %vm345, %v5965, %v5964
  %v5967 = vrot.slane %v5689, 2
  %v5968 = vsel %vm348, %v5967, %v5966
  %v5969 = vrot.slane %v5690, 1
  %v5970 = vsel %vm351, %v5969, %v5968
  %v5971 = vrot.slane %v5692, 7
  %v5972 = vsel %vm333, %v5971, %v5691
  %v5973 = vrot.slane %v5693, 6
  %v5974 = vsel %vm336, %v5973, %v5972
  %v5975 = vrot.slane %v5694, 5
  %v5976 = vsel %vm339, %v5975, %v5974
  %v5977 = vrot.slane %v5695, 4
  %v5978 = vsel %vm342, %v5977, %v5976
  %v5979 = vrot.slane %v5696, 3
  %v5980 = vsel %vm345, %v5979, %v5978
  %v5981 = vrot.slane %v5697, 2
  %v5982 = vsel %vm348, %v5981, %v5980
  %v5983 = vrot.slane %v5698, 1
  %v5984 = vsel %vm351, %v5983, %v5982
  %v5985 = vrot.slane %v5700, 7
  %v5986 = vsel %vm333, %v5985, %v5699
  %v5987 = vrot.slane %v5701, 6
  %v5988 = vsel %vm336, %v5987, %v5986
  %v5989 = vrot.slane %v5702, 5
  %v5990 = vsel %vm339, %v5989, %v5988
  %v5991 = vrot.slane %v5703, 4
  %v5992 = vsel %vm342, %v5991, %v5990
  %v5993 = vrot.slane %v5704, 3
  %v5994 = vsel %vm345, %v5993, %v5992
  %v5995 = vrot.slane %v5705, 2
  %v5996 = vsel %vm348, %v5995, %v5994
  %v5997 = vrot.slane %v5706, 1
  %v5998 = vsel %vm351, %v5997, %v5996
  %v5999 = vrot.slane %v5708, 7
  %v6000 = vsel %vm333, %v5999, %v5707
  %v6001 = vrot.slane %v5709, 6
  %v6002 = vsel %vm336, %v6001, %v6000
  %v6003 = vrot.slane %v5710, 5
  %v6004 = vsel %vm339, %v6003, %v6002
  %v6005 = vrot.slane %v5711, 4
  %v6006 = vsel %vm342, %v6005, %v6004
  %v6007 = vrot.slane %v5712, 3
  %v6008 = vsel %vm345, %v6007, %v6006
  %v6009 = vrot.slane %v5713, 2
  %v6010 = vsel %vm348, %v6009, %v6008
  %v6011 = vrot.slane %v5714, 1
  %v6012 = vsel %vm351, %v6011, %v6010
  %v6013 = vrot.slane %v5716, 7
  %v6014 = vsel %vm333, %v6013, %v5715
  %v6015 = vrot.slane %v5717, 6
  %v6016 = vsel %vm336, %v6015, %v6014
  %v6017 = vrot.slane %v5718, 5
  %v6018 = vsel %vm339, %v6017, %v6016
  %v6019 = vrot.slane %v5719, 4
  %v6020 = vsel %vm342, %v6019, %v6018
  %v6021 = vrot.slane %v5720, 3
  %v6022 = vsel %vm345, %v6021, %v6020
  %v6023 = vrot.slane %v5721, 2
  %v6024 = vsel %vm348, %v6023, %v6022
  %v6025 = vrot.slane %v5722, 1
  %v6026 = vsel %vm351, %v6025, %v6024
  %v6027 = vrot.slane %v5724, 7
  %v6028 = vsel %vm333, %v6027, %v5723
  %v6029 = vrot.slane %v5725, 6
  %v6030 = vsel %vm336, %v6029, %v6028
  %v6031 = vrot.slane %v5726, 5
  %v6032 = vsel %vm339, %v6031, %v6030
  %v6033 = vrot.slane %v5727, 4
  %v6034 = vsel %vm342, %v6033, %v6032
  %v6035 = vrot.slane %v5728, 3
  %v6036 = vsel %vm345, %v6035, %v6034
  %v6037 = vrot.slane %v5729, 2
  %v6038 = vsel %vm348, %v6037, %v6036
  %v6039 = vrot.slane %v5730, 1
  %v6040 = vsel %vm351, %v6039, %v6038
  %v6041 = vrot.slane %v5732, 7
  %v6042 = vsel %vm333, %v6041, %v5731
  %v6043 = vrot.slane %v5733, 6
  %v6044 = vsel %vm336, %v6043, %v6042
  %v6045 = vrot.slane %v5734, 5
  %v6046 = vsel %vm339, %v6045, %v6044
  %v6047 = vrot.slane %v5735, 4
  %v6048 = vsel %vm342, %v6047, %v6046
  %v6049 = vrot.slane %v5736, 3
  %v6050 = vsel %vm345, %v6049, %v6048
  %v6051 = vrot.slane %v5737, 2
  %v6052 = vsel %vm348, %v6051, %v6050
  %v6053 = vrot.slane %v5738, 1
  %v6054 = vsel %vm351, %v6053, %v6052
  %v6055 = vrot.slane %v5740, 7
  %v6056 = vsel %vm333, %v6055, %v5739
  %v6057 = vrot.slane %v5741, 6
  %v6058 = vsel %vm336, %v6057, %v6056
  %v6059 = vrot.slane %v5742, 5
  %v6060 = vsel %vm339, %v6059, %v6058
  %v6061 = vrot.slane %v5743, 4
  %v6062 = vsel %vm342, %v6061, %v6060
  %v6063 = vrot.slane %v5744, 3
  %v6064 = vsel %vm345, %v6063, %v6062
  %v6065 = vrot.slane %v5745, 2
  %v6066 = vsel %vm348, %v6065, %v6064
  %v6067 = vrot.slane %v5746, 1
  %v6068 = vsel %vm351, %v6067, %v6066
  %v6069 = vrot.slane %v5748, 7
  %v6070 = vsel %vm333, %v6069, %v5747
  %v6071 = vrot.slane %v5749, 6
  %v6072 = vsel %vm336, %v6071, %v6070
  %v6073 = vrot.slane %v5750, 5
  %v6074 = vsel %vm339, %v6073, %v6072
  %v6075 = vrot.slane %v5751, 4
  %v6076 = vsel %vm342, %v6075, %v6074
  %v6077 = vrot.slane %v5752, 3
  %v6078 = vsel %vm345, %v6077, %v6076
  %v6079 = vrot.slane %v5753, 2
  %v6080 = vsel %vm348, %v6079, %v6078
  %v6081 = vrot.slane %v5754, 1
  %v6082 = vsel %vm351, %v6081, %v6080
  %v6083 = vrot.slane %v5756, 7
  %v6084 = vsel %vm333, %v6083, %v5755
  %v6085 = vrot.slane %v5757, 6
  %v6086 = vsel %vm336, %v6085, %v6084
  %v6087 = vrot.slane %v5758, 5
  %v6088 = vsel %vm339, %v6087, %v6086
  %v6089 = vrot.slane %v5759, 4
  %v6090 = vsel %vm342, %v6089, %v6088
  %v6091 = vrot.slane %v5760, 3
  %v6092 = vsel %vm345, %v6091, %v6090
  %v6093 = vrot.slane %v5761, 2
  %v6094 = vsel %vm348, %v6093, %v6092
  %v6095 = vrot.slane %v5762, 1
  %v6096 = vsel %vm351, %v6095, %v6094
  %v6097 = vrot.slane %v5764, 7
  %v6098 = vsel %vm333, %v6097, %v5763
  %v6099 = vrot.slane %v5765, 6
  %v6100 = vsel %vm336, %v6099, %v6098
  %v6101 = vrot.slane %v5766, 5
  %v6102 = vsel %vm339, %v6101, %v6100
  %v6103 = vrot.slane %v5767, 4
  %v6104 = vsel %vm342, %v6103, %v6102
  %v6105 = vrot.slane %v5768, 3
  %v6106 = vsel %vm345, %v6105, %v6104
  %v6107 = vrot.slane %v5769, 2
  %v6108 = vsel %vm348, %v6107, %v6106
  %v6109 = vrot.slane %v5770, 1
  %v6110 = vsel %vm351, %v6109, %v6108
  %v6111 = vrot.slane %v5772, 7
  %v6112 = vsel %vm333, %v6111, %v5771
  %v6113 = vrot.slane %v5773, 6
  %v6114 = vsel %vm336, %v6113, %v6112
  %v6115 = vrot.slane %v5774, 5
  %v6116 = vsel %vm339, %v6115, %v6114
  %v6117 = vrot.slane %v5775, 4
  %v6118 = vsel %vm342, %v6117, %v6116
  %v6119 = vrot.slane %v5776, 3
  %v6120 = vsel %vm345, %v6119, %v6118
  %v6121 = vrot.slane %v5777, 2
  %v6122 = vsel %vm348, %v6121, %v6120
  %v6123 = vrot.slane %v5778, 1
  %v6124 = vsel %vm351, %v6123, %v6122
  %v6125 = vrot.slane %v5780, 7
  %v6126 = vsel %vm333, %v6125, %v5779
  %v6127 = vrot.slane %v5781, 6
  %v6128 = vsel %vm336, %v6127, %v6126
  %v6129 = vrot.slane %v5782, 5
  %v6130 = vsel %vm339, %v6129, %v6128
  %v6131 = vrot.slane %v5783, 4
  %v6132 = vsel %vm342, %v6131, %v6130
  %v6133 = vrot.slane %v5784, 3
  %v6134 = vsel %vm345, %v6133, %v6132
  %v6135 = vrot.slane %v5785, 2
  %v6136 = vsel %vm348, %v6135, %v6134
  %v6137 = vrot.slane %v5786, 1
  %v6138 = vsel %vm351, %v6137, %v6136
  %v6139 = vsel %vm563, %v5928, 0
  %v6141 = vsel %vm563, %v5942, 0
  %v6143 = vsel %vm563, %v5956, 0
  %v6145 = vsel %vm563, %v5970, 0
  %v6147 = vsel %vm563, %v5984, 0
  %v6149 = vsel %vm563, %v5998, 0
  %v6151 = vsel %vm563, %v6012, 0
  %v6153 = vsel %vm563, %v6026, 0
  %v6155 = vsel %vm563, %v6040, 0
  %v6157 = vsel %vm563, %v6054, 0
  %v6159 = vsel %vm563, %v6068, 0
  %v6161 = vsel %vm563, %v6082, 0
  %v6163 = vsel %vm563, %v6096, 0
  %v6165 = vsel %vm563, %v6110, 0
  %v6167 = vsel %vm563, %v6124, 0
  %v6169 = vsel %vm563, %v6138, 0
  %6171 = vmatpush.msra.mxu0 0.0
  %6172 = vmatpush.msra.mxu0 0.0
  %6173 = vmatpush.msra.mxu0 0.0
  %6174 = vmatpush.msra.mxu0 0.0
  %6175 = vmatpush.msra.mxu0 0.0
  %6176 = vmatpush.msra.mxu0 0.0
  %6177 = vmatpush.msra.mxu0 0.0
  %6178 = vmatpush.msra.mxu0 0.0
  %6179 = vmatpush.msra.mxu0 0.0
  %6180 = vmatpush.msra.mxu0 0.0
  %6181 = vmatpush.msra.mxu0 0.0
  %6182 = vmatpush.msra.mxu0 0.0
  %6183 = vmatpush.msra.mxu0 %v34
  %6184 = vmatpush.msra.mxu0 %v33
  %6185 = vmatpush.msra.mxu0 %v32
  %6186 = vmatpush.msra.mxu0 %v31
  %6187 = vmatmul.f32.gmra.mxu0 %v6139
  %v6188 = vpop.f32.mrf.mxu0
  %v6189 = vadd.f32 0.0, %v6188
  %6190 = vmatmul.f32.gmra.mxu0 %v6141
  %v6191 = vpop.f32.mrf.mxu0
  %v6192 = vadd.f32 0.0, %v6191
  %6193 = vmatmul.f32.gmra.mxu0 %v6143
  %v6194 = vpop.f32.mrf.mxu0
  %v6195 = vadd.f32 0.0, %v6194
  %6196 = vmatmul.f32.gmra.mxu0 %v6145
  %v6197 = vpop.f32.mrf.mxu0
  %v6198 = vadd.f32 0.0, %v6197
  %6199 = vmatmul.f32.gmra.mxu0 %v6147
  %v6200 = vpop.f32.mrf.mxu0
  %v6201 = vadd.f32 0.0, %v6200
  %6202 = vmatmul.f32.gmra.mxu0 %v6149
  %v6203 = vpop.f32.mrf.mxu0
  %v6204 = vadd.f32 0.0, %v6203
  %6205 = vmatmul.f32.gmra.mxu0 %v6151
  %v6206 = vpop.f32.mrf.mxu0
  %v6207 = vadd.f32 0.0, %v6206
  %6208 = vmatmul.f32.gmra.mxu0 %v6153
  %v6209 = vpop.f32.mrf.mxu0
  %v6210 = vadd.f32 0.0, %v6209
  %6211 = vmatmul.f32.gmra.mxu0 %v6155
  %v6212 = vpop.f32.mrf.mxu0
  %v6213 = vadd.f32 0.0, %v6212
  %6214 = vmatmul.f32.gmra.mxu0 %v6157
  %v6215 = vpop.f32.mrf.mxu0
  %v6216 = vadd.f32 0.0, %v6215
  %6217 = vmatmul.f32.gmra.mxu0 %v6159
  %v6218 = vpop.f32.mrf.mxu0
  %v6219 = vadd.f32 0.0, %v6218
  %6220 = vmatmul.f32.gmra.mxu0 %v6161
  %v6221 = vpop.f32.mrf.mxu0
  %v6222 = vadd.f32 0.0, %v6221
  %6223 = vmatmul.f32.gmra.mxu0 %v6163
  %v6224 = vpop.f32.mrf.mxu0
  %v6225 = vadd.f32 0.0, %v6224
  %6226 = vmatmul.f32.gmra.mxu0 %v6165
  %v6227 = vpop.f32.mrf.mxu0
  %v6228 = vadd.f32 0.0, %v6227
  %6229 = vmatmul.f32.gmra.mxu0 %v6167
  %v6230 = vpop.f32.mrf.mxu0
  %v6231 = vadd.f32 0.0, %v6230
  %6232 = vmatmul.f32.gmra.mxu0 %v6169
  %v6233 = vpop.f32.mrf.mxu0
  %v6234 = vadd.f32 0.0, %v6233
  %6235 = vdwg.mxu0
  %6236 = vxpose.xlu0.b32.start [1/16] %v6189, 128
  %6237 = vxpose.xlu0.b32.cont [2/16] %v6192, 128
  %6238 = vxpose.xlu0.b32.cont [3/16] %v6195, 128
  %6239 = vxpose.xlu0.b32.cont [4/16] %v6198, 128
  %6240 = vxpose.xlu0.b32.cont [5/16] %v6201, 128
  %6241 = vxpose.xlu0.b32.cont [6/16] %v6204, 128
  %6242 = vxpose.xlu0.b32.cont [7/16] %v6207, 128
  %6243 = vxpose.xlu0.b32.cont [8/16] %v6210, 128
  %6244 = vxpose.xlu0.b32.cont [9/16] %v6213, 128
  %6245 = vxpose.xlu0.b32.cont [10/16] %v6216, 128
  %6246 = vxpose.xlu0.b32.cont [11/16] %v6219, 128
  %6247 = vxpose.xlu0.b32.cont [12/16] %v6222, 128
  %6248 = vxpose.xlu0.b32.cont [13/16] %v6225, 128
  %6249 = vxpose.xlu0.b32.cont [14/16] %v6228, 128
  %6250 = vxpose.xlu0.b32.cont [15/16] %v6231, 128
  %6251 = vxpose.xlu0.b32.end [16/16] %v6234, 128
  %v6252 = vpop.trf.xlu0
  %v6253 = vpop.trf.xlu0
  %v6254 = vpop.trf.xlu0
  %v6255 = vpop.trf.xlu0
  %v6256 = vpop.trf.xlu0
  %v6257 = vpop.trf.xlu0
  %v6258 = vpop.trf.xlu0
  %v6259 = vpop.trf.xlu0
  %v6260 = vpop.trf.xlu0
  %v6261 = vpop.trf.xlu0
  %v6262 = vpop.trf.xlu0
  %v6263 = vpop.trf.xlu0
  %v6264 = vpop.trf.xlu0
  %v6265 = vpop.trf.xlu0
  %v6266 = vpop.trf.xlu0
  %v6267 = vpop.trf.xlu0
  %v6268 = vadd.f32 %v6252, %v696
  %v6269 = vperm.slane %v71, 7
  %vm6270 = vcmp.eq.s32.totalorder %v74, %v6269
  %v6271 = vsel %vm6270, 1, 0
  %v6272 = vcvt.s32.f32 %v6271
  %v6274 = vsel %vm1578, %v5496, 0
  %6276 = vmatpush.msra.mxu0 0.0
  %6277 = vmatpush.msra.mxu0 0.0
  %6278 = vmatpush.msra.mxu0 0.0
  %6279 = vmatpush.msra.mxu0 0.0
  %6280 = vmatpush.msra.mxu0 0.0
  %6281 = vmatpush.msra.mxu0 0.0
  %6282 = vmatpush.msra.mxu0 0.0
  %6283 = vmatpush.msra.mxu0 0.0
  %6284 = vmatpush.msra.mxu0 0.0
  %6285 = vmatpush.msra.mxu0 0.0
  %6286 = vmatpush.msra.mxu0 0.0
  %6287 = vmatpush.msra.mxu0 0.0
  %6288 = vmatpush.msra.mxu0 0.0
  %6289 = vmatpush.msra.mxu0 0.0
  %6290 = vmatpush.msra.mxu0 0.0
  %6291 = vmatpush.msra.mxu0 %v6274
  %6292 = vmatmul.f32.gmra.mxu0 %v1576
  %v6293 = vpop.f32.mrf.mxu0
  %v6294 = vadd.f32 %v6268, %v6293
  %6295 = vdwg.mxu0
  %v6296 = vmul.f32 %v6272, %v6294
  %v6297 = vsel %vm1578, %v6296, 0.0
  %v6298 = vrot.slane %v6297, 4
  %v6299 = vadd.f32 %v6297, %v6298
  %v6300 = vrot.slane %v6299, 2
  %v6301 = vadd.f32 %v6299, %v6300
  %v6302 = vrot.slane %v6301, 1
  %v6303 = vadd.f32 %v6301, %v6302
  %v6304 = vmul.f32 %v6303, %v1565
  %6306 = vst [vmem:[#allocation1] sm:$0xff] %v6304
  %s6307 = scalar_lea.vmem [#allocation1], 7
  %v6308 = vld [vmem:[%s6307] ss:$9 sm:$0xff]
  %v6310 = vadd.f32 %v5534, %v6308
  %v6312 = vrot.slane %v5594, 1
  %v6313 = vrot.slane %v5594, 2
  %v6314 = vrot.slane %v5594, 3
  %v6315 = vrot.slane %v5594, 4
  %v6316 = vperm.slane %v5594, 0
  %v6317 = vperm.slane %v6312, 0
  %v6318 = vperm.slane %v6313, 0
  %v6319 = vperm.slane %v6314, 0
  %v6320 = vperm.slane %v6315, 0
  %v6326 = vadd.f32 %v6316, %v1628
  %v6327 = vadd.f32 %v6317, %v1635
  %v6328 = vadd.f32 %v6318, %v1642
  %v6329 = vadd.f32 %v6319, %v1649
  %v6330 = vadd.f32 %v6320, %v1656
  %v6331 = vsel %vm1578, %v6326, -inf
  %v6332 = vsel %vm1578, %v6327, -inf
  %v6333 = vsel %vm1578, %v6328, -inf
  %v6334 = vsel %vm1578, %v6329, -inf
  %v6335 = vsel %vm1578, %v6330, -inf
  %v6336 = vmax.f32 %v6331, %v6335
  %v6337 = vmax.f32 %v6336, %v6332
  %v6338 = vmax.f32 %v6333, %v6334
  %v6339 = vmax.f32 %v6337, %v6338
  %v6340 = vsub.f32 %v6326, %v6339
  %v6341 = vsub.f32 %v6327, %v6339
  %v6342 = vsub.f32 %v6328, %v6339
  %v6343 = vsub.f32 %v6329, %v6339
  %v6344 = vsub.f32 %v6330, %v6339
  %v6345 = vmul.f32 %v6340, 1.442695
  %v6346 = vpow.pop %v6345
  %v6347 = vmul.f32 %v6341, 1.442695
  %v6348 = vpow.pop %v6347
  %v6349 = vmul.f32 %v6342, 1.442695
  %v6350 = vpow.pop %v6349
  %v6351 = vmul.f32 %v6343, 1.442695
  %v6352 = vpow.pop %v6351
  %v6353 = vmul.f32 %v6344, 1.442695
  %v6354 = vpow.pop %v6353
  %v6355 = vsel %vm1578, %v6346, 0.0
  %v6356 = vsel %vm1578, %v6348, 0.0
  %v6357 = vadd.f32 %v6355, %v6356
  %v6358 = vsel %vm1578, %v6350, 0.0
  %v6359 = vadd.f32 %v6357, %v6358
  %v6360 = vsel %vm1578, %v6352, 0.0
  %v6361 = vadd.f32 %v6359, %v6360
  %v6362 = vsel %vm1578, %v6354, 0.0
  %v6363 = vadd.f32 %v6361, %v6362
  %v6364 = vlog2.pop %v6363
  %v6365 = vmul.f32 %v6364, 0.6931472
  %v6366 = vadd.f32 %v6339, %v6365
  %v6367 = vadd.f32 %v6366, %v6268
  %v6368 = vperm.slane %v1710, 7
  %vm6369 = vcmp.eq.s32.totalorder %v6368, 1
  %v6370 = vsel %vm6369, %v6367, %v5594
  %v6372 = vrot.slane %v5651, 1
  %v6373 = vrot.slane %v5651, 2
  %v6374 = vrot.slane %v5651, 3
  %v6375 = vrot.slane %v5651, 4
  %v6376 = vperm.slane %v5651, 0
  %v6377 = vperm.slane %v6372, 0
  %v6378 = vperm.slane %v6373, 0
  %v6379 = vperm.slane %v6374, 0
  %v6380 = vperm.slane %v6375, 0
  %v6386 = vadd.f32 %v6376, %v1628
  %v6387 = vadd.f32 %v6377, %v1635
  %v6388 = vadd.f32 %v6378, %v1642
  %v6389 = vadd.f32 %v6379, %v1649
  %v6390 = vadd.f32 %v6380, %v1656
  %v6391 = vsel %vm1578, %v6386, -inf
  %v6392 = vsel %vm1578, %v6387, -inf
  %v6393 = vsel %vm1578, %v6388, -inf
  %v6394 = vsel %vm1578, %v6389, -inf
  %v6395 = vsel %vm1578, %v6390, -inf
  %v6396 = vmax.f32 %v6391, %v6395
  %v6397 = vmax.f32 %v6396, %v6392
  %v6398 = vmax.f32 %v6393, %v6394
  %v6399 = vmax.f32 %v6397, %v6398
  %vm6400 = vcmp.eq.f32.partialorder %v6386, %v6399
  %vm6401 = vcmp.eq.f32.partialorder %v6387, %v6399
  %vm6402 = vcmp.eq.f32.partialorder %v6388, %v6399
  %vm6403 = vcmp.eq.f32.partialorder %v6389, %v6399
  %vm6404 = vcmp.eq.f32.partialorder %v6390, %v6399
  %v6405 = vsel %vm6400, 0, 5
  %v6406 = vsel %vm6401, 1, 5
  %v6407 = vsel %vm6402, 2, 5
  %v6408 = vsel %vm6403, 3, 5
  %v6409 = vsel %vm6404, 4, 5
  %v6410 = vsel %vm1578, %v6405, 2147483647
  %v6411 = vsel %vm1578, %v6406, 2147483647
  %v6412 = vsel %vm1578, %v6407, 2147483647
  %v6413 = vsel %vm1578, %v6408, 2147483647
  %v6414 = vsel %vm1578, %v6409, 2147483647
  %vm6415 = vcmp.lt.s32.totalorder %v6410, %v6414
  %v6416 = vsel %vm6415, %v6410, %v6414
  %vm6417 = vcmp.lt.s32.totalorder %v6416, %v6411
  %v6418 = vsel %vm6417, %v6416, %v6411
  %vm6419 = vcmp.lt.s32.totalorder %v6412, %v6413
  %v6420 = vsel %vm6419, %v6412, %v6413
  %vm6421 = vcmp.lt.s32.totalorder %v6418, %v6420
  %v6422 = vsel %vm6421, %v6418, %v6420
  %s6423 = smul.u32 %s5658, 8
  %s6424 = scalar_lea.vmem [#allocation8], %s6423
  %6425 = vst [vmem:[%s6424] sm:$0x1f] %v6422
  %v6426 = vadd.f32 %v6399, %v6268
  %v6427 = vsel %vm6369, %v6426, %v5651
  %v6428 = vrot.slane %v5653, 7
  %v6429 = vsel %vm1771, %v71, %v6428
  %6430 = vst [vmem:[#allocation1] sm:$0xff] %v72
  %s6431 = scalar_lea.vmem [#allocation1], 7
  %v6432 = vld [vmem:[%s6431] ss:$9 sm:$0xff]
  %v6433 = vadd.s32 %v5657, %v6432
  %6434 = vst [vmem:[#allocation2] sm:$0x1] %v6310
  %6435 = vst [vmem:[#allocation3] sm:$0x1f] %v6370
  %6436 = vst [vmem:[#allocation4] sm:$0x1f] %v6427
  %6437 = vst [vmem:[#allocation5 - $0x7] sm:$0x80] %v71
  %6438 = vst [vmem:[#allocation6 - $0x7] sm:$0x80] %v6429
  %6439 = vst [vmem:[#allocation7] sm:$0x1] %v6433
  // Predicated region
  $region42: #{sequence_label_forward.1} parent=0 // pred_check
    %p6440 = pneg %p699
  $region43: #{sequence_label_forward.1} parent=0 // pred_check_branch
    %6442 = sbr.rel (%p6440) target = $region45
  $region44: #{sequence_label_forward.1} parent=0 // pred_region
    %v6443 = vperm.slane %v6429, 7
    %vm6444 = vcmp.eq.s32.totalorder %v74, %v6443
    %v6445 = vsel %vm6444, 1, 0
    %v6446 = vcvt.s32.f32 %v6445
    %6448 = vset.pattern.permute.xlu0 0
    %6449 = vperm.xlu0 %6448, %v37
    %v6450 = vpop.permute.xlu0 %6449
    %v6452 = vmul.f32 %v6446, %v6450
    %v6453 = vsel %vm1578, %v6452, 0.0
    %v6454 = vrot.slane %v6453, 4
    %v6455 = vadd.f32 %v6453, %v6454
    %v6456 = vrot.slane %v6455, 2
    %v6457 = vadd.f32 %v6455, %v6456
    %v6458 = vrot.slane %v6457, 1
    %v6459 = vadd.f32 %v6457, %v6458
    %v6460 = vadd.f32 %v6310, %v6459
    %v6461 = vadd.f32 %v6370, %v6450
    %v6462 = vsel %vm1578, %v6461, -inf
    %v6463 = vrot.slane %v6462, 4
    %v6464 = vmax.f32 %v6462, %v6463
    %v6465 = vrot.slane %v6464, 2
    %v6466 = vmax.f32 %v6464, %v6465
    %v6467 = vrot.slane %v6466, 1
    %v6468 = vmax.f32 %v6466, %v6467
    %v6469 = vsub.f32 %v6461, %v6468
    %v6470 = vmul.f32 %v6469, 1.442695
    %v6471 = vpow.pop %v6470
    %v6472 = vsel %vm1578, %v6471, 0.0
    %v6473 = vrot.slane %v6472, 4
    %v6474 = vadd.f32 %v6472, %v6473
    %v6475 = vrot.slane %v6474, 2
    %v6476 = vadd.f32 %v6474, %v6475
    %v6477 = vrot.slane %v6476, 1
    %v6478 = vadd.f32 %v6476, %v6477
    %v6479 = vlog2.pop %v6478
    %v6480 = vmul.f32 %v6479, 0.6931472
    %v6481 = vadd.f32 %v6468, %v6480
    %v6482 = vsub.f32 %v6460, %v6481
    %6483 = vst [vmem:[%s9] sm:$0x1] %v6482
    %v6484 = vadd.f32 %v6427, %v6450
    %v6485 = vsel %vm1578, %v6484, -inf
    %v6486 = vrot.slane %v6485, 4
    %v6487 = vmax.f32 %v6485, %v6486
    %v6488 = vrot.slane %v6487, 2
    %v6489 = vmax.f32 %v6487, %v6488
    %v6490 = vrot.slane %v6489, 1
    %v6491 = vmax.f32 %v6489, %v6490
    %vm6492 = vcmp.eq.f32.partialorder %v6484, %v6491
    %v6493 = vsel %vm6492, %v74, 5
    %v6494 = vsel %vm1578, %v6493, 2147483647
    %v6495 = vrot.slane %v6494, 4
    %vm6496 = vcmp.lt.s32.totalorder %v6494, %v6495
    %v6497 = vsel %vm6496, %v6494, %v6495
    %v6498 = vrot.slane %v6497, 2
    %vm6499 = vcmp.lt.s32.totalorder %v6497, %v6498
    %v6500 = vsel %vm6499, %v6497, %v6498
    %v6501 = vrot.slane %v6500, 1
    %vm6502 = vcmp.lt.s32.totalorder %v6500, %v6501
    %v6503 = vsel %vm6502, %v6500, %v6501
    %v6504 = vsub.s32 %v6433, 1
    %vm6505 = vcmp.eq.s32.totalorder %v6504, 7
    %v6506 = vsel %vm6505, %v6503, 0
    %6507 = vst [vmem:[%s8 + $0x7] sm:$0x1] %v6506
    loop: start=0, step=1, limit=7
    $region46: #{sequence_label_forward.1} parent=44 // loop_pre_header
      _
    $region47: #{sequence_label_forward.1} parent=44 // loop_header
      %s6509 = sphi 0, %s6513
      %p6510 = scmp.ge.s32.totalorder %s6509, 7
      %v6514 = vphi %v6506, %v6534
    $region48: #{sequence_label_forward.1} parent=44 // loop_header_branch
      %6512 = sbr.rel (%p6510) target = $region52
    $region49: #{sequence_label_forward.1} parent=44 // loop_body
      %s6515 = ssub.s32 6, %s6509
      %s6516 = ssub.s32 7, %s6509
      %s6517 = smul.u32 %s6516, 8
      %s6518 = scalar_lea.vmem [#allocation8], %s6517
      %v6519 = vld [vmem:[%s6518] sm:$0x1f]
      %v6520 = vperm.slane %v6514, 0
      %vm6521 = vcmp.eq.s32.totalorder %v74, %v6520
      %v6522 = vsel %vm6521, %v6519, 0
      %v6523 = vsel %vm1578, %v6522, 0
      %v6524 = vrot.slane %v6523, 4
      %v6525 = vadd.s32 %v6523, %v6524
      %v6526 = vrot.slane %v6525, 2
      %v6527 = vadd.s32 %v6525, %v6526
      %v6528 = vrot.slane %v6527, 1
      %v6529 = vadd.s32 %v6527, %v6528
      %v6530 = vstv %s6515
      %vm6531 = vcmp.eq.s32.totalorder %v6504, %v6530
      %vm6532 = vcmp.gt.s32.totalorder %v6504, %v6530
      %v6533 = vsel %vm6532, %v6529, 0
      %v6534 = vsel %vm6531, %v6503, %v6533
      %s6535 = scalar_lea.vmem %s8, %s6515
      %6536 = vst [vmem:[%s6535] sm:$0x1] %v6534
    $region50: #{sequence_label_forward.1} parent=44 // loop_footer
      %s6513 = sadd.s32 1, %s6509
    $region51: #{sequence_label_forward.1} parent=44 // loop_footer_branch
      %6508 = sbr.rel target = $region47
    $region52: #{sequence_label_forward.1} parent=44 // loop_exit
      _
    %6537 = vst [vmem:[%s8] sm:$0x1] %v6514
  $region45: #{sequence_label_forward.1} parent=0 // pred_fallthru
    _
  // Predicated region
  $region53: #{sequence_label_forward.1} parent=0 // pred_check
    _
  $region54: #{sequence_label_forward.1} parent=0 // pred_check_branch
    %6539 = sbr.rel (0) target = $region56
  $region55: #{sequence_label_forward.1} parent=0 // pred_region
    _
  $region56: #{sequence_label_forward.1} parent=0 // pred_fallthru
    _
  // Predicated region
  $region57: #{sequence_label_forward.1} parent=0 // pred_check
    _
  $region58: #{sequence_label_forward.1} parent=0 // pred_check_branch
    %6541 = sbr.rel (0) target = $region60
  $region59: #{sequence_label_forward.1} parent=0 // pred_region
    _
  $region60: #{sequence_label_forward.1} parent=0 // pred_fallthru
    _
  // Predicated region
  $region61: #{sequence_label_forward.1} parent=0 // pred_check
    _
  $region62: #{sequence_label_forward.1} parent=0 // pred_check_branch
    %6543 = sbr.rel (0) target = $region64
  $region63: #{sequence_label_forward.1} parent=0 // pred_region
    _
  $region64: #{sequence_label_forward.1} parent=0 // pred_fallthru
    _
  // Predicated region
  $region65: #{sequence_label_forward.1} parent=0 // pred_check
    _
  $region66: #{sequence_label_forward.1} parent=0 // pred_check_branch
    %6545 = sbr.rel (0) target = $region68
  $region67: #{sequence_label_forward.1} parent=0 // pred_region
    _
  $region68: #{sequence_label_forward.1} parent=0 // pred_fallthru
    _

</llo_original>
